<compile_context>
chip_gen: v6e
topology: v6e:2x2x1
jax: 0.10.0
libtpu: 0.0.40
codegen_flags: <defaults>
</compile_context>

<pallas_src>
import functools

import jax
import jax.numpy as jnp
from jax import lax
from jax.experimental import pallas as pl
from jax.experimental.pallas import tpu as pltpu

INPUT_DIM = 4
BIG_DIM = 32
HIDDEN_DIM = 2
K = 3
EPS = 1e-5
BIG = 1e30
LANE = 128
DP = 8               # row-major feature width / feature-major sublane count
OUT_PAD = 8          # last-layer output lanes carried by the kernels

# packed "tail" MLP parameters ([T_ROWS, 128]): layers 2 and 3 of the edge MLP
T_B2 = 0
T_B3 = 1
T_W2 = 8
T_W3 = T_W2 + BIG_DIM
T_ROWS = T_W3 + BIG_DIM          # 72

# VMEM cap: safe on v7x (64 MiB/TC physical); v6e/v5e can raise it (128 MiB).
VMEM_LIMIT_BYTES = 48 * 1024 * 1024


def _edgeconv_kernel(feat_ref, p_ref, br_ref, cand_ref, colsq_ref, bc_ref,
                     qproj_ref, w_ref, out_ref, *, final_relu):
    """One row-tile of DynamicEdgeConv (k=3, mean aggr, same-graph kNN).

    feat_ref  [tm, DP]      query features (row tile, zero-padded columns)
    p_ref     [tm, 32]      x_i @ (w1a - w1b) + b1   (precomputed, row tile)
    br_ref    [tm, 1]       batch id of the query rows
    cand_ref  [DP, N]       candidate features, feature-major (grid-invariant)
    colsq_ref [1, N]        ||x_j||^2 per candidate      (grid-invariant)
    bc_ref    [1, N]        batch id per candidate       (grid-invariant)
    qproj_ref [N, 32]       x_j @ w1b                    (grid-invariant)
    w_ref     [T_ROWS,128]  packed layer-2/3 weights     (grid-invariant)
    out_ref   [tm, OUT_PAD]
    """
    feat_q = feat_ref[...]
    p_inv = p_ref[...]
    same = br_ref[...] == bc_ref[...]                      # [tm, N]
    col_sq = colsq_ref[...]
    qproj = qproj_ref[...]
    w2 = w_ref[T_W2:T_W2 + BIG_DIM, 0:BIG_DIM]
    b2 = w_ref[T_B2:T_B2 + 1, 0:BIG_DIM]
    w3 = w_ref[T_W3:T_W3 + BIG_DIM, 0:OUT_PAD]
    b3 = w_ref[T_B3:T_B3 + 1, 0:OUT_PAD]

    tm = feat_q.shape[0]
    n = col_sq.shape[1]

    # Distance proxy ||x_j||^2 - 2 x_i.x_j (per-row ||x_i||^2 constant does not
    # change the nearest-k ordering).  Canonical [tm,DP] @ [DP,N] matmul.
    gram = jnp.dot(feat_q, cand_ref[...], preferred_element_type=jnp.float32)
    dist = jnp.where(same, col_sq - 2.0 * gram, BIG)
    cols = lax.broadcasted_iota(jnp.int32, (tm, n), 1)

    # TODO(synk): graphs with < K nodes fall back to selecting column 0 once
    # in-graph candidates are exhausted (and still divide by K) — mirrors the
    # pure-JAX reference here, not torch_cluster's true neighbor count.
    acc = jnp.zeros((tm, OUT_PAD), jnp.float32)
    for _ in range(K):
        minval = jnp.min(dist, axis=1, keepdims=True)
        is_min = dist <= minval
        first = jnp.min(jnp.where(is_min, cols, n), axis=1, keepdims=True)
        sel = cols == first                                 # one-hot [tm, N]
        dist = jnp.where(sel, BIG, dist)                    # drop chosen

        # gather-after-projection:  sel @ (x @ w1b)  ->  [tm, 32]
        h = p_inv + jnp.dot(sel.astype(jnp.float32), qproj,
                            preferred_element_type=jnp.float32)
        h = jnp.maximum(h, 0.0)
        h = jnp.maximum(jnp.dot(h, w2, preferred_element_type=jnp.float32) + b2,
                        0.0)
        h = jnp.dot(h, w3, preferred_element_type=jnp.float32) + b3
        if final_relu:
            h = jnp.maximum(h, 0.0)
        acc = acc + h
    out_ref[...] = (acc * (1.0 / K)).astype(out_ref.dtype)  # aggr='mean' over k


def _pad_lanes(a):
    return jnp.pad(a, ((0, 0), (0, LANE - a.shape[1])))


def _pack_tail(w2, b2, w3, b3):
    tail = jnp.concatenate([
        _pad_lanes(b2),
        _pad_lanes(b3),
        jnp.zeros((T_W2 - 2, LANE), jnp.float32),    # align matrices to 8 rows
        _pad_lanes(w2),
        _pad_lanes(w3),
    ], axis=0)
    assert tail.shape == (T_ROWS, LANE)
    return tail


@functools.partial(jax.jit, static_argnames=("tile_m", "single_buffer"))
def _forward(x, batch, params, *, tile_m, single_buffer):
    n = x.shape[0]
    tile_m = max(8, (int(tile_m) // 8) * 8)          # row tile, multiple of 8
    n_pad = pl.cdiv(n, tile_m) * tile_m              # pad N: grid never = (1,)
    pad = n_pad - n
    grid = (n_pad // tile_m,)

    # ---------- grid-invariant precompute (wrapper, tiny fused XLA ops) ------
    # BatchNorm1d, training-mode batch stats (biased var), over REAL rows only.
    mean = jnp.mean(x, axis=0, keepdims=True)
    var = jnp.mean((x - mean) ** 2, axis=0, keepdims=True)
    xn = (x - mean) * lax.rsqrt(var + EPS) * params["gamma"] + params["beta"]

    batch_p = jnp.pad(batch.astype(jnp.int32), (0, pad), constant_values=-1)
    batch_r = batch_p.reshape(n_pad, 1)              # pad rows never match
    batch_c = batch_p.reshape(1, n_pad)

    cparams = pltpu.CompilerParams(
        dimension_semantics=("parallel",),
        vmem_limit_bytes=VMEM_LIMIT_BYTES)

    def inv_spec(shape):
        # Grid-invariant block: fetched once; single-buffer it to halve its
        # resident VMEM (fallback to default double buffering if unsupported).
        if single_buffer:
            return pl.BlockSpec(shape, lambda i: (0, 0),
                                pipeline_mode=pl.Buffered(1))
        return pl.BlockSpec(shape, lambda i: (0, 0))

    def row_spec(cols):
        return pl.BlockSpec((tile_m, cols), lambda i: (i, 0))

    def conv(feat, w1, b1, w2, b2, w3, b3, final_relu):
        d = feat.shape[1]
        w1a, w1b = w1[:d], w1[d:]
        feat_p = jnp.pad(feat, ((0, pad), (0, 0)))                # [n_pad, d]
        feat_rm = jnp.pad(feat_p, ((0, 0), (0, DP - d)))          # [n_pad, DP]
        cand_fm = feat_rm.T                                       # [DP, n_pad]
        col_sq = jnp.sum(feat_p * feat_p, axis=1).reshape(1, n_pad)
        p_row = feat_p @ (w1a - w1b) + b1                         # [n_pad, 32]
        q_proj = feat_p @ w1b                                     # [n_pad, 32]
        tail = _pack_tail(w2, b2, w3, b3)
        return pl.pallas_call(
            functools.partial(_edgeconv_kernel, final_relu=final_relu),
            out_shape=jax.ShapeDtypeStruct((n_pad, OUT_PAD), jnp.float32),
            grid=grid,
            in_specs=[row_spec(DP), row_spec(BIG_DIM), row_spec(1),
                      inv_spec((DP, n_pad)), inv_spec((1, n_pad)),
                      inv_spec((1, n_pad)), inv_spec((n_pad, BIG_DIM)),
                      inv_spec((T_ROWS, LANE))],
            out_specs=row_spec(OUT_PAD),
            compiler_params=cparams,
        )(feat_rm, p_row, batch_r, cand_fm, col_sq, batch_c, q_proj, tail)

    # TODO(synk): for very large N, chunk the candidate axis inside the kernel
    # (running best-k over [tm, N_chunk] blocks) instead of full [tm, N] dist.
    h = conv(xn, params["ew1"], params["eb1"], params["ew2"], params["eb2"],
             params["ew3"], params["eb3"], True)                  # [n_pad, 8]
    h_real = h[:n, :HIDDEN_DIM]
    out = conv(h_real, params["dw1"], params["db1"], params["dw2"],
               params["db2"], params["dw3"], params["db3"], False)
    return out[:n, :INPUT_DIM]


def edgenet_forward(x, batch, params, *, tile_m=128):
    try:
        return jax.block_until_ready(
            _forward(x, batch, params, tile_m=tile_m, single_buffer=True))
    except Exception:
        # pl.Buffered(1) not accepted by this Pallas/Mosaic version — fall back
        # to default double buffering (correctness identical).
        return jax.block_until_ready(
            _forward(x, batch, params, tile_m=tile_m, single_buffer=False))


def reference_forward(x, batch, params):
    """Pure-JAX reference (independent kNN via top_k) for correctness check."""
    mean = x.mean(0, keepdims=True)
    var = ((x - mean) ** 2).mean(0, keepdims=True)
    xn = (x - mean) / jnp.sqrt(var + EPS) * params["gamma"] + params["beta"]
    same = batch[:, None] == batch[None, :]

    def conv(feat, w1, b1, w2, b2, w3, b3, final_relu):
        d = jnp.sum((feat[:, None, :] - feat[None, :, :]) ** 2, axis=-1)
        d = jnp.where(same, d, jnp.inf)
        _, idx = jax.lax.top_k(-d, K)                 # nearest K (self included)
        xi = jnp.broadcast_to(feat[:, None, :], (feat.shape[0], K, feat.shape[1]))
        xj = feat[idx]
        h = jnp.concatenate([xi, xj - xi], axis=-1)
        h = jax.nn.relu(h @ w1 + b1)
        h = jax.nn.relu(h @ w2 + b2)
        h = h @ w3 + b3
        if final_relu:
            h = jax.nn.relu(h)
        return h.mean(axis=1)

    h = conv(xn, params["ew1"], params["eb1"], params["ew2"], params["eb2"],
             params["ew3"], params["eb3"], True)
    return conv(h, params["dw1"], params["db1"], params["dw2"], params["db2"],
                params["dw3"], params["db3"], False)


if __name__ == "__main__":
    n_graphs, n_per = 2, 20
    N = n_graphs * n_per

    key = jax.random.PRNGKey(0)
    kx, kp = jax.random.split(key)
    x = jax.random.normal(kx, (N, INPUT_DIM), jnp.float32)
    batch = jnp.repeat(jnp.arange(n_graphs, dtype=jnp.int32), n_per)

    def lin(k, fan_in, fan_out):
        kw, kb = jax.random.split(k)
        bound = 1.0 / (fan_in ** 0.5)
        w = jax.random.uniform(kw, (fan_in, fan_out), jnp.float32, -bound, bound)
        b = jax.random.uniform(kb, (1, fan_out), jnp.float32, -bound, bound)
        return w, b

    ks = jax.random.split(kp, 6)
    ew1, eb1 = lin(ks[0], 2 * INPUT_DIM, BIG_DIM)
    ew2, eb2 = lin(ks[1], BIG_DIM, BIG_DIM)
    ew3, eb3 = lin(ks[2], BIG_DIM, HIDDEN_DIM)
    dw1, db1 = lin(ks[3], 2 * HIDDEN_DIM, BIG_DIM)
    dw2, db2 = lin(ks[4], BIG_DIM, BIG_DIM)
    dw3, db3 = lin(ks[5], BIG_DIM, INPUT_DIM)

    params = dict(
        gamma=jnp.ones((1, INPUT_DIM), jnp.float32),
        beta=jnp.zeros((1, INPUT_DIM), jnp.float32),
        ew1=ew1, eb1=eb1, ew2=ew2, eb2=eb2, ew3=ew3, eb3=eb3,
        dw1=dw1, db1=db1, dw2=dw2, db2=db2, dw3=dw3, db3=db3,
    )

    # tile_m=16 -> N padded 40 -> 48, grid=(3,) per conv: exercises row tiling,
    # the batch-id=-1 padding path, and the parallel grid.
    out = edgenet_forward(x, batch, params, tile_m=16)
    assert out.shape == (N, INPUT_DIM)

    ref = jax.block_until_ready(reference_forward(x, batch, params))
    err = float(jnp.max(jnp.abs(out - ref)))
    assert jnp.allclose(out, ref, rtol=5e-4, atol=5e-4), f"max abs err {err}"

    print("KERNEL_OK")
</pallas_src>

<mosaic_0001>
module attributes {stable_mosaic.version = 11 : i64} {
  func.func @_edgeconv_kernel(%arg0: i32, %arg1: memref<16x8xf32, #tpu.memory_space<vmem>>, %arg2: memref<16x32xf32, #tpu.memory_space<vmem>>, %arg3: memref<16x1xi32, #tpu.memory_space<vmem>>, %arg4: memref<8x48xf32, #tpu.memory_space<vmem>>, %arg5: memref<1x48xf32, #tpu.memory_space<vmem>>, %arg6: memref<1x48xi32, #tpu.memory_space<vmem>>, %arg7: memref<48x32xf32, #tpu.memory_space<vmem>>, %arg8: memref<72x128xf32, #tpu.memory_space<vmem>>, %arg9: memref<16x8xf32, #tpu.memory_space<vmem>>) attributes {dimension_semantics = [#tpu.dimension_semantics<parallel>], iteration_bounds = array<i64: 3>, scalar_prefetch = 0 : i64, scratch_operands = 0 : i64, tpu.core_type = #tpu.core_type<tc>, window_params = [{transform_indices = @transform_0, window_bounds = array<i64: 16, 8>}, {transform_indices = @transform_1, window_bounds = array<i64: 16, 32>}, {transform_indices = @transform_2, window_bounds = array<i64: 16, 1>}, {pipeline_mode = #tpu.pipeline_mode<synchronous>, transform_indices = @transform_3, window_bounds = array<i64: 8, 48>}, {pipeline_mode = #tpu.pipeline_mode<synchronous>, transform_indices = @transform_4, window_bounds = array<i64: 1, 48>}, {pipeline_mode = #tpu.pipeline_mode<synchronous>, transform_indices = @transform_5, window_bounds = array<i64: 1, 48>}, {pipeline_mode = #tpu.pipeline_mode<synchronous>, transform_indices = @transform_6, window_bounds = array<i64: 48, 32>}, {pipeline_mode = #tpu.pipeline_mode<synchronous>, transform_indices = @transform_7, window_bounds = array<i64: 72, 128>}, {transform_indices = @transform_8, window_bounds = array<i64: 16, 8>}]} {
    %c0 = arith.constant 0 : index
    %c0_0 = arith.constant 0 : index
    %0 = vector.load %arg1[%c0, %c0_0] : memref<16x8xf32, #tpu.memory_space<vmem>>, vector<16x8xf32>
    %c0_1 = arith.constant 0 : index
    %c0_2 = arith.constant 0 : index
    %1 = vector.load %arg2[%c0_1, %c0_2] : memref<16x32xf32, #tpu.memory_space<vmem>>, vector<16x32xf32>
    %c0_3 = arith.constant 0 : index
    %c0_4 = arith.constant 0 : index
    %2 = vector.load %arg3[%c0_3, %c0_4] : memref<16x1xi32, #tpu.memory_space<vmem>>, vector<16x1xi32>
    %c0_5 = arith.constant 0 : index
    %c0_6 = arith.constant 0 : index
    %3 = vector.load %arg6[%c0_5, %c0_6] : memref<1x48xi32, #tpu.memory_space<vmem>>, vector<1x48xi32>
    %4 = vector.broadcast %2 : vector<16x1xi32> to vector<16x48xi32>
    %5 = vector.broadcast %3 : vector<1x48xi32> to vector<16x48xi32>
    %6 = arith.cmpi eq, %4, %5 : vector<16x48xi32>
    %c0_7 = arith.constant 0 : index
    %c0_8 = arith.constant 0 : index
    %7 = vector.load %arg5[%c0_7, %c0_8] : memref<1x48xf32, #tpu.memory_space<vmem>>, vector<1x48xf32>
    %c0_9 = arith.constant 0 : index
    %c0_10 = arith.constant 0 : index
    %8 = vector.load %arg7[%c0_9, %c0_10] : memref<48x32xf32, #tpu.memory_space<vmem>>, vector<48x32xf32>
    %c8 = arith.constant 8 : index
    %c0_11 = arith.constant 0 : index
    %9 = vector.load %arg8[%c8, %c0_11] : memref<72x128xf32, #tpu.memory_space<vmem>>, vector<32x32xf32>
    %c0_12 = arith.constant 0 : index
    %c0_13 = arith.constant 0 : index
    %10 = vector.load %arg8[%c0_12, %c0_13] : memref<72x128xf32, #tpu.memory_space<vmem>>, vector<1x32xf32>
    %c40 = arith.constant 40 : index
    %c0_14 = arith.constant 0 : index
    %11 = vector.load %arg8[%c40, %c0_14] : memref<72x128xf32, #tpu.memory_space<vmem>>, vector<32x8xf32>
    %c1 = arith.constant 1 : index
    %c0_15 = arith.constant 0 : index
    %12 = vector.load %arg8[%c1, %c0_15] : memref<72x128xf32, #tpu.memory_space<vmem>>, vector<1x8xf32>
    %c0_16 = arith.constant 0 : index
    %c0_17 = arith.constant 0 : index
    %13 = vector.load %arg4[%c0_16, %c0_17] : memref<8x48xf32, #tpu.memory_space<vmem>>, vector<8x48xf32>
    %cst = arith.constant dense<0.000000e+00> : vector<16x48xf32>
    %14 = tpu.matmul %0, %13, %cst {dimension_numbers = #tpu.dot_dimension_numbers<[1], [0], [0], [1], [0, 0, 1, 1], [], []>} : vector<16x8xf32>, vector<8x48xf32>, vector<16x48xf32> -> vector<16x48xf32>
    %cst_18 = arith.constant 2.000000e+00 : f32
    %15 = vector.broadcast %cst_18 : f32 to vector<16x48xf32>
    %16 = arith.mulf %15, %14 : vector<16x48xf32>
    %17 = vector.broadcast %7 : vector<1x48xf32> to vector<16x48xf32>
    %18 = arith.subf %17, %16 : vector<16x48xf32>
    %cst_19 = arith.constant 1.000000e+30 : f32
    %19 = vector.broadcast %cst_19 : f32 to vector<16x48xf32>
    %20 = arith.select %6, %18, %19 : vector<16x48xi1>, vector<16x48xf32>
    %21 = tpu.iota {dimensions = array<i32: 1>} : vector<16x48xi32>
    %cst_20 = arith.constant 0.000000e+00 : f32
    %22 = vector.broadcast %cst_20 : f32 to vector<16x8xf32>
    %cst_21 = arith.constant dense<0x7F800000> : vector<16xf32>
    %23 = vector.multi_reduction <minimumf>, %20, %cst_21 [1] : vector<16x48xf32> to vector<16xf32>
    %24 = vector.shape_cast %23 : vector<16xf32> to vector<16x1xf32>
    %25 = vector.broadcast %24 : vector<16x1xf32> to vector<16x48xf32>
    %26 = arith.cmpf ole, %20, %25 : vector<16x48xf32>
    %c48_i32 = arith.constant 48 : i32
    %27 = vector.broadcast %c48_i32 : i32 to vector<16x48xi32>
    %28 = arith.select %26, %21, %27 : vector<16x48xi1>, vector<16x48xi32>
    %cst_22 = arith.constant dense<2147483647> : vector<16xi32>
    %29 = vector.multi_reduction <minsi>, %28, %cst_22 [1] : vector<16x48xi32> to vector<16xi32>
    %30 = vector.shape_cast %29 : vector<16xi32> to vector<16x1xi32>
    %31 = vector.broadcast %30 : vector<16x1xi32> to vector<16x48xi32>
    %32 = arith.cmpi eq, %21, %31 : vector<16x48xi32>
    %cst_23 = arith.constant 1.000000e+30 : f32
    %33 = vector.broadcast %cst_23 : f32 to vector<16x48xf32>
    %34 = arith.select %32, %33, %20 : vector<16x48xi1>, vector<16x48xf32>
    %35 = arith.extui %32 : vector<16x48xi1> to vector<16x48xi32>
    %36 = arith.sitofp %35 : vector<16x48xi32> to vector<16x48xf32>
    %cst_24 = arith.constant dense<0.000000e+00> : vector<16x32xf32>
    %37 = tpu.matmul %36, %8, %cst_24 {dimension_numbers = #tpu.dot_dimension_numbers<[1], [0], [0], [1], [0, 0, 1, 1], [], []>} : vector<16x48xf32>, vector<48x32xf32>, vector<16x32xf32> -> vector<16x32xf32>
    %38 = arith.addf %1, %37 : vector<16x32xf32>
    %cst_25 = arith.constant 0.000000e+00 : f32
    %39 = vector.broadcast %cst_25 : f32 to vector<16x32xf32>
    %40 = arith.maximumf %38, %39 : vector<16x32xf32>
    %cst_26 = arith.constant dense<0.000000e+00> : vector<16x32xf32>
    %41 = tpu.matmul %40, %9, %cst_26 {dimension_numbers = #tpu.dot_dimension_numbers<[1], [0], [0], [1], [0, 0, 1, 1], [], []>} : vector<16x32xf32>, vector<32x32xf32>, vector<16x32xf32> -> vector<16x32xf32>
    %42 = vector.broadcast %10 : vector<1x32xf32> to vector<16x32xf32>
    %43 = arith.addf %41, %42 : vector<16x32xf32>
    %cst_27 = arith.constant 0.000000e+00 : f32
    %44 = vector.broadcast %cst_27 : f32 to vector<16x32xf32>
    %45 = arith.maximumf %43, %44 : vector<16x32xf32>
    %cst_28 = arith.constant dense<0.000000e+00> : vector<16x8xf32>
    %46 = tpu.matmul %45, %11, %cst_28 {dimension_numbers = #tpu.dot_dimension_numbers<[1], [0], [0], [1], [0, 0, 1, 1], [], []>} : vector<16x32xf32>, vector<32x8xf32>, vector<16x8xf32> -> vector<16x8xf32>
    %47 = vector.broadcast %12 : vector<1x8xf32> to vector<16x8xf32>
    %48 = arith.addf %46, %47 : vector<16x8xf32>
    %cst_29 = arith.constant 0.000000e+00 : f32
    %49 = vector.broadcast %cst_29 : f32 to vector<16x8xf32>
    %50 = arith.maximumf %48, %49 : vector<16x8xf32>
    %51 = arith.addf %22, %50 : vector<16x8xf32>
    %cst_30 = arith.constant dense<0x7F800000> : vector<16xf32>
    %52 = vector.multi_reduction <minimumf>, %34, %cst_30 [1] : vector<16x48xf32> to vector<16xf32>
    %53 = vector.shape_cast %52 : vector<16xf32> to vector<16x1xf32>
    %54 = vector.broadcast %53 : vector<16x1xf32> to vector<16x48xf32>
    %55 = arith.cmpf ole, %34, %54 : vector<16x48xf32>
    %c48_i32_31 = arith.constant 48 : i32
    %56 = vector.broadcast %c48_i32_31 : i32 to vector<16x48xi32>
    %57 = arith.select %55, %21, %56 : vector<16x48xi1>, vector<16x48xi32>
    %cst_32 = arith.constant dense<2147483647> : vector<16xi32>
    %58 = vector.multi_reduction <minsi>, %57, %cst_32 [1] : vector<16x48xi32> to vector<16xi32>
    %59 = vector.shape_cast %58 : vector<16xi32> to vector<16x1xi32>
    %60 = vector.broadcast %59 : vector<16x1xi32> to vector<16x48xi32>
    %61 = arith.cmpi eq, %21, %60 : vector<16x48xi32>
    %cst_33 = arith.constant 1.000000e+30 : f32
    %62 = vector.broadcast %cst_33 : f32 to vector<16x48xf32>
    %63 = arith.select %61, %62, %34 : vector<16x48xi1>, vector<16x48xf32>
    %64 = arith.extui %61 : vector<16x48xi1> to vector<16x48xi32>
    %65 = arith.sitofp %64 : vector<16x48xi32> to vector<16x48xf32>
    %cst_34 = arith.constant dense<0.000000e+00> : vector<16x32xf32>
    %66 = tpu.matmul %65, %8, %cst_34 {dimension_numbers = #tpu.dot_dimension_numbers<[1], [0], [0], [1], [0, 0, 1, 1], [], []>} : vector<16x48xf32>, vector<48x32xf32>, vector<16x32xf32> -> vector<16x32xf32>
    %67 = arith.addf %1, %66 : vector<16x32xf32>
    %cst_35 = arith.constant 0.000000e+00 : f32
    %68 = vector.broadcast %cst_35 : f32 to vector<16x32xf32>
    %69 = arith.maximumf %67, %68 : vector<16x32xf32>
    %cst_36 = arith.constant dense<0.000000e+00> : vector<16x32xf32>
    %70 = tpu.matmul %69, %9, %cst_36 {dimension_numbers = #tpu.dot_dimension_numbers<[1], [0], [0], [1], [0, 0, 1, 1], [], []>} : vector<16x32xf32>, vector<32x32xf32>, vector<16x32xf32> -> vector<16x32xf32>
    %71 = vector.broadcast %10 : vector<1x32xf32> to vector<16x32xf32>
    %72 = arith.addf %70, %71 : vector<16x32xf32>
    %cst_37 = arith.constant 0.000000e+00 : f32
    %73 = vector.broadcast %cst_37 : f32 to vector<16x32xf32>
    %74 = arith.maximumf %72, %73 : vector<16x32xf32>
    %cst_38 = arith.constant dense<0.000000e+00> : vector<16x8xf32>
    %75 = tpu.matmul %74, %11, %cst_38 {dimension_numbers = #tpu.dot_dimension_numbers<[1], [0], [0], [1], [0, 0, 1, 1], [], []>} : vector<16x32xf32>, vector<32x8xf32>, vector<16x8xf32> -> vector<16x8xf32>
    %76 = vector.broadcast %12 : vector<1x8xf32> to vector<16x8xf32>
    %77 = arith.addf %75, %76 : vector<16x8xf32>
    %cst_39 = arith.constant 0.000000e+00 : f32
    %78 = vector.broadcast %cst_39 : f32 to vector<16x8xf32>
    %79 = arith.maximumf %77, %78 : vector<16x8xf32>
    %80 = arith.addf %51, %79 : vector<16x8xf32>
    %cst_40 = arith.constant dense<0x7F800000> : vector<16xf32>
    %81 = vector.multi_reduction <minimumf>, %63, %cst_40 [1] : vector<16x48xf32> to vector<16xf32>
    %82 = vector.shape_cast %81 : vector<16xf32> to vector<16x1xf32>
    %83 = vector.broadcast %82 : vector<16x1xf32> to vector<16x48xf32>
    %84 = arith.cmpf ole, %63, %83 : vector<16x48xf32>
    %c48_i32_41 = arith.constant 48 : i32
    %85 = vector.broadcast %c48_i32_41 : i32 to vector<16x48xi32>
    %86 = arith.select %84, %21, %85 : vector<16x48xi1>, vector<16x48xi32>
    %cst_42 = arith.constant dense<2147483647> : vector<16xi32>
    %87 = vector.multi_reduction <minsi>, %86, %cst_42 [1] : vector<16x48xi32> to vector<16xi32>
    %88 = vector.shape_cast %87 : vector<16xi32> to vector<16x1xi32>
    %89 = vector.broadcast %88 : vector<16x1xi32> to vector<16x48xi32>
    %90 = arith.cmpi eq, %21, %89 : vector<16x48xi32>
    %91 = arith.extui %90 : vector<16x48xi1> to vector<16x48xi32>
    %92 = arith.sitofp %91 : vector<16x48xi32> to vector<16x48xf32>
    %cst_43 = arith.constant dense<0.000000e+00> : vector<16x32xf32>
    %93 = tpu.matmul %92, %8, %cst_43 {dimension_numbers = #tpu.dot_dimension_numbers<[1], [0], [0], [1], [0, 0, 1, 1], [], []>} : vector<16x48xf32>, vector<48x32xf32>, vector<16x32xf32> -> vector<16x32xf32>
    %94 = arith.addf %1, %93 : vector<16x32xf32>
    %cst_44 = arith.constant 0.000000e+00 : f32
    %95 = vector.broadcast %cst_44 : f32 to vector<16x32xf32>
    %96 = arith.maximumf %94, %95 : vector<16x32xf32>
    %cst_45 = arith.constant dense<0.000000e+00> : vector<16x32xf32>
    %97 = tpu.matmul %96, %9, %cst_45 {dimension_numbers = #tpu.dot_dimension_numbers<[1], [0], [0], [1], [0, 0, 1, 1], [], []>} : vector<16x32xf32>, vector<32x32xf32>, vector<16x32xf32> -> vector<16x32xf32>
    %98 = vector.broadcast %10 : vector<1x32xf32> to vector<16x32xf32>
    %99 = arith.addf %97, %98 : vector<16x32xf32>
    %cst_46 = arith.constant 0.000000e+00 : f32
    %100 = vector.broadcast %cst_46 : f32 to vector<16x32xf32>
    %101 = arith.maximumf %99, %100 : vector<16x32xf32>
    %cst_47 = arith.constant dense<0.000000e+00> : vector<16x8xf32>
    %102 = tpu.matmul %101, %11, %cst_47 {dimension_numbers = #tpu.dot_dimension_numbers<[1], [0], [0], [1], [0, 0, 1, 1], [], []>} : vector<16x32xf32>, vector<32x8xf32>, vector<16x8xf32> -> vector<16x8xf32>
    %103 = vector.broadcast %12 : vector<1x8xf32> to vector<16x8xf32>
    %104 = arith.addf %102, %103 : vector<16x8xf32>
    %cst_48 = arith.constant 0.000000e+00 : f32
    %105 = vector.broadcast %cst_48 : f32 to vector<16x8xf32>
    %106 = arith.maximumf %104, %105 : vector<16x8xf32>
    %107 = arith.addf %80, %106 : vector<16x8xf32>
    %cst_49 = arith.constant 0.333333343 : f32
    %108 = vector.broadcast %cst_49 : f32 to vector<16x8xf32>
    %109 = arith.mulf %107, %108 : vector<16x8xf32>
    %c0_50 = arith.constant 0 : index
    %c0_51 = arith.constant 0 : index
    %110 = vector.load %arg9[%c0_50, %c0_51] : memref<16x8xf32, #tpu.memory_space<vmem>>, vector<16x8xf32>
    tpu.vector_store %arg9[%c0_50, %c0_51], %109 {strides = array<i32>} : memref<16x8xf32, #tpu.memory_space<vmem>>, vector<16x8xf32>,
    return
  }
  func.func @transform_0(%arg0: i32) -> (i32, i32) {
    %c0_i32 = arith.constant 0 : i32
    %c0_i32_0 = arith.constant 0 : i32
    return %arg0, %c0_i32 : i32, i32
  }
  func.func @transform_1(%arg0: i32) -> (i32, i32) {
    %c0_i32 = arith.constant 0 : i32
    %c0_i32_0 = arith.constant 0 : i32
    return %arg0, %c0_i32 : i32, i32
  }
  func.func @transform_2(%arg0: i32) -> (i32, i32) {
    %c0_i32 = arith.constant 0 : i32
    %c0_i32_0 = arith.constant 0 : i32
    return %arg0, %c0_i32 : i32, i32
  }
  func.func @transform_3(%arg0: i32) -> (i32, i32) {
    %c0_i32 = arith.constant 0 : i32
    %c0_i32_0 = arith.constant 0 : i32
    %c0_i32_1 = arith.constant 0 : i32
    return %c0_i32, %c0_i32_0 : i32, i32
  }
  func.func @transform_4(%arg0: i32) -> (i32, i32) {
    %c0_i32 = arith.constant 0 : i32
    %c0_i32_0 = arith.constant 0 : i32
    %c0_i32_1 = arith.constant 0 : i32
    return %c0_i32, %c0_i32_0 : i32, i32
  }
  func.func @transform_5(%arg0: i32) -> (i32, i32) {
    %c0_i32 = arith.constant 0 : i32
    %c0_i32_0 = arith.constant 0 : i32
    %c0_i32_1 = arith.constant 0 : i32
    return %c0_i32, %c0_i32_0 : i32, i32
  }
  func.func @transform_6(%arg0: i32) -> (i32, i32) {
    %c0_i32 = arith.constant 0 : i32
    %c0_i32_0 = arith.constant 0 : i32
    %c0_i32_1 = arith.constant 0 : i32
    return %c0_i32, %c0_i32_0 : i32, i32
  }
  func.func @transform_7(%arg0: i32) -> (i32, i32) {
    %c0_i32 = arith.constant 0 : i32
    %c0_i32_0 = arith.constant 0 : i32
    %c0_i32_1 = arith.constant 0 : i32
    return %c0_i32, %c0_i32_0 : i32, i32
  }
  func.func @transform_8(%arg0: i32) -> (i32, i32) {
    %c0_i32 = arith.constant 0 : i32
    %c0_i32_0 = arith.constant 0 : i32
    return %arg0, %c0_i32 : i32, i32
  }
}

module attributes {stable_mosaic.version = 11 : i64} {
  func.func @_edgeconv_kernel(%arg0: i32, %arg1: memref<16x8xf32, #tpu.memory_space<vmem>>, %arg2: memref<16x32xf32, #tpu.memory_space<vmem>>, %arg3: memref<16x1xi32, #tpu.memory_space<vmem>>, %arg4: memref<8x48xf32, #tpu.memory_space<vmem>>, %arg5: memref<1x48xf32, #tpu.memory_space<vmem>>, %arg6: memref<1x48xi32, #tpu.memory_space<vmem>>, %arg7: memref<48x32xf32, #tpu.memory_space<vmem>>, %arg8: memref<72x128xf32, #tpu.memory_space<vmem>>, %arg9: memref<16x8xf32, #tpu.memory_space<vmem>>) attributes {dimension_semantics = [#tpu.dimension_semantics<parallel>], iteration_bounds = array<i64: 3>, scalar_prefetch = 0 : i64, scratch_operands = 0 : i64, tpu.core_type = #tpu.core_type<tc>, window_params = [{transform_indices = @transform_0, window_bounds = array<i64: 16, 8>}, {transform_indices = @transform_1, window_bounds = array<i64: 16, 32>}, {transform_indices = @transform_2, window_bounds = array<i64: 16, 1>}, {pipeline_mode = #tpu.pipeline_mode<synchronous>, transform_indices = @transform_3, window_bounds = array<i64: 8, 48>}, {pipeline_mode = #tpu.pipeline_mode<synchronous>, transform_indices = @transform_4, window_bounds = array<i64: 1, 48>}, {pipeline_mode = #tpu.pipeline_mode<synchronous>, transform_indices = @transform_5, window_bounds = array<i64: 1, 48>}, {pipeline_mode = #tpu.pipeline_mode<synchronous>, transform_indices = @transform_6, window_bounds = array<i64: 48, 32>}, {pipeline_mode = #tpu.pipeline_mode<synchronous>, transform_indices = @transform_7, window_bounds = array<i64: 72, 128>}, {transform_indices = @transform_8, window_bounds = array<i64: 16, 8>}]} {
    %c0 = arith.constant 0 : index
    %c0_0 = arith.constant 0 : index
    %0 = vector.load %arg1[%c0, %c0_0] : memref<16x8xf32, #tpu.memory_space<vmem>>, vector<16x8xf32>
    %c0_1 = arith.constant 0 : index
    %c0_2 = arith.constant 0 : index
    %1 = vector.load %arg2[%c0_1, %c0_2] : memref<16x32xf32, #tpu.memory_space<vmem>>, vector<16x32xf32>
    %c0_3 = arith.constant 0 : index
    %c0_4 = arith.constant 0 : index
    %2 = vector.load %arg3[%c0_3, %c0_4] : memref<16x1xi32, #tpu.memory_space<vmem>>, vector<16x1xi32>
    %c0_5 = arith.constant 0 : index
    %c0_6 = arith.constant 0 : index
    %3 = vector.load %arg6[%c0_5, %c0_6] : memref<1x48xi32, #tpu.memory_space<vmem>>, vector<1x48xi32>
    %4 = vector.broadcast %2 : vector<16x1xi32> to vector<16x48xi32>
    %5 = vector.broadcast %3 : vector<1x48xi32> to vector<16x48xi32>
    %6 = arith.cmpi eq, %4, %5 : vector<16x48xi32>
    %c0_7 = arith.constant 0 : index
    %c0_8 = arith.constant 0 : index
    %7 = vector.load %arg5[%c0_7, %c0_8] : memref<1x48xf32, #tpu.memory_space<vmem>>, vector<1x48xf32>
    %c0_9 = arith.constant 0 : index
    %c0_10 = arith.constant 0 : index
    %8 = vector.load %arg7[%c0_9, %c0_10] : memref<48x32xf32, #tpu.memory_space<vmem>>, vector<48x32xf32>
    %c8 = arith.constant 8 : index
    %c0_11 = arith.constant 0 : index
    %9 = vector.load %arg8[%c8, %c0_11] : memref<72x128xf32, #tpu.memory_space<vmem>>, vector<32x32xf32>
    %c0_12 = arith.constant 0 : index
    %c0_13 = arith.constant 0 : index
    %10 = vector.load %arg8[%c0_12, %c0_13] : memref<72x128xf32, #tpu.memory_space<vmem>>, vector<1x32xf32>
    %c40 = arith.constant 40 : index
    %c0_14 = arith.constant 0 : index
    %11 = vector.load %arg8[%c40, %c0_14] : memref<72x128xf32, #tpu.memory_space<vmem>>, vector<32x8xf32>
    %c1 = arith.constant 1 : index
    %c0_15 = arith.constant 0 : index
    %12 = vector.load %arg8[%c1, %c0_15] : memref<72x128xf32, #tpu.memory_space<vmem>>, vector<1x8xf32>
    %c0_16 = arith.constant 0 : index
    %c0_17 = arith.constant 0 : index
    %13 = vector.load %arg4[%c0_16, %c0_17] : memref<8x48xf32, #tpu.memory_space<vmem>>, vector<8x48xf32>
    %cst = arith.constant dense<0.000000e+00> : vector<16x48xf32>
    %14 = tpu.matmul %0, %13, %cst {dimension_numbers = #tpu.dot_dimension_numbers<[1], [0], [0], [1], [0, 0, 1, 1], [], []>} : vector<16x8xf32>, vector<8x48xf32>, vector<16x48xf32> -> vector<16x48xf32>
    %cst_18 = arith.constant 2.000000e+00 : f32
    %15 = vector.broadcast %cst_18 : f32 to vector<16x48xf32>
    %16 = arith.mulf %15, %14 : vector<16x48xf32>
    %17 = vector.broadcast %7 : vector<1x48xf32> to vector<16x48xf32>
    %18 = arith.subf %17, %16 : vector<16x48xf32>
    %cst_19 = arith.constant 1.000000e+30 : f32
    %19 = vector.broadcast %cst_19 : f32 to vector<16x48xf32>
    %20 = arith.select %6, %18, %19 : vector<16x48xi1>, vector<16x48xf32>
    %21 = tpu.iota {dimensions = array<i32: 1>} : vector<16x48xi32>
    %cst_20 = arith.constant 0.000000e+00 : f32
    %22 = vector.broadcast %cst_20 : f32 to vector<16x8xf32>
    %cst_21 = arith.constant dense<0x7F800000> : vector<16xf32>
    %23 = vector.multi_reduction <minimumf>, %20, %cst_21 [1] : vector<16x48xf32> to vector<16xf32>
    %24 = vector.shape_cast %23 : vector<16xf32> to vector<16x1xf32>
    %25 = vector.broadcast %24 : vector<16x1xf32> to vector<16x48xf32>
    %26 = arith.cmpf ole, %20, %25 : vector<16x48xf32>
    %c48_i32 = arith.constant 48 : i32
    %27 = vector.broadcast %c48_i32 : i32 to vector<16x48xi32>
    %28 = arith.select %26, %21, %27 : vector<16x48xi1>, vector<16x48xi32>
    %cst_22 = arith.constant dense<2147483647> : vector<16xi32>
    %29 = vector.multi_reduction <minsi>, %28, %cst_22 [1] : vector<16x48xi32> to vector<16xi32>
    %30 = vector.shape_cast %29 : vector<16xi32> to vector<16x1xi32>
    %31 = vector.broadcast %30 : vector<16x1xi32> to vector<16x48xi32>
    %32 = arith.cmpi eq, %21, %31 : vector<16x48xi32>
    %cst_23 = arith.constant 1.000000e+30 : f32
    %33 = vector.broadcast %cst_23 : f32 to vector<16x48xf32>
    %34 = arith.select %32, %33, %20 : vector<16x48xi1>, vector<16x48xf32>
    %35 = arith.extui %32 : vector<16x48xi1> to vector<16x48xi32>
    %36 = arith.sitofp %35 : vector<16x48xi32> to vector<16x48xf32>
    %cst_24 = arith.constant dense<0.000000e+00> : vector<16x32xf32>
    %37 = tpu.matmul %36, %8, %cst_24 {dimension_numbers = #tpu.dot_dimension_numbers<[1], [0], [0], [1], [0, 0, 1, 1], [], []>} : vector<16x48xf32>, vector<48x32xf32>, vector<16x32xf32> -> vector<16x32xf32>
    %38 = arith.addf %1, %37 : vector<16x32xf32>
    %cst_25 = arith.constant 0.000000e+00 : f32
    %39 = vector.broadcast %cst_25 : f32 to vector<16x32xf32>
    %40 = arith.maximumf %38, %39 : vector<16x32xf32>
    %cst_26 = arith.constant dense<0.000000e+00> : vector<16x32xf32>
    %41 = tpu.matmul %40, %9, %cst_26 {dimension_numbers = #tpu.dot_dimension_numbers<[1], [0], [0], [1], [0, 0, 1, 1], [], []>} : vector<16x32xf32>, vector<32x32xf32>, vector<16x32xf32> -> vector<16x32xf32>
    %42 = vector.broadcast %10 : vector<1x32xf32> to vector<16x32xf32>
    %43 = arith.addf %41, %42 : vector<16x32xf32>
    %cst_27 = arith.constant 0.000000e+00 : f32
    %44 = vector.broadcast %cst_27 : f32 to vector<16x32xf32>
    %45 = arith.maximumf %43, %44 : vector<16x32xf32>
    %cst_28 = arith.constant dense<0.000000e+00> : vector<16x8xf32>
    %46 = tpu.matmul %45, %11, %cst_28 {dimension_numbers = #tpu.dot_dimension_numbers<[1], [0], [0], [1], [0, 0, 1, 1], [], []>} : vector<16x32xf32>, vector<32x8xf32>, vector<16x8xf32> -> vector<16x8xf32>
    %47 = vector.broadcast %12 : vector<1x8xf32> to vector<16x8xf32>
    %48 = arith.addf %46, %47 : vector<16x8xf32>
    %49 = arith.addf %22, %48 : vector<16x8xf32>
    %cst_29 = arith.constant dense<0x7F800000> : vector<16xf32>
    %50 = vector.multi_reduction <minimumf>, %34, %cst_29 [1] : vector<16x48xf32> to vector<16xf32>
    %51 = vector.shape_cast %50 : vector<16xf32> to vector<16x1xf32>
    %52 = vector.broadcast %51 : vector<16x1xf32> to vector<16x48xf32>
    %53 = arith.cmpf ole, %34, %52 : vector<16x48xf32>
    %c48_i32_30 = arith.constant 48 : i32
    %54 = vector.broadcast %c48_i32_30 : i32 to vector<16x48xi32>
    %55 = arith.select %53, %21, %54 : vector<16x48xi1>, vector<16x48xi32>
    %cst_31 = arith.constant dense<2147483647> : vector<16xi32>
    %56 = vector.multi_reduction <minsi>, %55, %cst_31 [1] : vector<16x48xi32> to vector<16xi32>
    %57 = vector.shape_cast %56 : vector<16xi32> to vector<16x1xi32>
    %58 = vector.broadcast %57 : vector<16x1xi32> to vector<16x48xi32>
    %59 = arith.cmpi eq, %21, %58 : vector<16x48xi32>
    %cst_32 = arith.constant 1.000000e+30 : f32
    %60 = vector.broadcast %cst_32 : f32 to vector<16x48xf32>
    %61 = arith.select %59, %60, %34 : vector<16x48xi1>, vector<16x48xf32>
    %62 = arith.extui %59 : vector<16x48xi1> to vector<16x48xi32>
    %63 = arith.sitofp %62 : vector<16x48xi32> to vector<16x48xf32>
    %cst_33 = arith.constant dense<0.000000e+00> : vector<16x32xf32>
    %64 = tpu.matmul %63, %8, %cst_33 {dimension_numbers = #tpu.dot_dimension_numbers<[1], [0], [0], [1], [0, 0, 1, 1], [], []>} : vector<16x48xf32>, vector<48x32xf32>, vector<16x32xf32> -> vector<16x32xf32>
    %65 = arith.addf %1, %64 : vector<16x32xf32>
    %cst_34 = arith.constant 0.000000e+00 : f32
    %66 = vector.broadcast %cst_34 : f32 to vector<16x32xf32>
    %67 = arith.maximumf %65, %66 : vector<16x32xf32>
    %cst_35 = arith.constant dense<0.000000e+00> : vector<16x32xf32>
    %68 = tpu.matmul %67, %9, %cst_35 {dimension_numbers = #tpu.dot_dimension_numbers<[1], [0], [0], [1], [0, 0, 1, 1], [], []>} : vector<16x32xf32>, vector<32x32xf32>, vector<16x32xf32> -> vector<16x32xf32>
    %69 = vector.broadcast %10 : vector<1x32xf32> to vector<16x32xf32>
    %70 = arith.addf %68, %69 : vector<16x32xf32>
    %cst_36 = arith.constant 0.000000e+00 : f32
    %71 = vector.broadcast %cst_36 : f32 to vector<16x32xf32>
    %72 = arith.maximumf %70, %71 : vector<16x32xf32>
    %cst_37 = arith.constant dense<0.000000e+00> : vector<16x8xf32>
    %73 = tpu.matmul %72, %11, %cst_37 {dimension_numbers = #tpu.dot_dimension_numbers<[1], [0], [0], [1], [0, 0, 1, 1], [], []>} : vector<16x32xf32>, vector<32x8xf32>, vector<16x8xf32> -> vector<16x8xf32>
    %74 = vector.broadcast %12 : vector<1x8xf32> to vector<16x8xf32>
    %75 = arith.addf %73, %74 : vector<16x8xf32>
    %76 = arith.addf %49, %75 : vector<16x8xf32>
    %cst_38 = arith.constant dense<0x7F800000> : vector<16xf32>
    %77 = vector.multi_reduction <minimumf>, %61, %cst_38 [1] : vector<16x48xf32> to vector<16xf32>
    %78 = vector.shape_cast %77 : vector<16xf32> to vector<16x1xf32>
    %79 = vector.broadcast %78 : vector<16x1xf32> to vector<16x48xf32>
    %80 = arith.cmpf ole, %61, %79 : vector<16x48xf32>
    %c48_i32_39 = arith.constant 48 : i32
    %81 = vector.broadcast %c48_i32_39 : i32 to vector<16x48xi32>
    %82 = arith.select %80, %21, %81 : vector<16x48xi1>, vector<16x48xi32>
    %cst_40 = arith.constant dense<2147483647> : vector<16xi32>
    %83 = vector.multi_reduction <minsi>, %82, %cst_40 [1] : vector<16x48xi32> to vector<16xi32>
    %84 = vector.shape_cast %83 : vector<16xi32> to vector<16x1xi32>
    %85 = vector.broadcast %84 : vector<16x1xi32> to vector<16x48xi32>
    %86 = arith.cmpi eq, %21, %85 : vector<16x48xi32>
    %87 = arith.extui %86 : vector<16x48xi1> to vector<16x48xi32>
    %88 = arith.sitofp %87 : vector<16x48xi32> to vector<16x48xf32>
    %cst_41 = arith.constant dense<0.000000e+00> : vector<16x32xf32>
    %89 = tpu.matmul %88, %8, %cst_41 {dimension_numbers = #tpu.dot_dimension_numbers<[1], [0], [0], [1], [0, 0, 1, 1], [], []>} : vector<16x48xf32>, vector<48x32xf32>, vector<16x32xf32> -> vector<16x32xf32>
    %90 = arith.addf %1, %89 : vector<16x32xf32>
    %cst_42 = arith.constant 0.000000e+00 : f32
    %91 = vector.broadcast %cst_42 : f32 to vector<16x32xf32>
    %92 = arith.maximumf %90, %91 : vector<16x32xf32>
    %cst_43 = arith.constant dense<0.000000e+00> : vector<16x32xf32>
    %93 = tpu.matmul %92, %9, %cst_43 {dimension_numbers = #tpu.dot_dimension_numbers<[1], [0], [0], [1], [0, 0, 1, 1], [], []>} : vector<16x32xf32>, vector<32x32xf32>, vector<16x32xf32> -> vector<16x32xf32>
    %94 = vector.broadcast %10 : vector<1x32xf32> to vector<16x32xf32>
    %95 = arith.addf %93, %94 : vector<16x32xf32>
    %cst_44 = arith.constant 0.000000e+00 : f32
    %96 = vector.broadcast %cst_44 : f32 to vector<16x32xf32>
    %97 = arith.maximumf %95, %96 : vector<16x32xf32>
    %cst_45 = arith.constant dense<0.000000e+00> : vector<16x8xf32>
    %98 = tpu.matmul %97, %11, %cst_45 {dimension_numbers = #tpu.dot_dimension_numbers<[1], [0], [0], [1], [0, 0, 1, 1], [], []>} : vector<16x32xf32>, vector<32x8xf32>, vector<16x8xf32> -> vector<16x8xf32>
    %99 = vector.broadcast %12 : vector<1x8xf32> to vector<16x8xf32>
    %100 = arith.addf %98, %99 : vector<16x8xf32>
    %101 = arith.addf %76, %100 : vector<16x8xf32>
    %cst_46 = arith.constant 0.333333343 : f32
    %102 = vector.broadcast %cst_46 : f32 to vector<16x8xf32>
    %103 = arith.mulf %101, %102 : vector<16x8xf32>
    %c0_47 = arith.constant 0 : index
    %c0_48 = arith.constant 0 : index
    %104 = vector.load %arg9[%c0_47, %c0_48] : memref<16x8xf32, #tpu.memory_space<vmem>>, vector<16x8xf32>
    tpu.vector_store %arg9[%c0_47, %c0_48], %103 {strides = array<i32>} : memref<16x8xf32, #tpu.memory_space<vmem>>, vector<16x8xf32>,
    return
  }
  func.func @transform_0(%arg0: i32) -> (i32, i32) {
    %c0_i32 = arith.constant 0 : i32
    %c0_i32_0 = arith.constant 0 : i32
    return %arg0, %c0_i32 : i32, i32
  }
  func.func @transform_1(%arg0: i32) -> (i32, i32) {
    %c0_i32 = arith.constant 0 : i32
    %c0_i32_0 = arith.constant 0 : i32
    return %arg0, %c0_i32 : i32, i32
  }
  func.func @transform_2(%arg0: i32) -> (i32, i32) {
    %c0_i32 = arith.constant 0 : i32
    %c0_i32_0 = arith.constant 0 : i32
    return %arg0, %c0_i32 : i32, i32
  }
  func.func @transform_3(%arg0: i32) -> (i32, i32) {
    %c0_i32 = arith.constant 0 : i32
    %c0_i32_0 = arith.constant 0 : i32
    %c0_i32_1 = arith.constant 0 : i32
    return %c0_i32, %c0_i32_0 : i32, i32
  }
  func.func @transform_4(%arg0: i32) -> (i32, i32) {
    %c0_i32 = arith.constant 0 : i32
    %c0_i32_0 = arith.constant 0 : i32
    %c0_i32_1 = arith.constant 0 : i32
    return %c0_i32, %c0_i32_0 : i32, i32
  }
  func.func @transform_5(%arg0: i32) -> (i32, i32) {
    %c0_i32 = arith.constant 0 : i32
    %c0_i32_0 = arith.constant 0 : i32
    %c0_i32_1 = arith.constant 0 : i32
    return %c0_i32, %c0_i32_0 : i32, i32
  }
  func.func @transform_6(%arg0: i32) -> (i32, i32) {
    %c0_i32 = arith.constant 0 : i32
    %c0_i32_0 = arith.constant 0 : i32
    %c0_i32_1 = arith.constant 0 : i32
    return %c0_i32, %c0_i32_0 : i32, i32
  }
  func.func @transform_7(%arg0: i32) -> (i32, i32) {
    %c0_i32 = arith.constant 0 : i32
    %c0_i32_0 = arith.constant 0 : i32
    %c0_i32_1 = arith.constant 0 : i32
    return %c0_i32, %c0_i32_0 : i32, i32
  }
  func.func @transform_8(%arg0: i32) -> (i32, i32) {
    %c0_i32 = arith.constant 0 : i32
    %c0_i32_0 = arith.constant 0 : i32
    return %arg0, %c0_i32 : i32, i32
  }
}

module attributes {stable_mosaic.version = 11 : i64} {
  func.func @_edgeconv_kernel(%arg0: i32, %arg1: memref<16x8xf32, #tpu.memory_space<vmem>>, %arg2: memref<16x32xf32, #tpu.memory_space<vmem>>, %arg3: memref<16x1xi32, #tpu.memory_space<vmem>>, %arg4: memref<8x48xf32, #tpu.memory_space<vmem>>, %arg5: memref<1x48xf32, #tpu.memory_space<vmem>>, %arg6: memref<1x48xi32, #tpu.memory_space<vmem>>, %arg7: memref<48x32xf32, #tpu.memory_space<vmem>>, %arg8: memref<72x128xf32, #tpu.memory_space<vmem>>, %arg9: memref<16x8xf32, #tpu.memory_space<vmem>>) attributes {dimension_semantics = [#tpu.dimension_semantics<parallel>], iteration_bounds = array<i64: 3>, scalar_prefetch = 0 : i64, scratch_operands = 0 : i64, tpu.core_type = #tpu.core_type<tc>, window_params = [{transform_indices = @transform_0, window_bounds = array<i64: 16, 8>}, {transform_indices = @transform_1, window_bounds = array<i64: 16, 32>}, {transform_indices = @transform_2, window_bounds = array<i64: 16, 1>}, {pipeline_mode = #tpu.pipeline_mode<synchronous>, transform_indices = @transform_3, window_bounds = array<i64: 8, 48>}, {pipeline_mode = #tpu.pipeline_mode<synchronous>, transform_indices = @transform_4, window_bounds = array<i64: 1, 48>}, {pipeline_mode = #tpu.pipeline_mode<synchronous>, transform_indices = @transform_5, window_bounds = array<i64: 1, 48>}, {pipeline_mode = #tpu.pipeline_mode<synchronous>, transform_indices = @transform_6, window_bounds = array<i64: 48, 32>}, {pipeline_mode = #tpu.pipeline_mode<synchronous>, transform_indices = @transform_7, window_bounds = array<i64: 72, 128>}, {transform_indices = @transform_8, window_bounds = array<i64: 16, 8>}]} {
    %c0 = arith.constant 0 : index
    %c0_0 = arith.constant 0 : index
    %0 = vector.load %arg1[%c0, %c0_0] : memref<16x8xf32, #tpu.memory_space<vmem>>, vector<16x8xf32>
    %c0_1 = arith.constant 0 : index
    %c0_2 = arith.constant 0 : index
    %1 = vector.load %arg2[%c0_1, %c0_2] : memref<16x32xf32, #tpu.memory_space<vmem>>, vector<16x32xf32>
    %c0_3 = arith.constant 0 : index
    %c0_4 = arith.constant 0 : index
    %2 = vector.load %arg3[%c0_3, %c0_4] : memref<16x1xi32, #tpu.memory_space<vmem>>, vector<16x1xi32>
    %c0_5 = arith.constant 0 : index
    %c0_6 = arith.constant 0 : index
    %3 = vector.load %arg6[%c0_5, %c0_6] : memref<1x48xi32, #tpu.memory_space<vmem>>, vector<1x48xi32>
    %4 = vector.broadcast %2 : vector<16x1xi32> to vector<16x48xi32>
    %5 = vector.broadcast %3 : vector<1x48xi32> to vector<16x48xi32>
    %6 = arith.cmpi eq, %4, %5 : vector<16x48xi32>
    %c0_7 = arith.constant 0 : index
    %c0_8 = arith.constant 0 : index
    %7 = vector.load %arg5[%c0_7, %c0_8] : memref<1x48xf32, #tpu.memory_space<vmem>>, vector<1x48xf32>
    %c0_9 = arith.constant 0 : index
    %c0_10 = arith.constant 0 : index
    %8 = vector.load %arg7[%c0_9, %c0_10] : memref<48x32xf32, #tpu.memory_space<vmem>>, vector<48x32xf32>
    %c8 = arith.constant 8 : index
    %c0_11 = arith.constant 0 : index
    %9 = vector.load %arg8[%c8, %c0_11] : memref<72x128xf32, #tpu.memory_space<vmem>>, vector<32x32xf32>
    %c0_12 = arith.constant 0 : index
    %c0_13 = arith.constant 0 : index
    %10 = vector.load %arg8[%c0_12, %c0_13] : memref<72x128xf32, #tpu.memory_space<vmem>>, vector<1x32xf32>
    %c40 = arith.constant 40 : index
    %c0_14 = arith.constant 0 : index
    %11 = vector.load %arg8[%c40, %c0_14] : memref<72x128xf32, #tpu.memory_space<vmem>>, vector<32x8xf32>
    %c1 = arith.constant 1 : index
    %c0_15 = arith.constant 0 : index
    %12 = vector.load %arg8[%c1, %c0_15] : memref<72x128xf32, #tpu.memory_space<vmem>>, vector<1x8xf32>
    %c0_16 = arith.constant 0 : index
    %c0_17 = arith.constant 0 : index
    %13 = vector.load %arg4[%c0_16, %c0_17] : memref<8x48xf32, #tpu.memory_space<vmem>>, vector<8x48xf32>
    %cst = arith.constant dense<0.000000e+00> : vector<16x48xf32>
    %14 = tpu.matmul %0, %13, %cst {dimension_numbers = #tpu.dot_dimension_numbers<[1], [0], [0], [1], [0, 0, 1, 1], [], []>} : vector<16x8xf32>, vector<8x48xf32>, vector<16x48xf32> -> vector<16x48xf32>
    %cst_18 = arith.constant 2.000000e+00 : f32
    %15 = vector.broadcast %cst_18 : f32 to vector<16x48xf32>
    %16 = arith.mulf %15, %14 : vector<16x48xf32>
    %17 = vector.broadcast %7 : vector<1x48xf32> to vector<16x48xf32>
    %18 = arith.subf %17, %16 : vector<16x48xf32>
    %cst_19 = arith.constant 1.000000e+30 : f32
    %19 = vector.broadcast %cst_19 : f32 to vector<16x48xf32>
    %20 = arith.select %6, %18, %19 : vector<16x48xi1>, vector<16x48xf32>
    %21 = tpu.iota {dimensions = array<i32: 1>} : vector<16x48xi32>
    %cst_20 = arith.constant 0.000000e+00 : f32
    %22 = vector.broadcast %cst_20 : f32 to vector<16x8xf32>
    %cst_21 = arith.constant dense<0x7F800000> : vector<16xf32>
    %23 = vector.multi_reduction <minimumf>, %20, %cst_21 [1] : vector<16x48xf32> to vector<16xf32>
    %24 = vector.shape_cast %23 : vector<16xf32> to vector<16x1xf32>
    %25 = vector.broadcast %24 : vector<16x1xf32> to vector<16x48xf32>
    %26 = arith.cmpf ole, %20, %25 : vector<16x48xf32>
    %c48_i32 = arith.constant 48 : i32
    %27 = vector.broadcast %c48_i32 : i32 to vector<16x48xi32>
    %28 = arith.select %26, %21, %27 : vector<16x48xi1>, vector<16x48xi32>
    %cst_22 = arith.constant dense<2147483647> : vector<16xi32>
    %29 = vector.multi_reduction <minsi>, %28, %cst_22 [1] : vector<16x48xi32> to vector<16xi32>
    %30 = vector.shape_cast %29 : vector<16xi32> to vector<16x1xi32>
    %31 = vector.broadcast %30 : vector<16x1xi32> to vector<16x48xi32>
    %32 = arith.cmpi eq, %21, %31 : vector<16x48xi32>
    %cst_23 = arith.constant 1.000000e+30 : f32
    %33 = vector.broadcast %cst_23 : f32 to vector<16x48xf32>
    %34 = arith.select %32, %33, %20 : vector<16x48xi1>, vector<16x48xf32>
    %35 = arith.extui %32 : vector<16x48xi1> to vector<16x48xi32>
    %36 = arith.sitofp %35 : vector<16x48xi32> to vector<16x48xf32>
    %cst_24 = arith.constant dense<0.000000e+00> : vector<16x32xf32>
    %37 = tpu.matmul %36, %8, %cst_24 {dimension_numbers = #tpu.dot_dimension_numbers<[1], [0], [0], [1], [0, 0, 1, 1], [], []>} : vector<16x48xf32>, vector<48x32xf32>, vector<16x32xf32> -> vector<16x32xf32>
    %38 = arith.addf %1, %37 : vector<16x32xf32>
    %cst_25 = arith.constant 0.000000e+00 : f32
    %39 = vector.broadcast %cst_25 : f32 to vector<16x32xf32>
    %40 = arith.maximumf %38, %39 : vector<16x32xf32>
    %cst_26 = arith.constant dense<0.000000e+00> : vector<16x32xf32>
    %41 = tpu.matmul %40, %9, %cst_26 {dimension_numbers = #tpu.dot_dimension_numbers<[1], [0], [0], [1], [0, 0, 1, 1], [], []>} : vector<16x32xf32>, vector<32x32xf32>, vector<16x32xf32> -> vector<16x32xf32>
    %42 = vector.broadcast %10 : vector<1x32xf32> to vector<16x32xf32>
    %43 = arith.addf %41, %42 : vector<16x32xf32>
    %cst_27 = arith.constant 0.000000e+00 : f32
    %44 = vector.broadcast %cst_27 : f32 to vector<16x32xf32>
    %45 = arith.maximumf %43, %44 : vector<16x32xf32>
    %cst_28 = arith.constant dense<0.000000e+00> : vector<16x8xf32>
    %46 = tpu.matmul %45, %11, %cst_28 {dimension_numbers = #tpu.dot_dimension_numbers<[1], [0], [0], [1], [0, 0, 1, 1], [], []>} : vector<16x32xf32>, vector<32x8xf32>, vector<16x8xf32> -> vector<16x8xf32>
    %47 = vector.broadcast %12 : vector<1x8xf32> to vector<16x8xf32>
    %48 = arith.addf %46, %47 : vector<16x8xf32>
    %cst_29 = arith.constant 0.000000e+00 : f32
    %49 = vector.broadcast %cst_29 : f32 to vector<16x8xf32>
    %50 = arith.maximumf %48, %49 : vector<16x8xf32>
    %51 = arith.addf %22, %50 : vector<16x8xf32>
    %cst_30 = arith.constant dense<0x7F800000> : vector<16xf32>
    %52 = vector.multi_reduction <minimumf>, %34, %cst_30 [1] : vector<16x48xf32> to vector<16xf32>
    %53 = vector.shape_cast %52 : vector<16xf32> to vector<16x1xf32>
    %54 = vector.broadcast %53 : vector<16x1xf32> to vector<16x48xf32>
    %55 = arith.cmpf ole, %34, %54 : vector<16x48xf32>
    %c48_i32_31 = arith.constant 48 : i32
    %56 = vector.broadcast %c48_i32_31 : i32 to vector<16x48xi32>
    %57 = arith.select %55, %21, %56 : vector<16x48xi1>, vector<16x48xi32>
    %cst_32 = arith.constant dense<2147483647> : vector<16xi32>
    %58 = vector.multi_reduction <minsi>, %57, %cst_32 [1] : vector<16x48xi32> to vector<16xi32>
    %59 = vector.shape_cast %58 : vector<16xi32> to vector<16x1xi32>
    %60 = vector.broadcast %59 : vector<16x1xi32> to vector<16x48xi32>
    %61 = arith.cmpi eq, %21, %60 : vector<16x48xi32>
    %cst_33 = arith.constant 1.000000e+30 : f32
    %62 = vector.broadcast %cst_33 : f32 to vector<16x48xf32>
    %63 = arith.select %61, %62, %34 : vector<16x48xi1>, vector<16x48xf32>
    %64 = arith.extui %61 : vector<16x48xi1> to vector<16x48xi32>
    %65 = arith.sitofp %64 : vector<16x48xi32> to vector<16x48xf32>
    %cst_34 = arith.constant dense<0.000000e+00> : vector<16x32xf32>
    %66 = tpu.matmul %65, %8, %cst_34 {dimension_numbers = #tpu.dot_dimension_numbers<[1], [0], [0], [1], [0, 0, 1, 1], [], []>} : vector<16x48xf32>, vector<48x32xf32>, vector<16x32xf32> -> vector<16x32xf32>
    %67 = arith.addf %1, %66 : vector<16x32xf32>
    %cst_35 = arith.constant 0.000000e+00 : f32
    %68 = vector.broadcast %cst_35 : f32 to vector<16x32xf32>
    %69 = arith.maximumf %67, %68 : vector<16x32xf32>
    %cst_36 = arith.constant dense<0.000000e+00> : vector<16x32xf32>
    %70 = tpu.matmul %69, %9, %cst_36 {dimension_numbers = #tpu.dot_dimension_numbers<[1], [0], [0], [1], [0, 0, 1, 1], [], []>} : vector<16x32xf32>, vector<32x32xf32>, vector<16x32xf32> -> vector<16x32xf32>
    %71 = vector.broadcast %10 : vector<1x32xf32> to vector<16x32xf32>
    %72 = arith.addf %70, %71 : vector<16x32xf32>
    %cst_37 = arith.constant 0.000000e+00 : f32
    %73 = vector.broadcast %cst_37 : f32 to vector<16x32xf32>
    %74 = arith.maximumf %72, %73 : vector<16x32xf32>
    %cst_38 = arith.constant dense<0.000000e+00> : vector<16x8xf32>
    %75 = tpu.matmul %74, %11, %cst_38 {dimension_numbers = #tpu.dot_dimension_numbers<[1], [0], [0], [1], [0, 0, 1, 1], [], []>} : vector<16x32xf32>, vector<32x8xf32>, vector<16x8xf32> -> vector<16x8xf32>
    %76 = vector.broadcast %12 : vector<1x8xf32> to vector<16x8xf32>
    %77 = arith.addf %75, %76 : vector<16x8xf32>
    %cst_39 = arith.constant 0.000000e+00 : f32
    %78 = vector.broadcast %cst_39 : f32 to vector<16x8xf32>
    %79 = arith.maximumf %77, %78 : vector<16x8xf32>
    %80 = arith.addf %51, %79 : vector<16x8xf32>
    %cst_40 = arith.constant dense<0x7F800000> : vector<16xf32>
    %81 = vector.multi_reduction <minimumf>, %63, %cst_40 [1] : vector<16x48xf32> to vector<16xf32>
    %82 = vector.shape_cast %81 : vector<16xf32> to vector<16x1xf32>
    %83 = vector.broadcast %82 : vector<16x1xf32> to vector<16x48xf32>
    %84 = arith.cmpf ole, %63, %83 : vector<16x48xf32>
    %c48_i32_41 = arith.constant 48 : i32
    %85 = vector.broadcast %c48_i32_41 : i32 to vector<16x48xi32>
    %86 = arith.select %84, %21, %85 : vector<16x48xi1>, vector<16x48xi32>
    %cst_42 = arith.constant dense<2147483647> : vector<16xi32>
    %87 = vector.multi_reduction <minsi>, %86, %cst_42 [1] : vector<16x48xi32> to vector<16xi32>
    %88 = vector.shape_cast %87 : vector<16xi32> to vector<16x1xi32>
    %89 = vector.broadcast %88 : vector<16x1xi32> to vector<16x48xi32>
    %90 = arith.cmpi eq, %21, %89 : vector<16x48xi32>
    %91 = arith.extui %90 : vector<16x48xi1> to vector<16x48xi32>
    %92 = arith.sitofp %91 : vector<16x48xi32> to vector<16x48xf32>
    %cst_43 = arith.constant dense<0.000000e+00> : vector<16x32xf32>
    %93 = tpu.matmul %92, %8, %cst_43 {dimension_numbers = #tpu.dot_dimension_numbers<[1], [0], [0], [1], [0, 0, 1, 1], [], []>} : vector<16x48xf32>, vector<48x32xf32>, vector<16x32xf32> -> vector<16x32xf32>
    %94 = arith.addf %1, %93 : vector<16x32xf32>
    %cst_44 = arith.constant 0.000000e+00 : f32
    %95 = vector.broadcast %cst_44 : f32 to vector<16x32xf32>
    %96 = arith.maximumf %94, %95 : vector<16x32xf32>
    %cst_45 = arith.constant dense<0.000000e+00> : vector<16x32xf32>
    %97 = tpu.matmul %96, %9, %cst_45 {dimension_numbers = #tpu.dot_dimension_numbers<[1], [0], [0], [1], [0, 0, 1, 1], [], []>} : vector<16x32xf32>, vector<32x32xf32>, vector<16x32xf32> -> vector<16x32xf32>
    %98 = vector.broadcast %10 : vector<1x32xf32> to vector<16x32xf32>
    %99 = arith.addf %97, %98 : vector<16x32xf32>
    %cst_46 = arith.constant 0.000000e+00 : f32
    %100 = vector.broadcast %cst_46 : f32 to vector<16x32xf32>
    %101 = arith.maximumf %99, %100 : vector<16x32xf32>
    %cst_47 = arith.constant dense<0.000000e+00> : vector<16x8xf32>
    %102 = tpu.matmul %101, %11, %cst_47 {dimension_numbers = #tpu.dot_dimension_numbers<[1], [0], [0], [1], [0, 0, 1, 1], [], []>} : vector<16x32xf32>, vector<32x8xf32>, vector<16x8xf32> -> vector<16x8xf32>
    %103 = vector.broadcast %12 : vector<1x8xf32> to vector<16x8xf32>
    %104 = arith.addf %102, %103 : vector<16x8xf32>
    %cst_48 = arith.constant 0.000000e+00 : f32
    %105 = vector.broadcast %cst_48 : f32 to vector<16x8xf32>
    %106 = arith.maximumf %104, %105 : vector<16x8xf32>
    %107 = arith.addf %80, %106 : vector<16x8xf32>
    %cst_49 = arith.constant 0.333333343 : f32
    %108 = vector.broadcast %cst_49 : f32 to vector<16x8xf32>
    %109 = arith.mulf %107, %108 : vector<16x8xf32>
    %c0_50 = arith.constant 0 : index
    %c0_51 = arith.constant 0 : index
    %110 = vector.load %arg9[%c0_50, %c0_51] : memref<16x8xf32, #tpu.memory_space<vmem>>, vector<16x8xf32>
    tpu.vector_store %arg9[%c0_50, %c0_51], %109 {strides = array<i32>} : memref<16x8xf32, #tpu.memory_space<vmem>>, vector<16x8xf32>,
    return
  }
  func.func @transform_0(%arg0: i32) -> (i32, i32) {
    %c0_i32 = arith.constant 0 : i32
    %c0_i32_0 = arith.constant 0 : i32
    return %arg0, %c0_i32 : i32, i32
  }
  func.func @transform_1(%arg0: i32) -> (i32, i32) {
    %c0_i32 = arith.constant 0 : i32
    %c0_i32_0 = arith.constant 0 : i32
    return %arg0, %c0_i32 : i32, i32
  }
  func.func @transform_2(%arg0: i32) -> (i32, i32) {
    %c0_i32 = arith.constant 0 : i32
    %c0_i32_0 = arith.constant 0 : i32
    return %arg0, %c0_i32 : i32, i32
  }
  func.func @transform_3(%arg0: i32) -> (i32, i32) {
    %c0_i32 = arith.constant 0 : i32
    %c0_i32_0 = arith.constant 0 : i32
    %c0_i32_1 = arith.constant 0 : i32
    return %c0_i32, %c0_i32_0 : i32, i32
  }
  func.func @transform_4(%arg0: i32) -> (i32, i32) {
    %c0_i32 = arith.constant 0 : i32
    %c0_i32_0 = arith.constant 0 : i32
    %c0_i32_1 = arith.constant 0 : i32
    return %c0_i32, %c0_i32_0 : i32, i32
  }
  func.func @transform_5(%arg0: i32) -> (i32, i32) {
    %c0_i32 = arith.constant 0 : i32
    %c0_i32_0 = arith.constant 0 : i32
    %c0_i32_1 = arith.constant 0 : i32
    return %c0_i32, %c0_i32_0 : i32, i32
  }
  func.func @transform_6(%arg0: i32) -> (i32, i32) {
    %c0_i32 = arith.constant 0 : i32
    %c0_i32_0 = arith.constant 0 : i32
    %c0_i32_1 = arith.constant 0 : i32
    return %c0_i32, %c0_i32_0 : i32, i32
  }
  func.func @transform_7(%arg0: i32) -> (i32, i32) {
    %c0_i32 = arith.constant 0 : i32
    %c0_i32_0 = arith.constant 0 : i32
    %c0_i32_1 = arith.constant 0 : i32
    return %c0_i32, %c0_i32_0 : i32, i32
  }
  func.func @transform_8(%arg0: i32) -> (i32, i32) {
    %c0_i32 = arith.constant 0 : i32
    %c0_i32_0 = arith.constant 0 : i32
    return %arg0, %c0_i32 : i32, i32
  }
}

module attributes {stable_mosaic.version = 11 : i64} {
  func.func @_edgeconv_kernel(%arg0: i32, %arg1: memref<16x8xf32, #tpu.memory_space<vmem>>, %arg2: memref<16x32xf32, #tpu.memory_space<vmem>>, %arg3: memref<16x1xi32, #tpu.memory_space<vmem>>, %arg4: memref<8x48xf32, #tpu.memory_space<vmem>>, %arg5: memref<1x48xf32, #tpu.memory_space<vmem>>, %arg6: memref<1x48xi32, #tpu.memory_space<vmem>>, %arg7: memref<48x32xf32, #tpu.memory_space<vmem>>, %arg8: memref<72x128xf32, #tpu.memory_space<vmem>>, %arg9: memref<16x8xf32, #tpu.memory_space<vmem>>) attributes {dimension_semantics = [#tpu.dimension_semantics<parallel>], iteration_bounds = array<i64: 3>, scalar_prefetch = 0 : i64, scratch_operands = 0 : i64, tpu.core_type = #tpu.core_type<tc>, window_params = [{transform_indices = @transform_0, window_bounds = array<i64: 16, 8>}, {transform_indices = @transform_1, window_bounds = array<i64: 16, 32>}, {transform_indices = @transform_2, window_bounds = array<i64: 16, 1>}, {pipeline_mode = #tpu.pipeline_mode<synchronous>, transform_indices = @transform_3, window_bounds = array<i64: 8, 48>}, {pipeline_mode = #tpu.pipeline_mode<synchronous>, transform_indices = @transform_4, window_bounds = array<i64: 1, 48>}, {pipeline_mode = #tpu.pipeline_mode<synchronous>, transform_indices = @transform_5, window_bounds = array<i64: 1, 48>}, {pipeline_mode = #tpu.pipeline_mode<synchronous>, transform_indices = @transform_6, window_bounds = array<i64: 48, 32>}, {pipeline_mode = #tpu.pipeline_mode<synchronous>, transform_indices = @transform_7, window_bounds = array<i64: 72, 128>}, {transform_indices = @transform_8, window_bounds = array<i64: 16, 8>}]} {
    %c0 = arith.constant 0 : index
    %c0_0 = arith.constant 0 : index
    %0 = vector.load %arg1[%c0, %c0_0] : memref<16x8xf32, #tpu.memory_space<vmem>>, vector<16x8xf32>
    %c0_1 = arith.constant 0 : index
    %c0_2 = arith.constant 0 : index
    %1 = vector.load %arg2[%c0_1, %c0_2] : memref<16x32xf32, #tpu.memory_space<vmem>>, vector<16x32xf32>
    %c0_3 = arith.constant 0 : index
    %c0_4 = arith.constant 0 : index
    %2 = vector.load %arg3[%c0_3, %c0_4] : memref<16x1xi32, #tpu.memory_space<vmem>>, vector<16x1xi32>
    %c0_5 = arith.constant 0 : index
    %c0_6 = arith.constant 0 : index
    %3 = vector.load %arg6[%c0_5, %c0_6] : memref<1x48xi32, #tpu.memory_space<vmem>>, vector<1x48xi32>
    %4 = vector.broadcast %2 : vector<16x1xi32> to vector<16x48xi32>
    %5 = vector.broadcast %3 : vector<1x48xi32> to vector<16x48xi32>
    %6 = arith.cmpi eq, %4, %5 : vector<16x48xi32>
    %c0_7 = arith.constant 0 : index
    %c0_8 = arith.constant 0 : index
    %7 = vector.load %arg5[%c0_7, %c0_8] : memref<1x48xf32, #tpu.memory_space<vmem>>, vector<1x48xf32>
    %c0_9 = arith.constant 0 : index
    %c0_10 = arith.constant 0 : index
    %8 = vector.load %arg7[%c0_9, %c0_10] : memref<48x32xf32, #tpu.memory_space<vmem>>, vector<48x32xf32>
    %c8 = arith.constant 8 : index
    %c0_11 = arith.constant 0 : index
    %9 = vector.load %arg8[%c8, %c0_11] : memref<72x128xf32, #tpu.memory_space<vmem>>, vector<32x32xf32>
    %c0_12 = arith.constant 0 : index
    %c0_13 = arith.constant 0 : index
    %10 = vector.load %arg8[%c0_12, %c0_13] : memref<72x128xf32, #tpu.memory_space<vmem>>, vector<1x32xf32>
    %c40 = arith.constant 40 : index
    %c0_14 = arith.constant 0 : index
    %11 = vector.load %arg8[%c40, %c0_14] : memref<72x128xf32, #tpu.memory_space<vmem>>, vector<32x8xf32>
    %c1 = arith.constant 1 : index
    %c0_15 = arith.constant 0 : index
    %12 = vector.load %arg8[%c1, %c0_15] : memref<72x128xf32, #tpu.memory_space<vmem>>, vector<1x8xf32>
    %c0_16 = arith.constant 0 : index
    %c0_17 = arith.constant 0 : index
    %13 = vector.load %arg4[%c0_16, %c0_17] : memref<8x48xf32, #tpu.memory_space<vmem>>, vector<8x48xf32>
    %cst = arith.constant dense<0.000000e+00> : vector<16x48xf32>
    %14 = tpu.matmul %0, %13, %cst {dimension_numbers = #tpu.dot_dimension_numbers<[1], [0], [0], [1], [0, 0, 1, 1], [], []>} : vector<16x8xf32>, vector<8x48xf32>, vector<16x48xf32> -> vector<16x48xf32>
    %cst_18 = arith.constant 2.000000e+00 : f32
    %15 = vector.broadcast %cst_18 : f32 to vector<16x48xf32>
    %16 = arith.mulf %15, %14 : vector<16x48xf32>
    %17 = vector.broadcast %7 : vector<1x48xf32> to vector<16x48xf32>
    %18 = arith.subf %17, %16 : vector<16x48xf32>
    %cst_19 = arith.constant 1.000000e+30 : f32
    %19 = vector.broadcast %cst_19 : f32 to vector<16x48xf32>
    %20 = arith.select %6, %18, %19 : vector<16x48xi1>, vector<16x48xf32>
    %21 = tpu.iota {dimensions = array<i32: 1>} : vector<16x48xi32>
    %cst_20 = arith.constant 0.000000e+00 : f32
    %22 = vector.broadcast %cst_20 : f32 to vector<16x8xf32>
    %cst_21 = arith.constant dense<0x7F800000> : vector<16xf32>
    %23 = vector.multi_reduction <minimumf>, %20, %cst_21 [1] : vector<16x48xf32> to vector<16xf32>
    %24 = vector.shape_cast %23 : vector<16xf32> to vector<16x1xf32>
    %25 = vector.broadcast %24 : vector<16x1xf32> to vector<16x48xf32>
    %26 = arith.cmpf ole, %20, %25 : vector<16x48xf32>
    %c48_i32 = arith.constant 48 : i32
    %27 = vector.broadcast %c48_i32 : i32 to vector<16x48xi32>
    %28 = arith.select %26, %21, %27 : vector<16x48xi1>, vector<16x48xi32>
    %cst_22 = arith.constant dense<2147483647> : vector<16xi32>
    %29 = vector.multi_reduction <minsi>, %28, %cst_22 [1] : vector<16x48xi32> to vector<16xi32>
    %30 = vector.shape_cast %29 : vector<16xi32> to vector<16x1xi32>
    %31 = vector.broadcast %30 : vector<16x1xi32> to vector<16x48xi32>
    %32 = arith.cmpi eq, %21, %31 : vector<16x48xi32>
    %cst_23 = arith.constant 1.000000e+30 : f32
    %33 = vector.broadcast %cst_23 : f32 to vector<16x48xf32>
    %34 = arith.select %32, %33, %20 : vector<16x48xi1>, vector<16x48xf32>
    %35 = arith.extui %32 : vector<16x48xi1> to vector<16x48xi32>
    %36 = arith.sitofp %35 : vector<16x48xi32> to vector<16x48xf32>
    %cst_24 = arith.constant dense<0.000000e+00> : vector<16x32xf32>
    %37 = tpu.matmul %36, %8, %cst_24 {dimension_numbers = #tpu.dot_dimension_numbers<[1], [0], [0], [1], [0, 0, 1, 1], [], []>} : vector<16x48xf32>, vector<48x32xf32>, vector<16x32xf32> -> vector<16x32xf32>
    %38 = arith.addf %1, %37 : vector<16x32xf32>
    %cst_25 = arith.constant 0.000000e+00 : f32
    %39 = vector.broadcast %cst_25 : f32 to vector<16x32xf32>
    %40 = arith.maximumf %38, %39 : vector<16x32xf32>
    %cst_26 = arith.constant dense<0.000000e+00> : vector<16x32xf32>
    %41 = tpu.matmul %40, %9, %cst_26 {dimension_numbers = #tpu.dot_dimension_numbers<[1], [0], [0], [1], [0, 0, 1, 1], [], []>} : vector<16x32xf32>, vector<32x32xf32>, vector<16x32xf32> -> vector<16x32xf32>
    %42 = vector.broadcast %10 : vector<1x32xf32> to vector<16x32xf32>
    %43 = arith.addf %41, %42 : vector<16x32xf32>
    %cst_27 = arith.constant 0.000000e+00 : f32
    %44 = vector.broadcast %cst_27 : f32 to vector<16x32xf32>
    %45 = arith.maximumf %43, %44 : vector<16x32xf32>
    %cst_28 = arith.constant dense<0.000000e+00> : vector<16x8xf32>
    %46 = tpu.matmul %45, %11, %cst_28 {dimension_numbers = #tpu.dot_dimension_numbers<[1], [0], [0], [1], [0, 0, 1, 1], [], []>} : vector<16x32xf32>, vector<32x8xf32>, vector<16x8xf32> -> vector<16x8xf32>
    %47 = vector.broadcast %12 : vector<1x8xf32> to vector<16x8xf32>
    %48 = arith.addf %46, %47 : vector<16x8xf32>
    %49 = arith.addf %22, %48 : vector<16x8xf32>
    %cst_29 = arith.constant dense<0x7F800000> : vector<16xf32>
    %50 = vector.multi_reduction <minimumf>, %34, %cst_29 [1] : vector<16x48xf32> to vector<16xf32>
    %51 = vector.shape_cast %50 : vector<16xf32> to vector<16x1xf32>
    %52 = vector.broadcast %51 : vector<16x1xf32> to vector<16x48xf32>
    %53 = arith.cmpf ole, %34, %52 : vector<16x48xf32>
    %c48_i32_30 = arith.constant 48 : i32
    %54 = vector.broadcast %c48_i32_30 : i32 to vector<16x48xi32>
    %55 = arith.select %53, %21, %54 : vector<16x48xi1>, vector<16x48xi32>
    %cst_31 = arith.constant dense<2147483647> : vector<16xi32>
    %56 = vector.multi_reduction <minsi>, %55, %cst_31 [1] : vector<16x48xi32> to vector<16xi32>
    %57 = vector.shape_cast %56 : vector<16xi32> to vector<16x1xi32>
    %58 = vector.broadcast %57 : vector<16x1xi32> to vector<16x48xi32>
    %59 = arith.cmpi eq, %21, %58 : vector<16x48xi32>
    %cst_32 = arith.constant 1.000000e+30 : f32
    %60 = vector.broadcast %cst_32 : f32 to vector<16x48xf32>
    %61 = arith.select %59, %60, %34 : vector<16x48xi1>, vector<16x48xf32>
    %62 = arith.extui %59 : vector<16x48xi1> to vector<16x48xi32>
    %63 = arith.sitofp %62 : vector<16x48xi32> to vector<16x48xf32>
    %cst_33 = arith.constant dense<0.000000e+00> : vector<16x32xf32>
    %64 = tpu.matmul %63, %8, %cst_33 {dimension_numbers = #tpu.dot_dimension_numbers<[1], [0], [0], [1], [0, 0, 1, 1], [], []>} : vector<16x48xf32>, vector<48x32xf32>, vector<16x32xf32> -> vector<16x32xf32>
    %65 = arith.addf %1, %64 : vector<16x32xf32>
    %cst_34 = arith.constant 0.000000e+00 : f32
    %66 = vector.broadcast %cst_34 : f32 to vector<16x32xf32>
    %67 = arith.maximumf %65, %66 : vector<16x32xf32>
    %cst_35 = arith.constant dense<0.000000e+00> : vector<16x32xf32>
    %68 = tpu.matmul %67, %9, %cst_35 {dimension_numbers = #tpu.dot_dimension_numbers<[1], [0], [0], [1], [0, 0, 1, 1], [], []>} : vector<16x32xf32>, vector<32x32xf32>, vector<16x32xf32> -> vector<16x32xf32>
    %69 = vector.broadcast %10 : vector<1x32xf32> to vector<16x32xf32>
    %70 = arith.addf %68, %69 : vector<16x32xf32>
    %cst_36 = arith.constant 0.000000e+00 : f32
    %71 = vector.broadcast %cst_36 : f32 to vector<16x32xf32>
    %72 = arith.maximumf %70, %71 : vector<16x32xf32>
    %cst_37 = arith.constant dense<0.000000e+00> : vector<16x8xf32>
    %73 = tpu.matmul %72, %11, %cst_37 {dimension_numbers = #tpu.dot_dimension_numbers<[1], [0], [0], [1], [0, 0, 1, 1], [], []>} : vector<16x32xf32>, vector<32x8xf32>, vector<16x8xf32> -> vector<16x8xf32>
    %74 = vector.broadcast %12 : vector<1x8xf32> to vector<16x8xf32>
    %75 = arith.addf %73, %74 : vector<16x8xf32>
    %76 = arith.addf %49, %75 : vector<16x8xf32>
    %cst_38 = arith.constant dense<0x7F800000> : vector<16xf32>
    %77 = vector.multi_reduction <minimumf>, %61, %cst_38 [1] : vector<16x48xf32> to vector<16xf32>
    %78 = vector.shape_cast %77 : vector<16xf32> to vector<16x1xf32>
    %79 = vector.broadcast %78 : vector<16x1xf32> to vector<16x48xf32>
    %80 = arith.cmpf ole, %61, %79 : vector<16x48xf32>
    %c48_i32_39 = arith.constant 48 : i32
    %81 = vector.broadcast %c48_i32_39 : i32 to vector<16x48xi32>
    %82 = arith.select %80, %21, %81 : vector<16x48xi1>, vector<16x48xi32>
    %cst_40 = arith.constant dense<2147483647> : vector<16xi32>
    %83 = vector.multi_reduction <minsi>, %82, %cst_40 [1] : vector<16x48xi32> to vector<16xi32>
    %84 = vector.shape_cast %83 : vector<16xi32> to vector<16x1xi32>
    %85 = vector.broadcast %84 : vector<16x1xi32> to vector<16x48xi32>
    %86 = arith.cmpi eq, %21, %85 : vector<16x48xi32>
    %87 = arith.extui %86 : vector<16x48xi1> to vector<16x48xi32>
    %88 = arith.sitofp %87 : vector<16x48xi32> to vector<16x48xf32>
    %cst_41 = arith.constant dense<0.000000e+00> : vector<16x32xf32>
    %89 = tpu.matmul %88, %8, %cst_41 {dimension_numbers = #tpu.dot_dimension_numbers<[1], [0], [0], [1], [0, 0, 1, 1], [], []>} : vector<16x48xf32>, vector<48x32xf32>, vector<16x32xf32> -> vector<16x32xf32>
    %90 = arith.addf %1, %89 : vector<16x32xf32>
    %cst_42 = arith.constant 0.000000e+00 : f32
    %91 = vector.broadcast %cst_42 : f32 to vector<16x32xf32>
    %92 = arith.maximumf %90, %91 : vector<16x32xf32>
    %cst_43 = arith.constant dense<0.000000e+00> : vector<16x32xf32>
    %93 = tpu.matmul %92, %9, %cst_43 {dimension_numbers = #tpu.dot_dimension_numbers<[1], [0], [0], [1], [0, 0, 1, 1], [], []>} : vector<16x32xf32>, vector<32x32xf32>, vector<16x32xf32> -> vector<16x32xf32>
    %94 = vector.broadcast %10 : vector<1x32xf32> to vector<16x32xf32>
    %95 = arith.addf %93, %94 : vector<16x32xf32>
    %cst_44 = arith.constant 0.000000e+00 : f32
    %96 = vector.broadcast %cst_44 : f32 to vector<16x32xf32>
    %97 = arith.maximumf %95, %96 : vector<16x32xf32>
    %cst_45 = arith.constant dense<0.000000e+00> : vector<16x8xf32>
    %98 = tpu.matmul %97, %11, %cst_45 {dimension_numbers = #tpu.dot_dimension_numbers<[1], [0], [0], [1], [0, 0, 1, 1], [], []>} : vector<16x32xf32>, vector<32x8xf32>, vector<16x8xf32> -> vector<16x8xf32>
    %99 = vector.broadcast %12 : vector<1x8xf32> to vector<16x8xf32>
    %100 = arith.addf %98, %99 : vector<16x8xf32>
    %101 = arith.addf %76, %100 : vector<16x8xf32>
    %cst_46 = arith.constant 0.333333343 : f32
    %102 = vector.broadcast %cst_46 : f32 to vector<16x8xf32>
    %103 = arith.mulf %101, %102 : vector<16x8xf32>
    %c0_47 = arith.constant 0 : index
    %c0_48 = arith.constant 0 : index
    %104 = vector.load %arg9[%c0_47, %c0_48] : memref<16x8xf32, #tpu.memory_space<vmem>>, vector<16x8xf32>
    tpu.vector_store %arg9[%c0_47, %c0_48], %103 {strides = array<i32>} : memref<16x8xf32, #tpu.memory_space<vmem>>, vector<16x8xf32>,
    return
  }
  func.func @transform_0(%arg0: i32) -> (i32, i32) {
    %c0_i32 = arith.constant 0 : i32
    %c0_i32_0 = arith.constant 0 : i32
    return %arg0, %c0_i32 : i32, i32
  }
  func.func @transform_1(%arg0: i32) -> (i32, i32) {
    %c0_i32 = arith.constant 0 : i32
    %c0_i32_0 = arith.constant 0 : i32
    return %arg0, %c0_i32 : i32, i32
  }
  func.func @transform_2(%arg0: i32) -> (i32, i32) {
    %c0_i32 = arith.constant 0 : i32
    %c0_i32_0 = arith.constant 0 : i32
    return %arg0, %c0_i32 : i32, i32
  }
  func.func @transform_3(%arg0: i32) -> (i32, i32) {
    %c0_i32 = arith.constant 0 : i32
    %c0_i32_0 = arith.constant 0 : i32
    %c0_i32_1 = arith.constant 0 : i32
    return %c0_i32, %c0_i32_0 : i32, i32
  }
  func.func @transform_4(%arg0: i32) -> (i32, i32) {
    %c0_i32 = arith.constant 0 : i32
    %c0_i32_0 = arith.constant 0 : i32
    %c0_i32_1 = arith.constant 0 : i32
    return %c0_i32, %c0_i32_0 : i32, i32
  }
  func.func @transform_5(%arg0: i32) -> (i32, i32) {
    %c0_i32 = arith.constant 0 : i32
    %c0_i32_0 = arith.constant 0 : i32
    %c0_i32_1 = arith.constant 0 : i32
    return %c0_i32, %c0_i32_0 : i32, i32
  }
  func.func @transform_6(%arg0: i32) -> (i32, i32) {
    %c0_i32 = arith.constant 0 : i32
    %c0_i32_0 = arith.constant 0 : i32
    %c0_i32_1 = arith.constant 0 : i32
    return %c0_i32, %c0_i32_0 : i32, i32
  }
  func.func @transform_7(%arg0: i32) -> (i32, i32) {
    %c0_i32 = arith.constant 0 : i32
    %c0_i32_0 = arith.constant 0 : i32
    %c0_i32_1 = arith.constant 0 : i32
    return %c0_i32, %c0_i32_0 : i32, i32
  }
  func.func @transform_8(%arg0: i32) -> (i32, i32) {
    %c0_i32 = arith.constant 0 : i32
    %c0_i32_0 = arith.constant 0 : i32
    return %arg0, %c0_i32 : i32, i32
  }
}

</mosaic_0001>

<llo_original>
// kernel: _forward.2
$region0: #{_forward.2}
  #allocation0 [shape = 'u32[]', space=smem, size = 0x4, offset = 0x4, fixed_abs, tag = 'smem constant byte address 0x4 - core index']
  #allocation1 [shape = 'u32[144,128]{1,0:T(1,128)}', space=vmem, size = 0x12000, scoped, tag = 'internal scratch']
  %s0 = inlined_call_operand.vmem [shape: f32[48,8], index: 0, kind: input, shape index: {}]
  %s1 = inlined_call_operand.vmem [shape: f32[48,32], index: 1, kind: input, shape index: {}]
  %s2 = inlined_call_operand.vmem [shape: s32[48,1], index: 2, kind: input, shape index: {}]
  %s3 = inlined_call_operand.vmem [shape: f32[8,48], index: 3, kind: input, shape index: {}]
  %s4 = inlined_call_operand.vmem [shape: f32[1,48], index: 4, kind: input, shape index: {}]
  %s5 = inlined_call_operand.vmem [shape: s32[1,48], index: 5, kind: input, shape index: {}]
  %s6 = inlined_call_operand.vmem [shape: f32[48,32], index: 6, kind: input, shape index: {}]
  %s7 = inlined_call_operand.vmem [shape: f32[72,128], index: 7, kind: input, shape index: {}]
  %s8 = inlined_call_operand.vmem [shape: f32[48,8], index: 8, kind: output, shape index: {}]
  %s9 = sld [smem:[#allocation0]]
  $region65: #{_forward.2} parent=0
    _
  %s11 = ssub.s32 1, %s9
  %s12 = scalar_select 0, %s11, %s9
  loop: start=0, step=1, limit=5
  $region2: #{_forward.2} parent=0 // loop_pre_header
    _
  $region3: #{_forward.2} parent=0 // loop_header
    %s14 = sphi 0, %s18
    %p15 = scmp.ge.s32.totalorder %s14, 5
    %s24 = sphi 0, %s26
    %s27 = sphi 0, %s24
    %s28 = sphi 0, %s27
    %s44 = sphi 0, %s28
    %s50 = sphi 0, %s52
    %s53 = sphi 0, %s50
    %s54 = sphi 0, %s53
    %s70 = sphi 0, %s54
    %s76 = sphi 0, %s78
    %s79 = sphi 0, %s76
    %s80 = sphi 0, %s79
    %s96 = sphi 0, %s80
    %s100 = sphi 0, %s100
    %s102 = sphi 0, %s100
    %s103 = sphi 0, %s102
    %s117 = sphi 0, %s103
    %s121 = sphi 0, %s121
    %s123 = sphi 0, %s121
    %s124 = sphi 0, %s123
    %s138 = sphi 0, %s124
    %s142 = sphi 0, %s142
    %s144 = sphi 0, %s142
    %s145 = sphi 0, %s144
    %s159 = sphi 0, %s145
    %s163 = sphi 0, %s163
    %s165 = sphi 0, %s163
    %s166 = sphi 0, %s165
    %s180 = sphi 0, %s166
    %s184 = sphi 0, %s184
    %s186 = sphi 0, %s184
    %s187 = sphi 0, %s186
    %s201 = sphi 0, %s187
    %s207 = sphi 0, %s209
    %s210 = sphi 0, %s207
    %s211 = sphi 0, %s210
    %s227 = sphi 0, %s211
  $region4: #{_forward.2} parent=0 // loop_header_branch
    %17 = sbr.rel (%p15) target = $region8
  $region5: #{_forward.2} parent=0 // loop_body
    %s19 = ssub.s32 %s14, 1
    %s20 = ssub.s32 %s14, 2
    %s21 = sadd.s32 %s14, 1
    %s22 = ssub.s32 %s14, %s21
    %p23 = scmp.eq.s32.totalorder %s22, 0
    %s25 = sadd.s32 %s24, 1
    %s26 = scalar_select %p23, %s24, %s25
    %p29 = pneg %p23
    %p30 = scmp.eq.s32.totalorder %s14, 2
    %p31 = por %p29, %p30
    %p32 = scmp.ne.s32.totalorder %s24, %s27
    %p33 = scmp.eq.s32.totalorder %s14, 0
    %p34 = por %p32, %p33
    %p35 = scmp.ne.s32.totalorder %s24, %s27
    %p36 = scmp.eq.s32.totalorder %s19, 2
    %p37 = por %p35, %p36
    %p38 = scmp.ne.s32.totalorder %s27, %s28
    %p39 = scmp.eq.s32.totalorder %s19, 0
    %p40 = por %p38, %p39
    %p41 = scmp.ne.s32.totalorder %s27, %s28
    %p42 = scmp.eq.s32.totalorder %s20, 2
    %p43 = por %p41, %p42
    %p45 = scmp.ne.s32.totalorder %s28, %s44
    %p46 = scmp.eq.s32.totalorder %s20, 0
    %p47 = por %p45, %p46
    %s48 = ssub.s32 %s14, %s21
    %p49 = scmp.eq.s32.totalorder %s48, 0
    %s51 = sadd.s32 %s50, 1
    %s52 = scalar_select %p49, %s50, %s51
    %p55 = pneg %p49
    %p56 = scmp.eq.s32.totalorder %s14, 2
    %p57 = por %p55, %p56
    %p58 = scmp.ne.s32.totalorder %s50, %s53
    %p59 = scmp.eq.s32.totalorder %s14, 0
    %p60 = por %p58, %p59
    %p61 = scmp.ne.s32.totalorder %s50, %s53
    %p62 = scmp.eq.s32.totalorder %s19, 2
    %p63 = por %p61, %p62
    %p64 = scmp.ne.s32.totalorder %s53, %s54
    %p65 = scmp.eq.s32.totalorder %s19, 0
    %p66 = por %p64, %p65
    %p67 = scmp.ne.s32.totalorder %s53, %s54
    %p68 = scmp.eq.s32.totalorder %s20, 2
    %p69 = por %p67, %p68
    %p71 = scmp.ne.s32.totalorder %s54, %s70
    %p72 = scmp.eq.s32.totalorder %s20, 0
    %p73 = por %p71, %p72
    %s74 = ssub.s32 %s14, %s21
    %p75 = scmp.eq.s32.totalorder %s74, 0
    %s77 = sadd.s32 %s76, 1
    %s78 = scalar_select %p75, %s76, %s77
    %p81 = pneg %p75
    %p82 = scmp.eq.s32.totalorder %s14, 2
    %p83 = por %p81, %p82
    %p84 = scmp.ne.s32.totalorder %s76, %s79
    %p85 = scmp.eq.s32.totalorder %s14, 0
    %p86 = por %p84, %p85
    %p87 = scmp.ne.s32.totalorder %s76, %s79
    %p88 = scmp.eq.s32.totalorder %s19, 2
    %p89 = por %p87, %p88
    %p90 = scmp.ne.s32.totalorder %s79, %s80
    %p91 = scmp.eq.s32.totalorder %s19, 0
    %p92 = por %p90, %p91
    %p93 = scmp.ne.s32.totalorder %s79, %s80
    %p94 = scmp.eq.s32.totalorder %s20, 2
    %p95 = por %p93, %p94
    %p97 = scmp.ne.s32.totalorder %s80, %s96
    %p98 = scmp.eq.s32.totalorder %s20, 0
    %p99 = por %p97, %p98
    %s101 = sadd.s32 %s100, 1
    %p104 = scmp.eq.s32.totalorder %s14, 2
    %p105 = scmp.ne.s32.totalorder %s100, %s102
    %p106 = scmp.eq.s32.totalorder %s14, 0
    %p107 = por %p105, %p106
    %p108 = scmp.ne.s32.totalorder %s100, %s102
    %p109 = scmp.eq.s32.totalorder %s19, 2
    %p110 = por %p108, %p109
    %p111 = scmp.ne.s32.totalorder %s102, %s103
    %p112 = scmp.eq.s32.totalorder %s19, 0
    %p113 = por %p111, %p112
    %p114 = scmp.ne.s32.totalorder %s102, %s103
    %p115 = scmp.eq.s32.totalorder %s20, 2
    %p116 = por %p114, %p115
    %p118 = scmp.ne.s32.totalorder %s103, %s117
    %p119 = scmp.eq.s32.totalorder %s20, 0
    %p120 = por %p118, %p119
    %s122 = sadd.s32 %s121, 1
    %p125 = scmp.eq.s32.totalorder %s14, 2
    %p126 = scmp.ne.s32.totalorder %s121, %s123
    %p127 = scmp.eq.s32.totalorder %s14, 0
    %p128 = por %p126, %p127
    %p129 = scmp.ne.s32.totalorder %s121, %s123
    %p130 = scmp.eq.s32.totalorder %s19, 2
    %p131 = por %p129, %p130
    %p132 = scmp.ne.s32.totalorder %s123, %s124
    %p133 = scmp.eq.s32.totalorder %s19, 0
    %p134 = por %p132, %p133
    %p135 = scmp.ne.s32.totalorder %s123, %s124
    %p136 = scmp.eq.s32.totalorder %s20, 2
    %p137 = por %p135, %p136
    %p139 = scmp.ne.s32.totalorder %s124, %s138
    %p140 = scmp.eq.s32.totalorder %s20, 0
    %p141 = por %p139, %p140
    %s143 = sadd.s32 %s142, 1
    %p146 = scmp.eq.s32.totalorder %s14, 2
    %p147 = scmp.ne.s32.totalorder %s142, %s144
    %p148 = scmp.eq.s32.totalorder %s14, 0
    %p149 = por %p147, %p148
    %p150 = scmp.ne.s32.totalorder %s142, %s144
    %p151 = scmp.eq.s32.totalorder %s19, 2
    %p152 = por %p150, %p151
    %p153 = scmp.ne.s32.totalorder %s144, %s145
    %p154 = scmp.eq.s32.totalorder %s19, 0
    %p155 = por %p153, %p154
    %p156 = scmp.ne.s32.totalorder %s144, %s145
    %p157 = scmp.eq.s32.totalorder %s20, 2
    %p158 = por %p156, %p157
    %p160 = scmp.ne.s32.totalorder %s145, %s159
    %p161 = scmp.eq.s32.totalorder %s20, 0
    %p162 = por %p160, %p161
    %s164 = sadd.s32 %s163, 1
    %p167 = scmp.eq.s32.totalorder %s14, 2
    %p168 = scmp.ne.s32.totalorder %s163, %s165
    %p169 = scmp.eq.s32.totalorder %s14, 0
    %p170 = por %p168, %p169
    %p171 = scmp.ne.s32.totalorder %s163, %s165
    %p172 = scmp.eq.s32.totalorder %s19, 2
    %p173 = por %p171, %p172
    %p174 = scmp.ne.s32.totalorder %s165, %s166
    %p175 = scmp.eq.s32.totalorder %s19, 0
    %p176 = por %p174, %p175
    %p177 = scmp.ne.s32.totalorder %s165, %s166
    %p178 = scmp.eq.s32.totalorder %s20, 2
    %p179 = por %p177, %p178
    %p181 = scmp.ne.s32.totalorder %s166, %s180
    %p182 = scmp.eq.s32.totalorder %s20, 0
    %p183 = por %p181, %p182
    %s185 = sadd.s32 %s184, 1
    %p188 = scmp.eq.s32.totalorder %s14, 2
    %p189 = scmp.ne.s32.totalorder %s184, %s186
    %p190 = scmp.eq.s32.totalorder %s14, 0
    %p191 = por %p189, %p190
    %p192 = scmp.ne.s32.totalorder %s184, %s186
    %p193 = scmp.eq.s32.totalorder %s19, 2
    %p194 = por %p192, %p193
    %p195 = scmp.ne.s32.totalorder %s186, %s187
    %p196 = scmp.eq.s32.totalorder %s19, 0
    %p197 = por %p195, %p196
    %p198 = scmp.ne.s32.totalorder %s186, %s187
    %p199 = scmp.eq.s32.totalorder %s20, 2
    %p200 = por %p198, %p199
    %p202 = scmp.ne.s32.totalorder %s187, %s201
    %p203 = scmp.eq.s32.totalorder %s20, 0
    %p204 = por %p202, %p203
    %s205 = ssub.s32 %s14, %s21
    %p206 = scmp.eq.s32.totalorder %s205, 0
    %s208 = sadd.s32 %s207, 1
    %s209 = scalar_select %p206, %s207, %s208
    %p212 = pneg %p206
    %p213 = scmp.eq.s32.totalorder %s14, 2
    %p214 = por %p212, %p213
    %p215 = scmp.ne.s32.totalorder %s207, %s210
    %p216 = scmp.eq.s32.totalorder %s14, 0
    %p217 = por %p215, %p216
    %p218 = scmp.ne.s32.totalorder %s207, %s210
    %p219 = scmp.eq.s32.totalorder %s19, 2
    %p220 = por %p218, %p219
    %p221 = scmp.ne.s32.totalorder %s210, %s211
    %p222 = scmp.eq.s32.totalorder %s19, 0
    %p223 = por %p221, %p222
    %p224 = scmp.ne.s32.totalorder %s210, %s211
    %p225 = scmp.eq.s32.totalorder %s20, 2
    %p226 = por %p224, %p225
    %p228 = scmp.ne.s32.totalorder %s211, %s227
    %p229 = scmp.eq.s32.totalorder %s20, 0
    %p230 = por %p228, %p229
    %p231 = scmp.le.s32.totalorder 1, %s14
    %p232 = scmp.lt.s32.totalorder %s14, 4
    %p233 = pnand %p231, %p232
    %p234 = pneg %p233
    // Predicated region
    $region9: #{_forward.2} parent=5 // pred_check
      _
    $region10: #{_forward.2} parent=5 // pred_check_branch
      %236 = sbr.rel (%p233) target = $region12
    $region11: #{_forward.2} parent=5 // pred_region
      %s237 = ssub.s32 %s14, 1
      // Predicated region
      $region13: #{_forward.2} parent=11 // pred_check
        %p238 = pneg %p113
      $region14: #{_forward.2} parent=11 // pred_check_branch
        %240 = sbr.rel (%p238) target = $region16
      $region15: #{_forward.2} parent=11 // pred_region
        _
      $region16: #{_forward.2} parent=11 // pred_fallthru
        _
      // Predicated region
      $region17: #{_forward.2} parent=11 // pred_check
        %p241 = pneg %p134
      $region18: #{_forward.2} parent=11 // pred_check_branch
        %243 = sbr.rel (%p241) target = $region20
      $region19: #{_forward.2} parent=11 // pred_region
        _
      $region20: #{_forward.2} parent=11 // pred_fallthru
        _
      // Predicated region
      $region21: #{_forward.2} parent=11 // pred_check
        %p244 = pneg %p155
      $region22: #{_forward.2} parent=11 // pred_check_branch
        %246 = sbr.rel (%p244) target = $region24
      $region23: #{_forward.2} parent=11 // pred_region
        _
      $region24: #{_forward.2} parent=11 // pred_fallthru
        _
      // Predicated region
      $region25: #{_forward.2} parent=11 // pred_check
        %p247 = pneg %p176
      $region26: #{_forward.2} parent=11 // pred_check_branch
        %249 = sbr.rel (%p247) target = $region28
      $region27: #{_forward.2} parent=11 // pred_region
        _
      $region28: #{_forward.2} parent=11 // pred_fallthru
        _
      // Predicated region
      $region29: #{_forward.2} parent=11 // pred_check
        %p250 = pneg %p197
      $region30: #{_forward.2} parent=11 // pred_check_branch
        %252 = sbr.rel (%p250) target = $region32
      $region31: #{_forward.2} parent=11 // pred_region
        _
      $region32: #{_forward.2} parent=11 // pred_fallthru
        _
    $region12: #{_forward.2} parent=5 // pred_fallthru
      _
    %p253 = scmp.lt.s32.totalorder %s14, 3
    // Predicated region
    $region33: #{_forward.2} parent=5 // pred_check
      %p254 = pneg %p253
    $region34: #{_forward.2} parent=5 // pred_check_branch
      %256 = sbr.rel (%p254) target = $region36
    $region35: #{_forward.2} parent=5 // pred_region
      // Predicated region
      $region37: #{_forward.2} parent=35 // pred_check
        %p257 = pneg %p34
      $region38: #{_forward.2} parent=35 // pred_check_branch
        %259 = sbr.rel (%p257) target = $region40
      $region39: #{_forward.2} parent=35 // pred_region
        %s260 = smul.u32 2, %s14
        %p261 = scmp.lt.s32.totalorder %s260, 5
        %s262 = scalar_select %p261, %s260, 5
        %s263 = smul.addr %s262, 8
        %s264 = scalar_lea.vmem %s0, %s263
        %s265 = smul.u32 2, %s14
      $region40: #{_forward.2} parent=35 // pred_fallthru
        _
      // Predicated region
      $region41: #{_forward.2} parent=35 // pred_check
        %p266 = pneg %p60
      $region42: #{_forward.2} parent=35 // pred_check_branch
        %268 = sbr.rel (%p266) target = $region44
      $region43: #{_forward.2} parent=35 // pred_region
        %s269 = smul.u32 2, %s14
        %p270 = scmp.lt.s32.totalorder %s269, 5
        %s271 = scalar_select %p270, %s269, 5
        %s272 = smul.addr %s271, 8
        %s273 = scalar_lea.vmem %s1, %s272
        %s274 = smul.u32 2, %s14
      $region44: #{_forward.2} parent=35 // pred_fallthru
        _
      // Predicated region
      $region45: #{_forward.2} parent=35 // pred_check
        %p275 = pneg %p86
      $region46: #{_forward.2} parent=35 // pred_check_branch
        %277 = sbr.rel (%p275) target = $region48
      $region47: #{_forward.2} parent=35 // pred_region
        %s278 = smul.u32 2, %s14
        %p279 = scmp.lt.s32.totalorder %s278, 5
        %s280 = scalar_select %p279, %s278, 5
        %s281 = smul.addr %s280, 8
        %s282 = scalar_lea.vmem %s2, %s281
        %s283 = smul.u32 2, %s14
      $region48: #{_forward.2} parent=35 // pred_fallthru
        _
    $region36: #{_forward.2} parent=5 // pred_fallthru
      _
    %p284 = scmp.le.s32.totalorder 1, %s14
    %p285 = scmp.lt.s32.totalorder %s14, 4
    %p286 = pnand %p284, %p285
    %p287 = pneg %p286
    // Predicated region
    $region49: #{_forward.2} parent=5 // pred_check
      _
    $region50: #{_forward.2} parent=5 // pred_check_branch
      %289 = sbr.rel (%p286) target = $region52
    $region51: #{_forward.2} parent=5 // pred_region
      %s290 = ssub.s32 %s14, 1
      %s291 = smul.u32 2, %s19
      %p292 = scmp.lt.s32.totalorder %s291, 5
      %s293 = scalar_select %p292, %s291, 5
      %s294 = smul.addr %s293, 8
      %s295 = scalar_lea.vmem %s0, %s294
      %p296 = pneg %p40
      %p297 = pneg %p37
      %s298 = smul.u32 2, %s19
      %p299 = scmp.lt.s32.totalorder %s298, 5
      %s300 = scalar_select %p299, %s298, 5
      %s301 = smul.addr %s300, 8
      %s302 = scalar_lea.vmem %s1, %s301
      %p303 = pneg %p66
      %p304 = pneg %p63
      %s305 = smul.u32 2, %s19
      %p306 = scmp.lt.s32.totalorder %s305, 5
      %s307 = scalar_select %p306, %s305, 5
      %s308 = smul.addr %s307, 8
      %s309 = scalar_lea.vmem %s2, %s308
      %p310 = pneg %p92
      %p311 = pneg %p89
      %p312 = pneg %p113
      %p313 = pneg %p110
      %p314 = pneg %p134
      %p315 = pneg %p131
      %p316 = pneg %p155
      %p317 = pneg %p152
      %p318 = pneg %p176
      %p319 = pneg %p173
      %p320 = pneg %p197
      %p321 = pneg %p194
      %p322 = pneg %p223
      %p323 = pneg %p220
      %s324 = smul.u32 2, %s19
      %p325 = scmp.lt.s32.totalorder %s324, 5
      %s326 = scalar_select %p325, %s324, 5
      %s327 = smul.addr %s326, 8
      %s328 = scalar_lea.vmem %s8, %s327
      %s329 = smul.u32 2, %s19
      %p330 = scmp.lt.s32.totalorder %s329, 5
      %s331 = scalar_select %p330, %s329, 5
      %s332 = smul.addr %s331, 8
      %s333 = scalar_lea.vmem %s0, %s332
      %s334 = smul.u32 2, %s19
      %s335 = smul.u32 2, %s19
      %p336 = scmp.lt.s32.totalorder %s335, 5
      %s337 = scalar_select %p336, %s335, 5
      %s338 = smul.addr %s337, 8
      %s339 = scalar_lea.vmem %s1, %s338
      %s340 = smul.u32 2, %s19
      %s341 = smul.u32 2, %s19
      %p342 = scmp.lt.s32.totalorder %s341, 5
      %s343 = scalar_select %p342, %s341, 5
      %s344 = smul.addr %s343, 8
      %s345 = scalar_lea.vmem %s2, %s344
      %s346 = smul.u32 2, %s19
      %s347 = smul.u32 2, %s19
      %p348 = scmp.lt.s32.totalorder %s347, 5
      %s349 = scalar_select %p348, %s347, 5
      %s350 = smul.addr %s349, 8
      %s351 = scalar_lea.vmem %s8, %s350
      %s352 = smul.u32 2, %s19
      %v353 = vld [vmem:[%s333] sm:$0xff]
      %v354 = vld [vmem:[%s333 + $0x8] sm:$0xff]
      %v355 = vld [vmem:[%s339] sm:$0xff]
      %v356 = vld [vmem:[%s339 + $0x8] sm:$0xff]
      %v357 = vld [vmem:[%s345] sm:$0xff]
      %v358 = vld [vmem:[%s345 + $0x8] sm:$0xff]
      %v359 = vld [vmem:[%s5] sm:$0x1]
      %360 = vset.pattern.permute.xlu0 0
      %361 = vperm.xlu0 %360, %v357
      %v362 = vpop.permute.xlu0 %361
      %363 = vset.pattern.permute.xlu0 0
      %364 = vperm.xlu0 %363, %v358
      %v365 = vpop.permute.xlu0 %364
      %v366 = vlaneseq
      %v367 = vshrl.u32 %v366, 7
      %v368 = vsub.s32 0, %v367
      %v369 = vrot.slane %v359, %v368
      %vm370 = vcmp.eq.s32.totalorder %v362, %v369
      %vm371 = vcmp.eq.s32.totalorder %v365, %v369
      %v372 = vld [vmem:[%s4] sm:$0x1]
      %v373 = vld [vmem:[%s6] sm:$0xff]
      %v374 = vld [vmem:[%s6 + $0x8] sm:$0xff]
      %v375 = vld [vmem:[%s6 + $0x10] sm:$0xff]
      %v376 = vld [vmem:[%s6 + $0x18] sm:$0xff]
      %v377 = vld [vmem:[%s6 + $0x20] sm:$0xff]
      %v378 = vld [vmem:[%s6 + $0x28] sm:$0xff]
      %v379 = vld [vmem:[%s7 + $0x8] sm:$0xff]
      %v380 = vld [vmem:[%s7 + $0x10] sm:$0xff]
      %v381 = vld [vmem:[%s7 + $0x18] sm:$0xff]
      %v382 = vld [vmem:[%s7 + $0x20] sm:$0xff]
      %v383 = vld [vmem:[%s7] sm:$0x1]
      %v384 = vld [vmem:[%s7 + $0x28] sm:$0xff]
      %v385 = vld [vmem:[%s7 + $0x30] sm:$0xff]
      %v386 = vld [vmem:[%s7 + $0x38] sm:$0xff]
      %v387 = vld [vmem:[%s7 + $0x40] sm:$0xff]
      %v388 = vld [vmem:[%s7 + $0x1] sm:$0x1]
      %v389 = vld [vmem:[%s3] sm:$0xff]
      %vm390 = vcmask 64512
      %v392 = vsel %vm390, %v353, 0
      %v395 = vsel %vm390, %v354, 0
      %397 = vmatprep.subr.mxu0 0.0
      %398 = vmatpush1.msra.mxu0 0.0
      %399 = vmatprep.subr.mxu0 0.0
      %400 = vmatpush1.msra.mxu0 0.0
      %401 = vmatprep.subr.mxu0 0.0
      %402 = vmatpush1.msra.mxu0 0.0
      %403 = vmatprep.subr.mxu0 0.0
      %404 = vmatpush1.msra.mxu0 0.0
      %405 = vmatprep.subr.mxu0 0.0
      %406 = vmatpush1.msra.mxu0 0.0
      %407 = vmatprep.subr.mxu0 0.0
      %408 = vmatpush1.msra.mxu0 0.0
      %409 = vmatprep.subr.mxu0 0.0
      %410 = vmatpush1.msra.mxu0 0.0
      %411 = vmatprep.subr.mxu0 0.0
      %412 = vmatpush1.msra.mxu0 0.0
      %413 = vmatprep.subr.mxu0 0.0
      %414 = vmatpush1.msra.mxu0 0.0
      %415 = vmatprep.subr.mxu0 0.0
      %416 = vmatpush1.msra.mxu0 0.0
      %417 = vmatprep.subr.mxu0 0.0
      %418 = vmatpush1.msra.mxu0 0.0
      %419 = vmatprep.subr.mxu0 0.0
      %420 = vmatpush1.msra.mxu0 0.0
      %421 = vmatprep.subr.mxu0 0.0
      %422 = vmatpush1.msra.mxu0 0.0
      %423 = vmatprep.subr.mxu0 0.0
      %424 = vmatpush1.msra.mxu0 0.0
      %425 = vmatprep.subr.mxu0 0.0
      %426 = vmatpush1.msra.mxu0 0.0
      %427 = vmatprep.subr.mxu0 0.0
      %428 = vmatpush1.msra.mxu0 %v389
      %429 = vmatprep.subr.mxu0 0.0
      %430 = vmatpush2.msra.mxu0 0.0
      %431 = vmatprep.subr.mxu0 0.0
      %432 = vmatpush2.msra.mxu0 0.0
      %433 = vmatprep.subr.mxu0 0.0
      %434 = vmatpush2.msra.mxu0 0.0
      %435 = vmatprep.subr.mxu0 0.0
      %436 = vmatpush2.msra.mxu0 0.0
      %437 = vmatprep.subr.mxu0 0.0
      %438 = vmatpush2.msra.mxu0 0.0
      %439 = vmatprep.subr.mxu0 0.0
      %440 = vmatpush2.msra.mxu0 0.0
      %441 = vmatprep.subr.mxu0 0.0
      %442 = vmatpush2.msra.mxu0 0.0
      %443 = vmatprep.subr.mxu0 0.0
      %444 = vmatpush2.msra.mxu0 0.0
      %445 = vmatprep.subr.mxu0 0.0
      %446 = vmatpush2.msra.mxu0 0.0
      %447 = vmatprep.subr.mxu0 0.0
      %448 = vmatpush2.msra.mxu0 0.0
      %449 = vmatprep.subr.mxu0 0.0
      %450 = vmatpush2.msra.mxu0 0.0
      %451 = vmatprep.subr.mxu0 0.0
      %452 = vmatpush2.msra.mxu0 0.0
      %453 = vmatprep.subr.mxu0 0.0
      %454 = vmatpush2.msra.mxu0 0.0
      %455 = vmatprep.subr.mxu0 0.0
      %456 = vmatpush2.msra.mxu0 0.0
      %457 = vmatprep.subr.mxu0 0.0
      %458 = vmatpush2.msra.mxu0 0.0
      %459 = vmatprep.subr.mxu0 0.0
      %460 = vmatpush2.msra.mxu0 0.0
      %461 = vmatprep.mubr.f32.mxu0 0.0
      %462 = vmatmul.mubr.f32.gmra.mxu0 %v392
      %v463 = vpop.f32.mrf.mxu0
      %v464 = vadd.f32 0.0, %v463
      %v465 = vpop.f32.mrf.mxu0
      %466 = vmatprep.mubr.f32.mxu0 0.0
      %467 = vmatmul.mubr.f32.gmra.mxu0 %v395
      %v468 = vpop.f32.mrf.mxu0
      %v469 = vadd.f32 0.0, %v468
      %v470 = vpop.f32.mrf.mxu0
      %471 = vdwg.mxu0
      %v472 = vmul.f32 %v464, 2.0
      %v473 = vmul.f32 %v469, 2.0
      %v475 = vlaneseq
      %v476 = vshrl.u32 %v475, 7
      %v477 = vsub.s32 0, %v476
      %v478 = vrot.slane %v372, %v477
      %v480 = vsub.f32 %v478, %v472
      %v481 = vsub.f32 %v478, %v473
      %v482 = vsel %vm370, %v480, 1e+30
      %v483 = vsel %vm371, %v481, 1e+30
      %v484 = vlaneseq
      %v485 = vand.u32 %v484, 127
      %vm486 = vcmask 392192
      %v487 = vsel %vm486, %v482, inf
      %488 = vmin.xlane.f32.xlu0 %v487
      %v489 = vpop.xlane.xlu0 %488
      %v490 = vsel %vm486, %v483, inf
      %491 = vmin.xlane.f32.xlu0 %v490
      %v492 = vpop.xlane.xlu0 %491
      %vm493 = vcmp.le.f32.partialorder %v482, %v489
      %vm494 = vcmp.le.f32.partialorder %v483, %v492
      %v495 = vsel %vm493, %v485, 48
      %v496 = vsel %vm494, %v485, 48
      %v497 = vsel %vm486, %v495, 2147483647
      %v498 = vand.u32 %v497, 65535
      %v499 = vshra.s32 %v497, 16
      %v500 = vcvt.s32.f32 %v498
      %v501 = vcvt.s32.f32 %v499
      %502 = vmin.xlane.f32.xlu0 %v501
      %v503 = vpop.xlane.xlu0 %502
      %vm504 = vcmp.eq.f32.partialorder %v501, %v503
      %v505 = vsel %vm504, %v500, inf
      %506 = vmin.xlane.f32.xlu0 %v505
      %v507 = vpop.xlane.xlu0 %506
      %v508 = vcvt.f32.s32 %v507
      %v509 = vcvt.f32.s32 %v503
      %v510 = vshll.u32 %v509, 16
      %v511 = vadd.s32 %v510, %v508
      %v512 = vsel %vm486, %v496, 2147483647
      %v513 = vand.u32 %v512, 65535
      %v514 = vshra.s32 %v512, 16
      %v515 = vcvt.s32.f32 %v513
      %v516 = vcvt.s32.f32 %v514
      %517 = vmin.xlane.f32.xlu0 %v516
      %v518 = vpop.xlane.xlu0 %517
      %vm519 = vcmp.eq.f32.partialorder %v516, %v518
      %v520 = vsel %vm519, %v515, inf
      %521 = vmin.xlane.f32.xlu0 %v520
      %v522 = vpop.xlane.xlu0 %521
      %v523 = vcvt.f32.s32 %v522
      %v524 = vcvt.f32.s32 %v518
      %v525 = vshll.u32 %v524, 16
      %v526 = vadd.s32 %v525, %v523
      %vm527 = vcmp.eq.s32.totalorder %v485, %v511
      %vm528 = vcmp.eq.s32.totalorder %v485, %v526
      %v529 = vsel %vm527, 1e+30, %v482
      %v530 = vsel %vm528, 1e+30, %v483
      %v531 = vsel %vm527, 1, 0
      %v532 = vsel %vm528, 1, 0
      %v533 = vcvt.s32.f32 %v531
      %v534 = vcvt.s32.f32 %v532
      %v536 = vsel %vm486, %v533, 0
      %v539 = vsel %vm486, %v534, 0
      %541 = vmatprep.subr.mxu0 0.0
      %542 = vmatpush1.msra.mxu0 0.0
      %543 = vmatprep.subr.mxu0 0.0
      %544 = vmatpush1.msra.mxu0 0.0
      %545 = vmatprep.subr.mxu0 0.0
      %546 = vmatpush1.msra.mxu0 0.0
      %547 = vmatprep.subr.mxu0 0.0
      %548 = vmatpush1.msra.mxu0 0.0
      %549 = vmatprep.subr.mxu0 0.0
      %550 = vmatpush1.msra.mxu0 0.0
      %551 = vmatprep.subr.mxu0 0.0
      %552 = vmatpush1.msra.mxu0 0.0
      %553 = vmatprep.subr.mxu0 0.0
      %554 = vmatpush1.msra.mxu0 0.0
      %555 = vmatprep.subr.mxu0 0.0
      %556 = vmatpush1.msra.mxu0 0.0
      %557 = vmatprep.subr.mxu0 0.0
      %558 = vmatpush1.msra.mxu0 0.0
      %559 = vmatprep.subr.mxu0 0.0
      %560 = vmatpush1.msra.mxu0 0.0
      %561 = vmatprep.subr.mxu0 0.0
      %562 = vmatpush1.msra.mxu0 %v378
      %563 = vmatprep.subr.mxu0 0.0
      %564 = vmatpush1.msra.mxu0 %v377
      %565 = vmatprep.subr.mxu0 0.0
      %566 = vmatpush1.msra.mxu0 %v376
      %567 = vmatprep.subr.mxu0 0.0
      %568 = vmatpush1.msra.mxu0 %v375
      %569 = vmatprep.subr.mxu0 0.0
      %570 = vmatpush1.msra.mxu0 %v374
      %571 = vmatprep.subr.mxu0 0.0
      %572 = vmatpush1.msra.mxu0 %v373
      %573 = vmatprep.subr.mxu0 0.0
      %574 = vmatpush2.msra.mxu0 0.0
      %575 = vmatprep.subr.mxu0 0.0
      %576 = vmatpush2.msra.mxu0 0.0
      %577 = vmatprep.subr.mxu0 0.0
      %578 = vmatpush2.msra.mxu0 0.0
      %579 = vmatprep.subr.mxu0 0.0
      %580 = vmatpush2.msra.mxu0 0.0
      %581 = vmatprep.subr.mxu0 0.0
      %582 = vmatpush2.msra.mxu0 0.0
      %583 = vmatprep.subr.mxu0 0.0
      %584 = vmatpush2.msra.mxu0 0.0
      %585 = vmatprep.subr.mxu0 0.0
      %586 = vmatpush2.msra.mxu0 0.0
      %587 = vmatprep.subr.mxu0 0.0
      %588 = vmatpush2.msra.mxu0 0.0
      %589 = vmatprep.subr.mxu0 0.0
      %590 = vmatpush2.msra.mxu0 0.0
      %591 = vmatprep.subr.mxu0 0.0
      %592 = vmatpush2.msra.mxu0 0.0
      %593 = vmatprep.subr.mxu0 0.0
      %594 = vmatpush2.msra.mxu0 0.0
      %595 = vmatprep.subr.mxu0 0.0
      %596 = vmatpush2.msra.mxu0 0.0
      %597 = vmatprep.subr.mxu0 0.0
      %598 = vmatpush2.msra.mxu0 0.0
      %599 = vmatprep.subr.mxu0 0.0
      %600 = vmatpush2.msra.mxu0 0.0
      %601 = vmatprep.subr.mxu0 0.0
      %602 = vmatpush2.msra.mxu0 0.0
      %603 = vmatprep.subr.mxu0 0.0
      %604 = vmatpush2.msra.mxu0 0.0
      %605 = vmatprep.mubr.f32.mxu0 0.0
      %606 = vmatmul.mubr.f32.gmra.mxu0 %v536
      %v607 = vpop.f32.mrf.mxu0
      %v608 = vadd.f32 0.0, %v607
      %v609 = vpop.f32.mrf.mxu0
      %610 = vmatprep.mubr.f32.mxu0 0.0
      %611 = vmatmul.mubr.f32.gmra.mxu0 %v539
      %v612 = vpop.f32.mrf.mxu0
      %v613 = vadd.f32 0.0, %v612
      %v614 = vpop.f32.mrf.mxu0
      %615 = vdwg.mxu0
      %v616 = vadd.f32 %v355, %v608
      %v617 = vadd.f32 %v356, %v613
      %v618 = vmax.f32 %v616, 0.0
      %v619 = vmax.f32 %v617, 0.0
      %v620 = vlaneseq
      %v621 = vshrl.u32 %v620, 7
      %v622 = vsub.s32 0, %v621
      %v623 = vrot.slane %v383, %v622
      %vm624 = vcmask 261120
      %v626 = vsel %vm624, %v618, 0
      %v629 = vsel %vm624, %v619, 0
      %631 = vmatprep.subr.mxu0 0.0
      %632 = vmatpush1.msra.mxu0 0.0
      %633 = vmatprep.subr.mxu0 0.0
      %634 = vmatpush1.msra.mxu0 0.0
      %635 = vmatprep.subr.mxu0 0.0
      %636 = vmatpush1.msra.mxu0 0.0
      %637 = vmatprep.subr.mxu0 0.0
      %638 = vmatpush1.msra.mxu0 0.0
      %639 = vmatprep.subr.mxu0 0.0
      %640 = vmatpush1.msra.mxu0 0.0
      %641 = vmatprep.subr.mxu0 0.0
      %642 = vmatpush1.msra.mxu0 0.0
      %643 = vmatprep.subr.mxu0 0.0
      %644 = vmatpush1.msra.mxu0 0.0
      %645 = vmatprep.subr.mxu0 0.0
      %646 = vmatpush1.msra.mxu0 0.0
      %647 = vmatprep.subr.mxu0 0.0
      %648 = vmatpush1.msra.mxu0 0.0
      %649 = vmatprep.subr.mxu0 0.0
      %650 = vmatpush1.msra.mxu0 0.0
      %651 = vmatprep.subr.mxu0 0.0
      %652 = vmatpush1.msra.mxu0 0.0
      %653 = vmatprep.subr.mxu0 0.0
      %654 = vmatpush1.msra.mxu0 0.0
      %655 = vmatprep.subr.mxu0 0.0
      %656 = vmatpush1.msra.mxu0 %v382
      %657 = vmatprep.subr.mxu0 0.0
      %658 = vmatpush1.msra.mxu0 %v381
      %659 = vmatprep.subr.mxu0 0.0
      %660 = vmatpush1.msra.mxu0 %v380
      %661 = vmatprep.subr.mxu0 0.0
      %662 = vmatpush1.msra.mxu0 %v379
      %663 = vmatprep.subr.mxu0 0.0
      %664 = vmatpush2.msra.mxu0 0.0
      %665 = vmatprep.subr.mxu0 0.0
      %666 = vmatpush2.msra.mxu0 0.0
      %667 = vmatprep.subr.mxu0 0.0
      %668 = vmatpush2.msra.mxu0 0.0
      %669 = vmatprep.subr.mxu0 0.0
      %670 = vmatpush2.msra.mxu0 0.0
      %671 = vmatprep.subr.mxu0 0.0
      %672 = vmatpush2.msra.mxu0 0.0
      %673 = vmatprep.subr.mxu0 0.0
      %674 = vmatpush2.msra.mxu0 0.0
      %675 = vmatprep.subr.mxu0 0.0
      %676 = vmatpush2.msra.mxu0 0.0
      %677 = vmatprep.subr.mxu0 0.0
      %678 = vmatpush2.msra.mxu0 0.0
      %679 = vmatprep.subr.mxu0 0.0
      %680 = vmatpush2.msra.mxu0 0.0
      %681 = vmatprep.subr.mxu0 0.0
      %682 = vmatpush2.msra.mxu0 0.0
      %683 = vmatprep.subr.mxu0 0.0
      %684 = vmatpush2.msra.mxu0 0.0
      %685 = vmatprep.subr.mxu0 0.0
      %686 = vmatpush2.msra.mxu0 0.0
      %687 = vmatprep.subr.mxu0 0.0
      %688 = vmatpush2.msra.mxu0 0.0
      %689 = vmatprep.subr.mxu0 0.0
      %690 = vmatpush2.msra.mxu0 0.0
      %691 = vmatprep.subr.mxu0 0.0
      %692 = vmatpush2.msra.mxu0 0.0
      %693 = vmatprep.subr.mxu0 0.0
      %694 = vmatpush2.msra.mxu0 0.0
      %695 = vmatprep.mubr.f32.mxu0 0.0
      %696 = vmatmul.mubr.f32.gmra.mxu0 %v626
      %v697 = vpop.f32.mrf.mxu0
      %v698 = vadd.f32 %v623, %v697
      %v699 = vpop.f32.mrf.mxu0
      %700 = vmatprep.mubr.f32.mxu0 0.0
      %701 = vmatmul.mubr.f32.gmra.mxu0 %v629
      %v702 = vpop.f32.mrf.mxu0
      %v703 = vadd.f32 %v623, %v702
      %v704 = vpop.f32.mrf.mxu0
      %705 = vdwg.mxu0
      %v706 = vmax.f32 %v698, 0.0
      %v707 = vmax.f32 %v703, 0.0
      %v708 = vlaneseq
      %v709 = vshrl.u32 %v708, 7
      %v710 = vsub.s32 0, %v709
      %v711 = vrot.slane %v388, %v710
      %v713 = vsel %vm624, %v706, 0
      %v716 = vsel %vm624, %v707, 0
      %718 = vmatprep.subr.mxu0 0.0
      %719 = vmatpush1.msra.mxu0 0.0
      %720 = vmatprep.subr.mxu0 0.0
      %721 = vmatpush1.msra.mxu0 0.0
      %722 = vmatprep.subr.mxu0 0.0
      %723 = vmatpush1.msra.mxu0 0.0
      %724 = vmatprep.subr.mxu0 0.0
      %725 = vmatpush1.msra.mxu0 0.0
      %726 = vmatprep.subr.mxu0 0.0
      %727 = vmatpush1.msra.mxu0 0.0
      %728 = vmatprep.subr.mxu0 0.0
      %729 = vmatpush1.msra.mxu0 0.0
      %730 = vmatprep.subr.mxu0 0.0
      %731 = vmatpush1.msra.mxu0 0.0
      %732 = vmatprep.subr.mxu0 0.0
      %733 = vmatpush1.msra.mxu0 0.0
      %734 = vmatprep.subr.mxu0 0.0
      %735 = vmatpush1.msra.mxu0 0.0
      %736 = vmatprep.subr.mxu0 0.0
      %737 = vmatpush1.msra.mxu0 0.0
      %738 = vmatprep.subr.mxu0 0.0
      %739 = vmatpush1.msra.mxu0 0.0
      %740 = vmatprep.subr.mxu0 0.0
      %741 = vmatpush1.msra.mxu0 0.0
      %742 = vmatprep.subr.mxu0 0.0
      %743 = vmatpush1.msra.mxu0 %v387
      %744 = vmatprep.subr.mxu0 0.0
      %745 = vmatpush1.msra.mxu0 %v386
      %746 = vmatprep.subr.mxu0 0.0
      %747 = vmatpush1.msra.mxu0 %v385
      %748 = vmatprep.subr.mxu0 0.0
      %749 = vmatpush1.msra.mxu0 %v384
      %750 = vmatprep.subr.mxu0 0.0
      %751 = vmatpush2.msra.mxu0 0.0
      %752 = vmatprep.subr.mxu0 0.0
      %753 = vmatpush2.msra.mxu0 0.0
      %754 = vmatprep.subr.mxu0 0.0
      %755 = vmatpush2.msra.mxu0 0.0
      %756 = vmatprep.subr.mxu0 0.0
      %757 = vmatpush2.msra.mxu0 0.0
      %758 = vmatprep.subr.mxu0 0.0
      %759 = vmatpush2.msra.mxu0 0.0
      %760 = vmatprep.subr.mxu0 0.0
      %761 = vmatpush2.msra.mxu0 0.0
      %762 = vmatprep.subr.mxu0 0.0
      %763 = vmatpush2.msra.mxu0 0.0
      %764 = vmatprep.subr.mxu0 0.0
      %765 = vmatpush2.msra.mxu0 0.0
      %766 = vmatprep.subr.mxu0 0.0
      %767 = vmatpush2.msra.mxu0 0.0
      %768 = vmatprep.subr.mxu0 0.0
      %769 = vmatpush2.msra.mxu0 0.0
      %770 = vmatprep.subr.mxu0 0.0
      %771 = vmatpush2.msra.mxu0 0.0
      %772 = vmatprep.subr.mxu0 0.0
      %773 = vmatpush2.msra.mxu0 0.0
      %774 = vmatprep.subr.mxu0 0.0
      %775 = vmatpush2.msra.mxu0 0.0
      %776 = vmatprep.subr.mxu0 0.0
      %777 = vmatpush2.msra.mxu0 0.0
      %778 = vmatprep.subr.mxu0 0.0
      %779 = vmatpush2.msra.mxu0 0.0
      %780 = vmatprep.subr.mxu0 0.0
      %781 = vmatpush2.msra.mxu0 0.0
      %782 = vmatprep.mubr.f32.mxu0 0.0
      %783 = vmatmul.mubr.f32.gmra.mxu0 %v713
      %v784 = vpop.f32.mrf.mxu0
      %v785 = vadd.f32 %v711, %v784
      %v786 = vpop.f32.mrf.mxu0
      %787 = vmatprep.mubr.f32.mxu0 0.0
      %788 = vmatmul.mubr.f32.gmra.mxu0 %v716
      %v789 = vpop.f32.mrf.mxu0
      %v790 = vadd.f32 %v711, %v789
      %v791 = vpop.f32.mrf.mxu0
      %792 = vdwg.mxu0
      %v793 = vmax.f32 %v785, 0.0
      %v794 = vmax.f32 %v790, 0.0
      %v795 = vadd.f32 %v793, 0.0
      %v796 = vadd.f32 %v794, 0.0
      %v797 = vsel %vm486, %v529, inf
      %798 = vmin.xlane.f32.xlu0 %v797
      %v799 = vpop.xlane.xlu0 %798
      %v800 = vsel %vm486, %v530, inf
      %801 = vmin.xlane.f32.xlu0 %v800
      %v802 = vpop.xlane.xlu0 %801
      %vm803 = vcmp.le.f32.partialorder %v529, %v799
      %vm804 = vcmp.le.f32.partialorder %v530, %v802
      %v805 = vsel %vm803, %v485, 48
      %v806 = vsel %vm804, %v485, 48
      %v807 = vsel %vm486, %v805, 2147483647
      %v808 = vand.u32 %v807, 65535
      %v809 = vshra.s32 %v807, 16
      %v810 = vcvt.s32.f32 %v808
      %v811 = vcvt.s32.f32 %v809
      %812 = vmin.xlane.f32.xlu0 %v811
      %v813 = vpop.xlane.xlu0 %812
      %vm814 = vcmp.eq.f32.partialorder %v811, %v813
      %v815 = vsel %vm814, %v810, inf
      %816 = vmin.xlane.f32.xlu0 %v815
      %v817 = vpop.xlane.xlu0 %816
      %v818 = vcvt.f32.s32 %v817
      %v819 = vcvt.f32.s32 %v813
      %v820 = vshll.u32 %v819, 16
      %v821 = vadd.s32 %v820, %v818
      %v822 = vsel %vm486, %v806, 2147483647
      %v823 = vand.u32 %v822, 65535
      %v824 = vshra.s32 %v822, 16
      %v825 = vcvt.s32.f32 %v823
      %v826 = vcvt.s32.f32 %v824
      %827 = vmin.xlane.f32.xlu0 %v826
      %v828 = vpop.xlane.xlu0 %827
      %vm829 = vcmp.eq.f32.partialorder %v826, %v828
      %v830 = vsel %vm829, %v825, inf
      %831 = vmin.xlane.f32.xlu0 %v830
      %v832 = vpop.xlane.xlu0 %831
      %v833 = vcvt.f32.s32 %v832
      %v834 = vcvt.f32.s32 %v828
      %v835 = vshll.u32 %v834, 16
      %v836 = vadd.s32 %v835, %v833
      %vm837 = vcmp.eq.s32.totalorder %v485, %v821
      %vm838 = vcmp.eq.s32.totalorder %v485, %v836
      %v839 = vsel %vm837, 1e+30, %v529
      %v840 = vsel %vm838, 1e+30, %v530
      %v841 = vsel %vm837, 1, 0
      %v842 = vsel %vm838, 1, 0
      %v843 = vcvt.s32.f32 %v841
      %v844 = vcvt.s32.f32 %v842
      %v846 = vsel %vm486, %v843, 0
      %v849 = vsel %vm486, %v844, 0
      %851 = vmatprep.subr.mxu0 0.0
      %852 = vmatpush1.msra.mxu0 0.0
      %853 = vmatprep.subr.mxu0 0.0
      %854 = vmatpush1.msra.mxu0 0.0
      %855 = vmatprep.subr.mxu0 0.0
      %856 = vmatpush1.msra.mxu0 0.0
      %857 = vmatprep.subr.mxu0 0.0
      %858 = vmatpush1.msra.mxu0 0.0
      %859 = vmatprep.subr.mxu0 0.0
      %860 = vmatpush1.msra.mxu0 0.0
      %861 = vmatprep.subr.mxu0 0.0
      %862 = vmatpush1.msra.mxu0 0.0
      %863 = vmatprep.subr.mxu0 0.0
      %864 = vmatpush1.msra.mxu0 0.0
      %865 = vmatprep.subr.mxu0 0.0
      %866 = vmatpush1.msra.mxu0 0.0
      %867 = vmatprep.subr.mxu0 0.0
      %868 = vmatpush1.msra.mxu0 0.0
      %869 = vmatprep.subr.mxu0 0.0
      %870 = vmatpush1.msra.mxu0 0.0
      %871 = vmatprep.subr.mxu0 0.0
      %872 = vmatpush1.msra.mxu0 %v378
      %873 = vmatprep.subr.mxu0 0.0
      %874 = vmatpush1.msra.mxu0 %v377
      %875 = vmatprep.subr.mxu0 0.0
      %876 = vmatpush1.msra.mxu0 %v376
      %877 = vmatprep.subr.mxu0 0.0
      %878 = vmatpush1.msra.mxu0 %v375
      %879 = vmatprep.subr.mxu0 0.0
      %880 = vmatpush1.msra.mxu0 %v374
      %881 = vmatprep.subr.mxu0 0.0
      %882 = vmatpush1.msra.mxu0 %v373
      %883 = vmatprep.subr.mxu0 0.0
      %884 = vmatpush2.msra.mxu0 0.0
      %885 = vmatprep.subr.mxu0 0.0
      %886 = vmatpush2.msra.mxu0 0.0
      %887 = vmatprep.subr.mxu0 0.0
      %888 = vmatpush2.msra.mxu0 0.0
      %889 = vmatprep.subr.mxu0 0.0
      %890 = vmatpush2.msra.mxu0 0.0
      %891 = vmatprep.subr.mxu0 0.0
      %892 = vmatpush2.msra.mxu0 0.0
      %893 = vmatprep.subr.mxu0 0.0
      %894 = vmatpush2.msra.mxu0 0.0
      %895 = vmatprep.subr.mxu0 0.0
      %896 = vmatpush2.msra.mxu0 0.0
      %897 = vmatprep.subr.mxu0 0.0
      %898 = vmatpush2.msra.mxu0 0.0
      %899 = vmatprep.subr.mxu0 0.0
      %900 = vmatpush2.msra.mxu0 0.0
      %901 = vmatprep.subr.mxu0 0.0
      %902 = vmatpush2.msra.mxu0 0.0
      %903 = vmatprep.subr.mxu0 0.0
      %904 = vmatpush2.msra.mxu0 0.0
      %905 = vmatprep.subr.mxu0 0.0
      %906 = vmatpush2.msra.mxu0 0.0
      %907 = vmatprep.subr.mxu0 0.0
      %908 = vmatpush2.msra.mxu0 0.0
      %909 = vmatprep.subr.mxu0 0.0
      %910 = vmatpush2.msra.mxu0 0.0
      %911 = vmatprep.subr.mxu0 0.0
      %912 = vmatpush2.msra.mxu0 0.0
      %913 = vmatprep.subr.mxu0 0.0
      %914 = vmatpush2.msra.mxu0 0.0
      %915 = vmatprep.mubr.f32.mxu0 0.0
      %916 = vmatmul.mubr.f32.gmra.mxu0 %v846
      %v917 = vpop.f32.mrf.mxu0
      %v918 = vadd.f32 0.0, %v917
      %v919 = vpop.f32.mrf.mxu0
      %920 = vmatprep.mubr.f32.mxu0 0.0
      %921 = vmatmul.mubr.f32.gmra.mxu0 %v849
      %v922 = vpop.f32.mrf.mxu0
      %v923 = vadd.f32 0.0, %v922
      %v924 = vpop.f32.mrf.mxu0
      %925 = vdwg.mxu0
      %v926 = vadd.f32 %v355, %v918
      %v927 = vadd.f32 %v356, %v923
      %v928 = vmax.f32 %v926, 0.0
      %v929 = vmax.f32 %v927, 0.0
      %v931 = vsel %vm624, %v928, 0
      %v934 = vsel %vm624, %v929, 0
      %936 = vmatprep.subr.mxu0 0.0
      %937 = vmatpush1.msra.mxu0 0.0
      %938 = vmatprep.subr.mxu0 0.0
      %939 = vmatpush1.msra.mxu0 0.0
      %940 = vmatprep.subr.mxu0 0.0
      %941 = vmatpush1.msra.mxu0 0.0
      %942 = vmatprep.subr.mxu0 0.0
      %943 = vmatpush1.msra.mxu0 0.0
      %944 = vmatprep.subr.mxu0 0.0
      %945 = vmatpush1.msra.mxu0 0.0
      %946 = vmatprep.subr.mxu0 0.0
      %947 = vmatpush1.msra.mxu0 0.0
      %948 = vmatprep.subr.mxu0 0.0
      %949 = vmatpush1.msra.mxu0 0.0
      %950 = vmatprep.subr.mxu0 0.0
      %951 = vmatpush1.msra.mxu0 0.0
      %952 = vmatprep.subr.mxu0 0.0
      %953 = vmatpush1.msra.mxu0 0.0
      %954 = vmatprep.subr.mxu0 0.0
      %955 = vmatpush1.msra.mxu0 0.0
      %956 = vmatprep.subr.mxu0 0.0
      %957 = vmatpush1.msra.mxu0 0.0
      %958 = vmatprep.subr.mxu0 0.0
      %959 = vmatpush1.msra.mxu0 0.0
      %960 = vmatprep.subr.mxu0 0.0
      %961 = vmatpush1.msra.mxu0 %v382
      %962 = vmatprep.subr.mxu0 0.0
      %963 = vmatpush1.msra.mxu0 %v381
      %964 = vmatprep.subr.mxu0 0.0
      %965 = vmatpush1.msra.mxu0 %v380
      %966 = vmatprep.subr.mxu0 0.0
      %967 = vmatpush1.msra.mxu0 %v379
      %968 = vmatprep.subr.mxu0 0.0
      %969 = vmatpush2.msra.mxu0 0.0
      %970 = vmatprep.subr.mxu0 0.0
      %971 = vmatpush2.msra.mxu0 0.0
      %972 = vmatprep.subr.mxu0 0.0
      %973 = vmatpush2.msra.mxu0 0.0
      %974 = vmatprep.subr.mxu0 0.0
      %975 = vmatpush2.msra.mxu0 0.0
      %976 = vmatprep.subr.mxu0 0.0
      %977 = vmatpush2.msra.mxu0 0.0
      %978 = vmatprep.subr.mxu0 0.0
      %979 = vmatpush2.msra.mxu0 0.0
      %980 = vmatprep.subr.mxu0 0.0
      %981 = vmatpush2.msra.mxu0 0.0
      %982 = vmatprep.subr.mxu0 0.0
      %983 = vmatpush2.msra.mxu0 0.0
      %984 = vmatprep.subr.mxu0 0.0
      %985 = vmatpush2.msra.mxu0 0.0
      %986 = vmatprep.subr.mxu0 0.0
      %987 = vmatpush2.msra.mxu0 0.0
      %988 = vmatprep.subr.mxu0 0.0
      %989 = vmatpush2.msra.mxu0 0.0
      %990 = vmatprep.subr.mxu0 0.0
      %991 = vmatpush2.msra.mxu0 0.0
      %992 = vmatprep.subr.mxu0 0.0
      %993 = vmatpush2.msra.mxu0 0.0
      %994 = vmatprep.subr.mxu0 0.0
      %995 = vmatpush2.msra.mxu0 0.0
      %996 = vmatprep.subr.mxu0 0.0
      %997 = vmatpush2.msra.mxu0 0.0
      %998 = vmatprep.subr.mxu0 0.0
      %999 = vmatpush2.msra.mxu0 0.0
      %1000 = vmatprep.mubr.f32.mxu0 0.0
      %1001 = vmatmul.mubr.f32.gmra.mxu0 %v931
      %v1002 = vpop.f32.mrf.mxu0
      %v1003 = vadd.f32 %v623, %v1002
      %v1004 = vpop.f32.mrf.mxu0
      %1005 = vmatprep.mubr.f32.mxu0 0.0
      %1006 = vmatmul.mubr.f32.gmra.mxu0 %v934
      %v1007 = vpop.f32.mrf.mxu0
      %v1008 = vadd.f32 %v623, %v1007
      %v1009 = vpop.f32.mrf.mxu0
      %1010 = vdwg.mxu0
      %v1011 = vmax.f32 %v1003, 0.0
      %v1012 = vmax.f32 %v1008, 0.0
      %v1014 = vsel %vm624, %v1011, 0
      %v1017 = vsel %vm624, %v1012, 0
      %1019 = vmatprep.subr.mxu0 0.0
      %1020 = vmatpush1.msra.mxu0 0.0
      %1021 = vmatprep.subr.mxu0 0.0
      %1022 = vmatpush1.msra.mxu0 0.0
      %1023 = vmatprep.subr.mxu0 0.0
      %1024 = vmatpush1.msra.mxu0 0.0
      %1025 = vmatprep.subr.mxu0 0.0
      %1026 = vmatpush1.msra.mxu0 0.0
      %1027 = vmatprep.subr.mxu0 0.0
      %1028 = vmatpush1.msra.mxu0 0.0
      %1029 = vmatprep.subr.mxu0 0.0
      %1030 = vmatpush1.msra.mxu0 0.0
      %1031 = vmatprep.subr.mxu0 0.0
      %1032 = vmatpush1.msra.mxu0 0.0
      %1033 = vmatprep.subr.mxu0 0.0
      %1034 = vmatpush1.msra.mxu0 0.0
      %1035 = vmatprep.subr.mxu0 0.0
      %1036 = vmatpush1.msra.mxu0 0.0
      %1037 = vmatprep.subr.mxu0 0.0
      %1038 = vmatpush1.msra.mxu0 0.0
      %1039 = vmatprep.subr.mxu0 0.0
      %1040 = vmatpush1.msra.mxu0 0.0
      %1041 = vmatprep.subr.mxu0 0.0
      %1042 = vmatpush1.msra.mxu0 0.0
      %1043 = vmatprep.subr.mxu0 0.0
      %1044 = vmatpush1.msra.mxu0 %v387
      %1045 = vmatprep.subr.mxu0 0.0
      %1046 = vmatpush1.msra.mxu0 %v386
      %1047 = vmatprep.subr.mxu0 0.0
      %1048 = vmatpush1.msra.mxu0 %v385
      %1049 = vmatprep.subr.mxu0 0.0
      %1050 = vmatpush1.msra.mxu0 %v384
      %1051 = vmatprep.subr.mxu0 0.0
      %1052 = vmatpush2.msra.mxu0 0.0
      %1053 = vmatprep.subr.mxu0 0.0
      %1054 = vmatpush2.msra.mxu0 0.0
      %1055 = vmatprep.subr.mxu0 0.0
      %1056 = vmatpush2.msra.mxu0 0.0
      %1057 = vmatprep.subr.mxu0 0.0
      %1058 = vmatpush2.msra.mxu0 0.0
      %1059 = vmatprep.subr.mxu0 0.0
      %1060 = vmatpush2.msra.mxu0 0.0
      %1061 = vmatprep.subr.mxu0 0.0
      %1062 = vmatpush2.msra.mxu0 0.0
      %1063 = vmatprep.subr.mxu0 0.0
      %1064 = vmatpush2.msra.mxu0 0.0
      %1065 = vmatprep.subr.mxu0 0.0
      %1066 = vmatpush2.msra.mxu0 0.0
      %1067 = vmatprep.subr.mxu0 0.0
      %1068 = vmatpush2.msra.mxu0 0.0
      %1069 = vmatprep.subr.mxu0 0.0
      %1070 = vmatpush2.msra.mxu0 0.0
      %1071 = vmatprep.subr.mxu0 0.0
      %1072 = vmatpush2.msra.mxu0 0.0
      %1073 = vmatprep.subr.mxu0 0.0
      %1074 = vmatpush2.msra.mxu0 0.0
      %1075 = vmatprep.subr.mxu0 0.0
      %1076 = vmatpush2.msra.mxu0 0.0
      %1077 = vmatprep.subr.mxu0 0.0
      %1078 = vmatpush2.msra.mxu0 0.0
      %1079 = vmatprep.subr.mxu0 0.0
      %1080 = vmatpush2.msra.mxu0 0.0
      %1081 = vmatprep.subr.mxu0 0.0
      %1082 = vmatpush2.msra.mxu0 0.0
      %1083 = vmatprep.mubr.f32.mxu0 0.0
      %1084 = vmatmul.mubr.f32.gmra.mxu0 %v1014
      %v1085 = vpop.f32.mrf.mxu0
      %v1086 = vadd.f32 %v711, %v1085
      %v1087 = vpop.f32.mrf.mxu0
      %1088 = vmatprep.mubr.f32.mxu0 0.0
      %1089 = vmatmul.mubr.f32.gmra.mxu0 %v1017
      %v1090 = vpop.f32.mrf.mxu0
      %v1091 = vadd.f32 %v711, %v1090
      %v1092 = vpop.f32.mrf.mxu0
      %1093 = vdwg.mxu0
      %v1094 = vmax.f32 %v1086, 0.0
      %v1095 = vmax.f32 %v1091, 0.0
      %v1096 = vadd.f32 %v795, %v1094
      %v1097 = vadd.f32 %v796, %v1095
      %v1098 = vsel %vm486, %v839, inf
      %1099 = vmin.xlane.f32.xlu0 %v1098
      %v1100 = vpop.xlane.xlu0 %1099
      %v1101 = vsel %vm486, %v840, inf
      %1102 = vmin.xlane.f32.xlu0 %v1101
      %v1103 = vpop.xlane.xlu0 %1102
      %vm1104 = vcmp.le.f32.partialorder %v839, %v1100
      %vm1105 = vcmp.le.f32.partialorder %v840, %v1103
      %v1106 = vsel %vm1104, %v485, 48
      %v1107 = vsel %vm1105, %v485, 48
      %v1108 = vsel %vm486, %v1106, 2147483647
      %v1109 = vand.u32 %v1108, 65535
      %v1110 = vshra.s32 %v1108, 16
      %v1111 = vcvt.s32.f32 %v1109
      %v1112 = vcvt.s32.f32 %v1110
      %1113 = vmin.xlane.f32.xlu0 %v1112
      %v1114 = vpop.xlane.xlu0 %1113
      %vm1115 = vcmp.eq.f32.partialorder %v1112, %v1114
      %v1116 = vsel %vm1115, %v1111, inf
      %1117 = vmin.xlane.f32.xlu0 %v1116
      %v1118 = vpop.xlane.xlu0 %1117
      %v1119 = vcvt.f32.s32 %v1118
      %v1120 = vcvt.f32.s32 %v1114
      %v1121 = vshll.u32 %v1120, 16
      %v1122 = vadd.s32 %v1121, %v1119
      %v1123 = vsel %vm486, %v1107, 2147483647
      %v1124 = vand.u32 %v1123, 65535
      %v1125 = vshra.s32 %v1123, 16
      %v1126 = vcvt.s32.f32 %v1124
      %v1127 = vcvt.s32.f32 %v1125
      %1128 = vmin.xlane.f32.xlu0 %v1127
      %v1129 = vpop.xlane.xlu0 %1128
      %vm1130 = vcmp.eq.f32.partialorder %v1127, %v1129
      %v1131 = vsel %vm1130, %v1126, inf
      %1132 = vmin.xlane.f32.xlu0 %v1131
      %v1133 = vpop.xlane.xlu0 %1132
      %v1134 = vcvt.f32.s32 %v1133
      %v1135 = vcvt.f32.s32 %v1129
      %v1136 = vshll.u32 %v1135, 16
      %v1137 = vadd.s32 %v1136, %v1134
      %vm1138 = vcmp.eq.s32.totalorder %v485, %v1122
      %vm1139 = vcmp.eq.s32.totalorder %v485, %v1137
      %v1140 = vsel %vm1138, 1, 0
      %v1141 = vsel %vm1139, 1, 0
      %v1142 = vcvt.s32.f32 %v1140
      %v1143 = vcvt.s32.f32 %v1141
      %v1145 = vsel %vm486, %v1142, 0
      %v1148 = vsel %vm486, %v1143, 0
      %1150 = vmatprep.subr.mxu0 0.0
      %1151 = vmatpush1.msra.mxu0 0.0
      %1152 = vmatprep.subr.mxu0 0.0
      %1153 = vmatpush1.msra.mxu0 0.0
      %1154 = vmatprep.subr.mxu0 0.0
      %1155 = vmatpush1.msra.mxu0 0.0
      %1156 = vmatprep.subr.mxu0 0.0
      %1157 = vmatpush1.msra.mxu0 0.0
      %1158 = vmatprep.subr.mxu0 0.0
      %1159 = vmatpush1.msra.mxu0 0.0
      %1160 = vmatprep.subr.mxu0 0.0
      %1161 = vmatpush1.msra.mxu0 0.0
      %1162 = vmatprep.subr.mxu0 0.0
      %1163 = vmatpush1.msra.mxu0 0.0
      %1164 = vmatprep.subr.mxu0 0.0
      %1165 = vmatpush1.msra.mxu0 0.0
      %1166 = vmatprep.subr.mxu0 0.0
      %1167 = vmatpush1.msra.mxu0 0.0
      %1168 = vmatprep.subr.mxu0 0.0
      %1169 = vmatpush1.msra.mxu0 0.0
      %1170 = vmatprep.subr.mxu0 0.0
      %1171 = vmatpush1.msra.mxu0 %v378
      %1172 = vmatprep.subr.mxu0 0.0
      %1173 = vmatpush1.msra.mxu0 %v377
      %1174 = vmatprep.subr.mxu0 0.0
      %1175 = vmatpush1.msra.mxu0 %v376
      %1176 = vmatprep.subr.mxu0 0.0
      %1177 = vmatpush1.msra.mxu0 %v375
      %1178 = vmatprep.subr.mxu0 0.0
      %1179 = vmatpush1.msra.mxu0 %v374
      %1180 = vmatprep.subr.mxu0 0.0
      %1181 = vmatpush1.msra.mxu0 %v373
      %1182 = vmatprep.subr.mxu0 0.0
      %1183 = vmatpush2.msra.mxu0 0.0
      %1184 = vmatprep.subr.mxu0 0.0
      %1185 = vmatpush2.msra.mxu0 0.0
      %1186 = vmatprep.subr.mxu0 0.0
      %1187 = vmatpush2.msra.mxu0 0.0
      %1188 = vmatprep.subr.mxu0 0.0
      %1189 = vmatpush2.msra.mxu0 0.0
      %1190 = vmatprep.subr.mxu0 0.0
      %1191 = vmatpush2.msra.mxu0 0.0
      %1192 = vmatprep.subr.mxu0 0.0
      %1193 = vmatpush2.msra.mxu0 0.0
      %1194 = vmatprep.subr.mxu0 0.0
      %1195 = vmatpush2.msra.mxu0 0.0
      %1196 = vmatprep.subr.mxu0 0.0
      %1197 = vmatpush2.msra.mxu0 0.0
      %1198 = vmatprep.subr.mxu0 0.0
      %1199 = vmatpush2.msra.mxu0 0.0
      %1200 = vmatprep.subr.mxu0 0.0
      %1201 = vmatpush2.msra.mxu0 0.0
      %1202 = vmatprep.subr.mxu0 0.0
      %1203 = vmatpush2.msra.mxu0 0.0
      %1204 = vmatprep.subr.mxu0 0.0
      %1205 = vmatpush2.msra.mxu0 0.0
      %1206 = vmatprep.subr.mxu0 0.0
      %1207 = vmatpush2.msra.mxu0 0.0
      %1208 = vmatprep.subr.mxu0 0.0
      %1209 = vmatpush2.msra.mxu0 0.0
      %1210 = vmatprep.subr.mxu0 0.0
      %1211 = vmatpush2.msra.mxu0 0.0
      %1212 = vmatprep.subr.mxu0 0.0
      %1213 = vmatpush2.msra.mxu0 0.0
      %1214 = vmatprep.mubr.f32.mxu0 0.0
      %1215 = vmatmul.mubr.f32.gmra.mxu0 %v1145
      %v1216 = vpop.f32.mrf.mxu0
      %v1217 = vadd.f32 0.0, %v1216
      %v1218 = vpop.f32.mrf.mxu0
      %1219 = vmatprep.mubr.f32.mxu0 0.0
      %1220 = vmatmul.mubr.f32.gmra.mxu0 %v1148
      %v1221 = vpop.f32.mrf.mxu0
      %v1222 = vadd.f32 0.0, %v1221
      %v1223 = vpop.f32.mrf.mxu0
      %1224 = vdwg.mxu0
      %v1225 = vadd.f32 %v355, %v1217
      %v1226 = vadd.f32 %v356, %v1222
      %v1227 = vmax.f32 %v1225, 0.0
      %v1228 = vmax.f32 %v1226, 0.0
      %v1230 = vsel %vm624, %v1227, 0
      %v1233 = vsel %vm624, %v1228, 0
      %1235 = vmatprep.subr.mxu0 0.0
      %1236 = vmatpush1.msra.mxu0 0.0
      %1237 = vmatprep.subr.mxu0 0.0
      %1238 = vmatpush1.msra.mxu0 0.0
      %1239 = vmatprep.subr.mxu0 0.0
      %1240 = vmatpush1.msra.mxu0 0.0
      %1241 = vmatprep.subr.mxu0 0.0
      %1242 = vmatpush1.msra.mxu0 0.0
      %1243 = vmatprep.subr.mxu0 0.0
      %1244 = vmatpush1.msra.mxu0 0.0
      %1245 = vmatprep.subr.mxu0 0.0
      %1246 = vmatpush1.msra.mxu0 0.0
      %1247 = vmatprep.subr.mxu0 0.0
      %1248 = vmatpush1.msra.mxu0 0.0
      %1249 = vmatprep.subr.mxu0 0.0
      %1250 = vmatpush1.msra.mxu0 0.0
      %1251 = vmatprep.subr.mxu0 0.0
      %1252 = vmatpush1.msra.mxu0 0.0
      %1253 = vmatprep.subr.mxu0 0.0
      %1254 = vmatpush1.msra.mxu0 0.0
      %1255 = vmatprep.subr.mxu0 0.0
      %1256 = vmatpush1.msra.mxu0 0.0
      %1257 = vmatprep.subr.mxu0 0.0
      %1258 = vmatpush1.msra.mxu0 0.0
      %1259 = vmatprep.subr.mxu0 0.0
      %1260 = vmatpush1.msra.mxu0 %v382
      %1261 = vmatprep.subr.mxu0 0.0
      %1262 = vmatpush1.msra.mxu0 %v381
      %1263 = vmatprep.subr.mxu0 0.0
      %1264 = vmatpush1.msra.mxu0 %v380
      %1265 = vmatprep.subr.mxu0 0.0
      %1266 = vmatpush1.msra.mxu0 %v379
      %1267 = vmatprep.subr.mxu0 0.0
      %1268 = vmatpush2.msra.mxu0 0.0
      %1269 = vmatprep.subr.mxu0 0.0
      %1270 = vmatpush2.msra.mxu0 0.0
      %1271 = vmatprep.subr.mxu0 0.0
      %1272 = vmatpush2.msra.mxu0 0.0
      %1273 = vmatprep.subr.mxu0 0.0
      %1274 = vmatpush2.msra.mxu0 0.0
      %1275 = vmatprep.subr.mxu0 0.0
      %1276 = vmatpush2.msra.mxu0 0.0
      %1277 = vmatprep.subr.mxu0 0.0
      %1278 = vmatpush2.msra.mxu0 0.0
      %1279 = vmatprep.subr.mxu0 0.0
      %1280 = vmatpush2.msra.mxu0 0.0
      %1281 = vmatprep.subr.mxu0 0.0
      %1282 = vmatpush2.msra.mxu0 0.0
      %1283 = vmatprep.subr.mxu0 0.0
      %1284 = vmatpush2.msra.mxu0 0.0
      %1285 = vmatprep.subr.mxu0 0.0
      %1286 = vmatpush2.msra.mxu0 0.0
      %1287 = vmatprep.subr.mxu0 0.0
      %1288 = vmatpush2.msra.mxu0 0.0
      %1289 = vmatprep.subr.mxu0 0.0
      %1290 = vmatpush2.msra.mxu0 0.0
      %1291 = vmatprep.subr.mxu0 0.0
      %1292 = vmatpush2.msra.mxu0 0.0
      %1293 = vmatprep.subr.mxu0 0.0
      %1294 = vmatpush2.msra.mxu0 0.0
      %1295 = vmatprep.subr.mxu0 0.0
      %1296 = vmatpush2.msra.mxu0 0.0
      %1297 = vmatprep.subr.mxu0 0.0
      %1298 = vmatpush2.msra.mxu0 0.0
      %1299 = vmatprep.mubr.f32.mxu0 0.0
      %1300 = vmatmul.mubr.f32.gmra.mxu0 %v1230
      %v1301 = vpop.f32.mrf.mxu0
      %v1302 = vadd.f32 %v623, %v1301
      %v1303 = vpop.f32.mrf.mxu0
      %1304 = vmatprep.mubr.f32.mxu0 0.0
      %1305 = vmatmul.mubr.f32.gmra.mxu0 %v1233
      %v1306 = vpop.f32.mrf.mxu0
      %v1307 = vadd.f32 %v623, %v1306
      %v1308 = vpop.f32.mrf.mxu0
      %1309 = vdwg.mxu0
      %v1310 = vmax.f32 %v1302, 0.0
      %v1311 = vmax.f32 %v1307, 0.0
      %v1313 = vsel %vm624, %v1310, 0
      %v1316 = vsel %vm624, %v1311, 0
      %1318 = vmatprep.subr.mxu0 0.0
      %1319 = vmatpush1.msra.mxu0 0.0
      %1320 = vmatprep.subr.mxu0 0.0
      %1321 = vmatpush1.msra.mxu0 0.0
      %1322 = vmatprep.subr.mxu0 0.0
      %1323 = vmatpush1.msra.mxu0 0.0
      %1324 = vmatprep.subr.mxu0 0.0
      %1325 = vmatpush1.msra.mxu0 0.0
      %1326 = vmatprep.subr.mxu0 0.0
      %1327 = vmatpush1.msra.mxu0 0.0
      %1328 = vmatprep.subr.mxu0 0.0
      %1329 = vmatpush1.msra.mxu0 0.0
      %1330 = vmatprep.subr.mxu0 0.0
      %1331 = vmatpush1.msra.mxu0 0.0
      %1332 = vmatprep.subr.mxu0 0.0
      %1333 = vmatpush1.msra.mxu0 0.0
      %1334 = vmatprep.subr.mxu0 0.0
      %1335 = vmatpush1.msra.mxu0 0.0
      %1336 = vmatprep.subr.mxu0 0.0
      %1337 = vmatpush1.msra.mxu0 0.0
      %1338 = vmatprep.subr.mxu0 0.0
      %1339 = vmatpush1.msra.mxu0 0.0
      %1340 = vmatprep.subr.mxu0 0.0
      %1341 = vmatpush1.msra.mxu0 0.0
      %1342 = vmatprep.subr.mxu0 0.0
      %1343 = vmatpush1.msra.mxu0 %v387
      %1344 = vmatprep.subr.mxu0 0.0
      %1345 = vmatpush1.msra.mxu0 %v386
      %1346 = vmatprep.subr.mxu0 0.0
      %1347 = vmatpush1.msra.mxu0 %v385
      %1348 = vmatprep.subr.mxu0 0.0
      %1349 = vmatpush1.msra.mxu0 %v384
      %1350 = vmatprep.subr.mxu0 0.0
      %1351 = vmatpush2.msra.mxu0 0.0
      %1352 = vmatprep.subr.mxu0 0.0
      %1353 = vmatpush2.msra.mxu0 0.0
      %1354 = vmatprep.subr.mxu0 0.0
      %1355 = vmatpush2.msra.mxu0 0.0
      %1356 = vmatprep.subr.mxu0 0.0
      %1357 = vmatpush2.msra.mxu0 0.0
      %1358 = vmatprep.subr.mxu0 0.0
      %1359 = vmatpush2.msra.mxu0 0.0
      %1360 = vmatprep.subr.mxu0 0.0
      %1361 = vmatpush2.msra.mxu0 0.0
      %1362 = vmatprep.subr.mxu0 0.0
      %1363 = vmatpush2.msra.mxu0 0.0
      %1364 = vmatprep.subr.mxu0 0.0
      %1365 = vmatpush2.msra.mxu0 0.0
      %1366 = vmatprep.subr.mxu0 0.0
      %1367 = vmatpush2.msra.mxu0 0.0
      %1368 = vmatprep.subr.mxu0 0.0
      %1369 = vmatpush2.msra.mxu0 0.0
      %1370 = vmatprep.subr.mxu0 0.0
      %1371 = vmatpush2.msra.mxu0 0.0
      %1372 = vmatprep.subr.mxu0 0.0
      %1373 = vmatpush2.msra.mxu0 0.0
      %1374 = vmatprep.subr.mxu0 0.0
      %1375 = vmatpush2.msra.mxu0 0.0
      %1376 = vmatprep.subr.mxu0 0.0
      %1377 = vmatpush2.msra.mxu0 0.0
      %1378 = vmatprep.subr.mxu0 0.0
      %1379 = vmatpush2.msra.mxu0 0.0
      %1380 = vmatprep.subr.mxu0 0.0
      %1381 = vmatpush2.msra.mxu0 0.0
      %1382 = vmatprep.mubr.f32.mxu0 0.0
      %1383 = vmatmul.mubr.f32.gmra.mxu0 %v1313
      %v1384 = vpop.f32.mrf.mxu0
      %v1385 = vadd.f32 %v711, %v1384
      %v1386 = vpop.f32.mrf.mxu0
      %1387 = vmatprep.mubr.f32.mxu0 0.0
      %1388 = vmatmul.mubr.f32.gmra.mxu0 %v1316
      %v1389 = vpop.f32.mrf.mxu0
      %v1390 = vadd.f32 %v711, %v1389
      %v1391 = vpop.f32.mrf.mxu0
      %1392 = vdwg.mxu0
      %v1393 = vmax.f32 %v1385, 0.0
      %v1394 = vmax.f32 %v1390, 0.0
      %v1395 = vadd.f32 %v1096, %v1393
      %v1396 = vadd.f32 %v1097, %v1394
      %v1397 = vmul.f32 %v1395, 0.33333334
      %v1398 = vmul.f32 %v1396, 0.33333334
      %1399 = vst.msk [vmem:[%s351] sm:$0xff] %vm390, %v1397
      %1400 = vst.msk [vmem:[%s351 + $0x8] sm:$0xff] %vm390, %v1398
      %s1401 = smul.u32 2, %s19
      %p1402 = scmp.lt.s32.totalorder %s1401, 5
      %s1403 = scalar_select %p1402, %s1401, 5
      %s1404 = smul.addr %s1403, 8
      %s1405 = scalar_lea.vmem %s8, %s1404
      // Predicated region
      $region53: #{_forward.2} parent=51 // pred_check
        %p1406 = pneg %p220
      $region54: #{_forward.2} parent=51 // pred_check_branch
        %1408 = sbr.rel (%p1406) target = $region56
      $region55: #{_forward.2} parent=51 // pred_region
        %s1409 = smul.u32 2, %s19
      $region56: #{_forward.2} parent=51 // pred_fallthru
        _
    $region52: #{_forward.2} parent=5 // pred_fallthru
      _
    %p1410 = scmp.le.s32.totalorder 2, %s14
    // Predicated region
    $region57: #{_forward.2} parent=5 // pred_check
      %p1411 = pneg %p1410
    $region58: #{_forward.2} parent=5 // pred_check_branch
      %1413 = sbr.rel (%p1411) target = $region60
    $region59: #{_forward.2} parent=5 // pred_region
      %s1414 = ssub.s32 %s14, 2
      // Predicated region
      $region61: #{_forward.2} parent=59 // pred_check
        %p1415 = pneg %p226
      $region62: #{_forward.2} parent=59 // pred_check_branch
        %1417 = sbr.rel (%p1415) target = $region64
      $region63: #{_forward.2} parent=59 // pred_region
        %s1418 = smul.u32 2, %s20
        %p1419 = scmp.lt.s32.totalorder %s1418, 5
        %s1420 = scalar_select %p1419, %s1418, 5
        %s1421 = smul.addr %s1420, 8
        %s1422 = scalar_lea.vmem %s8, %s1421
      $region64: #{_forward.2} parent=59 // pred_fallthru
        _
    $region60: #{_forward.2} parent=5 // pred_fallthru
      _
  $region6: #{_forward.2} parent=0 // loop_footer
    %s18 = sadd.s32 1, %s14
  $region7: #{_forward.2} parent=0 // loop_footer_branch
    %13 = sbr.rel target = $region3
  $region8: #{_forward.2} parent=0 // loop_exit
    _

// kernel: _forward.3
$region0: #{_forward.3}
  #allocation0 [shape = 'u32[]', space=smem, size = 0x4, offset = 0x4, fixed_abs, tag = 'smem constant byte address 0x4 - core index']
  #allocation1 [shape = 'u32[144,128]{1,0:T(1,128)}', space=vmem, size = 0x12000, scoped, tag = 'internal scratch']
  %s0 = inlined_call_operand.vmem [shape: f32[48,8], index: 0, kind: input, shape index: {}]
  %s1 = inlined_call_operand.vmem [shape: f32[48,32], index: 1, kind: input, shape index: {}]
  %s2 = inlined_call_operand.vmem [shape: s32[48,1], index: 2, kind: input, shape index: {}]
  %s3 = inlined_call_operand.vmem [shape: f32[8,48], index: 3, kind: input, shape index: {}]
  %s4 = inlined_call_operand.vmem [shape: f32[1,48], index: 4, kind: input, shape index: {}]
  %s5 = inlined_call_operand.vmem [shape: s32[1,48], index: 5, kind: input, shape index: {}]
  %s6 = inlined_call_operand.vmem [shape: f32[48,32], index: 6, kind: input, shape index: {}]
  %s7 = inlined_call_operand.vmem [shape: f32[72,128], index: 7, kind: input, shape index: {}]
  %s8 = inlined_call_operand.vmem [shape: f32[48,8], index: 8, kind: output, shape index: {}]
  %s9 = sld [smem:[#allocation0]]
  $region65: #{_forward.3} parent=0
    _
  %s11 = ssub.s32 1, %s9
  %s12 = scalar_select 0, %s11, %s9
  loop: start=0, step=1, limit=5
  $region2: #{_forward.3} parent=0 // loop_pre_header
    _
  $region3: #{_forward.3} parent=0 // loop_header
    %s14 = sphi 0, %s18
    %p15 = scmp.ge.s32.totalorder %s14, 5
    %s24 = sphi 0, %s26
    %s27 = sphi 0, %s24
    %s28 = sphi 0, %s27
    %s44 = sphi 0, %s28
    %s50 = sphi 0, %s52
    %s53 = sphi 0, %s50
    %s54 = sphi 0, %s53
    %s70 = sphi 0, %s54
    %s76 = sphi 0, %s78
    %s79 = sphi 0, %s76
    %s80 = sphi 0, %s79
    %s96 = sphi 0, %s80
    %s100 = sphi 0, %s100
    %s102 = sphi 0, %s100
    %s103 = sphi 0, %s102
    %s117 = sphi 0, %s103
    %s121 = sphi 0, %s121
    %s123 = sphi 0, %s121
    %s124 = sphi 0, %s123
    %s138 = sphi 0, %s124
    %s142 = sphi 0, %s142
    %s144 = sphi 0, %s142
    %s145 = sphi 0, %s144
    %s159 = sphi 0, %s145
    %s163 = sphi 0, %s163
    %s165 = sphi 0, %s163
    %s166 = sphi 0, %s165
    %s180 = sphi 0, %s166
    %s184 = sphi 0, %s184
    %s186 = sphi 0, %s184
    %s187 = sphi 0, %s186
    %s201 = sphi 0, %s187
    %s207 = sphi 0, %s209
    %s210 = sphi 0, %s207
    %s211 = sphi 0, %s210
    %s227 = sphi 0, %s211
  $region4: #{_forward.3} parent=0 // loop_header_branch
    %17 = sbr.rel (%p15) target = $region8
  $region5: #{_forward.3} parent=0 // loop_body
    %s19 = ssub.s32 %s14, 1
    %s20 = ssub.s32 %s14, 2
    %s21 = sadd.s32 %s14, 1
    %s22 = ssub.s32 %s14, %s21
    %p23 = scmp.eq.s32.totalorder %s22, 0
    %s25 = sadd.s32 %s24, 1
    %s26 = scalar_select %p23, %s24, %s25
    %p29 = pneg %p23
    %p30 = scmp.eq.s32.totalorder %s14, 2
    %p31 = por %p29, %p30
    %p32 = scmp.ne.s32.totalorder %s24, %s27
    %p33 = scmp.eq.s32.totalorder %s14, 0
    %p34 = por %p32, %p33
    %p35 = scmp.ne.s32.totalorder %s24, %s27
    %p36 = scmp.eq.s32.totalorder %s19, 2
    %p37 = por %p35, %p36
    %p38 = scmp.ne.s32.totalorder %s27, %s28
    %p39 = scmp.eq.s32.totalorder %s19, 0
    %p40 = por %p38, %p39
    %p41 = scmp.ne.s32.totalorder %s27, %s28
    %p42 = scmp.eq.s32.totalorder %s20, 2
    %p43 = por %p41, %p42
    %p45 = scmp.ne.s32.totalorder %s28, %s44
    %p46 = scmp.eq.s32.totalorder %s20, 0
    %p47 = por %p45, %p46
    %s48 = ssub.s32 %s14, %s21
    %p49 = scmp.eq.s32.totalorder %s48, 0
    %s51 = sadd.s32 %s50, 1
    %s52 = scalar_select %p49, %s50, %s51
    %p55 = pneg %p49
    %p56 = scmp.eq.s32.totalorder %s14, 2
    %p57 = por %p55, %p56
    %p58 = scmp.ne.s32.totalorder %s50, %s53
    %p59 = scmp.eq.s32.totalorder %s14, 0
    %p60 = por %p58, %p59
    %p61 = scmp.ne.s32.totalorder %s50, %s53
    %p62 = scmp.eq.s32.totalorder %s19, 2
    %p63 = por %p61, %p62
    %p64 = scmp.ne.s32.totalorder %s53, %s54
    %p65 = scmp.eq.s32.totalorder %s19, 0
    %p66 = por %p64, %p65
    %p67 = scmp.ne.s32.totalorder %s53, %s54
    %p68 = scmp.eq.s32.totalorder %s20, 2
    %p69 = por %p67, %p68
    %p71 = scmp.ne.s32.totalorder %s54, %s70
    %p72 = scmp.eq.s32.totalorder %s20, 0
    %p73 = por %p71, %p72
    %s74 = ssub.s32 %s14, %s21
    %p75 = scmp.eq.s32.totalorder %s74, 0
    %s77 = sadd.s32 %s76, 1
    %s78 = scalar_select %p75, %s76, %s77
    %p81 = pneg %p75
    %p82 = scmp.eq.s32.totalorder %s14, 2
    %p83 = por %p81, %p82
    %p84 = scmp.ne.s32.totalorder %s76, %s79
    %p85 = scmp.eq.s32.totalorder %s14, 0
    %p86 = por %p84, %p85
    %p87 = scmp.ne.s32.totalorder %s76, %s79
    %p88 = scmp.eq.s32.totalorder %s19, 2
    %p89 = por %p87, %p88
    %p90 = scmp.ne.s32.totalorder %s79, %s80
    %p91 = scmp.eq.s32.totalorder %s19, 0
    %p92 = por %p90, %p91
    %p93 = scmp.ne.s32.totalorder %s79, %s80
    %p94 = scmp.eq.s32.totalorder %s20, 2
    %p95 = por %p93, %p94
    %p97 = scmp.ne.s32.totalorder %s80, %s96
    %p98 = scmp.eq.s32.totalorder %s20, 0
    %p99 = por %p97, %p98
    %s101 = sadd.s32 %s100, 1
    %p104 = scmp.eq.s32.totalorder %s14, 2
    %p105 = scmp.ne.s32.totalorder %s100, %s102
    %p106 = scmp.eq.s32.totalorder %s14, 0
    %p107 = por %p105, %p106
    %p108 = scmp.ne.s32.totalorder %s100, %s102
    %p109 = scmp.eq.s32.totalorder %s19, 2
    %p110 = por %p108, %p109
    %p111 = scmp.ne.s32.totalorder %s102, %s103
    %p112 = scmp.eq.s32.totalorder %s19, 0
    %p113 = por %p111, %p112
    %p114 = scmp.ne.s32.totalorder %s102, %s103
    %p115 = scmp.eq.s32.totalorder %s20, 2
    %p116 = por %p114, %p115
    %p118 = scmp.ne.s32.totalorder %s103, %s117
    %p119 = scmp.eq.s32.totalorder %s20, 0
    %p120 = por %p118, %p119
    %s122 = sadd.s32 %s121, 1
    %p125 = scmp.eq.s32.totalorder %s14, 2
    %p126 = scmp.ne.s32.totalorder %s121, %s123
    %p127 = scmp.eq.s32.totalorder %s14, 0
    %p128 = por %p126, %p127
    %p129 = scmp.ne.s32.totalorder %s121, %s123
    %p130 = scmp.eq.s32.totalorder %s19, 2
    %p131 = por %p129, %p130
    %p132 = scmp.ne.s32.totalorder %s123, %s124
    %p133 = scmp.eq.s32.totalorder %s19, 0
    %p134 = por %p132, %p133
    %p135 = scmp.ne.s32.totalorder %s123, %s124
    %p136 = scmp.eq.s32.totalorder %s20, 2
    %p137 = por %p135, %p136
    %p139 = scmp.ne.s32.totalorder %s124, %s138
    %p140 = scmp.eq.s32.totalorder %s20, 0
    %p141 = por %p139, %p140
    %s143 = sadd.s32 %s142, 1
    %p146 = scmp.eq.s32.totalorder %s14, 2
    %p147 = scmp.ne.s32.totalorder %s142, %s144
    %p148 = scmp.eq.s32.totalorder %s14, 0
    %p149 = por %p147, %p148
    %p150 = scmp.ne.s32.totalorder %s142, %s144
    %p151 = scmp.eq.s32.totalorder %s19, 2
    %p152 = por %p150, %p151
    %p153 = scmp.ne.s32.totalorder %s144, %s145
    %p154 = scmp.eq.s32.totalorder %s19, 0
    %p155 = por %p153, %p154
    %p156 = scmp.ne.s32.totalorder %s144, %s145
    %p157 = scmp.eq.s32.totalorder %s20, 2
    %p158 = por %p156, %p157
    %p160 = scmp.ne.s32.totalorder %s145, %s159
    %p161 = scmp.eq.s32.totalorder %s20, 0
    %p162 = por %p160, %p161
    %s164 = sadd.s32 %s163, 1
    %p167 = scmp.eq.s32.totalorder %s14, 2
    %p168 = scmp.ne.s32.totalorder %s163, %s165
    %p169 = scmp.eq.s32.totalorder %s14, 0
    %p170 = por %p168, %p169
    %p171 = scmp.ne.s32.totalorder %s163, %s165
    %p172 = scmp.eq.s32.totalorder %s19, 2
    %p173 = por %p171, %p172
    %p174 = scmp.ne.s32.totalorder %s165, %s166
    %p175 = scmp.eq.s32.totalorder %s19, 0
    %p176 = por %p174, %p175
    %p177 = scmp.ne.s32.totalorder %s165, %s166
    %p178 = scmp.eq.s32.totalorder %s20, 2
    %p179 = por %p177, %p178
    %p181 = scmp.ne.s32.totalorder %s166, %s180
    %p182 = scmp.eq.s32.totalorder %s20, 0
    %p183 = por %p181, %p182
    %s185 = sadd.s32 %s184, 1
    %p188 = scmp.eq.s32.totalorder %s14, 2
    %p189 = scmp.ne.s32.totalorder %s184, %s186
    %p190 = scmp.eq.s32.totalorder %s14, 0
    %p191 = por %p189, %p190
    %p192 = scmp.ne.s32.totalorder %s184, %s186
    %p193 = scmp.eq.s32.totalorder %s19, 2
    %p194 = por %p192, %p193
    %p195 = scmp.ne.s32.totalorder %s186, %s187
    %p196 = scmp.eq.s32.totalorder %s19, 0
    %p197 = por %p195, %p196
    %p198 = scmp.ne.s32.totalorder %s186, %s187
    %p199 = scmp.eq.s32.totalorder %s20, 2
    %p200 = por %p198, %p199
    %p202 = scmp.ne.s32.totalorder %s187, %s201
    %p203 = scmp.eq.s32.totalorder %s20, 0
    %p204 = por %p202, %p203
    %s205 = ssub.s32 %s14, %s21
    %p206 = scmp.eq.s32.totalorder %s205, 0
    %s208 = sadd.s32 %s207, 1
    %s209 = scalar_select %p206, %s207, %s208
    %p212 = pneg %p206
    %p213 = scmp.eq.s32.totalorder %s14, 2
    %p214 = por %p212, %p213
    %p215 = scmp.ne.s32.totalorder %s207, %s210
    %p216 = scmp.eq.s32.totalorder %s14, 0
    %p217 = por %p215, %p216
    %p218 = scmp.ne.s32.totalorder %s207, %s210
    %p219 = scmp.eq.s32.totalorder %s19, 2
    %p220 = por %p218, %p219
    %p221 = scmp.ne.s32.totalorder %s210, %s211
    %p222 = scmp.eq.s32.totalorder %s19, 0
    %p223 = por %p221, %p222
    %p224 = scmp.ne.s32.totalorder %s210, %s211
    %p225 = scmp.eq.s32.totalorder %s20, 2
    %p226 = por %p224, %p225
    %p228 = scmp.ne.s32.totalorder %s211, %s227
    %p229 = scmp.eq.s32.totalorder %s20, 0
    %p230 = por %p228, %p229
    %p231 = scmp.le.s32.totalorder 1, %s14
    %p232 = scmp.lt.s32.totalorder %s14, 4
    %p233 = pnand %p231, %p232
    %p234 = pneg %p233
    // Predicated region
    $region9: #{_forward.3} parent=5 // pred_check
      _
    $region10: #{_forward.3} parent=5 // pred_check_branch
      %236 = sbr.rel (%p233) target = $region12
    $region11: #{_forward.3} parent=5 // pred_region
      %s237 = ssub.s32 %s14, 1
      // Predicated region
      $region13: #{_forward.3} parent=11 // pred_check
        %p238 = pneg %p113
      $region14: #{_forward.3} parent=11 // pred_check_branch
        %240 = sbr.rel (%p238) target = $region16
      $region15: #{_forward.3} parent=11 // pred_region
        _
      $region16: #{_forward.3} parent=11 // pred_fallthru
        _
      // Predicated region
      $region17: #{_forward.3} parent=11 // pred_check
        %p241 = pneg %p134
      $region18: #{_forward.3} parent=11 // pred_check_branch
        %243 = sbr.rel (%p241) target = $region20
      $region19: #{_forward.3} parent=11 // pred_region
        _
      $region20: #{_forward.3} parent=11 // pred_fallthru
        _
      // Predicated region
      $region21: #{_forward.3} parent=11 // pred_check
        %p244 = pneg %p155
      $region22: #{_forward.3} parent=11 // pred_check_branch
        %246 = sbr.rel (%p244) target = $region24
      $region23: #{_forward.3} parent=11 // pred_region
        _
      $region24: #{_forward.3} parent=11 // pred_fallthru
        _
      // Predicated region
      $region25: #{_forward.3} parent=11 // pred_check
        %p247 = pneg %p176
      $region26: #{_forward.3} parent=11 // pred_check_branch
        %249 = sbr.rel (%p247) target = $region28
      $region27: #{_forward.3} parent=11 // pred_region
        _
      $region28: #{_forward.3} parent=11 // pred_fallthru
        _
      // Predicated region
      $region29: #{_forward.3} parent=11 // pred_check
        %p250 = pneg %p197
      $region30: #{_forward.3} parent=11 // pred_check_branch
        %252 = sbr.rel (%p250) target = $region32
      $region31: #{_forward.3} parent=11 // pred_region
        _
      $region32: #{_forward.3} parent=11 // pred_fallthru
        _
    $region12: #{_forward.3} parent=5 // pred_fallthru
      _
    %p253 = scmp.lt.s32.totalorder %s14, 3
    // Predicated region
    $region33: #{_forward.3} parent=5 // pred_check
      %p254 = pneg %p253
    $region34: #{_forward.3} parent=5 // pred_check_branch
      %256 = sbr.rel (%p254) target = $region36
    $region35: #{_forward.3} parent=5 // pred_region
      // Predicated region
      $region37: #{_forward.3} parent=35 // pred_check
        %p257 = pneg %p34
      $region38: #{_forward.3} parent=35 // pred_check_branch
        %259 = sbr.rel (%p257) target = $region40
      $region39: #{_forward.3} parent=35 // pred_region
        %s260 = smul.u32 2, %s14
        %p261 = scmp.lt.s32.totalorder %s260, 5
        %s262 = scalar_select %p261, %s260, 5
        %s263 = smul.addr %s262, 8
        %s264 = scalar_lea.vmem %s0, %s263
        %s265 = smul.u32 2, %s14
      $region40: #{_forward.3} parent=35 // pred_fallthru
        _
      // Predicated region
      $region41: #{_forward.3} parent=35 // pred_check
        %p266 = pneg %p60
      $region42: #{_forward.3} parent=35 // pred_check_branch
        %268 = sbr.rel (%p266) target = $region44
      $region43: #{_forward.3} parent=35 // pred_region
        %s269 = smul.u32 2, %s14
        %p270 = scmp.lt.s32.totalorder %s269, 5
        %s271 = scalar_select %p270, %s269, 5
        %s272 = smul.addr %s271, 8
        %s273 = scalar_lea.vmem %s1, %s272
        %s274 = smul.u32 2, %s14
      $region44: #{_forward.3} parent=35 // pred_fallthru
        _
      // Predicated region
      $region45: #{_forward.3} parent=35 // pred_check
        %p275 = pneg %p86
      $region46: #{_forward.3} parent=35 // pred_check_branch
        %277 = sbr.rel (%p275) target = $region48
      $region47: #{_forward.3} parent=35 // pred_region
        %s278 = smul.u32 2, %s14
        %p279 = scmp.lt.s32.totalorder %s278, 5
        %s280 = scalar_select %p279, %s278, 5
        %s281 = smul.addr %s280, 8
        %s282 = scalar_lea.vmem %s2, %s281
        %s283 = smul.u32 2, %s14
      $region48: #{_forward.3} parent=35 // pred_fallthru
        _
    $region36: #{_forward.3} parent=5 // pred_fallthru
      _
    %p284 = scmp.le.s32.totalorder 1, %s14
    %p285 = scmp.lt.s32.totalorder %s14, 4
    %p286 = pnand %p284, %p285
    %p287 = pneg %p286
    // Predicated region
    $region49: #{_forward.3} parent=5 // pred_check
      _
    $region50: #{_forward.3} parent=5 // pred_check_branch
      %289 = sbr.rel (%p286) target = $region52
    $region51: #{_forward.3} parent=5 // pred_region
      %s290 = ssub.s32 %s14, 1
      %s291 = smul.u32 2, %s19
      %p292 = scmp.lt.s32.totalorder %s291, 5
      %s293 = scalar_select %p292, %s291, 5
      %s294 = smul.addr %s293, 8
      %s295 = scalar_lea.vmem %s0, %s294
      %p296 = pneg %p40
      %p297 = pneg %p37
      %s298 = smul.u32 2, %s19
      %p299 = scmp.lt.s32.totalorder %s298, 5
      %s300 = scalar_select %p299, %s298, 5
      %s301 = smul.addr %s300, 8
      %s302 = scalar_lea.vmem %s1, %s301
      %p303 = pneg %p66
      %p304 = pneg %p63
      %s305 = smul.u32 2, %s19
      %p306 = scmp.lt.s32.totalorder %s305, 5
      %s307 = scalar_select %p306, %s305, 5
      %s308 = smul.addr %s307, 8
      %s309 = scalar_lea.vmem %s2, %s308
      %p310 = pneg %p92
      %p311 = pneg %p89
      %p312 = pneg %p113
      %p313 = pneg %p110
      %p314 = pneg %p134
      %p315 = pneg %p131
      %p316 = pneg %p155
      %p317 = pneg %p152
      %p318 = pneg %p176
      %p319 = pneg %p173
      %p320 = pneg %p197
      %p321 = pneg %p194
      %p322 = pneg %p223
      %p323 = pneg %p220
      %s324 = smul.u32 2, %s19
      %p325 = scmp.lt.s32.totalorder %s324, 5
      %s326 = scalar_select %p325, %s324, 5
      %s327 = smul.addr %s326, 8
      %s328 = scalar_lea.vmem %s8, %s327
      %s329 = smul.u32 2, %s19
      %p330 = scmp.lt.s32.totalorder %s329, 5
      %s331 = scalar_select %p330, %s329, 5
      %s332 = smul.addr %s331, 8
      %s333 = scalar_lea.vmem %s0, %s332
      %s334 = smul.u32 2, %s19
      %s335 = smul.u32 2, %s19
      %p336 = scmp.lt.s32.totalorder %s335, 5
      %s337 = scalar_select %p336, %s335, 5
      %s338 = smul.addr %s337, 8
      %s339 = scalar_lea.vmem %s1, %s338
      %s340 = smul.u32 2, %s19
      %s341 = smul.u32 2, %s19
      %p342 = scmp.lt.s32.totalorder %s341, 5
      %s343 = scalar_select %p342, %s341, 5
      %s344 = smul.addr %s343, 8
      %s345 = scalar_lea.vmem %s2, %s344
      %s346 = smul.u32 2, %s19
      %s347 = smul.u32 2, %s19
      %p348 = scmp.lt.s32.totalorder %s347, 5
      %s349 = scalar_select %p348, %s347, 5
      %s350 = smul.addr %s349, 8
      %s351 = scalar_lea.vmem %s8, %s350
      %s352 = smul.u32 2, %s19
      %v353 = vld [vmem:[%s333] sm:$0xff]
      %v354 = vld [vmem:[%s333 + $0x8] sm:$0xff]
      %v355 = vld [vmem:[%s339] sm:$0xff]
      %v356 = vld [vmem:[%s339 + $0x8] sm:$0xff]
      %v357 = vld [vmem:[%s345] sm:$0xff]
      %v358 = vld [vmem:[%s345 + $0x8] sm:$0xff]
      %v359 = vld [vmem:[%s5] sm:$0x1]
      %360 = vset.pattern.permute.xlu0 0
      %361 = vperm.xlu0 %360, %v357
      %v362 = vpop.permute.xlu0 %361
      %363 = vset.pattern.permute.xlu0 0
      %364 = vperm.xlu0 %363, %v358
      %v365 = vpop.permute.xlu0 %364
      %v366 = vlaneseq
      %v367 = vshrl.u32 %v366, 7
      %v368 = vsub.s32 0, %v367
      %v369 = vrot.slane %v359, %v368
      %vm370 = vcmp.eq.s32.totalorder %v362, %v369
      %vm371 = vcmp.eq.s32.totalorder %v365, %v369
      %v372 = vld [vmem:[%s4] sm:$0x1]
      %v373 = vld [vmem:[%s6] sm:$0xff]
      %v374 = vld [vmem:[%s6 + $0x8] sm:$0xff]
      %v375 = vld [vmem:[%s6 + $0x10] sm:$0xff]
      %v376 = vld [vmem:[%s6 + $0x18] sm:$0xff]
      %v377 = vld [vmem:[%s6 + $0x20] sm:$0xff]
      %v378 = vld [vmem:[%s6 + $0x28] sm:$0xff]
      %v379 = vld [vmem:[%s7 + $0x8] sm:$0xff]
      %v380 = vld [vmem:[%s7 + $0x10] sm:$0xff]
      %v381 = vld [vmem:[%s7 + $0x18] sm:$0xff]
      %v382 = vld [vmem:[%s7 + $0x20] sm:$0xff]
      %v383 = vld [vmem:[%s7] sm:$0x1]
      %v384 = vld [vmem:[%s7 + $0x28] sm:$0xff]
      %v385 = vld [vmem:[%s7 + $0x30] sm:$0xff]
      %v386 = vld [vmem:[%s7 + $0x38] sm:$0xff]
      %v387 = vld [vmem:[%s7 + $0x40] sm:$0xff]
      %v388 = vld [vmem:[%s7 + $0x1] sm:$0x1]
      %v389 = vld [vmem:[%s3] sm:$0xff]
      %vm390 = vcmask 64512
      %v392 = vsel %vm390, %v353, 0
      %v395 = vsel %vm390, %v354, 0
      %397 = vmatprep.subr.mxu0 0.0
      %398 = vmatpush1.msra.mxu0 0.0
      %399 = vmatprep.subr.mxu0 0.0
      %400 = vmatpush1.msra.mxu0 0.0
      %401 = vmatprep.subr.mxu0 0.0
      %402 = vmatpush1.msra.mxu0 0.0
      %403 = vmatprep.subr.mxu0 0.0
      %404 = vmatpush1.msra.mxu0 0.0
      %405 = vmatprep.subr.mxu0 0.0
      %406 = vmatpush1.msra.mxu0 0.0
      %407 = vmatprep.subr.mxu0 0.0
      %408 = vmatpush1.msra.mxu0 0.0
      %409 = vmatprep.subr.mxu0 0.0
      %410 = vmatpush1.msra.mxu0 0.0
      %411 = vmatprep.subr.mxu0 0.0
      %412 = vmatpush1.msra.mxu0 0.0
      %413 = vmatprep.subr.mxu0 0.0
      %414 = vmatpush1.msra.mxu0 0.0
      %415 = vmatprep.subr.mxu0 0.0
      %416 = vmatpush1.msra.mxu0 0.0
      %417 = vmatprep.subr.mxu0 0.0
      %418 = vmatpush1.msra.mxu0 0.0
      %419 = vmatprep.subr.mxu0 0.0
      %420 = vmatpush1.msra.mxu0 0.0
      %421 = vmatprep.subr.mxu0 0.0
      %422 = vmatpush1.msra.mxu0 0.0
      %423 = vmatprep.subr.mxu0 0.0
      %424 = vmatpush1.msra.mxu0 0.0
      %425 = vmatprep.subr.mxu0 0.0
      %426 = vmatpush1.msra.mxu0 0.0
      %427 = vmatprep.subr.mxu0 0.0
      %428 = vmatpush1.msra.mxu0 %v389
      %429 = vmatprep.subr.mxu0 0.0
      %430 = vmatpush2.msra.mxu0 0.0
      %431 = vmatprep.subr.mxu0 0.0
      %432 = vmatpush2.msra.mxu0 0.0
      %433 = vmatprep.subr.mxu0 0.0
      %434 = vmatpush2.msra.mxu0 0.0
      %435 = vmatprep.subr.mxu0 0.0
      %436 = vmatpush2.msra.mxu0 0.0
      %437 = vmatprep.subr.mxu0 0.0
      %438 = vmatpush2.msra.mxu0 0.0
      %439 = vmatprep.subr.mxu0 0.0
      %440 = vmatpush2.msra.mxu0 0.0
      %441 = vmatprep.subr.mxu0 0.0
      %442 = vmatpush2.msra.mxu0 0.0
      %443 = vmatprep.subr.mxu0 0.0
      %444 = vmatpush2.msra.mxu0 0.0
      %445 = vmatprep.subr.mxu0 0.0
      %446 = vmatpush2.msra.mxu0 0.0
      %447 = vmatprep.subr.mxu0 0.0
      %448 = vmatpush2.msra.mxu0 0.0
      %449 = vmatprep.subr.mxu0 0.0
      %450 = vmatpush2.msra.mxu0 0.0
      %451 = vmatprep.subr.mxu0 0.0
      %452 = vmatpush2.msra.mxu0 0.0
      %453 = vmatprep.subr.mxu0 0.0
      %454 = vmatpush2.msra.mxu0 0.0
      %455 = vmatprep.subr.mxu0 0.0
      %456 = vmatpush2.msra.mxu0 0.0
      %457 = vmatprep.subr.mxu0 0.0
      %458 = vmatpush2.msra.mxu0 0.0
      %459 = vmatprep.subr.mxu0 0.0
      %460 = vmatpush2.msra.mxu0 0.0
      %461 = vmatprep.mubr.f32.mxu0 0.0
      %462 = vmatmul.mubr.f32.gmra.mxu0 %v392
      %v463 = vpop.f32.mrf.mxu0
      %v464 = vadd.f32 0.0, %v463
      %v465 = vpop.f32.mrf.mxu0
      %466 = vmatprep.mubr.f32.mxu0 0.0
      %467 = vmatmul.mubr.f32.gmra.mxu0 %v395
      %v468 = vpop.f32.mrf.mxu0
      %v469 = vadd.f32 0.0, %v468
      %v470 = vpop.f32.mrf.mxu0
      %471 = vdwg.mxu0
      %v472 = vmul.f32 %v464, 2.0
      %v473 = vmul.f32 %v469, 2.0
      %v475 = vlaneseq
      %v476 = vshrl.u32 %v475, 7
      %v477 = vsub.s32 0, %v476
      %v478 = vrot.slane %v372, %v477
      %v480 = vsub.f32 %v478, %v472
      %v481 = vsub.f32 %v478, %v473
      %v482 = vsel %vm370, %v480, 1e+30
      %v483 = vsel %vm371, %v481, 1e+30
      %v484 = vlaneseq
      %v485 = vand.u32 %v484, 127
      %vm486 = vcmask 392192
      %v487 = vsel %vm486, %v482, inf
      %488 = vmin.xlane.f32.xlu0 %v487
      %v489 = vpop.xlane.xlu0 %488
      %v490 = vsel %vm486, %v483, inf
      %491 = vmin.xlane.f32.xlu0 %v490
      %v492 = vpop.xlane.xlu0 %491
      %vm493 = vcmp.le.f32.partialorder %v482, %v489
      %vm494 = vcmp.le.f32.partialorder %v483, %v492
      %v495 = vsel %vm493, %v485, 48
      %v496 = vsel %vm494, %v485, 48
      %v497 = vsel %vm486, %v495, 2147483647
      %v498 = vand.u32 %v497, 65535
      %v499 = vshra.s32 %v497, 16
      %v500 = vcvt.s32.f32 %v498
      %v501 = vcvt.s32.f32 %v499
      %502 = vmin.xlane.f32.xlu0 %v501
      %v503 = vpop.xlane.xlu0 %502
      %vm504 = vcmp.eq.f32.partialorder %v501, %v503
      %v505 = vsel %vm504, %v500, inf
      %506 = vmin.xlane.f32.xlu0 %v505
      %v507 = vpop.xlane.xlu0 %506
      %v508 = vcvt.f32.s32 %v507
      %v509 = vcvt.f32.s32 %v503
      %v510 = vshll.u32 %v509, 16
      %v511 = vadd.s32 %v510, %v508
      %v512 = vsel %vm486, %v496, 2147483647
      %v513 = vand.u32 %v512, 65535
      %v514 = vshra.s32 %v512, 16
      %v515 = vcvt.s32.f32 %v513
      %v516 = vcvt.s32.f32 %v514
      %517 = vmin.xlane.f32.xlu0 %v516
      %v518 = vpop.xlane.xlu0 %517
      %vm519 = vcmp.eq.f32.partialorder %v516, %v518
      %v520 = vsel %vm519, %v515, inf
      %521 = vmin.xlane.f32.xlu0 %v520
      %v522 = vpop.xlane.xlu0 %521
      %v523 = vcvt.f32.s32 %v522
      %v524 = vcvt.f32.s32 %v518
      %v525 = vshll.u32 %v524, 16
      %v526 = vadd.s32 %v525, %v523
      %vm527 = vcmp.eq.s32.totalorder %v485, %v511
      %vm528 = vcmp.eq.s32.totalorder %v485, %v526
      %v529 = vsel %vm527, 1e+30, %v482
      %v530 = vsel %vm528, 1e+30, %v483
      %v531 = vsel %vm527, 1, 0
      %v532 = vsel %vm528, 1, 0
      %v533 = vcvt.s32.f32 %v531
      %v534 = vcvt.s32.f32 %v532
      %v536 = vsel %vm486, %v533, 0
      %v539 = vsel %vm486, %v534, 0
      %541 = vmatprep.subr.mxu0 0.0
      %542 = vmatpush1.msra.mxu0 0.0
      %543 = vmatprep.subr.mxu0 0.0
      %544 = vmatpush1.msra.mxu0 0.0
      %545 = vmatprep.subr.mxu0 0.0
      %546 = vmatpush1.msra.mxu0 0.0
      %547 = vmatprep.subr.mxu0 0.0
      %548 = vmatpush1.msra.mxu0 0.0
      %549 = vmatprep.subr.mxu0 0.0
      %550 = vmatpush1.msra.mxu0 0.0
      %551 = vmatprep.subr.mxu0 0.0
      %552 = vmatpush1.msra.mxu0 0.0
      %553 = vmatprep.subr.mxu0 0.0
      %554 = vmatpush1.msra.mxu0 0.0
      %555 = vmatprep.subr.mxu0 0.0
      %556 = vmatpush1.msra.mxu0 0.0
      %557 = vmatprep.subr.mxu0 0.0
      %558 = vmatpush1.msra.mxu0 0.0
      %559 = vmatprep.subr.mxu0 0.0
      %560 = vmatpush1.msra.mxu0 0.0
      %561 = vmatprep.subr.mxu0 0.0
      %562 = vmatpush1.msra.mxu0 %v378
      %563 = vmatprep.subr.mxu0 0.0
      %564 = vmatpush1.msra.mxu0 %v377
      %565 = vmatprep.subr.mxu0 0.0
      %566 = vmatpush1.msra.mxu0 %v376
      %567 = vmatprep.subr.mxu0 0.0
      %568 = vmatpush1.msra.mxu0 %v375
      %569 = vmatprep.subr.mxu0 0.0
      %570 = vmatpush1.msra.mxu0 %v374
      %571 = vmatprep.subr.mxu0 0.0
      %572 = vmatpush1.msra.mxu0 %v373
      %573 = vmatprep.subr.mxu0 0.0
      %574 = vmatpush2.msra.mxu0 0.0
      %575 = vmatprep.subr.mxu0 0.0
      %576 = vmatpush2.msra.mxu0 0.0
      %577 = vmatprep.subr.mxu0 0.0
      %578 = vmatpush2.msra.mxu0 0.0
      %579 = vmatprep.subr.mxu0 0.0
      %580 = vmatpush2.msra.mxu0 0.0
      %581 = vmatprep.subr.mxu0 0.0
      %582 = vmatpush2.msra.mxu0 0.0
      %583 = vmatprep.subr.mxu0 0.0
      %584 = vmatpush2.msra.mxu0 0.0
      %585 = vmatprep.subr.mxu0 0.0
      %586 = vmatpush2.msra.mxu0 0.0
      %587 = vmatprep.subr.mxu0 0.0
      %588 = vmatpush2.msra.mxu0 0.0
      %589 = vmatprep.subr.mxu0 0.0
      %590 = vmatpush2.msra.mxu0 0.0
      %591 = vmatprep.subr.mxu0 0.0
      %592 = vmatpush2.msra.mxu0 0.0
      %593 = vmatprep.subr.mxu0 0.0
      %594 = vmatpush2.msra.mxu0 0.0
      %595 = vmatprep.subr.mxu0 0.0
      %596 = vmatpush2.msra.mxu0 0.0
      %597 = vmatprep.subr.mxu0 0.0
      %598 = vmatpush2.msra.mxu0 0.0
      %599 = vmatprep.subr.mxu0 0.0
      %600 = vmatpush2.msra.mxu0 0.0
      %601 = vmatprep.subr.mxu0 0.0
      %602 = vmatpush2.msra.mxu0 0.0
      %603 = vmatprep.subr.mxu0 0.0
      %604 = vmatpush2.msra.mxu0 0.0
      %605 = vmatprep.mubr.f32.mxu0 0.0
      %606 = vmatmul.mubr.f32.gmra.mxu0 %v536
      %v607 = vpop.f32.mrf.mxu0
      %v608 = vadd.f32 0.0, %v607
      %v609 = vpop.f32.mrf.mxu0
      %610 = vmatprep.mubr.f32.mxu0 0.0
      %611 = vmatmul.mubr.f32.gmra.mxu0 %v539
      %v612 = vpop.f32.mrf.mxu0
      %v613 = vadd.f32 0.0, %v612
      %v614 = vpop.f32.mrf.mxu0
      %615 = vdwg.mxu0
      %v616 = vadd.f32 %v355, %v608
      %v617 = vadd.f32 %v356, %v613
      %v618 = vmax.f32 %v616, 0.0
      %v619 = vmax.f32 %v617, 0.0
      %v620 = vlaneseq
      %v621 = vshrl.u32 %v620, 7
      %v622 = vsub.s32 0, %v621
      %v623 = vrot.slane %v383, %v622
      %vm624 = vcmask 261120
      %v626 = vsel %vm624, %v618, 0
      %v629 = vsel %vm624, %v619, 0
      %631 = vmatprep.subr.mxu0 0.0
      %632 = vmatpush1.msra.mxu0 0.0
      %633 = vmatprep.subr.mxu0 0.0
      %634 = vmatpush1.msra.mxu0 0.0
      %635 = vmatprep.subr.mxu0 0.0
      %636 = vmatpush1.msra.mxu0 0.0
      %637 = vmatprep.subr.mxu0 0.0
      %638 = vmatpush1.msra.mxu0 0.0
      %639 = vmatprep.subr.mxu0 0.0
      %640 = vmatpush1.msra.mxu0 0.0
      %641 = vmatprep.subr.mxu0 0.0
      %642 = vmatpush1.msra.mxu0 0.0
      %643 = vmatprep.subr.mxu0 0.0
      %644 = vmatpush1.msra.mxu0 0.0
      %645 = vmatprep.subr.mxu0 0.0
      %646 = vmatpush1.msra.mxu0 0.0
      %647 = vmatprep.subr.mxu0 0.0
      %648 = vmatpush1.msra.mxu0 0.0
      %649 = vmatprep.subr.mxu0 0.0
      %650 = vmatpush1.msra.mxu0 0.0
      %651 = vmatprep.subr.mxu0 0.0
      %652 = vmatpush1.msra.mxu0 0.0
      %653 = vmatprep.subr.mxu0 0.0
      %654 = vmatpush1.msra.mxu0 0.0
      %655 = vmatprep.subr.mxu0 0.0
      %656 = vmatpush1.msra.mxu0 %v382
      %657 = vmatprep.subr.mxu0 0.0
      %658 = vmatpush1.msra.mxu0 %v381
      %659 = vmatprep.subr.mxu0 0.0
      %660 = vmatpush1.msra.mxu0 %v380
      %661 = vmatprep.subr.mxu0 0.0
      %662 = vmatpush1.msra.mxu0 %v379
      %663 = vmatprep.subr.mxu0 0.0
      %664 = vmatpush2.msra.mxu0 0.0
      %665 = vmatprep.subr.mxu0 0.0
      %666 = vmatpush2.msra.mxu0 0.0
      %667 = vmatprep.subr.mxu0 0.0
      %668 = vmatpush2.msra.mxu0 0.0
      %669 = vmatprep.subr.mxu0 0.0
      %670 = vmatpush2.msra.mxu0 0.0
      %671 = vmatprep.subr.mxu0 0.0
      %672 = vmatpush2.msra.mxu0 0.0
      %673 = vmatprep.subr.mxu0 0.0
      %674 = vmatpush2.msra.mxu0 0.0
      %675 = vmatprep.subr.mxu0 0.0
      %676 = vmatpush2.msra.mxu0 0.0
      %677 = vmatprep.subr.mxu0 0.0
      %678 = vmatpush2.msra.mxu0 0.0
      %679 = vmatprep.subr.mxu0 0.0
      %680 = vmatpush2.msra.mxu0 0.0
      %681 = vmatprep.subr.mxu0 0.0
      %682 = vmatpush2.msra.mxu0 0.0
      %683 = vmatprep.subr.mxu0 0.0
      %684 = vmatpush2.msra.mxu0 0.0
      %685 = vmatprep.subr.mxu0 0.0
      %686 = vmatpush2.msra.mxu0 0.0
      %687 = vmatprep.subr.mxu0 0.0
      %688 = vmatpush2.msra.mxu0 0.0
      %689 = vmatprep.subr.mxu0 0.0
      %690 = vmatpush2.msra.mxu0 0.0
      %691 = vmatprep.subr.mxu0 0.0
      %692 = vmatpush2.msra.mxu0 0.0
      %693 = vmatprep.subr.mxu0 0.0
      %694 = vmatpush2.msra.mxu0 0.0
      %695 = vmatprep.mubr.f32.mxu0 0.0
      %696 = vmatmul.mubr.f32.gmra.mxu0 %v626
      %v697 = vpop.f32.mrf.mxu0
      %v698 = vadd.f32 %v623, %v697
      %v699 = vpop.f32.mrf.mxu0
      %700 = vmatprep.mubr.f32.mxu0 0.0
      %701 = vmatmul.mubr.f32.gmra.mxu0 %v629
      %v702 = vpop.f32.mrf.mxu0
      %v703 = vadd.f32 %v623, %v702
      %v704 = vpop.f32.mrf.mxu0
      %705 = vdwg.mxu0
      %v706 = vmax.f32 %v698, 0.0
      %v707 = vmax.f32 %v703, 0.0
      %v708 = vlaneseq
      %v709 = vshrl.u32 %v708, 7
      %v710 = vsub.s32 0, %v709
      %v711 = vrot.slane %v388, %v710
      %v713 = vsel %vm624, %v706, 0
      %v716 = vsel %vm624, %v707, 0
      %718 = vmatprep.subr.mxu0 0.0
      %719 = vmatpush1.msra.mxu0 0.0
      %720 = vmatprep.subr.mxu0 0.0
      %721 = vmatpush1.msra.mxu0 0.0
      %722 = vmatprep.subr.mxu0 0.0
      %723 = vmatpush1.msra.mxu0 0.0
      %724 = vmatprep.subr.mxu0 0.0
      %725 = vmatpush1.msra.mxu0 0.0
      %726 = vmatprep.subr.mxu0 0.0
      %727 = vmatpush1.msra.mxu0 0.0
      %728 = vmatprep.subr.mxu0 0.0
      %729 = vmatpush1.msra.mxu0 0.0
      %730 = vmatprep.subr.mxu0 0.0
      %731 = vmatpush1.msra.mxu0 0.0
      %732 = vmatprep.subr.mxu0 0.0
      %733 = vmatpush1.msra.mxu0 0.0
      %734 = vmatprep.subr.mxu0 0.0
      %735 = vmatpush1.msra.mxu0 0.0
      %736 = vmatprep.subr.mxu0 0.0
      %737 = vmatpush1.msra.mxu0 0.0
      %738 = vmatprep.subr.mxu0 0.0
      %739 = vmatpush1.msra.mxu0 0.0
      %740 = vmatprep.subr.mxu0 0.0
      %741 = vmatpush1.msra.mxu0 0.0
      %742 = vmatprep.subr.mxu0 0.0
      %743 = vmatpush1.msra.mxu0 %v387
      %744 = vmatprep.subr.mxu0 0.0
      %745 = vmatpush1.msra.mxu0 %v386
      %746 = vmatprep.subr.mxu0 0.0
      %747 = vmatpush1.msra.mxu0 %v385
      %748 = vmatprep.subr.mxu0 0.0
      %749 = vmatpush1.msra.mxu0 %v384
      %750 = vmatprep.subr.mxu0 0.0
      %751 = vmatpush2.msra.mxu0 0.0
      %752 = vmatprep.subr.mxu0 0.0
      %753 = vmatpush2.msra.mxu0 0.0
      %754 = vmatprep.subr.mxu0 0.0
      %755 = vmatpush2.msra.mxu0 0.0
      %756 = vmatprep.subr.mxu0 0.0
      %757 = vmatpush2.msra.mxu0 0.0
      %758 = vmatprep.subr.mxu0 0.0
      %759 = vmatpush2.msra.mxu0 0.0
      %760 = vmatprep.subr.mxu0 0.0
      %761 = vmatpush2.msra.mxu0 0.0
      %762 = vmatprep.subr.mxu0 0.0
      %763 = vmatpush2.msra.mxu0 0.0
      %764 = vmatprep.subr.mxu0 0.0
      %765 = vmatpush2.msra.mxu0 0.0
      %766 = vmatprep.subr.mxu0 0.0
      %767 = vmatpush2.msra.mxu0 0.0
      %768 = vmatprep.subr.mxu0 0.0
      %769 = vmatpush2.msra.mxu0 0.0
      %770 = vmatprep.subr.mxu0 0.0
      %771 = vmatpush2.msra.mxu0 0.0
      %772 = vmatprep.subr.mxu0 0.0
      %773 = vmatpush2.msra.mxu0 0.0
      %774 = vmatprep.subr.mxu0 0.0
      %775 = vmatpush2.msra.mxu0 0.0
      %776 = vmatprep.subr.mxu0 0.0
      %777 = vmatpush2.msra.mxu0 0.0
      %778 = vmatprep.subr.mxu0 0.0
      %779 = vmatpush2.msra.mxu0 0.0
      %780 = vmatprep.subr.mxu0 0.0
      %781 = vmatpush2.msra.mxu0 0.0
      %782 = vmatprep.mubr.f32.mxu0 0.0
      %783 = vmatmul.mubr.f32.gmra.mxu0 %v713
      %v784 = vpop.f32.mrf.mxu0
      %v785 = vadd.f32 %v711, %v784
      %v786 = vpop.f32.mrf.mxu0
      %787 = vmatprep.mubr.f32.mxu0 0.0
      %788 = vmatmul.mubr.f32.gmra.mxu0 %v716
      %v789 = vpop.f32.mrf.mxu0
      %v790 = vadd.f32 %v711, %v789
      %v791 = vpop.f32.mrf.mxu0
      %792 = vdwg.mxu0
      %v793 = vadd.f32 %v785, 0.0
      %v794 = vadd.f32 %v790, 0.0
      %v795 = vsel %vm486, %v529, inf
      %796 = vmin.xlane.f32.xlu0 %v795
      %v797 = vpop.xlane.xlu0 %796
      %v798 = vsel %vm486, %v530, inf
      %799 = vmin.xlane.f32.xlu0 %v798
      %v800 = vpop.xlane.xlu0 %799
      %vm801 = vcmp.le.f32.partialorder %v529, %v797
      %vm802 = vcmp.le.f32.partialorder %v530, %v800
      %v803 = vsel %vm801, %v485, 48
      %v804 = vsel %vm802, %v485, 48
      %v805 = vsel %vm486, %v803, 2147483647
      %v806 = vand.u32 %v805, 65535
      %v807 = vshra.s32 %v805, 16
      %v808 = vcvt.s32.f32 %v806
      %v809 = vcvt.s32.f32 %v807
      %810 = vmin.xlane.f32.xlu0 %v809
      %v811 = vpop.xlane.xlu0 %810
      %vm812 = vcmp.eq.f32.partialorder %v809, %v811
      %v813 = vsel %vm812, %v808, inf
      %814 = vmin.xlane.f32.xlu0 %v813
      %v815 = vpop.xlane.xlu0 %814
      %v816 = vcvt.f32.s32 %v815
      %v817 = vcvt.f32.s32 %v811
      %v818 = vshll.u32 %v817, 16
      %v819 = vadd.s32 %v818, %v816
      %v820 = vsel %vm486, %v804, 2147483647
      %v821 = vand.u32 %v820, 65535
      %v822 = vshra.s32 %v820, 16
      %v823 = vcvt.s32.f32 %v821
      %v824 = vcvt.s32.f32 %v822
      %825 = vmin.xlane.f32.xlu0 %v824
      %v826 = vpop.xlane.xlu0 %825
      %vm827 = vcmp.eq.f32.partialorder %v824, %v826
      %v828 = vsel %vm827, %v823, inf
      %829 = vmin.xlane.f32.xlu0 %v828
      %v830 = vpop.xlane.xlu0 %829
      %v831 = vcvt.f32.s32 %v830
      %v832 = vcvt.f32.s32 %v826
      %v833 = vshll.u32 %v832, 16
      %v834 = vadd.s32 %v833, %v831
      %vm835 = vcmp.eq.s32.totalorder %v485, %v819
      %vm836 = vcmp.eq.s32.totalorder %v485, %v834
      %v837 = vsel %vm835, 1e+30, %v529
      %v838 = vsel %vm836, 1e+30, %v530
      %v839 = vsel %vm835, 1, 0
      %v840 = vsel %vm836, 1, 0
      %v841 = vcvt.s32.f32 %v839
      %v842 = vcvt.s32.f32 %v840
      %v844 = vsel %vm486, %v841, 0
      %v847 = vsel %vm486, %v842, 0
      %849 = vmatprep.subr.mxu0 0.0
      %850 = vmatpush1.msra.mxu0 0.0
      %851 = vmatprep.subr.mxu0 0.0
      %852 = vmatpush1.msra.mxu0 0.0
      %853 = vmatprep.subr.mxu0 0.0
      %854 = vmatpush1.msra.mxu0 0.0
      %855 = vmatprep.subr.mxu0 0.0
      %856 = vmatpush1.msra.mxu0 0.0
      %857 = vmatprep.subr.mxu0 0.0
      %858 = vmatpush1.msra.mxu0 0.0
      %859 = vmatprep.subr.mxu0 0.0
      %860 = vmatpush1.msra.mxu0 0.0
      %861 = vmatprep.subr.mxu0 0.0
      %862 = vmatpush1.msra.mxu0 0.0
      %863 = vmatprep.subr.mxu0 0.0
      %864 = vmatpush1.msra.mxu0 0.0
      %865 = vmatprep.subr.mxu0 0.0
      %866 = vmatpush1.msra.mxu0 0.0
      %867 = vmatprep.subr.mxu0 0.0
      %868 = vmatpush1.msra.mxu0 0.0
      %869 = vmatprep.subr.mxu0 0.0
      %870 = vmatpush1.msra.mxu0 %v378
      %871 = vmatprep.subr.mxu0 0.0
      %872 = vmatpush1.msra.mxu0 %v377
      %873 = vmatprep.subr.mxu0 0.0
      %874 = vmatpush1.msra.mxu0 %v376
      %875 = vmatprep.subr.mxu0 0.0
      %876 = vmatpush1.msra.mxu0 %v375
      %877 = vmatprep.subr.mxu0 0.0
      %878 = vmatpush1.msra.mxu0 %v374
      %879 = vmatprep.subr.mxu0 0.0
      %880 = vmatpush1.msra.mxu0 %v373
      %881 = vmatprep.subr.mxu0 0.0
      %882 = vmatpush2.msra.mxu0 0.0
      %883 = vmatprep.subr.mxu0 0.0
      %884 = vmatpush2.msra.mxu0 0.0
      %885 = vmatprep.subr.mxu0 0.0
      %886 = vmatpush2.msra.mxu0 0.0
      %887 = vmatprep.subr.mxu0 0.0
      %888 = vmatpush2.msra.mxu0 0.0
      %889 = vmatprep.subr.mxu0 0.0
      %890 = vmatpush2.msra.mxu0 0.0
      %891 = vmatprep.subr.mxu0 0.0
      %892 = vmatpush2.msra.mxu0 0.0
      %893 = vmatprep.subr.mxu0 0.0
      %894 = vmatpush2.msra.mxu0 0.0
      %895 = vmatprep.subr.mxu0 0.0
      %896 = vmatpush2.msra.mxu0 0.0
      %897 = vmatprep.subr.mxu0 0.0
      %898 = vmatpush2.msra.mxu0 0.0
      %899 = vmatprep.subr.mxu0 0.0
      %900 = vmatpush2.msra.mxu0 0.0
      %901 = vmatprep.subr.mxu0 0.0
      %902 = vmatpush2.msra.mxu0 0.0
      %903 = vmatprep.subr.mxu0 0.0
      %904 = vmatpush2.msra.mxu0 0.0
      %905 = vmatprep.subr.mxu0 0.0
      %906 = vmatpush2.msra.mxu0 0.0
      %907 = vmatprep.subr.mxu0 0.0
      %908 = vmatpush2.msra.mxu0 0.0
      %909 = vmatprep.subr.mxu0 0.0
      %910 = vmatpush2.msra.mxu0 0.0
      %911 = vmatprep.subr.mxu0 0.0
      %912 = vmatpush2.msra.mxu0 0.0
      %913 = vmatprep.mubr.f32.mxu0 0.0
      %914 = vmatmul.mubr.f32.gmra.mxu0 %v844
      %v915 = vpop.f32.mrf.mxu0
      %v916 = vadd.f32 0.0, %v915
      %v917 = vpop.f32.mrf.mxu0
      %918 = vmatprep.mubr.f32.mxu0 0.0
      %919 = vmatmul.mubr.f32.gmra.mxu0 %v847
      %v920 = vpop.f32.mrf.mxu0
      %v921 = vadd.f32 0.0, %v920
      %v922 = vpop.f32.mrf.mxu0
      %923 = vdwg.mxu0
      %v924 = vadd.f32 %v355, %v916
      %v925 = vadd.f32 %v356, %v921
      %v926 = vmax.f32 %v924, 0.0
      %v927 = vmax.f32 %v925, 0.0
      %v929 = vsel %vm624, %v926, 0
      %v932 = vsel %vm624, %v927, 0
      %934 = vmatprep.subr.mxu0 0.0
      %935 = vmatpush1.msra.mxu0 0.0
      %936 = vmatprep.subr.mxu0 0.0
      %937 = vmatpush1.msra.mxu0 0.0
      %938 = vmatprep.subr.mxu0 0.0
      %939 = vmatpush1.msra.mxu0 0.0
      %940 = vmatprep.subr.mxu0 0.0
      %941 = vmatpush1.msra.mxu0 0.0
      %942 = vmatprep.subr.mxu0 0.0
      %943 = vmatpush1.msra.mxu0 0.0
      %944 = vmatprep.subr.mxu0 0.0
      %945 = vmatpush1.msra.mxu0 0.0
      %946 = vmatprep.subr.mxu0 0.0
      %947 = vmatpush1.msra.mxu0 0.0
      %948 = vmatprep.subr.mxu0 0.0
      %949 = vmatpush1.msra.mxu0 0.0
      %950 = vmatprep.subr.mxu0 0.0
      %951 = vmatpush1.msra.mxu0 0.0
      %952 = vmatprep.subr.mxu0 0.0
      %953 = vmatpush1.msra.mxu0 0.0
      %954 = vmatprep.subr.mxu0 0.0
      %955 = vmatpush1.msra.mxu0 0.0
      %956 = vmatprep.subr.mxu0 0.0
      %957 = vmatpush1.msra.mxu0 0.0
      %958 = vmatprep.subr.mxu0 0.0
      %959 = vmatpush1.msra.mxu0 %v382
      %960 = vmatprep.subr.mxu0 0.0
      %961 = vmatpush1.msra.mxu0 %v381
      %962 = vmatprep.subr.mxu0 0.0
      %963 = vmatpush1.msra.mxu0 %v380
      %964 = vmatprep.subr.mxu0 0.0
      %965 = vmatpush1.msra.mxu0 %v379
      %966 = vmatprep.subr.mxu0 0.0
      %967 = vmatpush2.msra.mxu0 0.0
      %968 = vmatprep.subr.mxu0 0.0
      %969 = vmatpush2.msra.mxu0 0.0
      %970 = vmatprep.subr.mxu0 0.0
      %971 = vmatpush2.msra.mxu0 0.0
      %972 = vmatprep.subr.mxu0 0.0
      %973 = vmatpush2.msra.mxu0 0.0
      %974 = vmatprep.subr.mxu0 0.0
      %975 = vmatpush2.msra.mxu0 0.0
      %976 = vmatprep.subr.mxu0 0.0
      %977 = vmatpush2.msra.mxu0 0.0
      %978 = vmatprep.subr.mxu0 0.0
      %979 = vmatpush2.msra.mxu0 0.0
      %980 = vmatprep.subr.mxu0 0.0
      %981 = vmatpush2.msra.mxu0 0.0
      %982 = vmatprep.subr.mxu0 0.0
      %983 = vmatpush2.msra.mxu0 0.0
      %984 = vmatprep.subr.mxu0 0.0
      %985 = vmatpush2.msra.mxu0 0.0
      %986 = vmatprep.subr.mxu0 0.0
      %987 = vmatpush2.msra.mxu0 0.0
      %988 = vmatprep.subr.mxu0 0.0
      %989 = vmatpush2.msra.mxu0 0.0
      %990 = vmatprep.subr.mxu0 0.0
      %991 = vmatpush2.msra.mxu0 0.0
      %992 = vmatprep.subr.mxu0 0.0
      %993 = vmatpush2.msra.mxu0 0.0
      %994 = vmatprep.subr.mxu0 0.0
      %995 = vmatpush2.msra.mxu0 0.0
      %996 = vmatprep.subr.mxu0 0.0
      %997 = vmatpush2.msra.mxu0 0.0
      %998 = vmatprep.mubr.f32.mxu0 0.0
      %999 = vmatmul.mubr.f32.gmra.mxu0 %v929
      %v1000 = vpop.f32.mrf.mxu0
      %v1001 = vadd.f32 %v623, %v1000
      %v1002 = vpop.f32.mrf.mxu0
      %1003 = vmatprep.mubr.f32.mxu0 0.0
      %1004 = vmatmul.mubr.f32.gmra.mxu0 %v932
      %v1005 = vpop.f32.mrf.mxu0
      %v1006 = vadd.f32 %v623, %v1005
      %v1007 = vpop.f32.mrf.mxu0
      %1008 = vdwg.mxu0
      %v1009 = vmax.f32 %v1001, 0.0
      %v1010 = vmax.f32 %v1006, 0.0
      %v1012 = vsel %vm624, %v1009, 0
      %v1015 = vsel %vm624, %v1010, 0
      %1017 = vmatprep.subr.mxu0 0.0
      %1018 = vmatpush1.msra.mxu0 0.0
      %1019 = vmatprep.subr.mxu0 0.0
      %1020 = vmatpush1.msra.mxu0 0.0
      %1021 = vmatprep.subr.mxu0 0.0
      %1022 = vmatpush1.msra.mxu0 0.0
      %1023 = vmatprep.subr.mxu0 0.0
      %1024 = vmatpush1.msra.mxu0 0.0
      %1025 = vmatprep.subr.mxu0 0.0
      %1026 = vmatpush1.msra.mxu0 0.0
      %1027 = vmatprep.subr.mxu0 0.0
      %1028 = vmatpush1.msra.mxu0 0.0
      %1029 = vmatprep.subr.mxu0 0.0
      %1030 = vmatpush1.msra.mxu0 0.0
      %1031 = vmatprep.subr.mxu0 0.0
      %1032 = vmatpush1.msra.mxu0 0.0
      %1033 = vmatprep.subr.mxu0 0.0
      %1034 = vmatpush1.msra.mxu0 0.0
      %1035 = vmatprep.subr.mxu0 0.0
      %1036 = vmatpush1.msra.mxu0 0.0
      %1037 = vmatprep.subr.mxu0 0.0
      %1038 = vmatpush1.msra.mxu0 0.0
      %1039 = vmatprep.subr.mxu0 0.0
      %1040 = vmatpush1.msra.mxu0 0.0
      %1041 = vmatprep.subr.mxu0 0.0
      %1042 = vmatpush1.msra.mxu0 %v387
      %1043 = vmatprep.subr.mxu0 0.0
      %1044 = vmatpush1.msra.mxu0 %v386
      %1045 = vmatprep.subr.mxu0 0.0
      %1046 = vmatpush1.msra.mxu0 %v385
      %1047 = vmatprep.subr.mxu0 0.0
      %1048 = vmatpush1.msra.mxu0 %v384
      %1049 = vmatprep.subr.mxu0 0.0
      %1050 = vmatpush2.msra.mxu0 0.0
      %1051 = vmatprep.subr.mxu0 0.0
      %1052 = vmatpush2.msra.mxu0 0.0
      %1053 = vmatprep.subr.mxu0 0.0
      %1054 = vmatpush2.msra.mxu0 0.0
      %1055 = vmatprep.subr.mxu0 0.0
      %1056 = vmatpush2.msra.mxu0 0.0
      %1057 = vmatprep.subr.mxu0 0.0
      %1058 = vmatpush2.msra.mxu0 0.0
      %1059 = vmatprep.subr.mxu0 0.0
      %1060 = vmatpush2.msra.mxu0 0.0
      %1061 = vmatprep.subr.mxu0 0.0
      %1062 = vmatpush2.msra.mxu0 0.0
      %1063 = vmatprep.subr.mxu0 0.0
      %1064 = vmatpush2.msra.mxu0 0.0
      %1065 = vmatprep.subr.mxu0 0.0
      %1066 = vmatpush2.msra.mxu0 0.0
      %1067 = vmatprep.subr.mxu0 0.0
      %1068 = vmatpush2.msra.mxu0 0.0
      %1069 = vmatprep.subr.mxu0 0.0
      %1070 = vmatpush2.msra.mxu0 0.0
      %1071 = vmatprep.subr.mxu0 0.0
      %1072 = vmatpush2.msra.mxu0 0.0
      %1073 = vmatprep.subr.mxu0 0.0
      %1074 = vmatpush2.msra.mxu0 0.0
      %1075 = vmatprep.subr.mxu0 0.0
      %1076 = vmatpush2.msra.mxu0 0.0
      %1077 = vmatprep.subr.mxu0 0.0
      %1078 = vmatpush2.msra.mxu0 0.0
      %1079 = vmatprep.subr.mxu0 0.0
      %1080 = vmatpush2.msra.mxu0 0.0
      %1081 = vmatprep.mubr.f32.mxu0 0.0
      %1082 = vmatmul.mubr.f32.gmra.mxu0 %v1012
      %v1083 = vpop.f32.mrf.mxu0
      %v1084 = vadd.f32 %v711, %v1083
      %v1085 = vpop.f32.mrf.mxu0
      %1086 = vmatprep.mubr.f32.mxu0 0.0
      %1087 = vmatmul.mubr.f32.gmra.mxu0 %v1015
      %v1088 = vpop.f32.mrf.mxu0
      %v1089 = vadd.f32 %v711, %v1088
      %v1090 = vpop.f32.mrf.mxu0
      %1091 = vdwg.mxu0
      %v1092 = vadd.f32 %v793, %v1084
      %v1093 = vadd.f32 %v794, %v1089
      %v1094 = vsel %vm486, %v837, inf
      %1095 = vmin.xlane.f32.xlu0 %v1094
      %v1096 = vpop.xlane.xlu0 %1095
      %v1097 = vsel %vm486, %v838, inf
      %1098 = vmin.xlane.f32.xlu0 %v1097
      %v1099 = vpop.xlane.xlu0 %1098
      %vm1100 = vcmp.le.f32.partialorder %v837, %v1096
      %vm1101 = vcmp.le.f32.partialorder %v838, %v1099
      %v1102 = vsel %vm1100, %v485, 48
      %v1103 = vsel %vm1101, %v485, 48
      %v1104 = vsel %vm486, %v1102, 2147483647
      %v1105 = vand.u32 %v1104, 65535
      %v1106 = vshra.s32 %v1104, 16
      %v1107 = vcvt.s32.f32 %v1105
      %v1108 = vcvt.s32.f32 %v1106
      %1109 = vmin.xlane.f32.xlu0 %v1108
      %v1110 = vpop.xlane.xlu0 %1109
      %vm1111 = vcmp.eq.f32.partialorder %v1108, %v1110
      %v1112 = vsel %vm1111, %v1107, inf
      %1113 = vmin.xlane.f32.xlu0 %v1112
      %v1114 = vpop.xlane.xlu0 %1113
      %v1115 = vcvt.f32.s32 %v1114
      %v1116 = vcvt.f32.s32 %v1110
      %v1117 = vshll.u32 %v1116, 16
      %v1118 = vadd.s32 %v1117, %v1115
      %v1119 = vsel %vm486, %v1103, 2147483647
      %v1120 = vand.u32 %v1119, 65535
      %v1121 = vshra.s32 %v1119, 16
      %v1122 = vcvt.s32.f32 %v1120
      %v1123 = vcvt.s32.f32 %v1121
      %1124 = vmin.xlane.f32.xlu0 %v1123
      %v1125 = vpop.xlane.xlu0 %1124
      %vm1126 = vcmp.eq.f32.partialorder %v1123, %v1125
      %v1127 = vsel %vm1126, %v1122, inf
      %1128 = vmin.xlane.f32.xlu0 %v1127
      %v1129 = vpop.xlane.xlu0 %1128
      %v1130 = vcvt.f32.s32 %v1129
      %v1131 = vcvt.f32.s32 %v1125
      %v1132 = vshll.u32 %v1131, 16
      %v1133 = vadd.s32 %v1132, %v1130
      %vm1134 = vcmp.eq.s32.totalorder %v485, %v1118
      %vm1135 = vcmp.eq.s32.totalorder %v485, %v1133
      %v1136 = vsel %vm1134, 1, 0
      %v1137 = vsel %vm1135, 1, 0
      %v1138 = vcvt.s32.f32 %v1136
      %v1139 = vcvt.s32.f32 %v1137
      %v1141 = vsel %vm486, %v1138, 0
      %v1144 = vsel %vm486, %v1139, 0
      %1146 = vmatprep.subr.mxu0 0.0
      %1147 = vmatpush1.msra.mxu0 0.0
      %1148 = vmatprep.subr.mxu0 0.0
      %1149 = vmatpush1.msra.mxu0 0.0
      %1150 = vmatprep.subr.mxu0 0.0
      %1151 = vmatpush1.msra.mxu0 0.0
      %1152 = vmatprep.subr.mxu0 0.0
      %1153 = vmatpush1.msra.mxu0 0.0
      %1154 = vmatprep.subr.mxu0 0.0
      %1155 = vmatpush1.msra.mxu0 0.0
      %1156 = vmatprep.subr.mxu0 0.0
      %1157 = vmatpush1.msra.mxu0 0.0
      %1158 = vmatprep.subr.mxu0 0.0
      %1159 = vmatpush1.msra.mxu0 0.0
      %1160 = vmatprep.subr.mxu0 0.0
      %1161 = vmatpush1.msra.mxu0 0.0
      %1162 = vmatprep.subr.mxu0 0.0
      %1163 = vmatpush1.msra.mxu0 0.0
      %1164 = vmatprep.subr.mxu0 0.0
      %1165 = vmatpush1.msra.mxu0 0.0
      %1166 = vmatprep.subr.mxu0 0.0
      %1167 = vmatpush1.msra.mxu0 %v378
      %1168 = vmatprep.subr.mxu0 0.0
      %1169 = vmatpush1.msra.mxu0 %v377
      %1170 = vmatprep.subr.mxu0 0.0
      %1171 = vmatpush1.msra.mxu0 %v376
      %1172 = vmatprep.subr.mxu0 0.0
      %1173 = vmatpush1.msra.mxu0 %v375
      %1174 = vmatprep.subr.mxu0 0.0
      %1175 = vmatpush1.msra.mxu0 %v374
      %1176 = vmatprep.subr.mxu0 0.0
      %1177 = vmatpush1.msra.mxu0 %v373
      %1178 = vmatprep.subr.mxu0 0.0
      %1179 = vmatpush2.msra.mxu0 0.0
      %1180 = vmatprep.subr.mxu0 0.0
      %1181 = vmatpush2.msra.mxu0 0.0
      %1182 = vmatprep.subr.mxu0 0.0
      %1183 = vmatpush2.msra.mxu0 0.0
      %1184 = vmatprep.subr.mxu0 0.0
      %1185 = vmatpush2.msra.mxu0 0.0
      %1186 = vmatprep.subr.mxu0 0.0
      %1187 = vmatpush2.msra.mxu0 0.0
      %1188 = vmatprep.subr.mxu0 0.0
      %1189 = vmatpush2.msra.mxu0 0.0
      %1190 = vmatprep.subr.mxu0 0.0
      %1191 = vmatpush2.msra.mxu0 0.0
      %1192 = vmatprep.subr.mxu0 0.0
      %1193 = vmatpush2.msra.mxu0 0.0
      %1194 = vmatprep.subr.mxu0 0.0
      %1195 = vmatpush2.msra.mxu0 0.0
      %1196 = vmatprep.subr.mxu0 0.0
      %1197 = vmatpush2.msra.mxu0 0.0
      %1198 = vmatprep.subr.mxu0 0.0
      %1199 = vmatpush2.msra.mxu0 0.0
      %1200 = vmatprep.subr.mxu0 0.0
      %1201 = vmatpush2.msra.mxu0 0.0
      %1202 = vmatprep.subr.mxu0 0.0
      %1203 = vmatpush2.msra.mxu0 0.0
      %1204 = vmatprep.subr.mxu0 0.0
      %1205 = vmatpush2.msra.mxu0 0.0
      %1206 = vmatprep.subr.mxu0 0.0
      %1207 = vmatpush2.msra.mxu0 0.0
      %1208 = vmatprep.subr.mxu0 0.0
      %1209 = vmatpush2.msra.mxu0 0.0
      %1210 = vmatprep.mubr.f32.mxu0 0.0
      %1211 = vmatmul.mubr.f32.gmra.mxu0 %v1141
      %v1212 = vpop.f32.mrf.mxu0
      %v1213 = vadd.f32 0.0, %v1212
      %v1214 = vpop.f32.mrf.mxu0
      %1215 = vmatprep.mubr.f32.mxu0 0.0
      %1216 = vmatmul.mubr.f32.gmra.mxu0 %v1144
      %v1217 = vpop.f32.mrf.mxu0
      %v1218 = vadd.f32 0.0, %v1217
      %v1219 = vpop.f32.mrf.mxu0
      %1220 = vdwg.mxu0
      %v1221 = vadd.f32 %v355, %v1213
      %v1222 = vadd.f32 %v356, %v1218
      %v1223 = vmax.f32 %v1221, 0.0
      %v1224 = vmax.f32 %v1222, 0.0
      %v1226 = vsel %vm624, %v1223, 0
      %v1229 = vsel %vm624, %v1224, 0
      %1231 = vmatprep.subr.mxu0 0.0
      %1232 = vmatpush1.msra.mxu0 0.0
      %1233 = vmatprep.subr.mxu0 0.0
      %1234 = vmatpush1.msra.mxu0 0.0
      %1235 = vmatprep.subr.mxu0 0.0
      %1236 = vmatpush1.msra.mxu0 0.0
      %1237 = vmatprep.subr.mxu0 0.0
      %1238 = vmatpush1.msra.mxu0 0.0
      %1239 = vmatprep.subr.mxu0 0.0
      %1240 = vmatpush1.msra.mxu0 0.0
      %1241 = vmatprep.subr.mxu0 0.0
      %1242 = vmatpush1.msra.mxu0 0.0
      %1243 = vmatprep.subr.mxu0 0.0
      %1244 = vmatpush1.msra.mxu0 0.0
      %1245 = vmatprep.subr.mxu0 0.0
      %1246 = vmatpush1.msra.mxu0 0.0
      %1247 = vmatprep.subr.mxu0 0.0
      %1248 = vmatpush1.msra.mxu0 0.0
      %1249 = vmatprep.subr.mxu0 0.0
      %1250 = vmatpush1.msra.mxu0 0.0
      %1251 = vmatprep.subr.mxu0 0.0
      %1252 = vmatpush1.msra.mxu0 0.0
      %1253 = vmatprep.subr.mxu0 0.0
      %1254 = vmatpush1.msra.mxu0 0.0
      %1255 = vmatprep.subr.mxu0 0.0
      %1256 = vmatpush1.msra.mxu0 %v382
      %1257 = vmatprep.subr.mxu0 0.0
      %1258 = vmatpush1.msra.mxu0 %v381
      %1259 = vmatprep.subr.mxu0 0.0
      %1260 = vmatpush1.msra.mxu0 %v380
      %1261 = vmatprep.subr.mxu0 0.0
      %1262 = vmatpush1.msra.mxu0 %v379
      %1263 = vmatprep.subr.mxu0 0.0
      %1264 = vmatpush2.msra.mxu0 0.0
      %1265 = vmatprep.subr.mxu0 0.0
      %1266 = vmatpush2.msra.mxu0 0.0
      %1267 = vmatprep.subr.mxu0 0.0
      %1268 = vmatpush2.msra.mxu0 0.0
      %1269 = vmatprep.subr.mxu0 0.0
      %1270 = vmatpush2.msra.mxu0 0.0
      %1271 = vmatprep.subr.mxu0 0.0
      %1272 = vmatpush2.msra.mxu0 0.0
      %1273 = vmatprep.subr.mxu0 0.0
      %1274 = vmatpush2.msra.mxu0 0.0
      %1275 = vmatprep.subr.mxu0 0.0
      %1276 = vmatpush2.msra.mxu0 0.0
      %1277 = vmatprep.subr.mxu0 0.0
      %1278 = vmatpush2.msra.mxu0 0.0
      %1279 = vmatprep.subr.mxu0 0.0
      %1280 = vmatpush2.msra.mxu0 0.0
      %1281 = vmatprep.subr.mxu0 0.0
      %1282 = vmatpush2.msra.mxu0 0.0
      %1283 = vmatprep.subr.mxu0 0.0
      %1284 = vmatpush2.msra.mxu0 0.0
      %1285 = vmatprep.subr.mxu0 0.0
      %1286 = vmatpush2.msra.mxu0 0.0
      %1287 = vmatprep.subr.mxu0 0.0
      %1288 = vmatpush2.msra.mxu0 0.0
      %1289 = vmatprep.subr.mxu0 0.0
      %1290 = vmatpush2.msra.mxu0 0.0
      %1291 = vmatprep.subr.mxu0 0.0
      %1292 = vmatpush2.msra.mxu0 0.0
      %1293 = vmatprep.subr.mxu0 0.0
      %1294 = vmatpush2.msra.mxu0 0.0
      %1295 = vmatprep.mubr.f32.mxu0 0.0
      %1296 = vmatmul.mubr.f32.gmra.mxu0 %v1226
      %v1297 = vpop.f32.mrf.mxu0
      %v1298 = vadd.f32 %v623, %v1297
      %v1299 = vpop.f32.mrf.mxu0
      %1300 = vmatprep.mubr.f32.mxu0 0.0
      %1301 = vmatmul.mubr.f32.gmra.mxu0 %v1229
      %v1302 = vpop.f32.mrf.mxu0
      %v1303 = vadd.f32 %v623, %v1302
      %v1304 = vpop.f32.mrf.mxu0
      %1305 = vdwg.mxu0
      %v1306 = vmax.f32 %v1298, 0.0
      %v1307 = vmax.f32 %v1303, 0.0
      %v1309 = vsel %vm624, %v1306, 0
      %v1312 = vsel %vm624, %v1307, 0
      %1314 = vmatprep.subr.mxu0 0.0
      %1315 = vmatpush1.msra.mxu0 0.0
      %1316 = vmatprep.subr.mxu0 0.0
      %1317 = vmatpush1.msra.mxu0 0.0
      %1318 = vmatprep.subr.mxu0 0.0
      %1319 = vmatpush1.msra.mxu0 0.0
      %1320 = vmatprep.subr.mxu0 0.0
      %1321 = vmatpush1.msra.mxu0 0.0
      %1322 = vmatprep.subr.mxu0 0.0
      %1323 = vmatpush1.msra.mxu0 0.0
      %1324 = vmatprep.subr.mxu0 0.0
      %1325 = vmatpush1.msra.mxu0 0.0
      %1326 = vmatprep.subr.mxu0 0.0
      %1327 = vmatpush1.msra.mxu0 0.0
      %1328 = vmatprep.subr.mxu0 0.0
      %1329 = vmatpush1.msra.mxu0 0.0
      %1330 = vmatprep.subr.mxu0 0.0
      %1331 = vmatpush1.msra.mxu0 0.0
      %1332 = vmatprep.subr.mxu0 0.0
      %1333 = vmatpush1.msra.mxu0 0.0
      %1334 = vmatprep.subr.mxu0 0.0
      %1335 = vmatpush1.msra.mxu0 0.0
      %1336 = vmatprep.subr.mxu0 0.0
      %1337 = vmatpush1.msra.mxu0 0.0
      %1338 = vmatprep.subr.mxu0 0.0
      %1339 = vmatpush1.msra.mxu0 %v387
      %1340 = vmatprep.subr.mxu0 0.0
      %1341 = vmatpush1.msra.mxu0 %v386
      %1342 = vmatprep.subr.mxu0 0.0
      %1343 = vmatpush1.msra.mxu0 %v385
      %1344 = vmatprep.subr.mxu0 0.0
      %1345 = vmatpush1.msra.mxu0 %v384
      %1346 = vmatprep.subr.mxu0 0.0
      %1347 = vmatpush2.msra.mxu0 0.0
      %1348 = vmatprep.subr.mxu0 0.0
      %1349 = vmatpush2.msra.mxu0 0.0
      %1350 = vmatprep.subr.mxu0 0.0
      %1351 = vmatpush2.msra.mxu0 0.0
      %1352 = vmatprep.subr.mxu0 0.0
      %1353 = vmatpush2.msra.mxu0 0.0
      %1354 = vmatprep.subr.mxu0 0.0
      %1355 = vmatpush2.msra.mxu0 0.0
      %1356 = vmatprep.subr.mxu0 0.0
      %1357 = vmatpush2.msra.mxu0 0.0
      %1358 = vmatprep.subr.mxu0 0.0
      %1359 = vmatpush2.msra.mxu0 0.0
      %1360 = vmatprep.subr.mxu0 0.0
      %1361 = vmatpush2.msra.mxu0 0.0
      %1362 = vmatprep.subr.mxu0 0.0
      %1363 = vmatpush2.msra.mxu0 0.0
      %1364 = vmatprep.subr.mxu0 0.0
      %1365 = vmatpush2.msra.mxu0 0.0
      %1366 = vmatprep.subr.mxu0 0.0
      %1367 = vmatpush2.msra.mxu0 0.0
      %1368 = vmatprep.subr.mxu0 0.0
      %1369 = vmatpush2.msra.mxu0 0.0
      %1370 = vmatprep.subr.mxu0 0.0
      %1371 = vmatpush2.msra.mxu0 0.0
      %1372 = vmatprep.subr.mxu0 0.0
      %1373 = vmatpush2.msra.mxu0 0.0
      %1374 = vmatprep.subr.mxu0 0.0
      %1375 = vmatpush2.msra.mxu0 0.0
      %1376 = vmatprep.subr.mxu0 0.0
      %1377 = vmatpush2.msra.mxu0 0.0
      %1378 = vmatprep.mubr.f32.mxu0 0.0
      %1379 = vmatmul.mubr.f32.gmra.mxu0 %v1309
      %v1380 = vpop.f32.mrf.mxu0
      %v1381 = vadd.f32 %v711, %v1380
      %v1382 = vpop.f32.mrf.mxu0
      %1383 = vmatprep.mubr.f32.mxu0 0.0
      %1384 = vmatmul.mubr.f32.gmra.mxu0 %v1312
      %v1385 = vpop.f32.mrf.mxu0
      %v1386 = vadd.f32 %v711, %v1385
      %v1387 = vpop.f32.mrf.mxu0
      %1388 = vdwg.mxu0
      %v1389 = vadd.f32 %v1092, %v1381
      %v1390 = vadd.f32 %v1093, %v1386
      %v1391 = vmul.f32 %v1389, 0.33333334
      %v1392 = vmul.f32 %v1390, 0.33333334
      %1393 = vst.msk [vmem:[%s351] sm:$0xff] %vm390, %v1391
      %1394 = vst.msk [vmem:[%s351 + $0x8] sm:$0xff] %vm390, %v1392
      %s1395 = smul.u32 2, %s19
      %p1396 = scmp.lt.s32.totalorder %s1395, 5
      %s1397 = scalar_select %p1396, %s1395, 5
      %s1398 = smul.addr %s1397, 8
      %s1399 = scalar_lea.vmem %s8, %s1398
      // Predicated region
      $region53: #{_forward.3} parent=51 // pred_check
        %p1400 = pneg %p220
      $region54: #{_forward.3} parent=51 // pred_check_branch
        %1402 = sbr.rel (%p1400) target = $region56
      $region55: #{_forward.3} parent=51 // pred_region
        %s1403 = smul.u32 2, %s19
      $region56: #{_forward.3} parent=51 // pred_fallthru
        _
    $region52: #{_forward.3} parent=5 // pred_fallthru
      _
    %p1404 = scmp.le.s32.totalorder 2, %s14
    // Predicated region
    $region57: #{_forward.3} parent=5 // pred_check
      %p1405 = pneg %p1404
    $region58: #{_forward.3} parent=5 // pred_check_branch
      %1407 = sbr.rel (%p1405) target = $region60
    $region59: #{_forward.3} parent=5 // pred_region
      %s1408 = ssub.s32 %s14, 2
      // Predicated region
      $region61: #{_forward.3} parent=59 // pred_check
        %p1409 = pneg %p226
      $region62: #{_forward.3} parent=59 // pred_check_branch
        %1411 = sbr.rel (%p1409) target = $region64
      $region63: #{_forward.3} parent=59 // pred_region
        %s1412 = smul.u32 2, %s20
        %p1413 = scmp.lt.s32.totalorder %s1412, 5
        %s1414 = scalar_select %p1413, %s1412, 5
        %s1415 = smul.addr %s1414, 8
        %s1416 = scalar_lea.vmem %s8, %s1415
      $region64: #{_forward.3} parent=59 // pred_fallthru
        _
    $region60: #{_forward.3} parent=5 // pred_fallthru
      _
  $region6: #{_forward.3} parent=0 // loop_footer
    %s18 = sadd.s32 1, %s14
  $region7: #{_forward.3} parent=0 // loop_footer_branch
    %13 = sbr.rel target = $region3
  $region8: #{_forward.3} parent=0 // loop_exit
    _

// kernel: _forward.2
$region0: #{_forward.2}
  #allocation0 [shape = 'u32[]', space=smem, size = 0x4, offset = 0x4, fixed_abs, tag = 'smem constant byte address 0x4 - core index']
  #allocation1 [shape = 'u32[144,128]{1,0:T(1,128)}', space=vmem, size = 0x12000, scoped, tag = 'internal scratch']
  %s0 = inlined_call_operand.vmem [shape: f32[48,8], index: 0, kind: input, shape index: {}]
  %s1 = inlined_call_operand.vmem [shape: f32[48,32], index: 1, kind: input, shape index: {}]
  %s2 = inlined_call_operand.vmem [shape: s32[48,1], index: 2, kind: input, shape index: {}]
  %s3 = inlined_call_operand.vmem [shape: f32[8,48], index: 3, kind: input, shape index: {}]
  %s4 = inlined_call_operand.vmem [shape: f32[1,48], index: 4, kind: input, shape index: {}]
  %s5 = inlined_call_operand.vmem [shape: s32[1,48], index: 5, kind: input, shape index: {}]
  %s6 = inlined_call_operand.vmem [shape: f32[48,32], index: 6, kind: input, shape index: {}]
  %s7 = inlined_call_operand.vmem [shape: f32[72,128], index: 7, kind: input, shape index: {}]
  %s8 = inlined_call_operand.vmem [shape: f32[48,8], index: 8, kind: output, shape index: {}]
  %s9 = sld [smem:[#allocation0]]
  $region65: #{_forward.2} parent=0
    _
  %s11 = ssub.s32 1, %s9
  %s12 = scalar_select 0, %s11, %s9
  loop: start=0, step=1, limit=5
  $region2: #{_forward.2} parent=0 // loop_pre_header
    _
  $region3: #{_forward.2} parent=0 // loop_header
    %s14 = sphi 0, %s18
    %p15 = scmp.ge.s32.totalorder %s14, 5
    %s24 = sphi 0, %s26
    %s27 = sphi 0, %s24
    %s28 = sphi 0, %s27
    %s44 = sphi 0, %s28
    %s50 = sphi 0, %s52
    %s53 = sphi 0, %s50
    %s54 = sphi 0, %s53
    %s70 = sphi 0, %s54
    %s76 = sphi 0, %s78
    %s79 = sphi 0, %s76
    %s80 = sphi 0, %s79
    %s96 = sphi 0, %s80
    %s100 = sphi 0, %s100
    %s102 = sphi 0, %s100
    %s103 = sphi 0, %s102
    %s117 = sphi 0, %s103
    %s121 = sphi 0, %s121
    %s123 = sphi 0, %s121
    %s124 = sphi 0, %s123
    %s138 = sphi 0, %s124
    %s142 = sphi 0, %s142
    %s144 = sphi 0, %s142
    %s145 = sphi 0, %s144
    %s159 = sphi 0, %s145
    %s163 = sphi 0, %s163
    %s165 = sphi 0, %s163
    %s166 = sphi 0, %s165
    %s180 = sphi 0, %s166
    %s184 = sphi 0, %s184
    %s186 = sphi 0, %s184
    %s187 = sphi 0, %s186
    %s201 = sphi 0, %s187
    %s207 = sphi 0, %s209
    %s210 = sphi 0, %s207
    %s211 = sphi 0, %s210
    %s227 = sphi 0, %s211
  $region4: #{_forward.2} parent=0 // loop_header_branch
    %17 = sbr.rel (%p15) target = $region8
  $region5: #{_forward.2} parent=0 // loop_body
    %s19 = ssub.s32 %s14, 1
    %s20 = ssub.s32 %s14, 2
    %s21 = sadd.s32 %s14, 1
    %s22 = ssub.s32 %s14, %s21
    %p23 = scmp.eq.s32.totalorder %s22, 0
    %s25 = sadd.s32 %s24, 1
    %s26 = scalar_select %p23, %s24, %s25
    %p29 = pneg %p23
    %p30 = scmp.eq.s32.totalorder %s14, 2
    %p31 = por %p29, %p30
    %p32 = scmp.ne.s32.totalorder %s24, %s27
    %p33 = scmp.eq.s32.totalorder %s14, 0
    %p34 = por %p32, %p33
    %p35 = scmp.ne.s32.totalorder %s24, %s27
    %p36 = scmp.eq.s32.totalorder %s19, 2
    %p37 = por %p35, %p36
    %p38 = scmp.ne.s32.totalorder %s27, %s28
    %p39 = scmp.eq.s32.totalorder %s19, 0
    %p40 = por %p38, %p39
    %p41 = scmp.ne.s32.totalorder %s27, %s28
    %p42 = scmp.eq.s32.totalorder %s20, 2
    %p43 = por %p41, %p42
    %p45 = scmp.ne.s32.totalorder %s28, %s44
    %p46 = scmp.eq.s32.totalorder %s20, 0
    %p47 = por %p45, %p46
    %s48 = ssub.s32 %s14, %s21
    %p49 = scmp.eq.s32.totalorder %s48, 0
    %s51 = sadd.s32 %s50, 1
    %s52 = scalar_select %p49, %s50, %s51
    %p55 = pneg %p49
    %p56 = scmp.eq.s32.totalorder %s14, 2
    %p57 = por %p55, %p56
    %p58 = scmp.ne.s32.totalorder %s50, %s53
    %p59 = scmp.eq.s32.totalorder %s14, 0
    %p60 = por %p58, %p59
    %p61 = scmp.ne.s32.totalorder %s50, %s53
    %p62 = scmp.eq.s32.totalorder %s19, 2
    %p63 = por %p61, %p62
    %p64 = scmp.ne.s32.totalorder %s53, %s54
    %p65 = scmp.eq.s32.totalorder %s19, 0
    %p66 = por %p64, %p65
    %p67 = scmp.ne.s32.totalorder %s53, %s54
    %p68 = scmp.eq.s32.totalorder %s20, 2
    %p69 = por %p67, %p68
    %p71 = scmp.ne.s32.totalorder %s54, %s70
    %p72 = scmp.eq.s32.totalorder %s20, 0
    %p73 = por %p71, %p72
    %s74 = ssub.s32 %s14, %s21
    %p75 = scmp.eq.s32.totalorder %s74, 0
    %s77 = sadd.s32 %s76, 1
    %s78 = scalar_select %p75, %s76, %s77
    %p81 = pneg %p75
    %p82 = scmp.eq.s32.totalorder %s14, 2
    %p83 = por %p81, %p82
    %p84 = scmp.ne.s32.totalorder %s76, %s79
    %p85 = scmp.eq.s32.totalorder %s14, 0
    %p86 = por %p84, %p85
    %p87 = scmp.ne.s32.totalorder %s76, %s79
    %p88 = scmp.eq.s32.totalorder %s19, 2
    %p89 = por %p87, %p88
    %p90 = scmp.ne.s32.totalorder %s79, %s80
    %p91 = scmp.eq.s32.totalorder %s19, 0
    %p92 = por %p90, %p91
    %p93 = scmp.ne.s32.totalorder %s79, %s80
    %p94 = scmp.eq.s32.totalorder %s20, 2
    %p95 = por %p93, %p94
    %p97 = scmp.ne.s32.totalorder %s80, %s96
    %p98 = scmp.eq.s32.totalorder %s20, 0
    %p99 = por %p97, %p98
    %s101 = sadd.s32 %s100, 1
    %p104 = scmp.eq.s32.totalorder %s14, 2
    %p105 = scmp.ne.s32.totalorder %s100, %s102
    %p106 = scmp.eq.s32.totalorder %s14, 0
    %p107 = por %p105, %p106
    %p108 = scmp.ne.s32.totalorder %s100, %s102
    %p109 = scmp.eq.s32.totalorder %s19, 2
    %p110 = por %p108, %p109
    %p111 = scmp.ne.s32.totalorder %s102, %s103
    %p112 = scmp.eq.s32.totalorder %s19, 0
    %p113 = por %p111, %p112
    %p114 = scmp.ne.s32.totalorder %s102, %s103
    %p115 = scmp.eq.s32.totalorder %s20, 2
    %p116 = por %p114, %p115
    %p118 = scmp.ne.s32.totalorder %s103, %s117
    %p119 = scmp.eq.s32.totalorder %s20, 0
    %p120 = por %p118, %p119
    %s122 = sadd.s32 %s121, 1
    %p125 = scmp.eq.s32.totalorder %s14, 2
    %p126 = scmp.ne.s32.totalorder %s121, %s123
    %p127 = scmp.eq.s32.totalorder %s14, 0
    %p128 = por %p126, %p127
    %p129 = scmp.ne.s32.totalorder %s121, %s123
    %p130 = scmp.eq.s32.totalorder %s19, 2
    %p131 = por %p129, %p130
    %p132 = scmp.ne.s32.totalorder %s123, %s124
    %p133 = scmp.eq.s32.totalorder %s19, 0
    %p134 = por %p132, %p133
    %p135 = scmp.ne.s32.totalorder %s123, %s124
    %p136 = scmp.eq.s32.totalorder %s20, 2
    %p137 = por %p135, %p136
    %p139 = scmp.ne.s32.totalorder %s124, %s138
    %p140 = scmp.eq.s32.totalorder %s20, 0
    %p141 = por %p139, %p140
    %s143 = sadd.s32 %s142, 1
    %p146 = scmp.eq.s32.totalorder %s14, 2
    %p147 = scmp.ne.s32.totalorder %s142, %s144
    %p148 = scmp.eq.s32.totalorder %s14, 0
    %p149 = por %p147, %p148
    %p150 = scmp.ne.s32.totalorder %s142, %s144
    %p151 = scmp.eq.s32.totalorder %s19, 2
    %p152 = por %p150, %p151
    %p153 = scmp.ne.s32.totalorder %s144, %s145
    %p154 = scmp.eq.s32.totalorder %s19, 0
    %p155 = por %p153, %p154
    %p156 = scmp.ne.s32.totalorder %s144, %s145
    %p157 = scmp.eq.s32.totalorder %s20, 2
    %p158 = por %p156, %p157
    %p160 = scmp.ne.s32.totalorder %s145, %s159
    %p161 = scmp.eq.s32.totalorder %s20, 0
    %p162 = por %p160, %p161
    %s164 = sadd.s32 %s163, 1
    %p167 = scmp.eq.s32.totalorder %s14, 2
    %p168 = scmp.ne.s32.totalorder %s163, %s165
    %p169 = scmp.eq.s32.totalorder %s14, 0
    %p170 = por %p168, %p169
    %p171 = scmp.ne.s32.totalorder %s163, %s165
    %p172 = scmp.eq.s32.totalorder %s19, 2
    %p173 = por %p171, %p172
    %p174 = scmp.ne.s32.totalorder %s165, %s166
    %p175 = scmp.eq.s32.totalorder %s19, 0
    %p176 = por %p174, %p175
    %p177 = scmp.ne.s32.totalorder %s165, %s166
    %p178 = scmp.eq.s32.totalorder %s20, 2
    %p179 = por %p177, %p178
    %p181 = scmp.ne.s32.totalorder %s166, %s180
    %p182 = scmp.eq.s32.totalorder %s20, 0
    %p183 = por %p181, %p182
    %s185 = sadd.s32 %s184, 1
    %p188 = scmp.eq.s32.totalorder %s14, 2
    %p189 = scmp.ne.s32.totalorder %s184, %s186
    %p190 = scmp.eq.s32.totalorder %s14, 0
    %p191 = por %p189, %p190
    %p192 = scmp.ne.s32.totalorder %s184, %s186
    %p193 = scmp.eq.s32.totalorder %s19, 2
    %p194 = por %p192, %p193
    %p195 = scmp.ne.s32.totalorder %s186, %s187
    %p196 = scmp.eq.s32.totalorder %s19, 0
    %p197 = por %p195, %p196
    %p198 = scmp.ne.s32.totalorder %s186, %s187
    %p199 = scmp.eq.s32.totalorder %s20, 2
    %p200 = por %p198, %p199
    %p202 = scmp.ne.s32.totalorder %s187, %s201
    %p203 = scmp.eq.s32.totalorder %s20, 0
    %p204 = por %p202, %p203
    %s205 = ssub.s32 %s14, %s21
    %p206 = scmp.eq.s32.totalorder %s205, 0
    %s208 = sadd.s32 %s207, 1
    %s209 = scalar_select %p206, %s207, %s208
    %p212 = pneg %p206
    %p213 = scmp.eq.s32.totalorder %s14, 2
    %p214 = por %p212, %p213
    %p215 = scmp.ne.s32.totalorder %s207, %s210
    %p216 = scmp.eq.s32.totalorder %s14, 0
    %p217 = por %p215, %p216
    %p218 = scmp.ne.s32.totalorder %s207, %s210
    %p219 = scmp.eq.s32.totalorder %s19, 2
    %p220 = por %p218, %p219
    %p221 = scmp.ne.s32.totalorder %s210, %s211
    %p222 = scmp.eq.s32.totalorder %s19, 0
    %p223 = por %p221, %p222
    %p224 = scmp.ne.s32.totalorder %s210, %s211
    %p225 = scmp.eq.s32.totalorder %s20, 2
    %p226 = por %p224, %p225
    %p228 = scmp.ne.s32.totalorder %s211, %s227
    %p229 = scmp.eq.s32.totalorder %s20, 0
    %p230 = por %p228, %p229
    %p231 = scmp.le.s32.totalorder 1, %s14
    %p232 = scmp.lt.s32.totalorder %s14, 4
    %p233 = pnand %p231, %p232
    %p234 = pneg %p233
    // Predicated region
    $region9: #{_forward.2} parent=5 // pred_check
      _
    $region10: #{_forward.2} parent=5 // pred_check_branch
      %236 = sbr.rel (%p233) target = $region12
    $region11: #{_forward.2} parent=5 // pred_region
      %s237 = ssub.s32 %s14, 1
      // Predicated region
      $region13: #{_forward.2} parent=11 // pred_check
        %p238 = pneg %p113
      $region14: #{_forward.2} parent=11 // pred_check_branch
        %240 = sbr.rel (%p238) target = $region16
      $region15: #{_forward.2} parent=11 // pred_region
        _
      $region16: #{_forward.2} parent=11 // pred_fallthru
        _
      // Predicated region
      $region17: #{_forward.2} parent=11 // pred_check
        %p241 = pneg %p134
      $region18: #{_forward.2} parent=11 // pred_check_branch
        %243 = sbr.rel (%p241) target = $region20
      $region19: #{_forward.2} parent=11 // pred_region
        _
      $region20: #{_forward.2} parent=11 // pred_fallthru
        _
      // Predicated region
      $region21: #{_forward.2} parent=11 // pred_check
        %p244 = pneg %p155
      $region22: #{_forward.2} parent=11 // pred_check_branch
        %246 = sbr.rel (%p244) target = $region24
      $region23: #{_forward.2} parent=11 // pred_region
        _
      $region24: #{_forward.2} parent=11 // pred_fallthru
        _
      // Predicated region
      $region25: #{_forward.2} parent=11 // pred_check
        %p247 = pneg %p176
      $region26: #{_forward.2} parent=11 // pred_check_branch
        %249 = sbr.rel (%p247) target = $region28
      $region27: #{_forward.2} parent=11 // pred_region
        _
      $region28: #{_forward.2} parent=11 // pred_fallthru
        _
      // Predicated region
      $region29: #{_forward.2} parent=11 // pred_check
        %p250 = pneg %p197
      $region30: #{_forward.2} parent=11 // pred_check_branch
        %252 = sbr.rel (%p250) target = $region32
      $region31: #{_forward.2} parent=11 // pred_region
        _
      $region32: #{_forward.2} parent=11 // pred_fallthru
        _
    $region12: #{_forward.2} parent=5 // pred_fallthru
      _
    %p253 = scmp.lt.s32.totalorder %s14, 3
    // Predicated region
    $region33: #{_forward.2} parent=5 // pred_check
      %p254 = pneg %p253
    $region34: #{_forward.2} parent=5 // pred_check_branch
      %256 = sbr.rel (%p254) target = $region36
    $region35: #{_forward.2} parent=5 // pred_region
      // Predicated region
      $region37: #{_forward.2} parent=35 // pred_check
        %p257 = pneg %p34
      $region38: #{_forward.2} parent=35 // pred_check_branch
        %259 = sbr.rel (%p257) target = $region40
      $region39: #{_forward.2} parent=35 // pred_region
        %s260 = smul.u32 2, %s14
        %p261 = scmp.lt.s32.totalorder %s260, 5
        %s262 = scalar_select %p261, %s260, 5
        %s263 = smul.addr %s262, 8
        %s264 = scalar_lea.vmem %s0, %s263
        %s265 = smul.u32 2, %s14
      $region40: #{_forward.2} parent=35 // pred_fallthru
        _
      // Predicated region
      $region41: #{_forward.2} parent=35 // pred_check
        %p266 = pneg %p60
      $region42: #{_forward.2} parent=35 // pred_check_branch
        %268 = sbr.rel (%p266) target = $region44
      $region43: #{_forward.2} parent=35 // pred_region
        %s269 = smul.u32 2, %s14
        %p270 = scmp.lt.s32.totalorder %s269, 5
        %s271 = scalar_select %p270, %s269, 5
        %s272 = smul.addr %s271, 8
        %s273 = scalar_lea.vmem %s1, %s272
        %s274 = smul.u32 2, %s14
      $region44: #{_forward.2} parent=35 // pred_fallthru
        _
      // Predicated region
      $region45: #{_forward.2} parent=35 // pred_check
        %p275 = pneg %p86
      $region46: #{_forward.2} parent=35 // pred_check_branch
        %277 = sbr.rel (%p275) target = $region48
      $region47: #{_forward.2} parent=35 // pred_region
        %s278 = smul.u32 2, %s14
        %p279 = scmp.lt.s32.totalorder %s278, 5
        %s280 = scalar_select %p279, %s278, 5
        %s281 = smul.addr %s280, 8
        %s282 = scalar_lea.vmem %s2, %s281
        %s283 = smul.u32 2, %s14
      $region48: #{_forward.2} parent=35 // pred_fallthru
        _
    $region36: #{_forward.2} parent=5 // pred_fallthru
      _
    %p284 = scmp.le.s32.totalorder 1, %s14
    %p285 = scmp.lt.s32.totalorder %s14, 4
    %p286 = pnand %p284, %p285
    %p287 = pneg %p286
    // Predicated region
    $region49: #{_forward.2} parent=5 // pred_check
      _
    $region50: #{_forward.2} parent=5 // pred_check_branch
      %289 = sbr.rel (%p286) target = $region52
    $region51: #{_forward.2} parent=5 // pred_region
      %s290 = ssub.s32 %s14, 1
      %s291 = smul.u32 2, %s19
      %p292 = scmp.lt.s32.totalorder %s291, 5
      %s293 = scalar_select %p292, %s291, 5
      %s294 = smul.addr %s293, 8
      %s295 = scalar_lea.vmem %s0, %s294
      %p296 = pneg %p40
      %p297 = pneg %p37
      %s298 = smul.u32 2, %s19
      %p299 = scmp.lt.s32.totalorder %s298, 5
      %s300 = scalar_select %p299, %s298, 5
      %s301 = smul.addr %s300, 8
      %s302 = scalar_lea.vmem %s1, %s301
      %p303 = pneg %p66
      %p304 = pneg %p63
      %s305 = smul.u32 2, %s19
      %p306 = scmp.lt.s32.totalorder %s305, 5
      %s307 = scalar_select %p306, %s305, 5
      %s308 = smul.addr %s307, 8
      %s309 = scalar_lea.vmem %s2, %s308
      %p310 = pneg %p92
      %p311 = pneg %p89
      %p312 = pneg %p113
      %p313 = pneg %p110
      %p314 = pneg %p134
      %p315 = pneg %p131
      %p316 = pneg %p155
      %p317 = pneg %p152
      %p318 = pneg %p176
      %p319 = pneg %p173
      %p320 = pneg %p197
      %p321 = pneg %p194
      %p322 = pneg %p223
      %p323 = pneg %p220
      %s324 = smul.u32 2, %s19
      %p325 = scmp.lt.s32.totalorder %s324, 5
      %s326 = scalar_select %p325, %s324, 5
      %s327 = smul.addr %s326, 8
      %s328 = scalar_lea.vmem %s8, %s327
      %s329 = smul.u32 2, %s19
      %p330 = scmp.lt.s32.totalorder %s329, 5
      %s331 = scalar_select %p330, %s329, 5
      %s332 = smul.addr %s331, 8
      %s333 = scalar_lea.vmem %s0, %s332
      %s334 = smul.u32 2, %s19
      %s335 = smul.u32 2, %s19
      %p336 = scmp.lt.s32.totalorder %s335, 5
      %s337 = scalar_select %p336, %s335, 5
      %s338 = smul.addr %s337, 8
      %s339 = scalar_lea.vmem %s1, %s338
      %s340 = smul.u32 2, %s19
      %s341 = smul.u32 2, %s19
      %p342 = scmp.lt.s32.totalorder %s341, 5
      %s343 = scalar_select %p342, %s341, 5
      %s344 = smul.addr %s343, 8
      %s345 = scalar_lea.vmem %s2, %s344
      %s346 = smul.u32 2, %s19
      %s347 = smul.u32 2, %s19
      %p348 = scmp.lt.s32.totalorder %s347, 5
      %s349 = scalar_select %p348, %s347, 5
      %s350 = smul.addr %s349, 8
      %s351 = scalar_lea.vmem %s8, %s350
      %s352 = smul.u32 2, %s19
      %v353 = vld [vmem:[%s333] sm:$0xff]
      %v354 = vld [vmem:[%s333 + $0x8] sm:$0xff]
      %v355 = vld [vmem:[%s339] sm:$0xff]
      %v356 = vld [vmem:[%s339 + $0x8] sm:$0xff]
      %v357 = vld [vmem:[%s345] sm:$0xff]
      %v358 = vld [vmem:[%s345 + $0x8] sm:$0xff]
      %v359 = vld [vmem:[%s5] sm:$0x1]
      %360 = vset.pattern.permute.xlu0 0
      %361 = vperm.xlu0 %360, %v357
      %v362 = vpop.permute.xlu0 %361
      %363 = vset.pattern.permute.xlu0 0
      %364 = vperm.xlu0 %363, %v358
      %v365 = vpop.permute.xlu0 %364
      %v366 = vlaneseq
      %v367 = vshrl.u32 %v366, 7
      %v368 = vsub.s32 0, %v367
      %v369 = vrot.slane %v359, %v368
      %vm370 = vcmp.eq.s32.totalorder %v362, %v369
      %vm371 = vcmp.eq.s32.totalorder %v365, %v369
      %v372 = vld [vmem:[%s4] sm:$0x1]
      %v373 = vld [vmem:[%s6] sm:$0xff]
      %v374 = vld [vmem:[%s6 + $0x8] sm:$0xff]
      %v375 = vld [vmem:[%s6 + $0x10] sm:$0xff]
      %v376 = vld [vmem:[%s6 + $0x18] sm:$0xff]
      %v377 = vld [vmem:[%s6 + $0x20] sm:$0xff]
      %v378 = vld [vmem:[%s6 + $0x28] sm:$0xff]
      %v379 = vld [vmem:[%s7 + $0x8] sm:$0xff]
      %v380 = vld [vmem:[%s7 + $0x10] sm:$0xff]
      %v381 = vld [vmem:[%s7 + $0x18] sm:$0xff]
      %v382 = vld [vmem:[%s7 + $0x20] sm:$0xff]
      %v383 = vld [vmem:[%s7] sm:$0x1]
      %v384 = vld [vmem:[%s7 + $0x28] sm:$0xff]
      %v385 = vld [vmem:[%s7 + $0x30] sm:$0xff]
      %v386 = vld [vmem:[%s7 + $0x38] sm:$0xff]
      %v387 = vld [vmem:[%s7 + $0x40] sm:$0xff]
      %v388 = vld [vmem:[%s7 + $0x1] sm:$0x1]
      %v389 = vld [vmem:[%s3] sm:$0xff]
      %vm390 = vcmask 64512
      %v392 = vsel %vm390, %v353, 0
      %v395 = vsel %vm390, %v354, 0
      %397 = vmatprep.subr.mxu0 0.0
      %398 = vmatpush1.msra.mxu0 0.0
      %399 = vmatprep.subr.mxu0 0.0
      %400 = vmatpush1.msra.mxu0 0.0
      %401 = vmatprep.subr.mxu0 0.0
      %402 = vmatpush1.msra.mxu0 0.0
      %403 = vmatprep.subr.mxu0 0.0
      %404 = vmatpush1.msra.mxu0 0.0
      %405 = vmatprep.subr.mxu0 0.0
      %406 = vmatpush1.msra.mxu0 0.0
      %407 = vmatprep.subr.mxu0 0.0
      %408 = vmatpush1.msra.mxu0 0.0
      %409 = vmatprep.subr.mxu0 0.0
      %410 = vmatpush1.msra.mxu0 0.0
      %411 = vmatprep.subr.mxu0 0.0
      %412 = vmatpush1.msra.mxu0 0.0
      %413 = vmatprep.subr.mxu0 0.0
      %414 = vmatpush1.msra.mxu0 0.0
      %415 = vmatprep.subr.mxu0 0.0
      %416 = vmatpush1.msra.mxu0 0.0
      %417 = vmatprep.subr.mxu0 0.0
      %418 = vmatpush1.msra.mxu0 0.0
      %419 = vmatprep.subr.mxu0 0.0
      %420 = vmatpush1.msra.mxu0 0.0
      %421 = vmatprep.subr.mxu0 0.0
      %422 = vmatpush1.msra.mxu0 0.0
      %423 = vmatprep.subr.mxu0 0.0
      %424 = vmatpush1.msra.mxu0 0.0
      %425 = vmatprep.subr.mxu0 0.0
      %426 = vmatpush1.msra.mxu0 0.0
      %427 = vmatprep.subr.mxu0 0.0
      %428 = vmatpush1.msra.mxu0 %v389
      %429 = vmatprep.subr.mxu0 0.0
      %430 = vmatpush2.msra.mxu0 0.0
      %431 = vmatprep.subr.mxu0 0.0
      %432 = vmatpush2.msra.mxu0 0.0
      %433 = vmatprep.subr.mxu0 0.0
      %434 = vmatpush2.msra.mxu0 0.0
      %435 = vmatprep.subr.mxu0 0.0
      %436 = vmatpush2.msra.mxu0 0.0
      %437 = vmatprep.subr.mxu0 0.0
      %438 = vmatpush2.msra.mxu0 0.0
      %439 = vmatprep.subr.mxu0 0.0
      %440 = vmatpush2.msra.mxu0 0.0
      %441 = vmatprep.subr.mxu0 0.0
      %442 = vmatpush2.msra.mxu0 0.0
      %443 = vmatprep.subr.mxu0 0.0
      %444 = vmatpush2.msra.mxu0 0.0
      %445 = vmatprep.subr.mxu0 0.0
      %446 = vmatpush2.msra.mxu0 0.0
      %447 = vmatprep.subr.mxu0 0.0
      %448 = vmatpush2.msra.mxu0 0.0
      %449 = vmatprep.subr.mxu0 0.0
      %450 = vmatpush2.msra.mxu0 0.0
      %451 = vmatprep.subr.mxu0 0.0
      %452 = vmatpush2.msra.mxu0 0.0
      %453 = vmatprep.subr.mxu0 0.0
      %454 = vmatpush2.msra.mxu0 0.0
      %455 = vmatprep.subr.mxu0 0.0
      %456 = vmatpush2.msra.mxu0 0.0
      %457 = vmatprep.subr.mxu0 0.0
      %458 = vmatpush2.msra.mxu0 0.0
      %459 = vmatprep.subr.mxu0 0.0
      %460 = vmatpush2.msra.mxu0 0.0
      %461 = vmatprep.mubr.f32.mxu0 0.0
      %462 = vmatmul.mubr.f32.gmra.mxu0 %v392
      %v463 = vpop.f32.mrf.mxu0
      %v464 = vadd.f32 0.0, %v463
      %v465 = vpop.f32.mrf.mxu0
      %466 = vmatprep.mubr.f32.mxu0 0.0
      %467 = vmatmul.mubr.f32.gmra.mxu0 %v395
      %v468 = vpop.f32.mrf.mxu0
      %v469 = vadd.f32 0.0, %v468
      %v470 = vpop.f32.mrf.mxu0
      %471 = vdwg.mxu0
      %v472 = vmul.f32 %v464, 2.0
      %v473 = vmul.f32 %v469, 2.0
      %v475 = vlaneseq
      %v476 = vshrl.u32 %v475, 7
      %v477 = vsub.s32 0, %v476
      %v478 = vrot.slane %v372, %v477
      %v480 = vsub.f32 %v478, %v472
      %v481 = vsub.f32 %v478, %v473
      %v482 = vsel %vm370, %v480, 1e+30
      %v483 = vsel %vm371, %v481, 1e+30
      %v484 = vlaneseq
      %v485 = vand.u32 %v484, 127
      %vm486 = vcmask 392192
      %v487 = vsel %vm486, %v482, inf
      %488 = vmin.xlane.f32.xlu0 %v487
      %v489 = vpop.xlane.xlu0 %488
      %v490 = vsel %vm486, %v483, inf
      %491 = vmin.xlane.f32.xlu0 %v490
      %v492 = vpop.xlane.xlu0 %491
      %vm493 = vcmp.le.f32.partialorder %v482, %v489
      %vm494 = vcmp.le.f32.partialorder %v483, %v492
      %v495 = vsel %vm493, %v485, 48
      %v496 = vsel %vm494, %v485, 48
      %v497 = vsel %vm486, %v495, 2147483647
      %v498 = vand.u32 %v497, 65535
      %v499 = vshra.s32 %v497, 16
      %v500 = vcvt.s32.f32 %v498
      %v501 = vcvt.s32.f32 %v499
      %502 = vmin.xlane.f32.xlu0 %v501
      %v503 = vpop.xlane.xlu0 %502
      %vm504 = vcmp.eq.f32.partialorder %v501, %v503
      %v505 = vsel %vm504, %v500, inf
      %506 = vmin.xlane.f32.xlu0 %v505
      %v507 = vpop.xlane.xlu0 %506
      %v508 = vcvt.f32.s32 %v507
      %v509 = vcvt.f32.s32 %v503
      %v510 = vshll.u32 %v509, 16
      %v511 = vadd.s32 %v510, %v508
      %v512 = vsel %vm486, %v496, 2147483647
      %v513 = vand.u32 %v512, 65535
      %v514 = vshra.s32 %v512, 16
      %v515 = vcvt.s32.f32 %v513
      %v516 = vcvt.s32.f32 %v514
      %517 = vmin.xlane.f32.xlu0 %v516
      %v518 = vpop.xlane.xlu0 %517
      %vm519 = vcmp.eq.f32.partialorder %v516, %v518
      %v520 = vsel %vm519, %v515, inf
      %521 = vmin.xlane.f32.xlu0 %v520
      %v522 = vpop.xlane.xlu0 %521
      %v523 = vcvt.f32.s32 %v522
      %v524 = vcvt.f32.s32 %v518
      %v525 = vshll.u32 %v524, 16
      %v526 = vadd.s32 %v525, %v523
      %vm527 = vcmp.eq.s32.totalorder %v485, %v511
      %vm528 = vcmp.eq.s32.totalorder %v485, %v526
      %v529 = vsel %vm527, 1e+30, %v482
      %v530 = vsel %vm528, 1e+30, %v483
      %v531 = vsel %vm527, 1, 0
      %v532 = vsel %vm528, 1, 0
      %v533 = vcvt.s32.f32 %v531
      %v534 = vcvt.s32.f32 %v532
      %v536 = vsel %vm486, %v533, 0
      %v539 = vsel %vm486, %v534, 0
      %541 = vmatprep.subr.mxu0 0.0
      %542 = vmatpush1.msra.mxu0 0.0
      %543 = vmatprep.subr.mxu0 0.0
      %544 = vmatpush1.msra.mxu0 0.0
      %545 = vmatprep.subr.mxu0 0.0
      %546 = vmatpush1.msra.mxu0 0.0
      %547 = vmatprep.subr.mxu0 0.0
      %548 = vmatpush1.msra.mxu0 0.0
      %549 = vmatprep.subr.mxu0 0.0
      %550 = vmatpush1.msra.mxu0 0.0
      %551 = vmatprep.subr.mxu0 0.0
      %552 = vmatpush1.msra.mxu0 0.0
      %553 = vmatprep.subr.mxu0 0.0
      %554 = vmatpush1.msra.mxu0 0.0
      %555 = vmatprep.subr.mxu0 0.0
      %556 = vmatpush1.msra.mxu0 0.0
      %557 = vmatprep.subr.mxu0 0.0
      %558 = vmatpush1.msra.mxu0 0.0
      %559 = vmatprep.subr.mxu0 0.0
      %560 = vmatpush1.msra.mxu0 0.0
      %561 = vmatprep.subr.mxu0 0.0
      %562 = vmatpush1.msra.mxu0 %v378
      %563 = vmatprep.subr.mxu0 0.0
      %564 = vmatpush1.msra.mxu0 %v377
      %565 = vmatprep.subr.mxu0 0.0
      %566 = vmatpush1.msra.mxu0 %v376
      %567 = vmatprep.subr.mxu0 0.0
      %568 = vmatpush1.msra.mxu0 %v375
      %569 = vmatprep.subr.mxu0 0.0
      %570 = vmatpush1.msra.mxu0 %v374
      %571 = vmatprep.subr.mxu0 0.0
      %572 = vmatpush1.msra.mxu0 %v373
      %573 = vmatprep.subr.mxu0 0.0
      %574 = vmatpush2.msra.mxu0 0.0
      %575 = vmatprep.subr.mxu0 0.0
      %576 = vmatpush2.msra.mxu0 0.0
      %577 = vmatprep.subr.mxu0 0.0
      %578 = vmatpush2.msra.mxu0 0.0
      %579 = vmatprep.subr.mxu0 0.0
      %580 = vmatpush2.msra.mxu0 0.0
      %581 = vmatprep.subr.mxu0 0.0
      %582 = vmatpush2.msra.mxu0 0.0
      %583 = vmatprep.subr.mxu0 0.0
      %584 = vmatpush2.msra.mxu0 0.0
      %585 = vmatprep.subr.mxu0 0.0
      %586 = vmatpush2.msra.mxu0 0.0
      %587 = vmatprep.subr.mxu0 0.0
      %588 = vmatpush2.msra.mxu0 0.0
      %589 = vmatprep.subr.mxu0 0.0
      %590 = vmatpush2.msra.mxu0 0.0
      %591 = vmatprep.subr.mxu0 0.0
      %592 = vmatpush2.msra.mxu0 0.0
      %593 = vmatprep.subr.mxu0 0.0
      %594 = vmatpush2.msra.mxu0 0.0
      %595 = vmatprep.subr.mxu0 0.0
      %596 = vmatpush2.msra.mxu0 0.0
      %597 = vmatprep.subr.mxu0 0.0
      %598 = vmatpush2.msra.mxu0 0.0
      %599 = vmatprep.subr.mxu0 0.0
      %600 = vmatpush2.msra.mxu0 0.0
      %601 = vmatprep.subr.mxu0 0.0
      %602 = vmatpush2.msra.mxu0 0.0
      %603 = vmatprep.subr.mxu0 0.0
      %604 = vmatpush2.msra.mxu0 0.0
      %605 = vmatprep.mubr.f32.mxu0 0.0
      %606 = vmatmul.mubr.f32.gmra.mxu0 %v536
      %v607 = vpop.f32.mrf.mxu0
      %v608 = vadd.f32 0.0, %v607
      %v609 = vpop.f32.mrf.mxu0
      %610 = vmatprep.mubr.f32.mxu0 0.0
      %611 = vmatmul.mubr.f32.gmra.mxu0 %v539
      %v612 = vpop.f32.mrf.mxu0
      %v613 = vadd.f32 0.0, %v612
      %v614 = vpop.f32.mrf.mxu0
      %615 = vdwg.mxu0
      %v616 = vadd.f32 %v355, %v608
      %v617 = vadd.f32 %v356, %v613
      %v618 = vmax.f32 %v616, 0.0
      %v619 = vmax.f32 %v617, 0.0
      %v620 = vlaneseq
      %v621 = vshrl.u32 %v620, 7
      %v622 = vsub.s32 0, %v621
      %v623 = vrot.slane %v383, %v622
      %vm624 = vcmask 261120
      %v626 = vsel %vm624, %v618, 0
      %v629 = vsel %vm624, %v619, 0
      %631 = vmatprep.subr.mxu0 0.0
      %632 = vmatpush1.msra.mxu0 0.0
      %633 = vmatprep.subr.mxu0 0.0
      %634 = vmatpush1.msra.mxu0 0.0
      %635 = vmatprep.subr.mxu0 0.0
      %636 = vmatpush1.msra.mxu0 0.0
      %637 = vmatprep.subr.mxu0 0.0
      %638 = vmatpush1.msra.mxu0 0.0
      %639 = vmatprep.subr.mxu0 0.0
      %640 = vmatpush1.msra.mxu0 0.0
      %641 = vmatprep.subr.mxu0 0.0
      %642 = vmatpush1.msra.mxu0 0.0
      %643 = vmatprep.subr.mxu0 0.0
      %644 = vmatpush1.msra.mxu0 0.0
      %645 = vmatprep.subr.mxu0 0.0
      %646 = vmatpush1.msra.mxu0 0.0
      %647 = vmatprep.subr.mxu0 0.0
      %648 = vmatpush1.msra.mxu0 0.0
      %649 = vmatprep.subr.mxu0 0.0
      %650 = vmatpush1.msra.mxu0 0.0
      %651 = vmatprep.subr.mxu0 0.0
      %652 = vmatpush1.msra.mxu0 0.0
      %653 = vmatprep.subr.mxu0 0.0
      %654 = vmatpush1.msra.mxu0 0.0
      %655 = vmatprep.subr.mxu0 0.0
      %656 = vmatpush1.msra.mxu0 %v382
      %657 = vmatprep.subr.mxu0 0.0
      %658 = vmatpush1.msra.mxu0 %v381
      %659 = vmatprep.subr.mxu0 0.0
      %660 = vmatpush1.msra.mxu0 %v380
      %661 = vmatprep.subr.mxu0 0.0
      %662 = vmatpush1.msra.mxu0 %v379
      %663 = vmatprep.subr.mxu0 0.0
      %664 = vmatpush2.msra.mxu0 0.0
      %665 = vmatprep.subr.mxu0 0.0
      %666 = vmatpush2.msra.mxu0 0.0
      %667 = vmatprep.subr.mxu0 0.0
      %668 = vmatpush2.msra.mxu0 0.0
      %669 = vmatprep.subr.mxu0 0.0
      %670 = vmatpush2.msra.mxu0 0.0
      %671 = vmatprep.subr.mxu0 0.0
      %672 = vmatpush2.msra.mxu0 0.0
      %673 = vmatprep.subr.mxu0 0.0
      %674 = vmatpush2.msra.mxu0 0.0
      %675 = vmatprep.subr.mxu0 0.0
      %676 = vmatpush2.msra.mxu0 0.0
      %677 = vmatprep.subr.mxu0 0.0
      %678 = vmatpush2.msra.mxu0 0.0
      %679 = vmatprep.subr.mxu0 0.0
      %680 = vmatpush2.msra.mxu0 0.0
      %681 = vmatprep.subr.mxu0 0.0
      %682 = vmatpush2.msra.mxu0 0.0
      %683 = vmatprep.subr.mxu0 0.0
      %684 = vmatpush2.msra.mxu0 0.0
      %685 = vmatprep.subr.mxu0 0.0
      %686 = vmatpush2.msra.mxu0 0.0
      %687 = vmatprep.subr.mxu0 0.0
      %688 = vmatpush2.msra.mxu0 0.0
      %689 = vmatprep.subr.mxu0 0.0
      %690 = vmatpush2.msra.mxu0 0.0
      %691 = vmatprep.subr.mxu0 0.0
      %692 = vmatpush2.msra.mxu0 0.0
      %693 = vmatprep.subr.mxu0 0.0
      %694 = vmatpush2.msra.mxu0 0.0
      %695 = vmatprep.mubr.f32.mxu0 0.0
      %696 = vmatmul.mubr.f32.gmra.mxu0 %v626
      %v697 = vpop.f32.mrf.mxu0
      %v698 = vadd.f32 %v623, %v697
      %v699 = vpop.f32.mrf.mxu0
      %700 = vmatprep.mubr.f32.mxu0 0.0
      %701 = vmatmul.mubr.f32.gmra.mxu0 %v629
      %v702 = vpop.f32.mrf.mxu0
      %v703 = vadd.f32 %v623, %v702
      %v704 = vpop.f32.mrf.mxu0
      %705 = vdwg.mxu0
      %v706 = vmax.f32 %v698, 0.0
      %v707 = vmax.f32 %v703, 0.0
      %v708 = vlaneseq
      %v709 = vshrl.u32 %v708, 7
      %v710 = vsub.s32 0, %v709
      %v711 = vrot.slane %v388, %v710
      %v713 = vsel %vm624, %v706, 0
      %v716 = vsel %vm624, %v707, 0
      %718 = vmatprep.subr.mxu0 0.0
      %719 = vmatpush1.msra.mxu0 0.0
      %720 = vmatprep.subr.mxu0 0.0
      %721 = vmatpush1.msra.mxu0 0.0
      %722 = vmatprep.subr.mxu0 0.0
      %723 = vmatpush1.msra.mxu0 0.0
      %724 = vmatprep.subr.mxu0 0.0
      %725 = vmatpush1.msra.mxu0 0.0
      %726 = vmatprep.subr.mxu0 0.0
      %727 = vmatpush1.msra.mxu0 0.0
      %728 = vmatprep.subr.mxu0 0.0
      %729 = vmatpush1.msra.mxu0 0.0
      %730 = vmatprep.subr.mxu0 0.0
      %731 = vmatpush1.msra.mxu0 0.0
      %732 = vmatprep.subr.mxu0 0.0
      %733 = vmatpush1.msra.mxu0 0.0
      %734 = vmatprep.subr.mxu0 0.0
      %735 = vmatpush1.msra.mxu0 0.0
      %736 = vmatprep.subr.mxu0 0.0
      %737 = vmatpush1.msra.mxu0 0.0
      %738 = vmatprep.subr.mxu0 0.0
      %739 = vmatpush1.msra.mxu0 0.0
      %740 = vmatprep.subr.mxu0 0.0
      %741 = vmatpush1.msra.mxu0 0.0
      %742 = vmatprep.subr.mxu0 0.0
      %743 = vmatpush1.msra.mxu0 %v387
      %744 = vmatprep.subr.mxu0 0.0
      %745 = vmatpush1.msra.mxu0 %v386
      %746 = vmatprep.subr.mxu0 0.0
      %747 = vmatpush1.msra.mxu0 %v385
      %748 = vmatprep.subr.mxu0 0.0
      %749 = vmatpush1.msra.mxu0 %v384
      %750 = vmatprep.subr.mxu0 0.0
      %751 = vmatpush2.msra.mxu0 0.0
      %752 = vmatprep.subr.mxu0 0.0
      %753 = vmatpush2.msra.mxu0 0.0
      %754 = vmatprep.subr.mxu0 0.0
      %755 = vmatpush2.msra.mxu0 0.0
      %756 = vmatprep.subr.mxu0 0.0
      %757 = vmatpush2.msra.mxu0 0.0
      %758 = vmatprep.subr.mxu0 0.0
      %759 = vmatpush2.msra.mxu0 0.0
      %760 = vmatprep.subr.mxu0 0.0
      %761 = vmatpush2.msra.mxu0 0.0
      %762 = vmatprep.subr.mxu0 0.0
      %763 = vmatpush2.msra.mxu0 0.0
      %764 = vmatprep.subr.mxu0 0.0
      %765 = vmatpush2.msra.mxu0 0.0
      %766 = vmatprep.subr.mxu0 0.0
      %767 = vmatpush2.msra.mxu0 0.0
      %768 = vmatprep.subr.mxu0 0.0
      %769 = vmatpush2.msra.mxu0 0.0
      %770 = vmatprep.subr.mxu0 0.0
      %771 = vmatpush2.msra.mxu0 0.0
      %772 = vmatprep.subr.mxu0 0.0
      %773 = vmatpush2.msra.mxu0 0.0
      %774 = vmatprep.subr.mxu0 0.0
      %775 = vmatpush2.msra.mxu0 0.0
      %776 = vmatprep.subr.mxu0 0.0
      %777 = vmatpush2.msra.mxu0 0.0
      %778 = vmatprep.subr.mxu0 0.0
      %779 = vmatpush2.msra.mxu0 0.0
      %780 = vmatprep.subr.mxu0 0.0
      %781 = vmatpush2.msra.mxu0 0.0
      %782 = vmatprep.mubr.f32.mxu0 0.0
      %783 = vmatmul.mubr.f32.gmra.mxu0 %v713
      %v784 = vpop.f32.mrf.mxu0
      %v785 = vadd.f32 %v711, %v784
      %v786 = vpop.f32.mrf.mxu0
      %787 = vmatprep.mubr.f32.mxu0 0.0
      %788 = vmatmul.mubr.f32.gmra.mxu0 %v716
      %v789 = vpop.f32.mrf.mxu0
      %v790 = vadd.f32 %v711, %v789
      %v791 = vpop.f32.mrf.mxu0
      %792 = vdwg.mxu0
      %v793 = vmax.f32 %v785, 0.0
      %v794 = vmax.f32 %v790, 0.0
      %v795 = vadd.f32 %v793, 0.0
      %v796 = vadd.f32 %v794, 0.0
      %v797 = vsel %vm486, %v529, inf
      %798 = vmin.xlane.f32.xlu0 %v797
      %v799 = vpop.xlane.xlu0 %798
      %v800 = vsel %vm486, %v530, inf
      %801 = vmin.xlane.f32.xlu0 %v800
      %v802 = vpop.xlane.xlu0 %801
      %vm803 = vcmp.le.f32.partialorder %v529, %v799
      %vm804 = vcmp.le.f32.partialorder %v530, %v802
      %v805 = vsel %vm803, %v485, 48
      %v806 = vsel %vm804, %v485, 48
      %v807 = vsel %vm486, %v805, 2147483647
      %v808 = vand.u32 %v807, 65535
      %v809 = vshra.s32 %v807, 16
      %v810 = vcvt.s32.f32 %v808
      %v811 = vcvt.s32.f32 %v809
      %812 = vmin.xlane.f32.xlu0 %v811
      %v813 = vpop.xlane.xlu0 %812
      %vm814 = vcmp.eq.f32.partialorder %v811, %v813
      %v815 = vsel %vm814, %v810, inf
      %816 = vmin.xlane.f32.xlu0 %v815
      %v817 = vpop.xlane.xlu0 %816
      %v818 = vcvt.f32.s32 %v817
      %v819 = vcvt.f32.s32 %v813
      %v820 = vshll.u32 %v819, 16
      %v821 = vadd.s32 %v820, %v818
      %v822 = vsel %vm486, %v806, 2147483647
      %v823 = vand.u32 %v822, 65535
      %v824 = vshra.s32 %v822, 16
      %v825 = vcvt.s32.f32 %v823
      %v826 = vcvt.s32.f32 %v824
      %827 = vmin.xlane.f32.xlu0 %v826
      %v828 = vpop.xlane.xlu0 %827
      %vm829 = vcmp.eq.f32.partialorder %v826, %v828
      %v830 = vsel %vm829, %v825, inf
      %831 = vmin.xlane.f32.xlu0 %v830
      %v832 = vpop.xlane.xlu0 %831
      %v833 = vcvt.f32.s32 %v832
      %v834 = vcvt.f32.s32 %v828
      %v835 = vshll.u32 %v834, 16
      %v836 = vadd.s32 %v835, %v833
      %vm837 = vcmp.eq.s32.totalorder %v485, %v821
      %vm838 = vcmp.eq.s32.totalorder %v485, %v836
      %v839 = vsel %vm837, 1e+30, %v529
      %v840 = vsel %vm838, 1e+30, %v530
      %v841 = vsel %vm837, 1, 0
      %v842 = vsel %vm838, 1, 0
      %v843 = vcvt.s32.f32 %v841
      %v844 = vcvt.s32.f32 %v842
      %v846 = vsel %vm486, %v843, 0
      %v849 = vsel %vm486, %v844, 0
      %851 = vmatprep.subr.mxu0 0.0
      %852 = vmatpush1.msra.mxu0 0.0
      %853 = vmatprep.subr.mxu0 0.0
      %854 = vmatpush1.msra.mxu0 0.0
      %855 = vmatprep.subr.mxu0 0.0
      %856 = vmatpush1.msra.mxu0 0.0
      %857 = vmatprep.subr.mxu0 0.0
      %858 = vmatpush1.msra.mxu0 0.0
      %859 = vmatprep.subr.mxu0 0.0
      %860 = vmatpush1.msra.mxu0 0.0
      %861 = vmatprep.subr.mxu0 0.0
      %862 = vmatpush1.msra.mxu0 0.0
      %863 = vmatprep.subr.mxu0 0.0
      %864 = vmatpush1.msra.mxu0 0.0
      %865 = vmatprep.subr.mxu0 0.0
      %866 = vmatpush1.msra.mxu0 0.0
      %867 = vmatprep.subr.mxu0 0.0
      %868 = vmatpush1.msra.mxu0 0.0
      %869 = vmatprep.subr.mxu0 0.0
      %870 = vmatpush1.msra.mxu0 0.0
      %871 = vmatprep.subr.mxu0 0.0
      %872 = vmatpush1.msra.mxu0 %v378
      %873 = vmatprep.subr.mxu0 0.0
      %874 = vmatpush1.msra.mxu0 %v377
      %875 = vmatprep.subr.mxu0 0.0
      %876 = vmatpush1.msra.mxu0 %v376
      %877 = vmatprep.subr.mxu0 0.0
      %878 = vmatpush1.msra.mxu0 %v375
      %879 = vmatprep.subr.mxu0 0.0
      %880 = vmatpush1.msra.mxu0 %v374
      %881 = vmatprep.subr.mxu0 0.0
      %882 = vmatpush1.msra.mxu0 %v373
      %883 = vmatprep.subr.mxu0 0.0
      %884 = vmatpush2.msra.mxu0 0.0
      %885 = vmatprep.subr.mxu0 0.0
      %886 = vmatpush2.msra.mxu0 0.0
      %887 = vmatprep.subr.mxu0 0.0
      %888 = vmatpush2.msra.mxu0 0.0
      %889 = vmatprep.subr.mxu0 0.0
      %890 = vmatpush2.msra.mxu0 0.0
      %891 = vmatprep.subr.mxu0 0.0
      %892 = vmatpush2.msra.mxu0 0.0
      %893 = vmatprep.subr.mxu0 0.0
      %894 = vmatpush2.msra.mxu0 0.0
      %895 = vmatprep.subr.mxu0 0.0
      %896 = vmatpush2.msra.mxu0 0.0
      %897 = vmatprep.subr.mxu0 0.0
      %898 = vmatpush2.msra.mxu0 0.0
      %899 = vmatprep.subr.mxu0 0.0
      %900 = vmatpush2.msra.mxu0 0.0
      %901 = vmatprep.subr.mxu0 0.0
      %902 = vmatpush2.msra.mxu0 0.0
      %903 = vmatprep.subr.mxu0 0.0
      %904 = vmatpush2.msra.mxu0 0.0
      %905 = vmatprep.subr.mxu0 0.0
      %906 = vmatpush2.msra.mxu0 0.0
      %907 = vmatprep.subr.mxu0 0.0
      %908 = vmatpush2.msra.mxu0 0.0
      %909 = vmatprep.subr.mxu0 0.0
      %910 = vmatpush2.msra.mxu0 0.0
      %911 = vmatprep.subr.mxu0 0.0
      %912 = vmatpush2.msra.mxu0 0.0
      %913 = vmatprep.subr.mxu0 0.0
      %914 = vmatpush2.msra.mxu0 0.0
      %915 = vmatprep.mubr.f32.mxu0 0.0
      %916 = vmatmul.mubr.f32.gmra.mxu0 %v846
      %v917 = vpop.f32.mrf.mxu0
      %v918 = vadd.f32 0.0, %v917
      %v919 = vpop.f32.mrf.mxu0
      %920 = vmatprep.mubr.f32.mxu0 0.0
      %921 = vmatmul.mubr.f32.gmra.mxu0 %v849
      %v922 = vpop.f32.mrf.mxu0
      %v923 = vadd.f32 0.0, %v922
      %v924 = vpop.f32.mrf.mxu0
      %925 = vdwg.mxu0
      %v926 = vadd.f32 %v355, %v918
      %v927 = vadd.f32 %v356, %v923
      %v928 = vmax.f32 %v926, 0.0
      %v929 = vmax.f32 %v927, 0.0
      %v931 = vsel %vm624, %v928, 0
      %v934 = vsel %vm624, %v929, 0
      %936 = vmatprep.subr.mxu0 0.0
      %937 = vmatpush1.msra.mxu0 0.0
      %938 = vmatprep.subr.mxu0 0.0
      %939 = vmatpush1.msra.mxu0 0.0
      %940 = vmatprep.subr.mxu0 0.0
      %941 = vmatpush1.msra.mxu0 0.0
      %942 = vmatprep.subr.mxu0 0.0
      %943 = vmatpush1.msra.mxu0 0.0
      %944 = vmatprep.subr.mxu0 0.0
      %945 = vmatpush1.msra.mxu0 0.0
      %946 = vmatprep.subr.mxu0 0.0
      %947 = vmatpush1.msra.mxu0 0.0
      %948 = vmatprep.subr.mxu0 0.0
      %949 = vmatpush1.msra.mxu0 0.0
      %950 = vmatprep.subr.mxu0 0.0
      %951 = vmatpush1.msra.mxu0 0.0
      %952 = vmatprep.subr.mxu0 0.0
      %953 = vmatpush1.msra.mxu0 0.0
      %954 = vmatprep.subr.mxu0 0.0
      %955 = vmatpush1.msra.mxu0 0.0
      %956 = vmatprep.subr.mxu0 0.0
      %957 = vmatpush1.msra.mxu0 0.0
      %958 = vmatprep.subr.mxu0 0.0
      %959 = vmatpush1.msra.mxu0 0.0
      %960 = vmatprep.subr.mxu0 0.0
      %961 = vmatpush1.msra.mxu0 %v382
      %962 = vmatprep.subr.mxu0 0.0
      %963 = vmatpush1.msra.mxu0 %v381
      %964 = vmatprep.subr.mxu0 0.0
      %965 = vmatpush1.msra.mxu0 %v380
      %966 = vmatprep.subr.mxu0 0.0
      %967 = vmatpush1.msra.mxu0 %v379
      %968 = vmatprep.subr.mxu0 0.0
      %969 = vmatpush2.msra.mxu0 0.0
      %970 = vmatprep.subr.mxu0 0.0
      %971 = vmatpush2.msra.mxu0 0.0
      %972 = vmatprep.subr.mxu0 0.0
      %973 = vmatpush2.msra.mxu0 0.0
      %974 = vmatprep.subr.mxu0 0.0
      %975 = vmatpush2.msra.mxu0 0.0
      %976 = vmatprep.subr.mxu0 0.0
      %977 = vmatpush2.msra.mxu0 0.0
      %978 = vmatprep.subr.mxu0 0.0
      %979 = vmatpush2.msra.mxu0 0.0
      %980 = vmatprep.subr.mxu0 0.0
      %981 = vmatpush2.msra.mxu0 0.0
      %982 = vmatprep.subr.mxu0 0.0
      %983 = vmatpush2.msra.mxu0 0.0
      %984 = vmatprep.subr.mxu0 0.0
      %985 = vmatpush2.msra.mxu0 0.0
      %986 = vmatprep.subr.mxu0 0.0
      %987 = vmatpush2.msra.mxu0 0.0
      %988 = vmatprep.subr.mxu0 0.0
      %989 = vmatpush2.msra.mxu0 0.0
      %990 = vmatprep.subr.mxu0 0.0
      %991 = vmatpush2.msra.mxu0 0.0
      %992 = vmatprep.subr.mxu0 0.0
      %993 = vmatpush2.msra.mxu0 0.0
      %994 = vmatprep.subr.mxu0 0.0
      %995 = vmatpush2.msra.mxu0 0.0
      %996 = vmatprep.subr.mxu0 0.0
      %997 = vmatpush2.msra.mxu0 0.0
      %998 = vmatprep.subr.mxu0 0.0
      %999 = vmatpush2.msra.mxu0 0.0
      %1000 = vmatprep.mubr.f32.mxu0 0.0
      %1001 = vmatmul.mubr.f32.gmra.mxu0 %v931
      %v1002 = vpop.f32.mrf.mxu0
      %v1003 = vadd.f32 %v623, %v1002
      %v1004 = vpop.f32.mrf.mxu0
      %1005 = vmatprep.mubr.f32.mxu0 0.0
      %1006 = vmatmul.mubr.f32.gmra.mxu0 %v934
      %v1007 = vpop.f32.mrf.mxu0
      %v1008 = vadd.f32 %v623, %v1007
      %v1009 = vpop.f32.mrf.mxu0
      %1010 = vdwg.mxu0
      %v1011 = vmax.f32 %v1003, 0.0
      %v1012 = vmax.f32 %v1008, 0.0
      %v1014 = vsel %vm624, %v1011, 0
      %v1017 = vsel %vm624, %v1012, 0
      %1019 = vmatprep.subr.mxu0 0.0
      %1020 = vmatpush1.msra.mxu0 0.0
      %1021 = vmatprep.subr.mxu0 0.0
      %1022 = vmatpush1.msra.mxu0 0.0
      %1023 = vmatprep.subr.mxu0 0.0
      %1024 = vmatpush1.msra.mxu0 0.0
      %1025 = vmatprep.subr.mxu0 0.0
      %1026 = vmatpush1.msra.mxu0 0.0
      %1027 = vmatprep.subr.mxu0 0.0
      %1028 = vmatpush1.msra.mxu0 0.0
      %1029 = vmatprep.subr.mxu0 0.0
      %1030 = vmatpush1.msra.mxu0 0.0
      %1031 = vmatprep.subr.mxu0 0.0
      %1032 = vmatpush1.msra.mxu0 0.0
      %1033 = vmatprep.subr.mxu0 0.0
      %1034 = vmatpush1.msra.mxu0 0.0
      %1035 = vmatprep.subr.mxu0 0.0
      %1036 = vmatpush1.msra.mxu0 0.0
      %1037 = vmatprep.subr.mxu0 0.0
      %1038 = vmatpush1.msra.mxu0 0.0
      %1039 = vmatprep.subr.mxu0 0.0
      %1040 = vmatpush1.msra.mxu0 0.0
      %1041 = vmatprep.subr.mxu0 0.0
      %1042 = vmatpush1.msra.mxu0 0.0
      %1043 = vmatprep.subr.mxu0 0.0
      %1044 = vmatpush1.msra.mxu0 %v387
      %1045 = vmatprep.subr.mxu0 0.0
      %1046 = vmatpush1.msra.mxu0 %v386
      %1047 = vmatprep.subr.mxu0 0.0
      %1048 = vmatpush1.msra.mxu0 %v385
      %1049 = vmatprep.subr.mxu0 0.0
      %1050 = vmatpush1.msra.mxu0 %v384
      %1051 = vmatprep.subr.mxu0 0.0
      %1052 = vmatpush2.msra.mxu0 0.0
      %1053 = vmatprep.subr.mxu0 0.0
      %1054 = vmatpush2.msra.mxu0 0.0
      %1055 = vmatprep.subr.mxu0 0.0
      %1056 = vmatpush2.msra.mxu0 0.0
      %1057 = vmatprep.subr.mxu0 0.0
      %1058 = vmatpush2.msra.mxu0 0.0
      %1059 = vmatprep.subr.mxu0 0.0
      %1060 = vmatpush2.msra.mxu0 0.0
      %1061 = vmatprep.subr.mxu0 0.0
      %1062 = vmatpush2.msra.mxu0 0.0
      %1063 = vmatprep.subr.mxu0 0.0
      %1064 = vmatpush2.msra.mxu0 0.0
      %1065 = vmatprep.subr.mxu0 0.0
      %1066 = vmatpush2.msra.mxu0 0.0
      %1067 = vmatprep.subr.mxu0 0.0
      %1068 = vmatpush2.msra.mxu0 0.0
      %1069 = vmatprep.subr.mxu0 0.0
      %1070 = vmatpush2.msra.mxu0 0.0
      %1071 = vmatprep.subr.mxu0 0.0
      %1072 = vmatpush2.msra.mxu0 0.0
      %1073 = vmatprep.subr.mxu0 0.0
      %1074 = vmatpush2.msra.mxu0 0.0
      %1075 = vmatprep.subr.mxu0 0.0
      %1076 = vmatpush2.msra.mxu0 0.0
      %1077 = vmatprep.subr.mxu0 0.0
      %1078 = vmatpush2.msra.mxu0 0.0
      %1079 = vmatprep.subr.mxu0 0.0
      %1080 = vmatpush2.msra.mxu0 0.0
      %1081 = vmatprep.subr.mxu0 0.0
      %1082 = vmatpush2.msra.mxu0 0.0
      %1083 = vmatprep.mubr.f32.mxu0 0.0
      %1084 = vmatmul.mubr.f32.gmra.mxu0 %v1014
      %v1085 = vpop.f32.mrf.mxu0
      %v1086 = vadd.f32 %v711, %v1085
      %v1087 = vpop.f32.mrf.mxu0
      %1088 = vmatprep.mubr.f32.mxu0 0.0
      %1089 = vmatmul.mubr.f32.gmra.mxu0 %v1017
      %v1090 = vpop.f32.mrf.mxu0
      %v1091 = vadd.f32 %v711, %v1090
      %v1092 = vpop.f32.mrf.mxu0
      %1093 = vdwg.mxu0
      %v1094 = vmax.f32 %v1086, 0.0
      %v1095 = vmax.f32 %v1091, 0.0
      %v1096 = vadd.f32 %v795, %v1094
      %v1097 = vadd.f32 %v796, %v1095
      %v1098 = vsel %vm486, %v839, inf
      %1099 = vmin.xlane.f32.xlu0 %v1098
      %v1100 = vpop.xlane.xlu0 %1099
      %v1101 = vsel %vm486, %v840, inf
      %1102 = vmin.xlane.f32.xlu0 %v1101
      %v1103 = vpop.xlane.xlu0 %1102
      %vm1104 = vcmp.le.f32.partialorder %v839, %v1100
      %vm1105 = vcmp.le.f32.partialorder %v840, %v1103
      %v1106 = vsel %vm1104, %v485, 48
      %v1107 = vsel %vm1105, %v485, 48
      %v1108 = vsel %vm486, %v1106, 2147483647
      %v1109 = vand.u32 %v1108, 65535
      %v1110 = vshra.s32 %v1108, 16
      %v1111 = vcvt.s32.f32 %v1109
      %v1112 = vcvt.s32.f32 %v1110
      %1113 = vmin.xlane.f32.xlu0 %v1112
      %v1114 = vpop.xlane.xlu0 %1113
      %vm1115 = vcmp.eq.f32.partialorder %v1112, %v1114
      %v1116 = vsel %vm1115, %v1111, inf
      %1117 = vmin.xlane.f32.xlu0 %v1116
      %v1118 = vpop.xlane.xlu0 %1117
      %v1119 = vcvt.f32.s32 %v1118
      %v1120 = vcvt.f32.s32 %v1114
      %v1121 = vshll.u32 %v1120, 16
      %v1122 = vadd.s32 %v1121, %v1119
      %v1123 = vsel %vm486, %v1107, 2147483647
      %v1124 = vand.u32 %v1123, 65535
      %v1125 = vshra.s32 %v1123, 16
      %v1126 = vcvt.s32.f32 %v1124
      %v1127 = vcvt.s32.f32 %v1125
      %1128 = vmin.xlane.f32.xlu0 %v1127
      %v1129 = vpop.xlane.xlu0 %1128
      %vm1130 = vcmp.eq.f32.partialorder %v1127, %v1129
      %v1131 = vsel %vm1130, %v1126, inf
      %1132 = vmin.xlane.f32.xlu0 %v1131
      %v1133 = vpop.xlane.xlu0 %1132
      %v1134 = vcvt.f32.s32 %v1133
      %v1135 = vcvt.f32.s32 %v1129
      %v1136 = vshll.u32 %v1135, 16
      %v1137 = vadd.s32 %v1136, %v1134
      %vm1138 = vcmp.eq.s32.totalorder %v485, %v1122
      %vm1139 = vcmp.eq.s32.totalorder %v485, %v1137
      %v1140 = vsel %vm1138, 1, 0
      %v1141 = vsel %vm1139, 1, 0
      %v1142 = vcvt.s32.f32 %v1140
      %v1143 = vcvt.s32.f32 %v1141
      %v1145 = vsel %vm486, %v1142, 0
      %v1148 = vsel %vm486, %v1143, 0
      %1150 = vmatprep.subr.mxu0 0.0
      %1151 = vmatpush1.msra.mxu0 0.0
      %1152 = vmatprep.subr.mxu0 0.0
      %1153 = vmatpush1.msra.mxu0 0.0
      %1154 = vmatprep.subr.mxu0 0.0
      %1155 = vmatpush1.msra.mxu0 0.0
      %1156 = vmatprep.subr.mxu0 0.0
      %1157 = vmatpush1.msra.mxu0 0.0
      %1158 = vmatprep.subr.mxu0 0.0
      %1159 = vmatpush1.msra.mxu0 0.0
      %1160 = vmatprep.subr.mxu0 0.0
      %1161 = vmatpush1.msra.mxu0 0.0
      %1162 = vmatprep.subr.mxu0 0.0
      %1163 = vmatpush1.msra.mxu0 0.0
      %1164 = vmatprep.subr.mxu0 0.0
      %1165 = vmatpush1.msra.mxu0 0.0
      %1166 = vmatprep.subr.mxu0 0.0
      %1167 = vmatpush1.msra.mxu0 0.0
      %1168 = vmatprep.subr.mxu0 0.0
      %1169 = vmatpush1.msra.mxu0 0.0
      %1170 = vmatprep.subr.mxu0 0.0
      %1171 = vmatpush1.msra.mxu0 %v378
      %1172 = vmatprep.subr.mxu0 0.0
      %1173 = vmatpush1.msra.mxu0 %v377
      %1174 = vmatprep.subr.mxu0 0.0
      %1175 = vmatpush1.msra.mxu0 %v376
      %1176 = vmatprep.subr.mxu0 0.0
      %1177 = vmatpush1.msra.mxu0 %v375
      %1178 = vmatprep.subr.mxu0 0.0
      %1179 = vmatpush1.msra.mxu0 %v374
      %1180 = vmatprep.subr.mxu0 0.0
      %1181 = vmatpush1.msra.mxu0 %v373
      %1182 = vmatprep.subr.mxu0 0.0
      %1183 = vmatpush2.msra.mxu0 0.0
      %1184 = vmatprep.subr.mxu0 0.0
      %1185 = vmatpush2.msra.mxu0 0.0
      %1186 = vmatprep.subr.mxu0 0.0
      %1187 = vmatpush2.msra.mxu0 0.0
      %1188 = vmatprep.subr.mxu0 0.0
      %1189 = vmatpush2.msra.mxu0 0.0
      %1190 = vmatprep.subr.mxu0 0.0
      %1191 = vmatpush2.msra.mxu0 0.0
      %1192 = vmatprep.subr.mxu0 0.0
      %1193 = vmatpush2.msra.mxu0 0.0
      %1194 = vmatprep.subr.mxu0 0.0
      %1195 = vmatpush2.msra.mxu0 0.0
      %1196 = vmatprep.subr.mxu0 0.0
      %1197 = vmatpush2.msra.mxu0 0.0
      %1198 = vmatprep.subr.mxu0 0.0
      %1199 = vmatpush2.msra.mxu0 0.0
      %1200 = vmatprep.subr.mxu0 0.0
      %1201 = vmatpush2.msra.mxu0 0.0
      %1202 = vmatprep.subr.mxu0 0.0
      %1203 = vmatpush2.msra.mxu0 0.0
      %1204 = vmatprep.subr.mxu0 0.0
      %1205 = vmatpush2.msra.mxu0 0.0
      %1206 = vmatprep.subr.mxu0 0.0
      %1207 = vmatpush2.msra.mxu0 0.0
      %1208 = vmatprep.subr.mxu0 0.0
      %1209 = vmatpush2.msra.mxu0 0.0
      %1210 = vmatprep.subr.mxu0 0.0
      %1211 = vmatpush2.msra.mxu0 0.0
      %1212 = vmatprep.subr.mxu0 0.0
      %1213 = vmatpush2.msra.mxu0 0.0
      %1214 = vmatprep.mubr.f32.mxu0 0.0
      %1215 = vmatmul.mubr.f32.gmra.mxu0 %v1145
      %v1216 = vpop.f32.mrf.mxu0
      %v1217 = vadd.f32 0.0, %v1216
      %v1218 = vpop.f32.mrf.mxu0
      %1219 = vmatprep.mubr.f32.mxu0 0.0
      %1220 = vmatmul.mubr.f32.gmra.mxu0 %v1148
      %v1221 = vpop.f32.mrf.mxu0
      %v1222 = vadd.f32 0.0, %v1221
      %v1223 = vpop.f32.mrf.mxu0
      %1224 = vdwg.mxu0
      %v1225 = vadd.f32 %v355, %v1217
      %v1226 = vadd.f32 %v356, %v1222
      %v1227 = vmax.f32 %v1225, 0.0
      %v1228 = vmax.f32 %v1226, 0.0
      %v1230 = vsel %vm624, %v1227, 0
      %v1233 = vsel %vm624, %v1228, 0
      %1235 = vmatprep.subr.mxu0 0.0
      %1236 = vmatpush1.msra.mxu0 0.0
      %1237 = vmatprep.subr.mxu0 0.0
      %1238 = vmatpush1.msra.mxu0 0.0
      %1239 = vmatprep.subr.mxu0 0.0
      %1240 = vmatpush1.msra.mxu0 0.0
      %1241 = vmatprep.subr.mxu0 0.0
      %1242 = vmatpush1.msra.mxu0 0.0
      %1243 = vmatprep.subr.mxu0 0.0
      %1244 = vmatpush1.msra.mxu0 0.0
      %1245 = vmatprep.subr.mxu0 0.0
      %1246 = vmatpush1.msra.mxu0 0.0
      %1247 = vmatprep.subr.mxu0 0.0
      %1248 = vmatpush1.msra.mxu0 0.0
      %1249 = vmatprep.subr.mxu0 0.0
      %1250 = vmatpush1.msra.mxu0 0.0
      %1251 = vmatprep.subr.mxu0 0.0
      %1252 = vmatpush1.msra.mxu0 0.0
      %1253 = vmatprep.subr.mxu0 0.0
      %1254 = vmatpush1.msra.mxu0 0.0
      %1255 = vmatprep.subr.mxu0 0.0
      %1256 = vmatpush1.msra.mxu0 0.0
      %1257 = vmatprep.subr.mxu0 0.0
      %1258 = vmatpush1.msra.mxu0 0.0
      %1259 = vmatprep.subr.mxu0 0.0
      %1260 = vmatpush1.msra.mxu0 %v382
      %1261 = vmatprep.subr.mxu0 0.0
      %1262 = vmatpush1.msra.mxu0 %v381
      %1263 = vmatprep.subr.mxu0 0.0
      %1264 = vmatpush1.msra.mxu0 %v380
      %1265 = vmatprep.subr.mxu0 0.0
      %1266 = vmatpush1.msra.mxu0 %v379
      %1267 = vmatprep.subr.mxu0 0.0
      %1268 = vmatpush2.msra.mxu0 0.0
      %1269 = vmatprep.subr.mxu0 0.0
      %1270 = vmatpush2.msra.mxu0 0.0
      %1271 = vmatprep.subr.mxu0 0.0
      %1272 = vmatpush2.msra.mxu0 0.0
      %1273 = vmatprep.subr.mxu0 0.0
      %1274 = vmatpush2.msra.mxu0 0.0
      %1275 = vmatprep.subr.mxu0 0.0
      %1276 = vmatpush2.msra.mxu0 0.0
      %1277 = vmatprep.subr.mxu0 0.0
      %1278 = vmatpush2.msra.mxu0 0.0
      %1279 = vmatprep.subr.mxu0 0.0
      %1280 = vmatpush2.msra.mxu0 0.0
      %1281 = vmatprep.subr.mxu0 0.0
      %1282 = vmatpush2.msra.mxu0 0.0
      %1283 = vmatprep.subr.mxu0 0.0
      %1284 = vmatpush2.msra.mxu0 0.0
      %1285 = vmatprep.subr.mxu0 0.0
      %1286 = vmatpush2.msra.mxu0 0.0
      %1287 = vmatprep.subr.mxu0 0.0
      %1288 = vmatpush2.msra.mxu0 0.0
      %1289 = vmatprep.subr.mxu0 0.0
      %1290 = vmatpush2.msra.mxu0 0.0
      %1291 = vmatprep.subr.mxu0 0.0
      %1292 = vmatpush2.msra.mxu0 0.0
      %1293 = vmatprep.subr.mxu0 0.0
      %1294 = vmatpush2.msra.mxu0 0.0
      %1295 = vmatprep.subr.mxu0 0.0
      %1296 = vmatpush2.msra.mxu0 0.0
      %1297 = vmatprep.subr.mxu0 0.0
      %1298 = vmatpush2.msra.mxu0 0.0
      %1299 = vmatprep.mubr.f32.mxu0 0.0
      %1300 = vmatmul.mubr.f32.gmra.mxu0 %v1230
      %v1301 = vpop.f32.mrf.mxu0
      %v1302 = vadd.f32 %v623, %v1301
      %v1303 = vpop.f32.mrf.mxu0
      %1304 = vmatprep.mubr.f32.mxu0 0.0
      %1305 = vmatmul.mubr.f32.gmra.mxu0 %v1233
      %v1306 = vpop.f32.mrf.mxu0
      %v1307 = vadd.f32 %v623, %v1306
      %v1308 = vpop.f32.mrf.mxu0
      %1309 = vdwg.mxu0
      %v1310 = vmax.f32 %v1302, 0.0
      %v1311 = vmax.f32 %v1307, 0.0
      %v1313 = vsel %vm624, %v1310, 0
      %v1316 = vsel %vm624, %v1311, 0
      %1318 = vmatprep.subr.mxu0 0.0
      %1319 = vmatpush1.msra.mxu0 0.0
      %1320 = vmatprep.subr.mxu0 0.0
      %1321 = vmatpush1.msra.mxu0 0.0
      %1322 = vmatprep.subr.mxu0 0.0
      %1323 = vmatpush1.msra.mxu0 0.0
      %1324 = vmatprep.subr.mxu0 0.0
      %1325 = vmatpush1.msra.mxu0 0.0
      %1326 = vmatprep.subr.mxu0 0.0
      %1327 = vmatpush1.msra.mxu0 0.0
      %1328 = vmatprep.subr.mxu0 0.0
      %1329 = vmatpush1.msra.mxu0 0.0
      %1330 = vmatprep.subr.mxu0 0.0
      %1331 = vmatpush1.msra.mxu0 0.0
      %1332 = vmatprep.subr.mxu0 0.0
      %1333 = vmatpush1.msra.mxu0 0.0
      %1334 = vmatprep.subr.mxu0 0.0
      %1335 = vmatpush1.msra.mxu0 0.0
      %1336 = vmatprep.subr.mxu0 0.0
      %1337 = vmatpush1.msra.mxu0 0.0
      %1338 = vmatprep.subr.mxu0 0.0
      %1339 = vmatpush1.msra.mxu0 0.0
      %1340 = vmatprep.subr.mxu0 0.0
      %1341 = vmatpush1.msra.mxu0 0.0
      %1342 = vmatprep.subr.mxu0 0.0
      %1343 = vmatpush1.msra.mxu0 %v387
      %1344 = vmatprep.subr.mxu0 0.0
      %1345 = vmatpush1.msra.mxu0 %v386
      %1346 = vmatprep.subr.mxu0 0.0
      %1347 = vmatpush1.msra.mxu0 %v385
      %1348 = vmatprep.subr.mxu0 0.0
      %1349 = vmatpush1.msra.mxu0 %v384
      %1350 = vmatprep.subr.mxu0 0.0
      %1351 = vmatpush2.msra.mxu0 0.0
      %1352 = vmatprep.subr.mxu0 0.0
      %1353 = vmatpush2.msra.mxu0 0.0
      %1354 = vmatprep.subr.mxu0 0.0
      %1355 = vmatpush2.msra.mxu0 0.0
      %1356 = vmatprep.subr.mxu0 0.0
      %1357 = vmatpush2.msra.mxu0 0.0
      %1358 = vmatprep.subr.mxu0 0.0
      %1359 = vmatpush2.msra.mxu0 0.0
      %1360 = vmatprep.subr.mxu0 0.0
      %1361 = vmatpush2.msra.mxu0 0.0
      %1362 = vmatprep.subr.mxu0 0.0
      %1363 = vmatpush2.msra.mxu0 0.0
      %1364 = vmatprep.subr.mxu0 0.0
      %1365 = vmatpush2.msra.mxu0 0.0
      %1366 = vmatprep.subr.mxu0 0.0
      %1367 = vmatpush2.msra.mxu0 0.0
      %1368 = vmatprep.subr.mxu0 0.0
      %1369 = vmatpush2.msra.mxu0 0.0
      %1370 = vmatprep.subr.mxu0 0.0
      %1371 = vmatpush2.msra.mxu0 0.0
      %1372 = vmatprep.subr.mxu0 0.0
      %1373 = vmatpush2.msra.mxu0 0.0
      %1374 = vmatprep.subr.mxu0 0.0
      %1375 = vmatpush2.msra.mxu0 0.0
      %1376 = vmatprep.subr.mxu0 0.0
      %1377 = vmatpush2.msra.mxu0 0.0
      %1378 = vmatprep.subr.mxu0 0.0
      %1379 = vmatpush2.msra.mxu0 0.0
      %1380 = vmatprep.subr.mxu0 0.0
      %1381 = vmatpush2.msra.mxu0 0.0
      %1382 = vmatprep.mubr.f32.mxu0 0.0
      %1383 = vmatmul.mubr.f32.gmra.mxu0 %v1313
      %v1384 = vpop.f32.mrf.mxu0
      %v1385 = vadd.f32 %v711, %v1384
      %v1386 = vpop.f32.mrf.mxu0
      %1387 = vmatprep.mubr.f32.mxu0 0.0
      %1388 = vmatmul.mubr.f32.gmra.mxu0 %v1316
      %v1389 = vpop.f32.mrf.mxu0
      %v1390 = vadd.f32 %v711, %v1389
      %v1391 = vpop.f32.mrf.mxu0
      %1392 = vdwg.mxu0
      %v1393 = vmax.f32 %v1385, 0.0
      %v1394 = vmax.f32 %v1390, 0.0
      %v1395 = vadd.f32 %v1096, %v1393
      %v1396 = vadd.f32 %v1097, %v1394
      %v1397 = vmul.f32 %v1395, 0.33333334
      %v1398 = vmul.f32 %v1396, 0.33333334
      %1399 = vst.msk [vmem:[%s351] sm:$0xff] %vm390, %v1397
      %1400 = vst.msk [vmem:[%s351 + $0x8] sm:$0xff] %vm390, %v1398
      %s1401 = smul.u32 2, %s19
      %p1402 = scmp.lt.s32.totalorder %s1401, 5
      %s1403 = scalar_select %p1402, %s1401, 5
      %s1404 = smul.addr %s1403, 8
      %s1405 = scalar_lea.vmem %s8, %s1404
      // Predicated region
      $region53: #{_forward.2} parent=51 // pred_check
        %p1406 = pneg %p220
      $region54: #{_forward.2} parent=51 // pred_check_branch
        %1408 = sbr.rel (%p1406) target = $region56
      $region55: #{_forward.2} parent=51 // pred_region
        %s1409 = smul.u32 2, %s19
      $region56: #{_forward.2} parent=51 // pred_fallthru
        _
    $region52: #{_forward.2} parent=5 // pred_fallthru
      _
    %p1410 = scmp.le.s32.totalorder 2, %s14
    // Predicated region
    $region57: #{_forward.2} parent=5 // pred_check
      %p1411 = pneg %p1410
    $region58: #{_forward.2} parent=5 // pred_check_branch
      %1413 = sbr.rel (%p1411) target = $region60
    $region59: #{_forward.2} parent=5 // pred_region
      %s1414 = ssub.s32 %s14, 2
      // Predicated region
      $region61: #{_forward.2} parent=59 // pred_check
        %p1415 = pneg %p226
      $region62: #{_forward.2} parent=59 // pred_check_branch
        %1417 = sbr.rel (%p1415) target = $region64
      $region63: #{_forward.2} parent=59 // pred_region
        %s1418 = smul.u32 2, %s20
        %p1419 = scmp.lt.s32.totalorder %s1418, 5
        %s1420 = scalar_select %p1419, %s1418, 5
        %s1421 = smul.addr %s1420, 8
        %s1422 = scalar_lea.vmem %s8, %s1421
      $region64: #{_forward.2} parent=59 // pred_fallthru
        _
    $region60: #{_forward.2} parent=5 // pred_fallthru
      _
  $region6: #{_forward.2} parent=0 // loop_footer
    %s18 = sadd.s32 1, %s14
  $region7: #{_forward.2} parent=0 // loop_footer_branch
    %13 = sbr.rel target = $region3
  $region8: #{_forward.2} parent=0 // loop_exit
    _

// kernel: _forward.3
$region0: #{_forward.3}
  #allocation0 [shape = 'u32[]', space=smem, size = 0x4, offset = 0x4, fixed_abs, tag = 'smem constant byte address 0x4 - core index']
  #allocation1 [shape = 'u32[144,128]{1,0:T(1,128)}', space=vmem, size = 0x12000, scoped, tag = 'internal scratch']
  %s0 = inlined_call_operand.vmem [shape: f32[48,8], index: 0, kind: input, shape index: {}]
  %s1 = inlined_call_operand.vmem [shape: f32[48,32], index: 1, kind: input, shape index: {}]
  %s2 = inlined_call_operand.vmem [shape: s32[48,1], index: 2, kind: input, shape index: {}]
  %s3 = inlined_call_operand.vmem [shape: f32[8,48], index: 3, kind: input, shape index: {}]
  %s4 = inlined_call_operand.vmem [shape: f32[1,48], index: 4, kind: input, shape index: {}]
  %s5 = inlined_call_operand.vmem [shape: s32[1,48], index: 5, kind: input, shape index: {}]
  %s6 = inlined_call_operand.vmem [shape: f32[48,32], index: 6, kind: input, shape index: {}]
  %s7 = inlined_call_operand.vmem [shape: f32[72,128], index: 7, kind: input, shape index: {}]
  %s8 = inlined_call_operand.vmem [shape: f32[48,8], index: 8, kind: output, shape index: {}]
  %s9 = sld [smem:[#allocation0]]
  $region65: #{_forward.3} parent=0
    _
  %s11 = ssub.s32 1, %s9
  %s12 = scalar_select 0, %s11, %s9
  loop: start=0, step=1, limit=5
  $region2: #{_forward.3} parent=0 // loop_pre_header
    _
  $region3: #{_forward.3} parent=0 // loop_header
    %s14 = sphi 0, %s18
    %p15 = scmp.ge.s32.totalorder %s14, 5
    %s24 = sphi 0, %s26
    %s27 = sphi 0, %s24
    %s28 = sphi 0, %s27
    %s44 = sphi 0, %s28
    %s50 = sphi 0, %s52
    %s53 = sphi 0, %s50
    %s54 = sphi 0, %s53
    %s70 = sphi 0, %s54
    %s76 = sphi 0, %s78
    %s79 = sphi 0, %s76
    %s80 = sphi 0, %s79
    %s96 = sphi 0, %s80
    %s100 = sphi 0, %s100
    %s102 = sphi 0, %s100
    %s103 = sphi 0, %s102
    %s117 = sphi 0, %s103
    %s121 = sphi 0, %s121
    %s123 = sphi 0, %s121
    %s124 = sphi 0, %s123
    %s138 = sphi 0, %s124
    %s142 = sphi 0, %s142
    %s144 = sphi 0, %s142
    %s145 = sphi 0, %s144
    %s159 = sphi 0, %s145
    %s163 = sphi 0, %s163
    %s165 = sphi 0, %s163
    %s166 = sphi 0, %s165
    %s180 = sphi 0, %s166
    %s184 = sphi 0, %s184
    %s186 = sphi 0, %s184
    %s187 = sphi 0, %s186
    %s201 = sphi 0, %s187
    %s207 = sphi 0, %s209
    %s210 = sphi 0, %s207
    %s211 = sphi 0, %s210
    %s227 = sphi 0, %s211
  $region4: #{_forward.3} parent=0 // loop_header_branch
    %17 = sbr.rel (%p15) target = $region8
  $region5: #{_forward.3} parent=0 // loop_body
    %s19 = ssub.s32 %s14, 1
    %s20 = ssub.s32 %s14, 2
    %s21 = sadd.s32 %s14, 1
    %s22 = ssub.s32 %s14, %s21
    %p23 = scmp.eq.s32.totalorder %s22, 0
    %s25 = sadd.s32 %s24, 1
    %s26 = scalar_select %p23, %s24, %s25
    %p29 = pneg %p23
    %p30 = scmp.eq.s32.totalorder %s14, 2
    %p31 = por %p29, %p30
    %p32 = scmp.ne.s32.totalorder %s24, %s27
    %p33 = scmp.eq.s32.totalorder %s14, 0
    %p34 = por %p32, %p33
    %p35 = scmp.ne.s32.totalorder %s24, %s27
    %p36 = scmp.eq.s32.totalorder %s19, 2
    %p37 = por %p35, %p36
    %p38 = scmp.ne.s32.totalorder %s27, %s28
    %p39 = scmp.eq.s32.totalorder %s19, 0
    %p40 = por %p38, %p39
    %p41 = scmp.ne.s32.totalorder %s27, %s28
    %p42 = scmp.eq.s32.totalorder %s20, 2
    %p43 = por %p41, %p42
    %p45 = scmp.ne.s32.totalorder %s28, %s44
    %p46 = scmp.eq.s32.totalorder %s20, 0
    %p47 = por %p45, %p46
    %s48 = ssub.s32 %s14, %s21
    %p49 = scmp.eq.s32.totalorder %s48, 0
    %s51 = sadd.s32 %s50, 1
    %s52 = scalar_select %p49, %s50, %s51
    %p55 = pneg %p49
    %p56 = scmp.eq.s32.totalorder %s14, 2
    %p57 = por %p55, %p56
    %p58 = scmp.ne.s32.totalorder %s50, %s53
    %p59 = scmp.eq.s32.totalorder %s14, 0
    %p60 = por %p58, %p59
    %p61 = scmp.ne.s32.totalorder %s50, %s53
    %p62 = scmp.eq.s32.totalorder %s19, 2
    %p63 = por %p61, %p62
    %p64 = scmp.ne.s32.totalorder %s53, %s54
    %p65 = scmp.eq.s32.totalorder %s19, 0
    %p66 = por %p64, %p65
    %p67 = scmp.ne.s32.totalorder %s53, %s54
    %p68 = scmp.eq.s32.totalorder %s20, 2
    %p69 = por %p67, %p68
    %p71 = scmp.ne.s32.totalorder %s54, %s70
    %p72 = scmp.eq.s32.totalorder %s20, 0
    %p73 = por %p71, %p72
    %s74 = ssub.s32 %s14, %s21
    %p75 = scmp.eq.s32.totalorder %s74, 0
    %s77 = sadd.s32 %s76, 1
    %s78 = scalar_select %p75, %s76, %s77
    %p81 = pneg %p75
    %p82 = scmp.eq.s32.totalorder %s14, 2
    %p83 = por %p81, %p82
    %p84 = scmp.ne.s32.totalorder %s76, %s79
    %p85 = scmp.eq.s32.totalorder %s14, 0
    %p86 = por %p84, %p85
    %p87 = scmp.ne.s32.totalorder %s76, %s79
    %p88 = scmp.eq.s32.totalorder %s19, 2
    %p89 = por %p87, %p88
    %p90 = scmp.ne.s32.totalorder %s79, %s80
    %p91 = scmp.eq.s32.totalorder %s19, 0
    %p92 = por %p90, %p91
    %p93 = scmp.ne.s32.totalorder %s79, %s80
    %p94 = scmp.eq.s32.totalorder %s20, 2
    %p95 = por %p93, %p94
    %p97 = scmp.ne.s32.totalorder %s80, %s96
    %p98 = scmp.eq.s32.totalorder %s20, 0
    %p99 = por %p97, %p98
    %s101 = sadd.s32 %s100, 1
    %p104 = scmp.eq.s32.totalorder %s14, 2
    %p105 = scmp.ne.s32.totalorder %s100, %s102
    %p106 = scmp.eq.s32.totalorder %s14, 0
    %p107 = por %p105, %p106
    %p108 = scmp.ne.s32.totalorder %s100, %s102
    %p109 = scmp.eq.s32.totalorder %s19, 2
    %p110 = por %p108, %p109
    %p111 = scmp.ne.s32.totalorder %s102, %s103
    %p112 = scmp.eq.s32.totalorder %s19, 0
    %p113 = por %p111, %p112
    %p114 = scmp.ne.s32.totalorder %s102, %s103
    %p115 = scmp.eq.s32.totalorder %s20, 2
    %p116 = por %p114, %p115
    %p118 = scmp.ne.s32.totalorder %s103, %s117
    %p119 = scmp.eq.s32.totalorder %s20, 0
    %p120 = por %p118, %p119
    %s122 = sadd.s32 %s121, 1
    %p125 = scmp.eq.s32.totalorder %s14, 2
    %p126 = scmp.ne.s32.totalorder %s121, %s123
    %p127 = scmp.eq.s32.totalorder %s14, 0
    %p128 = por %p126, %p127
    %p129 = scmp.ne.s32.totalorder %s121, %s123
    %p130 = scmp.eq.s32.totalorder %s19, 2
    %p131 = por %p129, %p130
    %p132 = scmp.ne.s32.totalorder %s123, %s124
    %p133 = scmp.eq.s32.totalorder %s19, 0
    %p134 = por %p132, %p133
    %p135 = scmp.ne.s32.totalorder %s123, %s124
    %p136 = scmp.eq.s32.totalorder %s20, 2
    %p137 = por %p135, %p136
    %p139 = scmp.ne.s32.totalorder %s124, %s138
    %p140 = scmp.eq.s32.totalorder %s20, 0
    %p141 = por %p139, %p140
    %s143 = sadd.s32 %s142, 1
    %p146 = scmp.eq.s32.totalorder %s14, 2
    %p147 = scmp.ne.s32.totalorder %s142, %s144
    %p148 = scmp.eq.s32.totalorder %s14, 0
    %p149 = por %p147, %p148
    %p150 = scmp.ne.s32.totalorder %s142, %s144
    %p151 = scmp.eq.s32.totalorder %s19, 2
    %p152 = por %p150, %p151
    %p153 = scmp.ne.s32.totalorder %s144, %s145
    %p154 = scmp.eq.s32.totalorder %s19, 0
    %p155 = por %p153, %p154
    %p156 = scmp.ne.s32.totalorder %s144, %s145
    %p157 = scmp.eq.s32.totalorder %s20, 2
    %p158 = por %p156, %p157
    %p160 = scmp.ne.s32.totalorder %s145, %s159
    %p161 = scmp.eq.s32.totalorder %s20, 0
    %p162 = por %p160, %p161
    %s164 = sadd.s32 %s163, 1
    %p167 = scmp.eq.s32.totalorder %s14, 2
    %p168 = scmp.ne.s32.totalorder %s163, %s165
    %p169 = scmp.eq.s32.totalorder %s14, 0
    %p170 = por %p168, %p169
    %p171 = scmp.ne.s32.totalorder %s163, %s165
    %p172 = scmp.eq.s32.totalorder %s19, 2
    %p173 = por %p171, %p172
    %p174 = scmp.ne.s32.totalorder %s165, %s166
    %p175 = scmp.eq.s32.totalorder %s19, 0
    %p176 = por %p174, %p175
    %p177 = scmp.ne.s32.totalorder %s165, %s166
    %p178 = scmp.eq.s32.totalorder %s20, 2
    %p179 = por %p177, %p178
    %p181 = scmp.ne.s32.totalorder %s166, %s180
    %p182 = scmp.eq.s32.totalorder %s20, 0
    %p183 = por %p181, %p182
    %s185 = sadd.s32 %s184, 1
    %p188 = scmp.eq.s32.totalorder %s14, 2
    %p189 = scmp.ne.s32.totalorder %s184, %s186
    %p190 = scmp.eq.s32.totalorder %s14, 0
    %p191 = por %p189, %p190
    %p192 = scmp.ne.s32.totalorder %s184, %s186
    %p193 = scmp.eq.s32.totalorder %s19, 2
    %p194 = por %p192, %p193
    %p195 = scmp.ne.s32.totalorder %s186, %s187
    %p196 = scmp.eq.s32.totalorder %s19, 0
    %p197 = por %p195, %p196
    %p198 = scmp.ne.s32.totalorder %s186, %s187
    %p199 = scmp.eq.s32.totalorder %s20, 2
    %p200 = por %p198, %p199
    %p202 = scmp.ne.s32.totalorder %s187, %s201
    %p203 = scmp.eq.s32.totalorder %s20, 0
    %p204 = por %p202, %p203
    %s205 = ssub.s32 %s14, %s21
    %p206 = scmp.eq.s32.totalorder %s205, 0
    %s208 = sadd.s32 %s207, 1
    %s209 = scalar_select %p206, %s207, %s208
    %p212 = pneg %p206
    %p213 = scmp.eq.s32.totalorder %s14, 2
    %p214 = por %p212, %p213
    %p215 = scmp.ne.s32.totalorder %s207, %s210
    %p216 = scmp.eq.s32.totalorder %s14, 0
    %p217 = por %p215, %p216
    %p218 = scmp.ne.s32.totalorder %s207, %s210
    %p219 = scmp.eq.s32.totalorder %s19, 2
    %p220 = por %p218, %p219
    %p221 = scmp.ne.s32.totalorder %s210, %s211
    %p222 = scmp.eq.s32.totalorder %s19, 0
    %p223 = por %p221, %p222
    %p224 = scmp.ne.s32.totalorder %s210, %s211
    %p225 = scmp.eq.s32.totalorder %s20, 2
    %p226 = por %p224, %p225
    %p228 = scmp.ne.s32.totalorder %s211, %s227
    %p229 = scmp.eq.s32.totalorder %s20, 0
    %p230 = por %p228, %p229
    %p231 = scmp.le.s32.totalorder 1, %s14
    %p232 = scmp.lt.s32.totalorder %s14, 4
    %p233 = pnand %p231, %p232
    %p234 = pneg %p233
    // Predicated region
    $region9: #{_forward.3} parent=5 // pred_check
      _
    $region10: #{_forward.3} parent=5 // pred_check_branch
      %236 = sbr.rel (%p233) target = $region12
    $region11: #{_forward.3} parent=5 // pred_region
      %s237 = ssub.s32 %s14, 1
      // Predicated region
      $region13: #{_forward.3} parent=11 // pred_check
        %p238 = pneg %p113
      $region14: #{_forward.3} parent=11 // pred_check_branch
        %240 = sbr.rel (%p238) target = $region16
      $region15: #{_forward.3} parent=11 // pred_region
        _
      $region16: #{_forward.3} parent=11 // pred_fallthru
        _
      // Predicated region
      $region17: #{_forward.3} parent=11 // pred_check
        %p241 = pneg %p134
      $region18: #{_forward.3} parent=11 // pred_check_branch
        %243 = sbr.rel (%p241) target = $region20
      $region19: #{_forward.3} parent=11 // pred_region
        _
      $region20: #{_forward.3} parent=11 // pred_fallthru
        _
      // Predicated region
      $region21: #{_forward.3} parent=11 // pred_check
        %p244 = pneg %p155
      $region22: #{_forward.3} parent=11 // pred_check_branch
        %246 = sbr.rel (%p244) target = $region24
      $region23: #{_forward.3} parent=11 // pred_region
        _
      $region24: #{_forward.3} parent=11 // pred_fallthru
        _
      // Predicated region
      $region25: #{_forward.3} parent=11 // pred_check
        %p247 = pneg %p176
      $region26: #{_forward.3} parent=11 // pred_check_branch
        %249 = sbr.rel (%p247) target = $region28
      $region27: #{_forward.3} parent=11 // pred_region
        _
      $region28: #{_forward.3} parent=11 // pred_fallthru
        _
      // Predicated region
      $region29: #{_forward.3} parent=11 // pred_check
        %p250 = pneg %p197
      $region30: #{_forward.3} parent=11 // pred_check_branch
        %252 = sbr.rel (%p250) target = $region32
      $region31: #{_forward.3} parent=11 // pred_region
        _
      $region32: #{_forward.3} parent=11 // pred_fallthru
        _
    $region12: #{_forward.3} parent=5 // pred_fallthru
      _
    %p253 = scmp.lt.s32.totalorder %s14, 3
    // Predicated region
    $region33: #{_forward.3} parent=5 // pred_check
      %p254 = pneg %p253
    $region34: #{_forward.3} parent=5 // pred_check_branch
      %256 = sbr.rel (%p254) target = $region36
    $region35: #{_forward.3} parent=5 // pred_region
      // Predicated region
      $region37: #{_forward.3} parent=35 // pred_check
        %p257 = pneg %p34
      $region38: #{_forward.3} parent=35 // pred_check_branch
        %259 = sbr.rel (%p257) target = $region40
      $region39: #{_forward.3} parent=35 // pred_region
        %s260 = smul.u32 2, %s14
        %p261 = scmp.lt.s32.totalorder %s260, 5
        %s262 = scalar_select %p261, %s260, 5
        %s263 = smul.addr %s262, 8
        %s264 = scalar_lea.vmem %s0, %s263
        %s265 = smul.u32 2, %s14
      $region40: #{_forward.3} parent=35 // pred_fallthru
        _
      // Predicated region
      $region41: #{_forward.3} parent=35 // pred_check
        %p266 = pneg %p60
      $region42: #{_forward.3} parent=35 // pred_check_branch
        %268 = sbr.rel (%p266) target = $region44
      $region43: #{_forward.3} parent=35 // pred_region
        %s269 = smul.u32 2, %s14
        %p270 = scmp.lt.s32.totalorder %s269, 5
        %s271 = scalar_select %p270, %s269, 5
        %s272 = smul.addr %s271, 8
        %s273 = scalar_lea.vmem %s1, %s272
        %s274 = smul.u32 2, %s14
      $region44: #{_forward.3} parent=35 // pred_fallthru
        _
      // Predicated region
      $region45: #{_forward.3} parent=35 // pred_check
        %p275 = pneg %p86
      $region46: #{_forward.3} parent=35 // pred_check_branch
        %277 = sbr.rel (%p275) target = $region48
      $region47: #{_forward.3} parent=35 // pred_region
        %s278 = smul.u32 2, %s14
        %p279 = scmp.lt.s32.totalorder %s278, 5
        %s280 = scalar_select %p279, %s278, 5
        %s281 = smul.addr %s280, 8
        %s282 = scalar_lea.vmem %s2, %s281
        %s283 = smul.u32 2, %s14
      $region48: #{_forward.3} parent=35 // pred_fallthru
        _
    $region36: #{_forward.3} parent=5 // pred_fallthru
      _
    %p284 = scmp.le.s32.totalorder 1, %s14
    %p285 = scmp.lt.s32.totalorder %s14, 4
    %p286 = pnand %p284, %p285
    %p287 = pneg %p286
    // Predicated region
    $region49: #{_forward.3} parent=5 // pred_check
      _
    $region50: #{_forward.3} parent=5 // pred_check_branch
      %289 = sbr.rel (%p286) target = $region52
    $region51: #{_forward.3} parent=5 // pred_region
      %s290 = ssub.s32 %s14, 1
      %s291 = smul.u32 2, %s19
      %p292 = scmp.lt.s32.totalorder %s291, 5
      %s293 = scalar_select %p292, %s291, 5
      %s294 = smul.addr %s293, 8
      %s295 = scalar_lea.vmem %s0, %s294
      %p296 = pneg %p40
      %p297 = pneg %p37
      %s298 = smul.u32 2, %s19
      %p299 = scmp.lt.s32.totalorder %s298, 5
      %s300 = scalar_select %p299, %s298, 5
      %s301 = smul.addr %s300, 8
      %s302 = scalar_lea.vmem %s1, %s301
      %p303 = pneg %p66
      %p304 = pneg %p63
      %s305 = smul.u32 2, %s19
      %p306 = scmp.lt.s32.totalorder %s305, 5
      %s307 = scalar_select %p306, %s305, 5
      %s308 = smul.addr %s307, 8
      %s309 = scalar_lea.vmem %s2, %s308
      %p310 = pneg %p92
      %p311 = pneg %p89
      %p312 = pneg %p113
      %p313 = pneg %p110
      %p314 = pneg %p134
      %p315 = pneg %p131
      %p316 = pneg %p155
      %p317 = pneg %p152
      %p318 = pneg %p176
      %p319 = pneg %p173
      %p320 = pneg %p197
      %p321 = pneg %p194
      %p322 = pneg %p223
      %p323 = pneg %p220
      %s324 = smul.u32 2, %s19
      %p325 = scmp.lt.s32.totalorder %s324, 5
      %s326 = scalar_select %p325, %s324, 5
      %s327 = smul.addr %s326, 8
      %s328 = scalar_lea.vmem %s8, %s327
      %s329 = smul.u32 2, %s19
      %p330 = scmp.lt.s32.totalorder %s329, 5
      %s331 = scalar_select %p330, %s329, 5
      %s332 = smul.addr %s331, 8
      %s333 = scalar_lea.vmem %s0, %s332
      %s334 = smul.u32 2, %s19
      %s335 = smul.u32 2, %s19
      %p336 = scmp.lt.s32.totalorder %s335, 5
      %s337 = scalar_select %p336, %s335, 5
      %s338 = smul.addr %s337, 8
      %s339 = scalar_lea.vmem %s1, %s338
      %s340 = smul.u32 2, %s19
      %s341 = smul.u32 2, %s19
      %p342 = scmp.lt.s32.totalorder %s341, 5
      %s343 = scalar_select %p342, %s341, 5
      %s344 = smul.addr %s343, 8
      %s345 = scalar_lea.vmem %s2, %s344
      %s346 = smul.u32 2, %s19
      %s347 = smul.u32 2, %s19
      %p348 = scmp.lt.s32.totalorder %s347, 5
      %s349 = scalar_select %p348, %s347, 5
      %s350 = smul.addr %s349, 8
      %s351 = scalar_lea.vmem %s8, %s350
      %s352 = smul.u32 2, %s19
      %v353 = vld [vmem:[%s333] sm:$0xff]
      %v354 = vld [vmem:[%s333 + $0x8] sm:$0xff]
      %v355 = vld [vmem:[%s339] sm:$0xff]
      %v356 = vld [vmem:[%s339 + $0x8] sm:$0xff]
      %v357 = vld [vmem:[%s345] sm:$0xff]
      %v358 = vld [vmem:[%s345 + $0x8] sm:$0xff]
      %v359 = vld [vmem:[%s5] sm:$0x1]
      %360 = vset.pattern.permute.xlu0 0
      %361 = vperm.xlu0 %360, %v357
      %v362 = vpop.permute.xlu0 %361
      %363 = vset.pattern.permute.xlu0 0
      %364 = vperm.xlu0 %363, %v358
      %v365 = vpop.permute.xlu0 %364
      %v366 = vlaneseq
      %v367 = vshrl.u32 %v366, 7
      %v368 = vsub.s32 0, %v367
      %v369 = vrot.slane %v359, %v368
      %vm370 = vcmp.eq.s32.totalorder %v362, %v369
      %vm371 = vcmp.eq.s32.totalorder %v365, %v369
      %v372 = vld [vmem:[%s4] sm:$0x1]
      %v373 = vld [vmem:[%s6] sm:$0xff]
      %v374 = vld [vmem:[%s6 + $0x8] sm:$0xff]
      %v375 = vld [vmem:[%s6 + $0x10] sm:$0xff]
      %v376 = vld [vmem:[%s6 + $0x18] sm:$0xff]
      %v377 = vld [vmem:[%s6 + $0x20] sm:$0xff]
      %v378 = vld [vmem:[%s6 + $0x28] sm:$0xff]
      %v379 = vld [vmem:[%s7 + $0x8] sm:$0xff]
      %v380 = vld [vmem:[%s7 + $0x10] sm:$0xff]
      %v381 = vld [vmem:[%s7 + $0x18] sm:$0xff]
      %v382 = vld [vmem:[%s7 + $0x20] sm:$0xff]
      %v383 = vld [vmem:[%s7] sm:$0x1]
      %v384 = vld [vmem:[%s7 + $0x28] sm:$0xff]
      %v385 = vld [vmem:[%s7 + $0x30] sm:$0xff]
      %v386 = vld [vmem:[%s7 + $0x38] sm:$0xff]
      %v387 = vld [vmem:[%s7 + $0x40] sm:$0xff]
      %v388 = vld [vmem:[%s7 + $0x1] sm:$0x1]
      %v389 = vld [vmem:[%s3] sm:$0xff]
      %vm390 = vcmask 64512
      %v392 = vsel %vm390, %v353, 0
      %v395 = vsel %vm390, %v354, 0
      %397 = vmatprep.subr.mxu0 0.0
      %398 = vmatpush1.msra.mxu0 0.0
      %399 = vmatprep.subr.mxu0 0.0
      %400 = vmatpush1.msra.mxu0 0.0
      %401 = vmatprep.subr.mxu0 0.0
      %402 = vmatpush1.msra.mxu0 0.0
      %403 = vmatprep.subr.mxu0 0.0
      %404 = vmatpush1.msra.mxu0 0.0
      %405 = vmatprep.subr.mxu0 0.0
      %406 = vmatpush1.msra.mxu0 0.0
      %407 = vmatprep.subr.mxu0 0.0
      %408 = vmatpush1.msra.mxu0 0.0
      %409 = vmatprep.subr.mxu0 0.0
      %410 = vmatpush1.msra.mxu0 0.0
      %411 = vmatprep.subr.mxu0 0.0
      %412 = vmatpush1.msra.mxu0 0.0
      %413 = vmatprep.subr.mxu0 0.0
      %414 = vmatpush1.msra.mxu0 0.0
      %415 = vmatprep.subr.mxu0 0.0
      %416 = vmatpush1.msra.mxu0 0.0
      %417 = vmatprep.subr.mxu0 0.0
      %418 = vmatpush1.msra.mxu0 0.0
      %419 = vmatprep.subr.mxu0 0.0
      %420 = vmatpush1.msra.mxu0 0.0
      %421 = vmatprep.subr.mxu0 0.0
      %422 = vmatpush1.msra.mxu0 0.0
      %423 = vmatprep.subr.mxu0 0.0
      %424 = vmatpush1.msra.mxu0 0.0
      %425 = vmatprep.subr.mxu0 0.0
      %426 = vmatpush1.msra.mxu0 0.0
      %427 = vmatprep.subr.mxu0 0.0
      %428 = vmatpush1.msra.mxu0 %v389
      %429 = vmatprep.subr.mxu0 0.0
      %430 = vmatpush2.msra.mxu0 0.0
      %431 = vmatprep.subr.mxu0 0.0
      %432 = vmatpush2.msra.mxu0 0.0
      %433 = vmatprep.subr.mxu0 0.0
      %434 = vmatpush2.msra.mxu0 0.0
      %435 = vmatprep.subr.mxu0 0.0
      %436 = vmatpush2.msra.mxu0 0.0
      %437 = vmatprep.subr.mxu0 0.0
      %438 = vmatpush2.msra.mxu0 0.0
      %439 = vmatprep.subr.mxu0 0.0
      %440 = vmatpush2.msra.mxu0 0.0
      %441 = vmatprep.subr.mxu0 0.0
      %442 = vmatpush2.msra.mxu0 0.0
      %443 = vmatprep.subr.mxu0 0.0
      %444 = vmatpush2.msra.mxu0 0.0
      %445 = vmatprep.subr.mxu0 0.0
      %446 = vmatpush2.msra.mxu0 0.0
      %447 = vmatprep.subr.mxu0 0.0
      %448 = vmatpush2.msra.mxu0 0.0
      %449 = vmatprep.subr.mxu0 0.0
      %450 = vmatpush2.msra.mxu0 0.0
      %451 = vmatprep.subr.mxu0 0.0
      %452 = vmatpush2.msra.mxu0 0.0
      %453 = vmatprep.subr.mxu0 0.0
      %454 = vmatpush2.msra.mxu0 0.0
      %455 = vmatprep.subr.mxu0 0.0
      %456 = vmatpush2.msra.mxu0 0.0
      %457 = vmatprep.subr.mxu0 0.0
      %458 = vmatpush2.msra.mxu0 0.0
      %459 = vmatprep.subr.mxu0 0.0
      %460 = vmatpush2.msra.mxu0 0.0
      %461 = vmatprep.mubr.f32.mxu0 0.0
      %462 = vmatmul.mubr.f32.gmra.mxu0 %v392
      %v463 = vpop.f32.mrf.mxu0
      %v464 = vadd.f32 0.0, %v463
      %v465 = vpop.f32.mrf.mxu0
      %466 = vmatprep.mubr.f32.mxu0 0.0
      %467 = vmatmul.mubr.f32.gmra.mxu0 %v395
      %v468 = vpop.f32.mrf.mxu0
      %v469 = vadd.f32 0.0, %v468
      %v470 = vpop.f32.mrf.mxu0
      %471 = vdwg.mxu0
      %v472 = vmul.f32 %v464, 2.0
      %v473 = vmul.f32 %v469, 2.0
      %v475 = vlaneseq
      %v476 = vshrl.u32 %v475, 7
      %v477 = vsub.s32 0, %v476
      %v478 = vrot.slane %v372, %v477
      %v480 = vsub.f32 %v478, %v472
      %v481 = vsub.f32 %v478, %v473
      %v482 = vsel %vm370, %v480, 1e+30
      %v483 = vsel %vm371, %v481, 1e+30
      %v484 = vlaneseq
      %v485 = vand.u32 %v484, 127
      %vm486 = vcmask 392192
      %v487 = vsel %vm486, %v482, inf
      %488 = vmin.xlane.f32.xlu0 %v487
      %v489 = vpop.xlane.xlu0 %488
      %v490 = vsel %vm486, %v483, inf
      %491 = vmin.xlane.f32.xlu0 %v490
      %v492 = vpop.xlane.xlu0 %491
      %vm493 = vcmp.le.f32.partialorder %v482, %v489
      %vm494 = vcmp.le.f32.partialorder %v483, %v492
      %v495 = vsel %vm493, %v485, 48
      %v496 = vsel %vm494, %v485, 48
      %v497 = vsel %vm486, %v495, 2147483647
      %v498 = vand.u32 %v497, 65535
      %v499 = vshra.s32 %v497, 16
      %v500 = vcvt.s32.f32 %v498
      %v501 = vcvt.s32.f32 %v499
      %502 = vmin.xlane.f32.xlu0 %v501
      %v503 = vpop.xlane.xlu0 %502
      %vm504 = vcmp.eq.f32.partialorder %v501, %v503
      %v505 = vsel %vm504, %v500, inf
      %506 = vmin.xlane.f32.xlu0 %v505
      %v507 = vpop.xlane.xlu0 %506
      %v508 = vcvt.f32.s32 %v507
      %v509 = vcvt.f32.s32 %v503
      %v510 = vshll.u32 %v509, 16
      %v511 = vadd.s32 %v510, %v508
      %v512 = vsel %vm486, %v496, 2147483647
      %v513 = vand.u32 %v512, 65535
      %v514 = vshra.s32 %v512, 16
      %v515 = vcvt.s32.f32 %v513
      %v516 = vcvt.s32.f32 %v514
      %517 = vmin.xlane.f32.xlu0 %v516
      %v518 = vpop.xlane.xlu0 %517
      %vm519 = vcmp.eq.f32.partialorder %v516, %v518
      %v520 = vsel %vm519, %v515, inf
      %521 = vmin.xlane.f32.xlu0 %v520
      %v522 = vpop.xlane.xlu0 %521
      %v523 = vcvt.f32.s32 %v522
      %v524 = vcvt.f32.s32 %v518
      %v525 = vshll.u32 %v524, 16
      %v526 = vadd.s32 %v525, %v523
      %vm527 = vcmp.eq.s32.totalorder %v485, %v511
      %vm528 = vcmp.eq.s32.totalorder %v485, %v526
      %v529 = vsel %vm527, 1e+30, %v482
      %v530 = vsel %vm528, 1e+30, %v483
      %v531 = vsel %vm527, 1, 0
      %v532 = vsel %vm528, 1, 0
      %v533 = vcvt.s32.f32 %v531
      %v534 = vcvt.s32.f32 %v532
      %v536 = vsel %vm486, %v533, 0
      %v539 = vsel %vm486, %v534, 0
      %541 = vmatprep.subr.mxu0 0.0
      %542 = vmatpush1.msra.mxu0 0.0
      %543 = vmatprep.subr.mxu0 0.0
      %544 = vmatpush1.msra.mxu0 0.0
      %545 = vmatprep.subr.mxu0 0.0
      %546 = vmatpush1.msra.mxu0 0.0
      %547 = vmatprep.subr.mxu0 0.0
      %548 = vmatpush1.msra.mxu0 0.0
      %549 = vmatprep.subr.mxu0 0.0
      %550 = vmatpush1.msra.mxu0 0.0
      %551 = vmatprep.subr.mxu0 0.0
      %552 = vmatpush1.msra.mxu0 0.0
      %553 = vmatprep.subr.mxu0 0.0
      %554 = vmatpush1.msra.mxu0 0.0
      %555 = vmatprep.subr.mxu0 0.0
      %556 = vmatpush1.msra.mxu0 0.0
      %557 = vmatprep.subr.mxu0 0.0
      %558 = vmatpush1.msra.mxu0 0.0
      %559 = vmatprep.subr.mxu0 0.0
      %560 = vmatpush1.msra.mxu0 0.0
      %561 = vmatprep.subr.mxu0 0.0
      %562 = vmatpush1.msra.mxu0 %v378
      %563 = vmatprep.subr.mxu0 0.0
      %564 = vmatpush1.msra.mxu0 %v377
      %565 = vmatprep.subr.mxu0 0.0
      %566 = vmatpush1.msra.mxu0 %v376
      %567 = vmatprep.subr.mxu0 0.0
      %568 = vmatpush1.msra.mxu0 %v375
      %569 = vmatprep.subr.mxu0 0.0
      %570 = vmatpush1.msra.mxu0 %v374
      %571 = vmatprep.subr.mxu0 0.0
      %572 = vmatpush1.msra.mxu0 %v373
      %573 = vmatprep.subr.mxu0 0.0
      %574 = vmatpush2.msra.mxu0 0.0
      %575 = vmatprep.subr.mxu0 0.0
      %576 = vmatpush2.msra.mxu0 0.0
      %577 = vmatprep.subr.mxu0 0.0
      %578 = vmatpush2.msra.mxu0 0.0
      %579 = vmatprep.subr.mxu0 0.0
      %580 = vmatpush2.msra.mxu0 0.0
      %581 = vmatprep.subr.mxu0 0.0
      %582 = vmatpush2.msra.mxu0 0.0
      %583 = vmatprep.subr.mxu0 0.0
      %584 = vmatpush2.msra.mxu0 0.0
      %585 = vmatprep.subr.mxu0 0.0
      %586 = vmatpush2.msra.mxu0 0.0
      %587 = vmatprep.subr.mxu0 0.0
      %588 = vmatpush2.msra.mxu0 0.0
      %589 = vmatprep.subr.mxu0 0.0
      %590 = vmatpush2.msra.mxu0 0.0
      %591 = vmatprep.subr.mxu0 0.0
      %592 = vmatpush2.msra.mxu0 0.0
      %593 = vmatprep.subr.mxu0 0.0
      %594 = vmatpush2.msra.mxu0 0.0
      %595 = vmatprep.subr.mxu0 0.0
      %596 = vmatpush2.msra.mxu0 0.0
      %597 = vmatprep.subr.mxu0 0.0
      %598 = vmatpush2.msra.mxu0 0.0
      %599 = vmatprep.subr.mxu0 0.0
      %600 = vmatpush2.msra.mxu0 0.0
      %601 = vmatprep.subr.mxu0 0.0
      %602 = vmatpush2.msra.mxu0 0.0
      %603 = vmatprep.subr.mxu0 0.0
      %604 = vmatpush2.msra.mxu0 0.0
      %605 = vmatprep.mubr.f32.mxu0 0.0
      %606 = vmatmul.mubr.f32.gmra.mxu0 %v536
      %v607 = vpop.f32.mrf.mxu0
      %v608 = vadd.f32 0.0, %v607
      %v609 = vpop.f32.mrf.mxu0
      %610 = vmatprep.mubr.f32.mxu0 0.0
      %611 = vmatmul.mubr.f32.gmra.mxu0 %v539
      %v612 = vpop.f32.mrf.mxu0
      %v613 = vadd.f32 0.0, %v612
      %v614 = vpop.f32.mrf.mxu0
      %615 = vdwg.mxu0
      %v616 = vadd.f32 %v355, %v608
      %v617 = vadd.f32 %v356, %v613
      %v618 = vmax.f32 %v616, 0.0
      %v619 = vmax.f32 %v617, 0.0
      %v620 = vlaneseq
      %v621 = vshrl.u32 %v620, 7
      %v622 = vsub.s32 0, %v621
      %v623 = vrot.slane %v383, %v622
      %vm624 = vcmask 261120
      %v626 = vsel %vm624, %v618, 0
      %v629 = vsel %vm624, %v619, 0
      %631 = vmatprep.subr.mxu0 0.0
      %632 = vmatpush1.msra.mxu0 0.0
      %633 = vmatprep.subr.mxu0 0.0
      %634 = vmatpush1.msra.mxu0 0.0
      %635 = vmatprep.subr.mxu0 0.0
      %636 = vmatpush1.msra.mxu0 0.0
      %637 = vmatprep.subr.mxu0 0.0
      %638 = vmatpush1.msra.mxu0 0.0
      %639 = vmatprep.subr.mxu0 0.0
      %640 = vmatpush1.msra.mxu0 0.0
      %641 = vmatprep.subr.mxu0 0.0
      %642 = vmatpush1.msra.mxu0 0.0
      %643 = vmatprep.subr.mxu0 0.0
      %644 = vmatpush1.msra.mxu0 0.0
      %645 = vmatprep.subr.mxu0 0.0
      %646 = vmatpush1.msra.mxu0 0.0
      %647 = vmatprep.subr.mxu0 0.0
      %648 = vmatpush1.msra.mxu0 0.0
      %649 = vmatprep.subr.mxu0 0.0
      %650 = vmatpush1.msra.mxu0 0.0
      %651 = vmatprep.subr.mxu0 0.0
      %652 = vmatpush1.msra.mxu0 0.0
      %653 = vmatprep.subr.mxu0 0.0
      %654 = vmatpush1.msra.mxu0 0.0
      %655 = vmatprep.subr.mxu0 0.0
      %656 = vmatpush1.msra.mxu0 %v382
      %657 = vmatprep.subr.mxu0 0.0
      %658 = vmatpush1.msra.mxu0 %v381
      %659 = vmatprep.subr.mxu0 0.0
      %660 = vmatpush1.msra.mxu0 %v380
      %661 = vmatprep.subr.mxu0 0.0
      %662 = vmatpush1.msra.mxu0 %v379
      %663 = vmatprep.subr.mxu0 0.0
      %664 = vmatpush2.msra.mxu0 0.0
      %665 = vmatprep.subr.mxu0 0.0
      %666 = vmatpush2.msra.mxu0 0.0
      %667 = vmatprep.subr.mxu0 0.0
      %668 = vmatpush2.msra.mxu0 0.0
      %669 = vmatprep.subr.mxu0 0.0
      %670 = vmatpush2.msra.mxu0 0.0
      %671 = vmatprep.subr.mxu0 0.0
      %672 = vmatpush2.msra.mxu0 0.0
      %673 = vmatprep.subr.mxu0 0.0
      %674 = vmatpush2.msra.mxu0 0.0
      %675 = vmatprep.subr.mxu0 0.0
      %676 = vmatpush2.msra.mxu0 0.0
      %677 = vmatprep.subr.mxu0 0.0
      %678 = vmatpush2.msra.mxu0 0.0
      %679 = vmatprep.subr.mxu0 0.0
      %680 = vmatpush2.msra.mxu0 0.0
      %681 = vmatprep.subr.mxu0 0.0
      %682 = vmatpush2.msra.mxu0 0.0
      %683 = vmatprep.subr.mxu0 0.0
      %684 = vmatpush2.msra.mxu0 0.0
      %685 = vmatprep.subr.mxu0 0.0
      %686 = vmatpush2.msra.mxu0 0.0
      %687 = vmatprep.subr.mxu0 0.0
      %688 = vmatpush2.msra.mxu0 0.0
      %689 = vmatprep.subr.mxu0 0.0
      %690 = vmatpush2.msra.mxu0 0.0
      %691 = vmatprep.subr.mxu0 0.0
      %692 = vmatpush2.msra.mxu0 0.0
      %693 = vmatprep.subr.mxu0 0.0
      %694 = vmatpush2.msra.mxu0 0.0
      %695 = vmatprep.mubr.f32.mxu0 0.0
      %696 = vmatmul.mubr.f32.gmra.mxu0 %v626
      %v697 = vpop.f32.mrf.mxu0
      %v698 = vadd.f32 %v623, %v697
      %v699 = vpop.f32.mrf.mxu0
      %700 = vmatprep.mubr.f32.mxu0 0.0
      %701 = vmatmul.mubr.f32.gmra.mxu0 %v629
      %v702 = vpop.f32.mrf.mxu0
      %v703 = vadd.f32 %v623, %v702
      %v704 = vpop.f32.mrf.mxu0
      %705 = vdwg.mxu0
      %v706 = vmax.f32 %v698, 0.0
      %v707 = vmax.f32 %v703, 0.0
      %v708 = vlaneseq
      %v709 = vshrl.u32 %v708, 7
      %v710 = vsub.s32 0, %v709
      %v711 = vrot.slane %v388, %v710
      %v713 = vsel %vm624, %v706, 0
      %v716 = vsel %vm624, %v707, 0
      %718 = vmatprep.subr.mxu0 0.0
      %719 = vmatpush1.msra.mxu0 0.0
      %720 = vmatprep.subr.mxu0 0.0
      %721 = vmatpush1.msra.mxu0 0.0
      %722 = vmatprep.subr.mxu0 0.0
      %723 = vmatpush1.msra.mxu0 0.0
      %724 = vmatprep.subr.mxu0 0.0
      %725 = vmatpush1.msra.mxu0 0.0
      %726 = vmatprep.subr.mxu0 0.0
      %727 = vmatpush1.msra.mxu0 0.0
      %728 = vmatprep.subr.mxu0 0.0
      %729 = vmatpush1.msra.mxu0 0.0
      %730 = vmatprep.subr.mxu0 0.0
      %731 = vmatpush1.msra.mxu0 0.0
      %732 = vmatprep.subr.mxu0 0.0
      %733 = vmatpush1.msra.mxu0 0.0
      %734 = vmatprep.subr.mxu0 0.0
      %735 = vmatpush1.msra.mxu0 0.0
      %736 = vmatprep.subr.mxu0 0.0
      %737 = vmatpush1.msra.mxu0 0.0
      %738 = vmatprep.subr.mxu0 0.0
      %739 = vmatpush1.msra.mxu0 0.0
      %740 = vmatprep.subr.mxu0 0.0
      %741 = vmatpush1.msra.mxu0 0.0
      %742 = vmatprep.subr.mxu0 0.0
      %743 = vmatpush1.msra.mxu0 %v387
      %744 = vmatprep.subr.mxu0 0.0
      %745 = vmatpush1.msra.mxu0 %v386
      %746 = vmatprep.subr.mxu0 0.0
      %747 = vmatpush1.msra.mxu0 %v385
      %748 = vmatprep.subr.mxu0 0.0
      %749 = vmatpush1.msra.mxu0 %v384
      %750 = vmatprep.subr.mxu0 0.0
      %751 = vmatpush2.msra.mxu0 0.0
      %752 = vmatprep.subr.mxu0 0.0
      %753 = vmatpush2.msra.mxu0 0.0
      %754 = vmatprep.subr.mxu0 0.0
      %755 = vmatpush2.msra.mxu0 0.0
      %756 = vmatprep.subr.mxu0 0.0
      %757 = vmatpush2.msra.mxu0 0.0
      %758 = vmatprep.subr.mxu0 0.0
      %759 = vmatpush2.msra.mxu0 0.0
      %760 = vmatprep.subr.mxu0 0.0
      %761 = vmatpush2.msra.mxu0 0.0
      %762 = vmatprep.subr.mxu0 0.0
      %763 = vmatpush2.msra.mxu0 0.0
      %764 = vmatprep.subr.mxu0 0.0
      %765 = vmatpush2.msra.mxu0 0.0
      %766 = vmatprep.subr.mxu0 0.0
      %767 = vmatpush2.msra.mxu0 0.0
      %768 = vmatprep.subr.mxu0 0.0
      %769 = vmatpush2.msra.mxu0 0.0
      %770 = vmatprep.subr.mxu0 0.0
      %771 = vmatpush2.msra.mxu0 0.0
      %772 = vmatprep.subr.mxu0 0.0
      %773 = vmatpush2.msra.mxu0 0.0
      %774 = vmatprep.subr.mxu0 0.0
      %775 = vmatpush2.msra.mxu0 0.0
      %776 = vmatprep.subr.mxu0 0.0
      %777 = vmatpush2.msra.mxu0 0.0
      %778 = vmatprep.subr.mxu0 0.0
      %779 = vmatpush2.msra.mxu0 0.0
      %780 = vmatprep.subr.mxu0 0.0
      %781 = vmatpush2.msra.mxu0 0.0
      %782 = vmatprep.mubr.f32.mxu0 0.0
      %783 = vmatmul.mubr.f32.gmra.mxu0 %v713
      %v784 = vpop.f32.mrf.mxu0
      %v785 = vadd.f32 %v711, %v784
      %v786 = vpop.f32.mrf.mxu0
      %787 = vmatprep.mubr.f32.mxu0 0.0
      %788 = vmatmul.mubr.f32.gmra.mxu0 %v716
      %v789 = vpop.f32.mrf.mxu0
      %v790 = vadd.f32 %v711, %v789
      %v791 = vpop.f32.mrf.mxu0
      %792 = vdwg.mxu0
      %v793 = vadd.f32 %v785, 0.0
      %v794 = vadd.f32 %v790, 0.0
      %v795 = vsel %vm486, %v529, inf
      %796 = vmin.xlane.f32.xlu0 %v795
      %v797 = vpop.xlane.xlu0 %796
      %v798 = vsel %vm486, %v530, inf
      %799 = vmin.xlane.f32.xlu0 %v798
      %v800 = vpop.xlane.xlu0 %799
      %vm801 = vcmp.le.f32.partialorder %v529, %v797
      %vm802 = vcmp.le.f32.partialorder %v530, %v800
      %v803 = vsel %vm801, %v485, 48
      %v804 = vsel %vm802, %v485, 48
      %v805 = vsel %vm486, %v803, 2147483647
      %v806 = vand.u32 %v805, 65535
      %v807 = vshra.s32 %v805, 16
      %v808 = vcvt.s32.f32 %v806
      %v809 = vcvt.s32.f32 %v807
      %810 = vmin.xlane.f32.xlu0 %v809
      %v811 = vpop.xlane.xlu0 %810
      %vm812 = vcmp.eq.f32.partialorder %v809, %v811
      %v813 = vsel %vm812, %v808, inf
      %814 = vmin.xlane.f32.xlu0 %v813
      %v815 = vpop.xlane.xlu0 %814
      %v816 = vcvt.f32.s32 %v815
      %v817 = vcvt.f32.s32 %v811
      %v818 = vshll.u32 %v817, 16
      %v819 = vadd.s32 %v818, %v816
      %v820 = vsel %vm486, %v804, 2147483647
      %v821 = vand.u32 %v820, 65535
      %v822 = vshra.s32 %v820, 16
      %v823 = vcvt.s32.f32 %v821
      %v824 = vcvt.s32.f32 %v822
      %825 = vmin.xlane.f32.xlu0 %v824
      %v826 = vpop.xlane.xlu0 %825
      %vm827 = vcmp.eq.f32.partialorder %v824, %v826
      %v828 = vsel %vm827, %v823, inf
      %829 = vmin.xlane.f32.xlu0 %v828
      %v830 = vpop.xlane.xlu0 %829
      %v831 = vcvt.f32.s32 %v830
      %v832 = vcvt.f32.s32 %v826
      %v833 = vshll.u32 %v832, 16
      %v834 = vadd.s32 %v833, %v831
      %vm835 = vcmp.eq.s32.totalorder %v485, %v819
      %vm836 = vcmp.eq.s32.totalorder %v485, %v834
      %v837 = vsel %vm835, 1e+30, %v529
      %v838 = vsel %vm836, 1e+30, %v530
      %v839 = vsel %vm835, 1, 0
      %v840 = vsel %vm836, 1, 0
      %v841 = vcvt.s32.f32 %v839
      %v842 = vcvt.s32.f32 %v840
      %v844 = vsel %vm486, %v841, 0
      %v847 = vsel %vm486, %v842, 0
      %849 = vmatprep.subr.mxu0 0.0
      %850 = vmatpush1.msra.mxu0 0.0
      %851 = vmatprep.subr.mxu0 0.0
      %852 = vmatpush1.msra.mxu0 0.0
      %853 = vmatprep.subr.mxu0 0.0
      %854 = vmatpush1.msra.mxu0 0.0
      %855 = vmatprep.subr.mxu0 0.0
      %856 = vmatpush1.msra.mxu0 0.0
      %857 = vmatprep.subr.mxu0 0.0
      %858 = vmatpush1.msra.mxu0 0.0
      %859 = vmatprep.subr.mxu0 0.0
      %860 = vmatpush1.msra.mxu0 0.0
      %861 = vmatprep.subr.mxu0 0.0
      %862 = vmatpush1.msra.mxu0 0.0
      %863 = vmatprep.subr.mxu0 0.0
      %864 = vmatpush1.msra.mxu0 0.0
      %865 = vmatprep.subr.mxu0 0.0
      %866 = vmatpush1.msra.mxu0 0.0
      %867 = vmatprep.subr.mxu0 0.0
      %868 = vmatpush1.msra.mxu0 0.0
      %869 = vmatprep.subr.mxu0 0.0
      %870 = vmatpush1.msra.mxu0 %v378
      %871 = vmatprep.subr.mxu0 0.0
      %872 = vmatpush1.msra.mxu0 %v377
      %873 = vmatprep.subr.mxu0 0.0
      %874 = vmatpush1.msra.mxu0 %v376
      %875 = vmatprep.subr.mxu0 0.0
      %876 = vmatpush1.msra.mxu0 %v375
      %877 = vmatprep.subr.mxu0 0.0
      %878 = vmatpush1.msra.mxu0 %v374
      %879 = vmatprep.subr.mxu0 0.0
      %880 = vmatpush1.msra.mxu0 %v373
      %881 = vmatprep.subr.mxu0 0.0
      %882 = vmatpush2.msra.mxu0 0.0
      %883 = vmatprep.subr.mxu0 0.0
      %884 = vmatpush2.msra.mxu0 0.0
      %885 = vmatprep.subr.mxu0 0.0
      %886 = vmatpush2.msra.mxu0 0.0
      %887 = vmatprep.subr.mxu0 0.0
      %888 = vmatpush2.msra.mxu0 0.0
      %889 = vmatprep.subr.mxu0 0.0
      %890 = vmatpush2.msra.mxu0 0.0
      %891 = vmatprep.subr.mxu0 0.0
      %892 = vmatpush2.msra.mxu0 0.0
      %893 = vmatprep.subr.mxu0 0.0
      %894 = vmatpush2.msra.mxu0 0.0
      %895 = vmatprep.subr.mxu0 0.0
      %896 = vmatpush2.msra.mxu0 0.0
      %897 = vmatprep.subr.mxu0 0.0
      %898 = vmatpush2.msra.mxu0 0.0
      %899 = vmatprep.subr.mxu0 0.0
      %900 = vmatpush2.msra.mxu0 0.0
      %901 = vmatprep.subr.mxu0 0.0
      %902 = vmatpush2.msra.mxu0 0.0
      %903 = vmatprep.subr.mxu0 0.0
      %904 = vmatpush2.msra.mxu0 0.0
      %905 = vmatprep.subr.mxu0 0.0
      %906 = vmatpush2.msra.mxu0 0.0
      %907 = vmatprep.subr.mxu0 0.0
      %908 = vmatpush2.msra.mxu0 0.0
      %909 = vmatprep.subr.mxu0 0.0
      %910 = vmatpush2.msra.mxu0 0.0
      %911 = vmatprep.subr.mxu0 0.0
      %912 = vmatpush2.msra.mxu0 0.0
      %913 = vmatprep.mubr.f32.mxu0 0.0
      %914 = vmatmul.mubr.f32.gmra.mxu0 %v844
      %v915 = vpop.f32.mrf.mxu0
      %v916 = vadd.f32 0.0, %v915
      %v917 = vpop.f32.mrf.mxu0
      %918 = vmatprep.mubr.f32.mxu0 0.0
      %919 = vmatmul.mubr.f32.gmra.mxu0 %v847
      %v920 = vpop.f32.mrf.mxu0
      %v921 = vadd.f32 0.0, %v920
      %v922 = vpop.f32.mrf.mxu0
      %923 = vdwg.mxu0
      %v924 = vadd.f32 %v355, %v916
      %v925 = vadd.f32 %v356, %v921
      %v926 = vmax.f32 %v924, 0.0
      %v927 = vmax.f32 %v925, 0.0
      %v929 = vsel %vm624, %v926, 0
      %v932 = vsel %vm624, %v927, 0
      %934 = vmatprep.subr.mxu0 0.0
      %935 = vmatpush1.msra.mxu0 0.0
      %936 = vmatprep.subr.mxu0 0.0
      %937 = vmatpush1.msra.mxu0 0.0
      %938 = vmatprep.subr.mxu0 0.0
      %939 = vmatpush1.msra.mxu0 0.0
      %940 = vmatprep.subr.mxu0 0.0
      %941 = vmatpush1.msra.mxu0 0.0
      %942 = vmatprep.subr.mxu0 0.0
      %943 = vmatpush1.msra.mxu0 0.0
      %944 = vmatprep.subr.mxu0 0.0
      %945 = vmatpush1.msra.mxu0 0.0
      %946 = vmatprep.subr.mxu0 0.0
      %947 = vmatpush1.msra.mxu0 0.0
      %948 = vmatprep.subr.mxu0 0.0
      %949 = vmatpush1.msra.mxu0 0.0
      %950 = vmatprep.subr.mxu0 0.0
      %951 = vmatpush1.msra.mxu0 0.0
      %952 = vmatprep.subr.mxu0 0.0
      %953 = vmatpush1.msra.mxu0 0.0
      %954 = vmatprep.subr.mxu0 0.0
      %955 = vmatpush1.msra.mxu0 0.0
      %956 = vmatprep.subr.mxu0 0.0
      %957 = vmatpush1.msra.mxu0 0.0
      %958 = vmatprep.subr.mxu0 0.0
      %959 = vmatpush1.msra.mxu0 %v382
      %960 = vmatprep.subr.mxu0 0.0
      %961 = vmatpush1.msra.mxu0 %v381
      %962 = vmatprep.subr.mxu0 0.0
      %963 = vmatpush1.msra.mxu0 %v380
      %964 = vmatprep.subr.mxu0 0.0
      %965 = vmatpush1.msra.mxu0 %v379
      %966 = vmatprep.subr.mxu0 0.0
      %967 = vmatpush2.msra.mxu0 0.0
      %968 = vmatprep.subr.mxu0 0.0
      %969 = vmatpush2.msra.mxu0 0.0
      %970 = vmatprep.subr.mxu0 0.0
      %971 = vmatpush2.msra.mxu0 0.0
      %972 = vmatprep.subr.mxu0 0.0
      %973 = vmatpush2.msra.mxu0 0.0
      %974 = vmatprep.subr.mxu0 0.0
      %975 = vmatpush2.msra.mxu0 0.0
      %976 = vmatprep.subr.mxu0 0.0
      %977 = vmatpush2.msra.mxu0 0.0
      %978 = vmatprep.subr.mxu0 0.0
      %979 = vmatpush2.msra.mxu0 0.0
      %980 = vmatprep.subr.mxu0 0.0
      %981 = vmatpush2.msra.mxu0 0.0
      %982 = vmatprep.subr.mxu0 0.0
      %983 = vmatpush2.msra.mxu0 0.0
      %984 = vmatprep.subr.mxu0 0.0
      %985 = vmatpush2.msra.mxu0 0.0
      %986 = vmatprep.subr.mxu0 0.0
      %987 = vmatpush2.msra.mxu0 0.0
      %988 = vmatprep.subr.mxu0 0.0
      %989 = vmatpush2.msra.mxu0 0.0
      %990 = vmatprep.subr.mxu0 0.0
      %991 = vmatpush2.msra.mxu0 0.0
      %992 = vmatprep.subr.mxu0 0.0
      %993 = vmatpush2.msra.mxu0 0.0
      %994 = vmatprep.subr.mxu0 0.0
      %995 = vmatpush2.msra.mxu0 0.0
      %996 = vmatprep.subr.mxu0 0.0
      %997 = vmatpush2.msra.mxu0 0.0
      %998 = vmatprep.mubr.f32.mxu0 0.0
      %999 = vmatmul.mubr.f32.gmra.mxu0 %v929
      %v1000 = vpop.f32.mrf.mxu0
      %v1001 = vadd.f32 %v623, %v1000
      %v1002 = vpop.f32.mrf.mxu0
      %1003 = vmatprep.mubr.f32.mxu0 0.0
      %1004 = vmatmul.mubr.f32.gmra.mxu0 %v932
      %v1005 = vpop.f32.mrf.mxu0
      %v1006 = vadd.f32 %v623, %v1005
      %v1007 = vpop.f32.mrf.mxu0
      %1008 = vdwg.mxu0
      %v1009 = vmax.f32 %v1001, 0.0
      %v1010 = vmax.f32 %v1006, 0.0
      %v1012 = vsel %vm624, %v1009, 0
      %v1015 = vsel %vm624, %v1010, 0
      %1017 = vmatprep.subr.mxu0 0.0
      %1018 = vmatpush1.msra.mxu0 0.0
      %1019 = vmatprep.subr.mxu0 0.0
      %1020 = vmatpush1.msra.mxu0 0.0
      %1021 = vmatprep.subr.mxu0 0.0
      %1022 = vmatpush1.msra.mxu0 0.0
      %1023 = vmatprep.subr.mxu0 0.0
      %1024 = vmatpush1.msra.mxu0 0.0
      %1025 = vmatprep.subr.mxu0 0.0
      %1026 = vmatpush1.msra.mxu0 0.0
      %1027 = vmatprep.subr.mxu0 0.0
      %1028 = vmatpush1.msra.mxu0 0.0
      %1029 = vmatprep.subr.mxu0 0.0
      %1030 = vmatpush1.msra.mxu0 0.0
      %1031 = vmatprep.subr.mxu0 0.0
      %1032 = vmatpush1.msra.mxu0 0.0
      %1033 = vmatprep.subr.mxu0 0.0
      %1034 = vmatpush1.msra.mxu0 0.0
      %1035 = vmatprep.subr.mxu0 0.0
      %1036 = vmatpush1.msra.mxu0 0.0
      %1037 = vmatprep.subr.mxu0 0.0
      %1038 = vmatpush1.msra.mxu0 0.0
      %1039 = vmatprep.subr.mxu0 0.0
      %1040 = vmatpush1.msra.mxu0 0.0
      %1041 = vmatprep.subr.mxu0 0.0
      %1042 = vmatpush1.msra.mxu0 %v387
      %1043 = vmatprep.subr.mxu0 0.0
      %1044 = vmatpush1.msra.mxu0 %v386
      %1045 = vmatprep.subr.mxu0 0.0
      %1046 = vmatpush1.msra.mxu0 %v385
      %1047 = vmatprep.subr.mxu0 0.0
      %1048 = vmatpush1.msra.mxu0 %v384
      %1049 = vmatprep.subr.mxu0 0.0
      %1050 = vmatpush2.msra.mxu0 0.0
      %1051 = vmatprep.subr.mxu0 0.0
      %1052 = vmatpush2.msra.mxu0 0.0
      %1053 = vmatprep.subr.mxu0 0.0
      %1054 = vmatpush2.msra.mxu0 0.0
      %1055 = vmatprep.subr.mxu0 0.0
      %1056 = vmatpush2.msra.mxu0 0.0
      %1057 = vmatprep.subr.mxu0 0.0
      %1058 = vmatpush2.msra.mxu0 0.0
      %1059 = vmatprep.subr.mxu0 0.0
      %1060 = vmatpush2.msra.mxu0 0.0
      %1061 = vmatprep.subr.mxu0 0.0
      %1062 = vmatpush2.msra.mxu0 0.0
      %1063 = vmatprep.subr.mxu0 0.0
      %1064 = vmatpush2.msra.mxu0 0.0
      %1065 = vmatprep.subr.mxu0 0.0
      %1066 = vmatpush2.msra.mxu0 0.0
      %1067 = vmatprep.subr.mxu0 0.0
      %1068 = vmatpush2.msra.mxu0 0.0
      %1069 = vmatprep.subr.mxu0 0.0
      %1070 = vmatpush2.msra.mxu0 0.0
      %1071 = vmatprep.subr.mxu0 0.0
      %1072 = vmatpush2.msra.mxu0 0.0
      %1073 = vmatprep.subr.mxu0 0.0
      %1074 = vmatpush2.msra.mxu0 0.0
      %1075 = vmatprep.subr.mxu0 0.0
      %1076 = vmatpush2.msra.mxu0 0.0
      %1077 = vmatprep.subr.mxu0 0.0
      %1078 = vmatpush2.msra.mxu0 0.0
      %1079 = vmatprep.subr.mxu0 0.0
      %1080 = vmatpush2.msra.mxu0 0.0
      %1081 = vmatprep.mubr.f32.mxu0 0.0
      %1082 = vmatmul.mubr.f32.gmra.mxu0 %v1012
      %v1083 = vpop.f32.mrf.mxu0
      %v1084 = vadd.f32 %v711, %v1083
      %v1085 = vpop.f32.mrf.mxu0
      %1086 = vmatprep.mubr.f32.mxu0 0.0
      %1087 = vmatmul.mubr.f32.gmra.mxu0 %v1015
      %v1088 = vpop.f32.mrf.mxu0
      %v1089 = vadd.f32 %v711, %v1088
      %v1090 = vpop.f32.mrf.mxu0
      %1091 = vdwg.mxu0
      %v1092 = vadd.f32 %v793, %v1084
      %v1093 = vadd.f32 %v794, %v1089
      %v1094 = vsel %vm486, %v837, inf
      %1095 = vmin.xlane.f32.xlu0 %v1094
      %v1096 = vpop.xlane.xlu0 %1095
      %v1097 = vsel %vm486, %v838, inf
      %1098 = vmin.xlane.f32.xlu0 %v1097
      %v1099 = vpop.xlane.xlu0 %1098
      %vm1100 = vcmp.le.f32.partialorder %v837, %v1096
      %vm1101 = vcmp.le.f32.partialorder %v838, %v1099
      %v1102 = vsel %vm1100, %v485, 48
      %v1103 = vsel %vm1101, %v485, 48
      %v1104 = vsel %vm486, %v1102, 2147483647
      %v1105 = vand.u32 %v1104, 65535
      %v1106 = vshra.s32 %v1104, 16
      %v1107 = vcvt.s32.f32 %v1105
      %v1108 = vcvt.s32.f32 %v1106
      %1109 = vmin.xlane.f32.xlu0 %v1108
      %v1110 = vpop.xlane.xlu0 %1109
      %vm1111 = vcmp.eq.f32.partialorder %v1108, %v1110
      %v1112 = vsel %vm1111, %v1107, inf
      %1113 = vmin.xlane.f32.xlu0 %v1112
      %v1114 = vpop.xlane.xlu0 %1113
      %v1115 = vcvt.f32.s32 %v1114
      %v1116 = vcvt.f32.s32 %v1110
      %v1117 = vshll.u32 %v1116, 16
      %v1118 = vadd.s32 %v1117, %v1115
      %v1119 = vsel %vm486, %v1103, 2147483647
      %v1120 = vand.u32 %v1119, 65535
      %v1121 = vshra.s32 %v1119, 16
      %v1122 = vcvt.s32.f32 %v1120
      %v1123 = vcvt.s32.f32 %v1121
      %1124 = vmin.xlane.f32.xlu0 %v1123
      %v1125 = vpop.xlane.xlu0 %1124
      %vm1126 = vcmp.eq.f32.partialorder %v1123, %v1125
      %v1127 = vsel %vm1126, %v1122, inf
      %1128 = vmin.xlane.f32.xlu0 %v1127
      %v1129 = vpop.xlane.xlu0 %1128
      %v1130 = vcvt.f32.s32 %v1129
      %v1131 = vcvt.f32.s32 %v1125
      %v1132 = vshll.u32 %v1131, 16
      %v1133 = vadd.s32 %v1132, %v1130
      %vm1134 = vcmp.eq.s32.totalorder %v485, %v1118
      %vm1135 = vcmp.eq.s32.totalorder %v485, %v1133
      %v1136 = vsel %vm1134, 1, 0
      %v1137 = vsel %vm1135, 1, 0
      %v1138 = vcvt.s32.f32 %v1136
      %v1139 = vcvt.s32.f32 %v1137
      %v1141 = vsel %vm486, %v1138, 0
      %v1144 = vsel %vm486, %v1139, 0
      %1146 = vmatprep.subr.mxu0 0.0
      %1147 = vmatpush1.msra.mxu0 0.0
      %1148 = vmatprep.subr.mxu0 0.0
      %1149 = vmatpush1.msra.mxu0 0.0
      %1150 = vmatprep.subr.mxu0 0.0
      %1151 = vmatpush1.msra.mxu0 0.0
      %1152 = vmatprep.subr.mxu0 0.0
      %1153 = vmatpush1.msra.mxu0 0.0
      %1154 = vmatprep.subr.mxu0 0.0
      %1155 = vmatpush1.msra.mxu0 0.0
      %1156 = vmatprep.subr.mxu0 0.0
      %1157 = vmatpush1.msra.mxu0 0.0
      %1158 = vmatprep.subr.mxu0 0.0
      %1159 = vmatpush1.msra.mxu0 0.0
      %1160 = vmatprep.subr.mxu0 0.0
      %1161 = vmatpush1.msra.mxu0 0.0
      %1162 = vmatprep.subr.mxu0 0.0
      %1163 = vmatpush1.msra.mxu0 0.0
      %1164 = vmatprep.subr.mxu0 0.0
      %1165 = vmatpush1.msra.mxu0 0.0
      %1166 = vmatprep.subr.mxu0 0.0
      %1167 = vmatpush1.msra.mxu0 %v378
      %1168 = vmatprep.subr.mxu0 0.0
      %1169 = vmatpush1.msra.mxu0 %v377
      %1170 = vmatprep.subr.mxu0 0.0
      %1171 = vmatpush1.msra.mxu0 %v376
      %1172 = vmatprep.subr.mxu0 0.0
      %1173 = vmatpush1.msra.mxu0 %v375
      %1174 = vmatprep.subr.mxu0 0.0
      %1175 = vmatpush1.msra.mxu0 %v374
      %1176 = vmatprep.subr.mxu0 0.0
      %1177 = vmatpush1.msra.mxu0 %v373
      %1178 = vmatprep.subr.mxu0 0.0
      %1179 = vmatpush2.msra.mxu0 0.0
      %1180 = vmatprep.subr.mxu0 0.0
      %1181 = vmatpush2.msra.mxu0 0.0
      %1182 = vmatprep.subr.mxu0 0.0
      %1183 = vmatpush2.msra.mxu0 0.0
      %1184 = vmatprep.subr.mxu0 0.0
      %1185 = vmatpush2.msra.mxu0 0.0
      %1186 = vmatprep.subr.mxu0 0.0
      %1187 = vmatpush2.msra.mxu0 0.0
      %1188 = vmatprep.subr.mxu0 0.0
      %1189 = vmatpush2.msra.mxu0 0.0
      %1190 = vmatprep.subr.mxu0 0.0
      %1191 = vmatpush2.msra.mxu0 0.0
      %1192 = vmatprep.subr.mxu0 0.0
      %1193 = vmatpush2.msra.mxu0 0.0
      %1194 = vmatprep.subr.mxu0 0.0
      %1195 = vmatpush2.msra.mxu0 0.0
      %1196 = vmatprep.subr.mxu0 0.0
      %1197 = vmatpush2.msra.mxu0 0.0
      %1198 = vmatprep.subr.mxu0 0.0
      %1199 = vmatpush2.msra.mxu0 0.0
      %1200 = vmatprep.subr.mxu0 0.0
      %1201 = vmatpush2.msra.mxu0 0.0
      %1202 = vmatprep.subr.mxu0 0.0
      %1203 = vmatpush2.msra.mxu0 0.0
      %1204 = vmatprep.subr.mxu0 0.0
      %1205 = vmatpush2.msra.mxu0 0.0
      %1206 = vmatprep.subr.mxu0 0.0
      %1207 = vmatpush2.msra.mxu0 0.0
      %1208 = vmatprep.subr.mxu0 0.0
      %1209 = vmatpush2.msra.mxu0 0.0
      %1210 = vmatprep.mubr.f32.mxu0 0.0
      %1211 = vmatmul.mubr.f32.gmra.mxu0 %v1141
      %v1212 = vpop.f32.mrf.mxu0
      %v1213 = vadd.f32 0.0, %v1212
      %v1214 = vpop.f32.mrf.mxu0
      %1215 = vmatprep.mubr.f32.mxu0 0.0
      %1216 = vmatmul.mubr.f32.gmra.mxu0 %v1144
      %v1217 = vpop.f32.mrf.mxu0
      %v1218 = vadd.f32 0.0, %v1217
      %v1219 = vpop.f32.mrf.mxu0
      %1220 = vdwg.mxu0
      %v1221 = vadd.f32 %v355, %v1213
      %v1222 = vadd.f32 %v356, %v1218
      %v1223 = vmax.f32 %v1221, 0.0
      %v1224 = vmax.f32 %v1222, 0.0
      %v1226 = vsel %vm624, %v1223, 0
      %v1229 = vsel %vm624, %v1224, 0
      %1231 = vmatprep.subr.mxu0 0.0
      %1232 = vmatpush1.msra.mxu0 0.0
      %1233 = vmatprep.subr.mxu0 0.0
      %1234 = vmatpush1.msra.mxu0 0.0
      %1235 = vmatprep.subr.mxu0 0.0
      %1236 = vmatpush1.msra.mxu0 0.0
      %1237 = vmatprep.subr.mxu0 0.0
      %1238 = vmatpush1.msra.mxu0 0.0
      %1239 = vmatprep.subr.mxu0 0.0
      %1240 = vmatpush1.msra.mxu0 0.0
      %1241 = vmatprep.subr.mxu0 0.0
      %1242 = vmatpush1.msra.mxu0 0.0
      %1243 = vmatprep.subr.mxu0 0.0
      %1244 = vmatpush1.msra.mxu0 0.0
      %1245 = vmatprep.subr.mxu0 0.0
      %1246 = vmatpush1.msra.mxu0 0.0
      %1247 = vmatprep.subr.mxu0 0.0
      %1248 = vmatpush1.msra.mxu0 0.0
      %1249 = vmatprep.subr.mxu0 0.0
      %1250 = vmatpush1.msra.mxu0 0.0
      %1251 = vmatprep.subr.mxu0 0.0
      %1252 = vmatpush1.msra.mxu0 0.0
      %1253 = vmatprep.subr.mxu0 0.0
      %1254 = vmatpush1.msra.mxu0 0.0
      %1255 = vmatprep.subr.mxu0 0.0
      %1256 = vmatpush1.msra.mxu0 %v382
      %1257 = vmatprep.subr.mxu0 0.0
      %1258 = vmatpush1.msra.mxu0 %v381
      %1259 = vmatprep.subr.mxu0 0.0
      %1260 = vmatpush1.msra.mxu0 %v380
      %1261 = vmatprep.subr.mxu0 0.0
      %1262 = vmatpush1.msra.mxu0 %v379
      %1263 = vmatprep.subr.mxu0 0.0
      %1264 = vmatpush2.msra.mxu0 0.0
      %1265 = vmatprep.subr.mxu0 0.0
      %1266 = vmatpush2.msra.mxu0 0.0
      %1267 = vmatprep.subr.mxu0 0.0
      %1268 = vmatpush2.msra.mxu0 0.0
      %1269 = vmatprep.subr.mxu0 0.0
      %1270 = vmatpush2.msra.mxu0 0.0
      %1271 = vmatprep.subr.mxu0 0.0
      %1272 = vmatpush2.msra.mxu0 0.0
      %1273 = vmatprep.subr.mxu0 0.0
      %1274 = vmatpush2.msra.mxu0 0.0
      %1275 = vmatprep.subr.mxu0 0.0
      %1276 = vmatpush2.msra.mxu0 0.0
      %1277 = vmatprep.subr.mxu0 0.0
      %1278 = vmatpush2.msra.mxu0 0.0
      %1279 = vmatprep.subr.mxu0 0.0
      %1280 = vmatpush2.msra.mxu0 0.0
      %1281 = vmatprep.subr.mxu0 0.0
      %1282 = vmatpush2.msra.mxu0 0.0
      %1283 = vmatprep.subr.mxu0 0.0
      %1284 = vmatpush2.msra.mxu0 0.0
      %1285 = vmatprep.subr.mxu0 0.0
      %1286 = vmatpush2.msra.mxu0 0.0
      %1287 = vmatprep.subr.mxu0 0.0
      %1288 = vmatpush2.msra.mxu0 0.0
      %1289 = vmatprep.subr.mxu0 0.0
      %1290 = vmatpush2.msra.mxu0 0.0
      %1291 = vmatprep.subr.mxu0 0.0
      %1292 = vmatpush2.msra.mxu0 0.0
      %1293 = vmatprep.subr.mxu0 0.0
      %1294 = vmatpush2.msra.mxu0 0.0
      %1295 = vmatprep.mubr.f32.mxu0 0.0
      %1296 = vmatmul.mubr.f32.gmra.mxu0 %v1226
      %v1297 = vpop.f32.mrf.mxu0
      %v1298 = vadd.f32 %v623, %v1297
      %v1299 = vpop.f32.mrf.mxu0
      %1300 = vmatprep.mubr.f32.mxu0 0.0
      %1301 = vmatmul.mubr.f32.gmra.mxu0 %v1229
      %v1302 = vpop.f32.mrf.mxu0
      %v1303 = vadd.f32 %v623, %v1302
      %v1304 = vpop.f32.mrf.mxu0
      %1305 = vdwg.mxu0
      %v1306 = vmax.f32 %v1298, 0.0
      %v1307 = vmax.f32 %v1303, 0.0
      %v1309 = vsel %vm624, %v1306, 0
      %v1312 = vsel %vm624, %v1307, 0
      %1314 = vmatprep.subr.mxu0 0.0
      %1315 = vmatpush1.msra.mxu0 0.0
      %1316 = vmatprep.subr.mxu0 0.0
      %1317 = vmatpush1.msra.mxu0 0.0
      %1318 = vmatprep.subr.mxu0 0.0
      %1319 = vmatpush1.msra.mxu0 0.0
      %1320 = vmatprep.subr.mxu0 0.0
      %1321 = vmatpush1.msra.mxu0 0.0
      %1322 = vmatprep.subr.mxu0 0.0
      %1323 = vmatpush1.msra.mxu0 0.0
      %1324 = vmatprep.subr.mxu0 0.0
      %1325 = vmatpush1.msra.mxu0 0.0
      %1326 = vmatprep.subr.mxu0 0.0
      %1327 = vmatpush1.msra.mxu0 0.0
      %1328 = vmatprep.subr.mxu0 0.0
      %1329 = vmatpush1.msra.mxu0 0.0
      %1330 = vmatprep.subr.mxu0 0.0
      %1331 = vmatpush1.msra.mxu0 0.0
      %1332 = vmatprep.subr.mxu0 0.0
      %1333 = vmatpush1.msra.mxu0 0.0
      %1334 = vmatprep.subr.mxu0 0.0
      %1335 = vmatpush1.msra.mxu0 0.0
      %1336 = vmatprep.subr.mxu0 0.0
      %1337 = vmatpush1.msra.mxu0 0.0
      %1338 = vmatprep.subr.mxu0 0.0
      %1339 = vmatpush1.msra.mxu0 %v387
      %1340 = vmatprep.subr.mxu0 0.0
      %1341 = vmatpush1.msra.mxu0 %v386
      %1342 = vmatprep.subr.mxu0 0.0
      %1343 = vmatpush1.msra.mxu0 %v385
      %1344 = vmatprep.subr.mxu0 0.0
      %1345 = vmatpush1.msra.mxu0 %v384
      %1346 = vmatprep.subr.mxu0 0.0
      %1347 = vmatpush2.msra.mxu0 0.0
      %1348 = vmatprep.subr.mxu0 0.0
      %1349 = vmatpush2.msra.mxu0 0.0
      %1350 = vmatprep.subr.mxu0 0.0
      %1351 = vmatpush2.msra.mxu0 0.0
      %1352 = vmatprep.subr.mxu0 0.0
      %1353 = vmatpush2.msra.mxu0 0.0
      %1354 = vmatprep.subr.mxu0 0.0
      %1355 = vmatpush2.msra.mxu0 0.0
      %1356 = vmatprep.subr.mxu0 0.0
      %1357 = vmatpush2.msra.mxu0 0.0
      %1358 = vmatprep.subr.mxu0 0.0
      %1359 = vmatpush2.msra.mxu0 0.0
      %1360 = vmatprep.subr.mxu0 0.0
      %1361 = vmatpush2.msra.mxu0 0.0
      %1362 = vmatprep.subr.mxu0 0.0
      %1363 = vmatpush2.msra.mxu0 0.0
      %1364 = vmatprep.subr.mxu0 0.0
      %1365 = vmatpush2.msra.mxu0 0.0
      %1366 = vmatprep.subr.mxu0 0.0
      %1367 = vmatpush2.msra.mxu0 0.0
      %1368 = vmatprep.subr.mxu0 0.0
      %1369 = vmatpush2.msra.mxu0 0.0
      %1370 = vmatprep.subr.mxu0 0.0
      %1371 = vmatpush2.msra.mxu0 0.0
      %1372 = vmatprep.subr.mxu0 0.0
      %1373 = vmatpush2.msra.mxu0 0.0
      %1374 = vmatprep.subr.mxu0 0.0
      %1375 = vmatpush2.msra.mxu0 0.0
      %1376 = vmatprep.subr.mxu0 0.0
      %1377 = vmatpush2.msra.mxu0 0.0
      %1378 = vmatprep.mubr.f32.mxu0 0.0
      %1379 = vmatmul.mubr.f32.gmra.mxu0 %v1309
      %v1380 = vpop.f32.mrf.mxu0
      %v1381 = vadd.f32 %v711, %v1380
      %v1382 = vpop.f32.mrf.mxu0
      %1383 = vmatprep.mubr.f32.mxu0 0.0
      %1384 = vmatmul.mubr.f32.gmra.mxu0 %v1312
      %v1385 = vpop.f32.mrf.mxu0
      %v1386 = vadd.f32 %v711, %v1385
      %v1387 = vpop.f32.mrf.mxu0
      %1388 = vdwg.mxu0
      %v1389 = vadd.f32 %v1092, %v1381
      %v1390 = vadd.f32 %v1093, %v1386
      %v1391 = vmul.f32 %v1389, 0.33333334
      %v1392 = vmul.f32 %v1390, 0.33333334
      %1393 = vst.msk [vmem:[%s351] sm:$0xff] %vm390, %v1391
      %1394 = vst.msk [vmem:[%s351 + $0x8] sm:$0xff] %vm390, %v1392
      %s1395 = smul.u32 2, %s19
      %p1396 = scmp.lt.s32.totalorder %s1395, 5
      %s1397 = scalar_select %p1396, %s1395, 5
      %s1398 = smul.addr %s1397, 8
      %s1399 = scalar_lea.vmem %s8, %s1398
      // Predicated region
      $region53: #{_forward.3} parent=51 // pred_check
        %p1400 = pneg %p220
      $region54: #{_forward.3} parent=51 // pred_check_branch
        %1402 = sbr.rel (%p1400) target = $region56
      $region55: #{_forward.3} parent=51 // pred_region
        %s1403 = smul.u32 2, %s19
      $region56: #{_forward.3} parent=51 // pred_fallthru
        _
    $region52: #{_forward.3} parent=5 // pred_fallthru
      _
    %p1404 = scmp.le.s32.totalorder 2, %s14
    // Predicated region
    $region57: #{_forward.3} parent=5 // pred_check
      %p1405 = pneg %p1404
    $region58: #{_forward.3} parent=5 // pred_check_branch
      %1407 = sbr.rel (%p1405) target = $region60
    $region59: #{_forward.3} parent=5 // pred_region
      %s1408 = ssub.s32 %s14, 2
      // Predicated region
      $region61: #{_forward.3} parent=59 // pred_check
        %p1409 = pneg %p226
      $region62: #{_forward.3} parent=59 // pred_check_branch
        %1411 = sbr.rel (%p1409) target = $region64
      $region63: #{_forward.3} parent=59 // pred_region
        %s1412 = smul.u32 2, %s20
        %p1413 = scmp.lt.s32.totalorder %s1412, 5
        %s1414 = scalar_select %p1413, %s1412, 5
        %s1415 = smul.addr %s1414, 8
        %s1416 = scalar_lea.vmem %s8, %s1415
      $region64: #{_forward.3} parent=59 // pred_fallthru
        _
    $region60: #{_forward.3} parent=5 // pred_fallthru
      _
  $region6: #{_forward.3} parent=0 // loop_footer
    %s18 = sadd.s32 1, %s14
  $region7: #{_forward.3} parent=0 // loop_footer_branch
    %13 = sbr.rel target = $region3
  $region8: #{_forward.3} parent=0 // loop_exit
    _

</llo_original>
